<compile_context>
chip_gen: v5e
topology: v5e:2x2
jax: 0.10.0
libtpu: 0.0.40
codegen_flags: <defaults>
</compile_context>

<pallas_src>
import functools
import math

import jax
import jax.numpy as jnp
from jax.experimental import pallas as pl
from jax.experimental.pallas import tpu as pltpu


# ----------------------------------------------------------------------------
# helpers
# ----------------------------------------------------------------------------
def _gelu(x):
    # TODO(synk): PyTorch nn.GELU defaults to the exact erf form; the tanh
    # approximation is used here for robust Mosaic lowering.
    c = math.sqrt(2.0 / math.pi)
    return 0.5 * x * (1.0 + jnp.tanh(c * (x + 0.044715 * x * x * x)))


def _row_tile(r):
    # largest row tile <= 512 that divides r (keeps blocks (8,128)-friendly
    # without host-side padding); fall back to the full extent.
    for t in (512, 256, 128, 64, 32, 16, 8):
        if r % t == 0:
            return t
    return r


def _n_tile(n):
    # source-point tile: last block dim must be a multiple of 128 or the full
    # extent.
    for t in (512, 256, 128):
        if n % t == 0:
            return t
    return n


# ----------------------------------------------------------------------------
# Kernel 1: fused Linear -> folded BatchNorm affine -> optional GELU
#           (row-tiled, bf16 MXU operands, f32 accumulation)
# ----------------------------------------------------------------------------
def _linear_kernel(x_ref, w_ref, scale_ref, shift_ref, o_ref, *, act):
    x = x_ref[...].astype(jnp.bfloat16)
    w = w_ref[...].astype(jnp.bfloat16)
    y = jnp.dot(x, w, preferred_element_type=jnp.float32)
    y = y * scale_ref[...] + shift_ref[...]
    if act == "gelu":
        y = _gelu(y)
    o_ref[...] = y.astype(o_ref.dtype)


def fused_linear(x, w, scale, shift, act="none"):
    # x: (R, Cin), w: (Cin, Cout), scale/shift: (1, Cout)
    R, Cin = x.shape
    Cout = w.shape[1]
    TR = _row_tile(R)
    # TODO(synk): Cout < 128 layers (32/64/40-wide) still use masked partial
    # stores; padding Cout to 128 would make the store path lane-dense.
    return pl.pallas_call(
        functools.partial(_linear_kernel, act=act),
        out_shape=jax.ShapeDtypeStruct((R, Cout), jnp.float32),
        grid=(R // TR,),
        in_specs=[
            pl.BlockSpec((TR, Cin), lambda i: (i, 0)),
            pl.BlockSpec((Cin, Cout), lambda i: (0, 0)),
            pl.BlockSpec((1, Cout), lambda i: (0, 0)),
            pl.BlockSpec((1, Cout), lambda i: (0, 0)),
        ],
        out_specs=pl.BlockSpec((TR, Cout), lambda i: (i, 0)),
        compiler_params=pltpu.CompilerParams(dimension_semantics=("parallel",)),
    )(x, w, scale, shift)


# ----------------------------------------------------------------------------
# Kernel 2: fully fused diffConv stage
#   grid = (B, pass, N_tile)
#     pass 0: accumulate local density (count of base-ball neighbors)
#     pass 1: q/k projections + masked online-softmax aggregation over N tiles
#             + fused output Conv1x1 (W split into W_var / W_c) + BN + GELU
# ----------------------------------------------------------------------------
def _diffconv_kernel(cxyz_ref, xyzt_ref, cfeat_ref, feat_ref,
                     wq_ref, wk_ref, wvar_ref, wc_ref, scale_ref, shift_ref,
                     o_ref,
                     dens_sc, m_sc, l_sc, acc_sc, q_sc,
                     *, base_r2, n_total, inv_sqrt_c):
    p = pl.program_id(1)
    nt = pl.program_id(2)
    last_nt = pl.num_programs(2) - 1

    cxyz = cxyz_ref[0]          # (M, 3)   sampled centers
    xyzt = xyzt_ref[0]          # (3, TN)  source points (pre-transposed)

    # pairwise squared distances on the VPU (no K=3 MXU pass):
    # dist = |c|^2 + |x|^2 - 2 c.x
    d_c = jnp.sum(cxyz * cxyz, axis=-1, keepdims=True)            # (M, 1)
    d_x = jnp.sum(xyzt * xyzt, axis=0, keepdims=True)             # (1, TN)
    cross = (cxyz[:, 0:1] * xyzt[0:1, :] +
             cxyz[:, 1:2] * xyzt[1:2, :] +
             cxyz[:, 2:3] * xyzt[2:3, :])                         # (M, TN)
    dist = jnp.maximum(d_c + d_x - 2.0 * cross, 0.0)              # (M, TN)

    # ---------------- pass 0: density accumulation ----------------
    @pl.when(jnp.logical_and(p == 0, nt == 0))
    def _():
        dens_sc[...] = jnp.zeros_like(dens_sc)

    @pl.when(p == 0)
    def _():
        dens_sc[...] += jnp.sum((dist < base_r2).astype(jnp.float32),
                                axis=-1, keepdims=True)

    # ---------------- pass 1: masked online-softmax attention ----------------
    @pl.when(jnp.logical_and(p == 1, nt == 0))
    def _():
        m_sc[...] = jnp.full_like(m_sc, -1e30)
        l_sc[...] = jnp.zeros_like(l_sc)
        acc_sc[...] = jnp.zeros_like(acc_sc)
        # fused query projection (bf16 MXU operands, f32 accumulation),
        # 1/sqrt(C) folded into q
        q = jax.lax.dot_general(
            cfeat_ref[0].astype(jnp.bfloat16), wq_ref[...].astype(jnp.bfloat16),
            (((1,), (0,)), ((), ())), preferred_element_type=jnp.float32)
        q_sc[...] = (q * inv_sqrt_c).astype(jnp.bfloat16)

    @pl.when(p == 1)
    def _():
        feat = feat_ref[0]                                        # (TN, C)
        k = jax.lax.dot_general(
            feat.astype(jnp.bfloat16), wk_ref[...].astype(jnp.bfloat16),
            (((1,), (0,)), ((), ())), preferred_element_type=jnp.float32)

        # density-dilated ball query (squared radius grows with local density)
        density = dens_sc[...] * (1.0 / n_total)                  # (M, 1)
        r2 = base_r2 * (1.0 + density)
        mask = dist < r2                                          # (M, TN)

        logits = jax.lax.dot_general(
            q_sc[...], k.astype(jnp.bfloat16),
            (((1,), (1,)), ((), ())), preferred_element_type=jnp.float32)
        logits = jnp.where(mask, logits, jnp.float32(-1e30))
        m_new = jnp.maximum(m_sc[...], jnp.max(logits, axis=-1, keepdims=True))
        alpha = jnp.exp(m_sc[...] - m_new)
        # masked lanes already hold -1e30 -> exp underflows to 0 once any real
        # neighbor has been seen; earlier bogus mass is wiped by alpha -> 0.
        pmat = jnp.exp(logits - m_new)
        l_sc[...] = alpha * l_sc[...] + jnp.sum(pmat, axis=-1, keepdims=True)
        acc_sc[...] = alpha * acc_sc[...] + jax.lax.dot_general(
            pmat.astype(jnp.bfloat16), feat.astype(jnp.bfloat16),
            (((1,), (0,)), ((), ())), preferred_element_type=jnp.float32)
        m_sc[...] = m_new

    # ---------------- finalize: fused output Conv1x1 + BN + GELU -------------
    @pl.when(jnp.logical_and(p == 1, nt == last_nt))
    def _():
        cfeat = cfeat_ref[0]                                      # (M, C)
        smoothed = acc_sc[...] * pl.reciprocal(l_sc[...], approx=True)
        variation = (smoothed - cfeat).astype(jnp.bfloat16)
        out = jax.lax.dot_general(
            variation, wvar_ref[...].astype(jnp.bfloat16),
            (((1,), (0,)), ((), ())), preferred_element_type=jnp.float32)
        out += jax.lax.dot_general(
            cfeat.astype(jnp.bfloat16), wc_ref[...].astype(jnp.bfloat16),
            (((1,), (0,)), ((), ())), preferred_element_type=jnp.float32)
        out = out * scale_ref[...] + shift_ref[...]
        o_ref[0] = _gelu(out).astype(o_ref.dtype)


def diffconv_fused(cxyz, xyz, cfeat, feat, wq, wk, w_var, w_c, scale, shift,
                   base_r2):
    B, M, _ = cxyz.shape
    N = xyz.shape[1]
    C = feat.shape[-1]
    Cout = w_var.shape[1]
    TN = _n_tile(N)
    xyz_t = jnp.transpose(xyz, (0, 2, 1))          # (B, 3, N) host-side glue

    kernel = functools.partial(_diffconv_kernel,
                               base_r2=float(base_r2),
                               n_total=float(N),
                               inv_sqrt_c=1.0 / math.sqrt(C))
    return pl.pallas_call(
        kernel,
        out_shape=jax.ShapeDtypeStruct((B, M, Cout), jnp.float32),
        grid=(B, 2, N // TN),
        in_specs=[
            pl.BlockSpec((1, M, 3), lambda b, p, n: (b, 0, 0)),
            pl.BlockSpec((1, 3, TN), lambda b, p, n: (b, 0, n)),
            pl.BlockSpec((1, M, C), lambda b, p, n: (b, 0, 0)),
            pl.BlockSpec((1, TN, C), lambda b, p, n: (b, n, 0)),
            pl.BlockSpec((C, C), lambda b, p, n: (0, 0)),
            pl.BlockSpec((C, C), lambda b, p, n: (0, 0)),
            pl.BlockSpec((C, Cout), lambda b, p, n: (0, 0)),
            pl.BlockSpec((C, Cout), lambda b, p, n: (0, 0)),
            pl.BlockSpec((1, Cout), lambda b, p, n: (0, 0)),
            pl.BlockSpec((1, Cout), lambda b, p, n: (0, 0)),
        ],
        out_specs=pl.BlockSpec((1, M, Cout), lambda b, p, n: (b, 0, 0)),
        scratch_shapes=[
            pltpu.VMEM((M, 1), jnp.float32),    # density (neighbor count)
            pltpu.VMEM((M, 1), jnp.float32),    # running softmax max
            pltpu.VMEM((M, 1), jnp.float32),    # running softmax denom
            pltpu.VMEM((M, C), jnp.float32),    # running weighted-value acc
            pltpu.VMEM((M, C), jnp.bfloat16),   # pre-scaled queries
        ],
        compiler_params=pltpu.CompilerParams(
            dimension_semantics=("parallel", "arbitrary", "arbitrary")),
    )(cxyz, xyz_t, cfeat, feat, wq, wk, w_var, w_c, scale, shift)


# ----------------------------------------------------------------------------
# Kernel 3: global max + mean pooling over the point axis (per-batch grid)
# ----------------------------------------------------------------------------
def _pool_kernel(x_ref, mx_ref, mn_ref):
    x = x_ref[0]                                   # (M, E)
    mx_ref[0] = jnp.max(x, axis=0, keepdims=True)
    mn_ref[0] = jnp.mean(x, axis=0, keepdims=True)


def global_pool(x):
    B, M, E = x.shape
    mx, mn = pl.pallas_call(
        _pool_kernel,
        out_shape=(jax.ShapeDtypeStruct((B, 1, E), jnp.float32),
                   jax.ShapeDtypeStruct((B, 1, E), jnp.float32)),
        grid=(B,),
        in_specs=[pl.BlockSpec((1, M, E), lambda b: (b, 0, 0))],
        out_specs=(pl.BlockSpec((1, 1, E), lambda b: (b, 0, 0)),
                   pl.BlockSpec((1, 1, E), lambda b: (b, 0, 0))),
        compiler_params=pltpu.CompilerParams(dimension_semantics=("parallel",)),
    )(x)
    return mx[:, 0], mn[:, 0]


# ----------------------------------------------------------------------------
# module application (plain-JAX glue around the kernels)
# ----------------------------------------------------------------------------
def conv1x1_apply(params, x, act="gelu"):
    # Conv1x1 = Linear + BatchNorm1d (eval, folded to affine) + GELU
    w, scale, shift = params
    B, N, Cin = x.shape
    y = fused_linear(x.reshape(B * N, Cin), w, scale, shift, act=act)
    return y.reshape(B, N, -1)


def diffconv_apply(params, feat, xyz, point_num, base_radius):
    B, N, C = feat.shape
    M = point_num
    # TODO(synk): upstream diffConv down-samples with farthest/random point
    # sampling; deterministic prefix sampling is used here.
    new_xyz = xyz[:, :M]
    new_feat = feat[:, :M]
    # TODO(synk): exact MaskedAttention formulation of the upstream repo is not
    # available; a masked query/key attention over the dilated ball is used.
    w_ker, scale, shift = params["kernel"]
    w_var, w_c = w_ker[:C], w_ker[C:]
    out = diffconv_fused(new_xyz, xyz, new_feat, feat,
                         params["wq"], params["wk"], w_var, w_c,
                         scale, shift, base_radius ** 2)   # (B, M, Cout)
    return out, new_xyz


def model_forward(params, x, radius):
    xyz = x                                 # (B, N, 3)
    B, N, _ = x.shape
    feat = conv1x1_apply(params["le"], x)                                  # (B, N, 32)
    f1, x1 = diffconv_apply(params["conv1"], feat, xyz, N, radius)         # (B, N, 64)
    f2, x2 = diffconv_apply(params["conv2"], f1, x1, N // 2, radius * 2)   # (B, N/2, 128)
    f3, x3 = diffconv_apply(params["conv3"], f2, x2, N // 4, radius * 4)   # (B, N/4, 256)
    f4, _ = diffconv_apply(params["conv4"], f3, x3, N // 8, radius * 8)    # (B, N/8, 512)
    e = conv1x1_apply(params["last"], f4)                                  # (B, N/8, emb)

    mx, mn = global_pool(e)                                                # (B, emb) x2
    h = jnp.concatenate([mx, mn], axis=1)                                  # (B, 2*emb)

    w1, s1, b1 = params["lin1"]
    h = fused_linear(h, w1, s1, b1, act="gelu")   # Linear(no bias)+BN+GELU
    # TODO(synk): nn.Dropout is identity in eval mode (omitted).
    w2, s2, b2 = params["lin2"]
    return fused_linear(h, w2, s2, b2, act="none")                         # (B, 40)


# ----------------------------------------------------------------------------
# deterministic parameter construction
# ----------------------------------------------------------------------------
def conv1x1_params(key, cin, cout):
    kw, kb = jax.random.split(key)
    w = jax.random.normal(kw, (cin, cout), jnp.float32) / math.sqrt(cin)
    b = jax.random.normal(kb, (1, cout), jnp.float32) * 0.01
    # BatchNorm1d (eval): gamma=1, beta=0, running_mean=0, running_var=1
    scale = jnp.ones((1, cout), jnp.float32)
    shift = b                               # bias folded through identity BN
    return w, scale, shift


def diff_params(key, cin, cout):
    k1, k2, k3 = jax.random.split(key, 3)
    return {
        "wq": jax.random.normal(k1, (cin, cin), jnp.float32) / math.sqrt(cin),
        "wk": jax.random.normal(k2, (cin, cin), jnp.float32) / math.sqrt(cin),
        "kernel": conv1x1_params(k3, 2 * cin, cout),
    }


def init_params(key, emb_dims=128, output_channels=40):
    init_feat = 32
    keys = jax.random.split(key, 10)
    p = {}
    p["le"] = conv1x1_params(keys[0], 3, init_feat)
    p["conv1"] = diff_params(keys[1], init_feat, init_feat * 2)
    p["conv2"] = diff_params(keys[2], init_feat * 2, init_feat * 4)
    p["conv3"] = diff_params(keys[3], init_feat * 4, init_feat * 8)
    p["conv4"] = diff_params(keys[4], init_feat * 8, init_feat * 16)
    p["last"] = conv1x1_params(keys[5], init_feat * 16, emb_dims)

    w1 = jax.random.normal(keys[6], (emb_dims * 2, 512), jnp.float32) / math.sqrt(emb_dims * 2)
    p["lin1"] = (w1, jnp.ones((1, 512), jnp.float32), jnp.zeros((1, 512), jnp.float32))
    w2 = jax.random.normal(keys[7], (512, output_channels), jnp.float32) / math.sqrt(512)
    b2 = jax.random.normal(keys[8], (1, output_channels), jnp.float32) * 0.01
    p["lin2"] = (w2, jnp.ones((1, output_channels), jnp.float32), b2)
    return p


# ----------------------------------------------------------------------------
if __name__ == "__main__":
    key = jax.random.PRNGKey(0)
    kx, kp = jax.random.split(key)

    B, N = 2, 64                     # small point cloud: 2 batches x 64 points
    x = jax.random.normal(kx, (B, N, 3), jnp.float32)
    params = init_params(kp, emb_dims=128, output_channels=40)

    fwd = jax.jit(functools.partial(model_forward, radius=0.1))
    out = fwd(params, x)
    jax.block_until_ready(out)

    assert out.shape == (B, 40), out.shape
    assert bool(jnp.all(jnp.isfinite(out)))
    print("KERNEL_OK")
</pallas_src>

<mosaic_0001>
module attributes {stable_mosaic.version = 11 : i64} {
  func.func @_linear_kernel(%arg0: i32, %arg1: memref<128x3xf32, #tpu.memory_space<vmem>>, %arg2: memref<3x32xf32, #tpu.memory_space<vmem>>, %arg3: memref<1x32xf32, #tpu.memory_space<vmem>>, %arg4: memref<1x32xf32, #tpu.memory_space<vmem>>, %arg5: memref<128x32xf32, #tpu.memory_space<vmem>>) attributes {dimension_semantics = [#tpu.dimension_semantics<parallel>], iteration_bounds = array<i64: 1>, scalar_prefetch = 0 : i64, scratch_operands = 0 : i64, tpu.core_type = #tpu.core_type<tc>, window_params = [{transform_indices = @transform_0, window_bounds = array<i64: 128, 3>}, {pipeline_mode = #tpu.pipeline_mode<synchronous>, transform_indices = @transform_1, window_bounds = array<i64: 3, 32>}, {pipeline_mode = #tpu.pipeline_mode<synchronous>, transform_indices = @transform_2, window_bounds = array<i64: 1, 32>}, {pipeline_mode = #tpu.pipeline_mode<synchronous>, transform_indices = @transform_3, window_bounds = array<i64: 1, 32>}, {transform_indices = @transform_4, window_bounds = array<i64: 128, 32>}]} {
    %c0 = arith.constant 0 : index
    %c0_0 = arith.constant 0 : index
    %0 = vector.load %arg1[%c0, %c0_0] : memref<128x3xf32, #tpu.memory_space<vmem>>, vector<128x3xf32>
    %1 = arith.truncf %0 : vector<128x3xf32> to vector<128x3xbf16>
    %c0_1 = arith.constant 0 : index
    %c0_2 = arith.constant 0 : index
    %2 = vector.load %arg2[%c0_1, %c0_2] : memref<3x32xf32, #tpu.memory_space<vmem>>, vector<3x32xf32>
    %3 = arith.truncf %2 : vector<3x32xf32> to vector<3x32xbf16>
    %cst = arith.constant dense<0.000000e+00> : vector<128x32xf32>
    %4 = tpu.matmul %1, %3, %cst {dimension_numbers = #tpu.dot_dimension_numbers<[1], [0], [0], [1], [0, 0, 1, 1], [], []>} : vector<128x3xbf16>, vector<3x32xbf16>, vector<128x32xf32> -> vector<128x32xf32>
    %c0_3 = arith.constant 0 : index
    %c0_4 = arith.constant 0 : index
    %5 = vector.load %arg3[%c0_3, %c0_4] : memref<1x32xf32, #tpu.memory_space<vmem>>, vector<1x32xf32>
    %6 = vector.broadcast %5 : vector<1x32xf32> to vector<128x32xf32>
    %7 = arith.mulf %4, %6 : vector<128x32xf32>
    %c0_5 = arith.constant 0 : index
    %c0_6 = arith.constant 0 : index
    %8 = vector.load %arg4[%c0_5, %c0_6] : memref<1x32xf32, #tpu.memory_space<vmem>>, vector<1x32xf32>
    %9 = vector.broadcast %8 : vector<1x32xf32> to vector<128x32xf32>
    %10 = arith.addf %7, %9 : vector<128x32xf32>
    %cst_7 = arith.constant 5.000000e-01 : f32
    %11 = vector.broadcast %cst_7 : f32 to vector<128x32xf32>
    %12 = arith.mulf %11, %10 : vector<128x32xf32>
    %cst_8 = arith.constant 4.471500e-02 : f32
    %13 = vector.broadcast %cst_8 : f32 to vector<128x32xf32>
    %14 = arith.mulf %13, %10 : vector<128x32xf32>
    %15 = arith.mulf %14, %10 : vector<128x32xf32>
    %16 = arith.mulf %15, %10 : vector<128x32xf32>
    %17 = arith.addf %10, %16 : vector<128x32xf32>
    %cst_9 = arith.constant 0.797884583 : f32
    %18 = vector.broadcast %cst_9 : f32 to vector<128x32xf32>
    %19 = arith.mulf %18, %17 : vector<128x32xf32>
    %20 = math.tanh %19 : vector<128x32xf32>
    %cst_10 = arith.constant 1.000000e+00 : f32
    %21 = vector.broadcast %cst_10 : f32 to vector<128x32xf32>
    %22 = arith.addf %21, %20 : vector<128x32xf32>
    %23 = arith.mulf %12, %22 : vector<128x32xf32>
    %c0_11 = arith.constant 0 : index
    %c0_12 = arith.constant 0 : index
    %24 = vector.load %arg5[%c0_11, %c0_12] : memref<128x32xf32, #tpu.memory_space<vmem>>, vector<128x32xf32>
    tpu.vector_store %arg5[%c0_11, %c0_12], %23 {strides = array<i32>} : memref<128x32xf32, #tpu.memory_space<vmem>>, vector<128x32xf32>,
    return
  }
  func.func @transform_0(%arg0: i32) -> (i32, i32) {
    %c0_i32 = arith.constant 0 : i32
    %c0_i32_0 = arith.constant 0 : i32
    return %arg0, %c0_i32 : i32, i32
  }
  func.func @transform_1(%arg0: i32) -> (i32, i32) {
    %c0_i32 = arith.constant 0 : i32
    %c0_i32_0 = arith.constant 0 : i32
    %c0_i32_1 = arith.constant 0 : i32
    return %c0_i32, %c0_i32_0 : i32, i32
  }
  func.func @transform_2(%arg0: i32) -> (i32, i32) {
    %c0_i32 = arith.constant 0 : i32
    %c0_i32_0 = arith.constant 0 : i32
    %c0_i32_1 = arith.constant 0 : i32
    return %c0_i32, %c0_i32_0 : i32, i32
  }
  func.func @transform_3(%arg0: i32) -> (i32, i32) {
    %c0_i32 = arith.constant 0 : i32
    %c0_i32_0 = arith.constant 0 : i32
    %c0_i32_1 = arith.constant 0 : i32
    return %c0_i32, %c0_i32_0 : i32, i32
  }
  func.func @transform_4(%arg0: i32) -> (i32, i32) {
    %c0_i32 = arith.constant 0 : i32
    %c0_i32_0 = arith.constant 0 : i32
    return %arg0, %c0_i32 : i32, i32
  }
}

module attributes {stable_mosaic.version = 11 : i64} {
  func.func @_diffconv_kernel(%arg0: i32, %arg1: i32, %arg2: i32, %arg3: memref<1x32x3xf32, #tpu.memory_space<vmem>>, %arg4: memref<1x3x64xf32, #tpu.memory_space<vmem>>, %arg5: memref<1x32x64xf32, #tpu.memory_space<vmem>>, %arg6: memref<1x64x64xf32, #tpu.memory_space<vmem>>, %arg7: memref<64x64xf32, #tpu.memory_space<vmem>>, %arg8: memref<64x64xf32, #tpu.memory_space<vmem>>, %arg9: memref<64x128xf32, #tpu.memory_space<vmem>>, %arg10: memref<64x128xf32, #tpu.memory_space<vmem>>, %arg11: memref<1x128xf32, #tpu.memory_space<vmem>>, %arg12: memref<1x128xf32, #tpu.memory_space<vmem>>, %arg13: memref<1x32x128xf32, #tpu.memory_space<vmem>>, %arg14: memref<32x1xf32, #tpu.memory_space<vmem>>, %arg15: memref<32x1xf32, #tpu.memory_space<vmem>>, %arg16: memref<32x1xf32, #tpu.memory_space<vmem>>, %arg17: memref<32x64xf32, #tpu.memory_space<vmem>>, %arg18: memref<32x64xbf16, #tpu.memory_space<vmem>>) attributes {dimension_semantics = [#tpu.dimension_semantics<parallel>, #tpu.dimension_semantics<arbitrary>, #tpu.dimension_semantics<arbitrary>], iteration_bounds = array<i64: 2, 2, 1>, scalar_prefetch = 0 : i64, scratch_operands = 5 : i64, tpu.core_type = #tpu.core_type<tc>, window_params = [{transform_indices = @transform_0, window_bounds = array<i64: 1, 32, 3>}, {transform_indices = @transform_1, window_bounds = array<i64: 1, 3, 64>}, {transform_indices = @transform_2, window_bounds = array<i64: 1, 32, 64>}, {transform_indices = @transform_3, window_bounds = array<i64: 1, 64, 64>}, {pipeline_mode = #tpu.pipeline_mode<synchronous>, transform_indices = @transform_4, window_bounds = array<i64: 64, 64>}, {pipeline_mode = #tpu.pipeline_mode<synchronous>, transform_indices = @transform_5, window_bounds = array<i64: 64, 64>}, {pipeline_mode = #tpu.pipeline_mode<synchronous>, transform_indices = @transform_6, window_bounds = array<i64: 64, 128>}, {pipeline_mode = #tpu.pipeline_mode<synchronous>, transform_indices = @transform_7, window_bounds = array<i64: 64, 128>}, {pipeline_mode = #tpu.pipeline_mode<synchronous>, transform_indices = @transform_8, window_bounds = array<i64: 1, 128>}, {pipeline_mode = #tpu.pipeline_mode<synchronous>, transform_indices = @transform_9, window_bounds = array<i64: 1, 128>}, {transform_indices = @transform_10, window_bounds = array<i64: 1, 32, 128>}]} {
    %c0 = arith.constant 0 : index
    %c0_0 = arith.constant 0 : index
    %c0_1 = arith.constant 0 : index
    %0 = vector.load %arg3[%c0, %c0_0, %c0_1] : memref<1x32x3xf32, #tpu.memory_space<vmem>>, vector<1x32x3xf32>
    %1 = vector.shape_cast %0 : vector<1x32x3xf32> to vector<32x3xf32>
    %c0_2 = arith.constant 0 : index
    %c0_3 = arith.constant 0 : index
    %c0_4 = arith.constant 0 : index
    %2 = vector.load %arg4[%c0_2, %c0_3, %c0_4] : memref<1x3x64xf32, #tpu.memory_space<vmem>>, vector<1x3x64xf32>
    %3 = vector.shape_cast %2 : vector<1x3x64xf32> to vector<3x64xf32>
    %4 = arith.mulf %1, %1 : vector<32x3xf32>
    %cst = arith.constant dense<0.000000e+00> : vector<32xf32>
    %5 = vector.multi_reduction <add>, %4, %cst [1] : vector<32x3xf32> to vector<32xf32>
    %6 = vector.shape_cast %5 : vector<32xf32> to vector<32x1xf32>
    %7 = arith.mulf %3, %3 : vector<3x64xf32>
    %cst_5 = arith.constant dense<0.000000e+00> : vector<64xf32>
    %8 = vector.multi_reduction <add>, %7, %cst_5 [0] : vector<3x64xf32> to vector<64xf32>
    %9 = vector.shape_cast %8 : vector<64xf32> to vector<1x64xf32>
    %10 = vector.extract_strided_slice %1 {offsets = [0, 0], sizes = [32, 1], strides = [1, 1]} : vector<32x3xf32> to vector<32x1xf32>
    %11 = vector.extract_strided_slice %3 {offsets = [0, 0], sizes = [1, 64], strides = [1, 1]} : vector<3x64xf32> to vector<1x64xf32>
    %12 = vector.broadcast %10 : vector<32x1xf32> to vector<32x64xf32>
    %13 = vector.broadcast %11 : vector<1x64xf32> to vector<32x64xf32>
    %14 = arith.mulf %12, %13 : vector<32x64xf32>
    %15 = vector.extract_strided_slice %1 {offsets = [0, 1], sizes = [32, 1], strides = [1, 1]} : vector<32x3xf32> to vector<32x1xf32>
    %16 = vector.extract_strided_slice %3 {offsets = [1, 0], sizes = [1, 64], strides = [1, 1]} : vector<3x64xf32> to vector<1x64xf32>
    %17 = vector.broadcast %15 : vector<32x1xf32> to vector<32x64xf32>
    %18 = vector.broadcast %16 : vector<1x64xf32> to vector<32x64xf32>
    %19 = arith.mulf %17, %18 : vector<32x64xf32>
    %20 = arith.addf %14, %19 : vector<32x64xf32>
    %21 = vector.extract_strided_slice %1 {offsets = [0, 2], sizes = [32, 1], strides = [1, 1]} : vector<32x3xf32> to vector<32x1xf32>
    %22 = vector.extract_strided_slice %3 {offsets = [2, 0], sizes = [1, 64], strides = [1, 1]} : vector<3x64xf32> to vector<1x64xf32>
    %23 = vector.broadcast %21 : vector<32x1xf32> to vector<32x64xf32>
    %24 = vector.broadcast %22 : vector<1x64xf32> to vector<32x64xf32>
    %25 = arith.mulf %23, %24 : vector<32x64xf32>
    %26 = arith.addf %20, %25 : vector<32x64xf32>
    %27 = vector.broadcast %6 : vector<32x1xf32> to vector<32x64xf32>
    %28 = vector.broadcast %9 : vector<1x64xf32> to vector<32x64xf32>
    %29 = arith.addf %27, %28 : vector<32x64xf32>
    %cst_6 = arith.constant 2.000000e+00 : f32
    %30 = vector.broadcast %cst_6 : f32 to vector<32x64xf32>
    %31 = arith.mulf %30, %26 : vector<32x64xf32>
    %32 = arith.subf %29, %31 : vector<32x64xf32>
    %cst_7 = arith.constant 0.000000e+00 : f32
    %33 = vector.broadcast %cst_7 : f32 to vector<32x64xf32>
    %34 = arith.maximumf %32, %33 : vector<32x64xf32>
    %c0_i32 = arith.constant 0 : i32
    %35 = arith.cmpi eq, %arg1, %c0_i32 : i32
    %c0_i32_8 = arith.constant 0 : i32
    %36 = arith.cmpi eq, %arg2, %c0_i32_8 : i32
    %37 = arith.andi %35, %36 : i1
    %38 = arith.extui %37 : i1 to i32
    %c0_i32_9 = arith.constant 0 : i32
    %39 = arith.cmpi ne, %38, %c0_i32_9 : i32
    scf.if %39 {
      %cst_19 = arith.constant 0.000000e+00 : f32
      %56 = vector.broadcast %cst_19 : f32 to vector<32x1xf32>
      %c0_20 = arith.constant 0 : index
      %c0_21 = arith.constant 0 : index
      %57 = vector.load %arg14[%c0_20, %c0_21] : memref<32x1xf32, #tpu.memory_space<vmem>>, vector<32x1xf32>
      tpu.vector_store %arg14[%c0_20, %c0_21], %56 {strides = array<i32>} : memref<32x1xf32, #tpu.memory_space<vmem>>, vector<32x1xf32>,
    } else {
    }
    %c0_i32_10 = arith.constant 0 : i32
    %40 = arith.cmpi eq, %arg1, %c0_i32_10 : i32
    %41 = arith.extui %40 : i1 to i32
    %c0_i32_11 = arith.constant 0 : i32
    %42 = arith.cmpi ne, %41, %c0_i32_11 : i32
    scf.if %42 {
      %c0_19 = arith.constant 0 : index
      %c0_20 = arith.constant 0 : index
      %56 = vector.load %arg14[%c0_19, %c0_20] : memref<32x1xf32, #tpu.memory_space<vmem>>, vector<32x1xf32>
      %cst_21 = arith.constant 4.000000e-02 : f32
      %57 = vector.broadcast %cst_21 : f32 to vector<32x64xf32>
      %58 = arith.cmpf olt, %34, %57 : vector<32x64xf32>
      %59 = arith.extui %58 : vector<32x64xi1> to vector<32x64xi32>
      %60 = arith.sitofp %59 : vector<32x64xi32> to vector<32x64xf32>
      %cst_22 = arith.constant dense<0.000000e+00> : vector<32xf32>
      %61 = vector.multi_reduction <add>, %60, %cst_22 [1] : vector<32x64xf32> to vector<32xf32>
      %62 = vector.shape_cast %61 : vector<32xf32> to vector<32x1xf32>
      %63 = arith.addf %56, %62 : vector<32x1xf32>
      %c0_23 = arith.constant 0 : index
      %c0_24 = arith.constant 0 : index
      %64 = vector.load %arg14[%c0_23, %c0_24] : memref<32x1xf32, #tpu.memory_space<vmem>>, vector<32x1xf32>
      tpu.vector_store %arg14[%c0_23, %c0_24], %63 {strides = array<i32>} : memref<32x1xf32, #tpu.memory_space<vmem>>, vector<32x1xf32>,
    } else {
    }
    %c1_i32 = arith.constant 1 : i32
    %43 = arith.cmpi eq, %arg1, %c1_i32 : i32
    %c0_i32_12 = arith.constant 0 : i32
    %44 = arith.cmpi eq, %arg2, %c0_i32_12 : i32
    %45 = arith.andi %43, %44 : i1
    %46 = arith.extui %45 : i1 to i32
    %c0_i32_13 = arith.constant 0 : i32
    %47 = arith.cmpi ne, %46, %c0_i32_13 : i32
    scf.if %47 {
      %cst_19 = arith.constant -1.000000e+30 : f32
      %56 = vector.broadcast %cst_19 : f32 to vector<32x1xf32>
      %c0_20 = arith.constant 0 : index
      %c0_21 = arith.constant 0 : index
      %57 = vector.load %arg15[%c0_20, %c0_21] : memref<32x1xf32, #tpu.memory_space<vmem>>, vector<32x1xf32>
      tpu.vector_store %arg15[%c0_20, %c0_21], %56 {strides = array<i32>} : memref<32x1xf32, #tpu.memory_space<vmem>>, vector<32x1xf32>,
      %cst_22 = arith.constant 0.000000e+00 : f32
      %58 = vector.broadcast %cst_22 : f32 to vector<32x1xf32>
      %c0_23 = arith.constant 0 : index
      %c0_24 = arith.constant 0 : index
      %59 = vector.load %arg16[%c0_23, %c0_24] : memref<32x1xf32, #tpu.memory_space<vmem>>, vector<32x1xf32>
      tpu.vector_store %arg16[%c0_23, %c0_24], %58 {strides = array<i32>} : memref<32x1xf32, #tpu.memory_space<vmem>>, vector<32x1xf32>,
      %cst_25 = arith.constant 0.000000e+00 : f32
      %60 = vector.broadcast %cst_25 : f32 to vector<32x64xf32>
      %c0_26 = arith.constant 0 : index
      %c0_27 = arith.constant 0 : index
      %61 = vector.load %arg17[%c0_26, %c0_27] : memref<32x64xf32, #tpu.memory_space<vmem>>, vector<32x64xf32>
      tpu.vector_store %arg17[%c0_26, %c0_27], %60 {strides = array<i32>} : memref<32x64xf32, #tpu.memory_space<vmem>>, vector<32x64xf32>,
      %c0_28 = arith.constant 0 : index
      %c0_29 = arith.constant 0 : index
      %c0_30 = arith.constant 0 : index
      %62 = vector.load %arg5[%c0_28, %c0_29, %c0_30] : memref<1x32x64xf32, #tpu.memory_space<vmem>>, vector<1x32x64xf32>
      %63 = vector.shape_cast %62 : vector<1x32x64xf32> to vector<32x64xf32>
      %64 = arith.truncf %63 : vector<32x64xf32> to vector<32x64xbf16>
      %c0_31 = arith.constant 0 : index
      %c0_32 = arith.constant 0 : index
      %65 = vector.load %arg7[%c0_31, %c0_32] : memref<64x64xf32, #tpu.memory_space<vmem>>, vector<64x64xf32>
      %66 = arith.truncf %65 : vector<64x64xf32> to vector<64x64xbf16>
      %cst_33 = arith.constant dense<0.000000e+00> : vector<32x64xf32>
      %67 = tpu.matmul %64, %66, %cst_33 {dimension_numbers = #tpu.dot_dimension_numbers<[1], [0], [0], [1], [0, 0, 1, 1], [], []>} : vector<32x64xbf16>, vector<64x64xbf16>, vector<32x64xf32> -> vector<32x64xf32>
      %cst_34 = arith.constant 1.250000e-01 : f32
      %68 = vector.broadcast %cst_34 : f32 to vector<32x64xf32>
      %69 = arith.mulf %67, %68 : vector<32x64xf32>
      %70 = arith.truncf %69 : vector<32x64xf32> to vector<32x64xbf16>
      %c0_35 = arith.constant 0 : index
      %c0_36 = arith.constant 0 : index
      %71 = vector.load %arg18[%c0_35, %c0_36] : memref<32x64xbf16, #tpu.memory_space<vmem>>, vector<32x64xbf16>
      tpu.vector_store %arg18[%c0_35, %c0_36], %70 {strides = array<i32>} : memref<32x64xbf16, #tpu.memory_space<vmem>>, vector<32x64xbf16>,
    } else {
    }
    %c1_i32_14 = arith.constant 1 : i32
    %48 = arith.cmpi eq, %arg1, %c1_i32_14 : i32
    %49 = arith.extui %48 : i1 to i32
    %c0_i32_15 = arith.constant 0 : i32
    %50 = arith.cmpi ne, %49, %c0_i32_15 : i32
    scf.if %50 {
      %c0_19 = arith.constant 0 : index
      %c0_20 = arith.constant 0 : index
      %c0_21 = arith.constant 0 : index
      %56 = vector.load %arg6[%c0_19, %c0_20, %c0_21] : memref<1x64x64xf32, #tpu.memory_space<vmem>>, vector<1x64x64xf32>
      %57 = vector.shape_cast %56 : vector<1x64x64xf32> to vector<64x64xf32>
      %58 = arith.truncf %57 : vector<64x64xf32> to vector<64x64xbf16>
      %c0_22 = arith.constant 0 : index
      %c0_23 = arith.constant 0 : index
      %59 = vector.load %arg8[%c0_22, %c0_23] : memref<64x64xf32, #tpu.memory_space<vmem>>, vector<64x64xf32>
      %60 = arith.truncf %59 : vector<64x64xf32> to vector<64x64xbf16>
      %cst_24 = arith.constant dense<0.000000e+00> : vector<64x64xf32>
      %61 = tpu.matmul %58, %60, %cst_24 {dimension_numbers = #tpu.dot_dimension_numbers<[1], [0], [0], [1], [0, 0, 1, 1], [], []>} : vector<64x64xbf16>, vector<64x64xbf16>, vector<64x64xf32> -> vector<64x64xf32>
      %c0_25 = arith.constant 0 : index
      %c0_26 = arith.constant 0 : index
      %62 = vector.load %arg14[%c0_25, %c0_26] : memref<32x1xf32, #tpu.memory_space<vmem>>, vector<32x1xf32>
      %cst_27 = arith.constant 1.562500e-02 : f32
      %63 = vector.broadcast %cst_27 : f32 to vector<32x1xf32>
      %64 = arith.mulf %62, %63 : vector<32x1xf32>
      %cst_28 = arith.constant 1.000000e+00 : f32
      %65 = vector.broadcast %cst_28 : f32 to vector<32x1xf32>
      %66 = arith.addf %65, %64 : vector<32x1xf32>
      %cst_29 = arith.constant 4.000000e-02 : f32
      %67 = vector.broadcast %cst_29 : f32 to vector<32x1xf32>
      %68 = arith.mulf %67, %66 : vector<32x1xf32>
      %69 = vector.broadcast %68 : vector<32x1xf32> to vector<32x64xf32>
      %70 = arith.cmpf olt, %34, %69 : vector<32x64xf32>
      %c0_30 = arith.constant 0 : index
      %c0_31 = arith.constant 0 : index
      %71 = vector.load %arg18[%c0_30, %c0_31] : memref<32x64xbf16, #tpu.memory_space<vmem>>, vector<32x64xbf16>
      %72 = arith.truncf %61 : vector<64x64xf32> to vector<64x64xbf16>
      %cst_32 = arith.constant dense<0.000000e+00> : vector<32x64xf32>
      %73 = tpu.matmul %71, %72, %cst_32 {dimension_numbers = #tpu.dot_dimension_numbers<[1], [1], [0], [0], [0, 0, 1, 0], [], []>} : vector<32x64xbf16>, vector<64x64xbf16>, vector<32x64xf32> -> vector<32x64xf32>
      %cst_33 = arith.constant -1.000000e+30 : f32
      %74 = vector.broadcast %cst_33 : f32 to vector<32x64xf32>
      %75 = arith.select %70, %73, %74 : vector<32x64xi1>, vector<32x64xf32>
      %c0_34 = arith.constant 0 : index
      %c0_35 = arith.constant 0 : index
      %76 = vector.load %arg15[%c0_34, %c0_35] : memref<32x1xf32, #tpu.memory_space<vmem>>, vector<32x1xf32>
      %cst_36 = arith.constant dense<0xFF800000> : vector<32xf32>
      %77 = vector.multi_reduction <maximumf>, %75, %cst_36 [1] : vector<32x64xf32> to vector<32xf32>
      %78 = vector.shape_cast %77 : vector<32xf32> to vector<32x1xf32>
      %79 = arith.maximumf %76, %78 : vector<32x1xf32>
      %c0_37 = arith.constant 0 : index
      %c0_38 = arith.constant 0 : index
      %80 = vector.load %arg15[%c0_37, %c0_38] : memref<32x1xf32, #tpu.memory_space<vmem>>, vector<32x1xf32>
      %81 = arith.subf %80, %79 : vector<32x1xf32>
      %82 = math.exp %81 : vector<32x1xf32>
      %83 = vector.broadcast %79 : vector<32x1xf32> to vector<32x64xf32>
      %84 = arith.subf %75, %83 : vector<32x64xf32>
      %85 = math.exp %84 : vector<32x64xf32>
      %c0_39 = arith.constant 0 : index
      %c0_40 = arith.constant 0 : index
      %86 = vector.load %arg16[%c0_39, %c0_40] : memref<32x1xf32, #tpu.memory_space<vmem>>, vector<32x1xf32>
      %87 = arith.mulf %82, %86 : vector<32x1xf32>
      %cst_41 = arith.constant dense<0.000000e+00> : vector<32xf32>
      %88 = vector.multi_reduction <add>, %85, %cst_41 [1] : vector<32x64xf32> to vector<32xf32>
      %89 = vector.shape_cast %88 : vector<32xf32> to vector<32x1xf32>
      %90 = arith.addf %87, %89 : vector<32x1xf32>
      %c0_42 = arith.constant 0 : index
      %c0_43 = arith.constant 0 : index
      %91 = vector.load %arg16[%c0_42, %c0_43] : memref<32x1xf32, #tpu.memory_space<vmem>>, vector<32x1xf32>
      tpu.vector_store %arg16[%c0_42, %c0_43], %90 {strides = array<i32>} : memref<32x1xf32, #tpu.memory_space<vmem>>, vector<32x1xf32>,
      %c0_44 = arith.constant 0 : index
      %c0_45 = arith.constant 0 : index
      %92 = vector.load %arg17[%c0_44, %c0_45] : memref<32x64xf32, #tpu.memory_space<vmem>>, vector<32x64xf32>
      %93 = vector.broadcast %82 : vector<32x1xf32> to vector<32x64xf32>
      %94 = arith.mulf %93, %92 : vector<32x64xf32>
      %95 = arith.truncf %85 : vector<32x64xf32> to vector<32x64xbf16>
      %96 = arith.truncf %57 : vector<64x64xf32> to vector<64x64xbf16>
      %cst_46 = arith.constant dense<0.000000e+00> : vector<32x64xf32>
      %97 = tpu.matmul %95, %96, %cst_46 {dimension_numbers = #tpu.dot_dimension_numbers<[1], [0], [0], [1], [0, 0, 1, 1], [], []>} : vector<32x64xbf16>, vector<64x64xbf16>, vector<32x64xf32> -> vector<32x64xf32>
      %98 = arith.addf %94, %97 : vector<32x64xf32>
      %c0_47 = arith.constant 0 : index
      %c0_48 = arith.constant 0 : index
      %99 = vector.load %arg17[%c0_47, %c0_48] : memref<32x64xf32, #tpu.memory_space<vmem>>, vector<32x64xf32>
      tpu.vector_store %arg17[%c0_47, %c0_48], %98 {strides = array<i32>} : memref<32x64xf32, #tpu.memory_space<vmem>>, vector<32x64xf32>,
      %c0_49 = arith.constant 0 : index
      %c0_50 = arith.constant 0 : index
      %100 = vector.load %arg15[%c0_49, %c0_50] : memref<32x1xf32, #tpu.memory_space<vmem>>, vector<32x1xf32>
      tpu.vector_store %arg15[%c0_49, %c0_50], %79 {strides = array<i32>} : memref<32x1xf32, #tpu.memory_space<vmem>>, vector<32x1xf32>,
    } else {
    }
    %c1_i32_16 = arith.constant 1 : i32
    %51 = arith.cmpi eq, %arg1, %c1_i32_16 : i32
    %c0_i32_17 = arith.constant 0 : i32
    %52 = arith.cmpi eq, %arg2, %c0_i32_17 : i32
    %53 = arith.andi %51, %52 : i1
    %54 = arith.extui %53 : i1 to i32
    %c0_i32_18 = arith.constant 0 : i32
    %55 = arith.cmpi ne, %54, %c0_i32_18 : i32
    scf.if %55 {
      %c0_19 = arith.constant 0 : index
      %c0_20 = arith.constant 0 : index
      %c0_21 = arith.constant 0 : index
      %56 = vector.load %arg5[%c0_19, %c0_20, %c0_21] : memref<1x32x64xf32, #tpu.memory_space<vmem>>, vector<1x32x64xf32>
      %57 = vector.shape_cast %56 : vector<1x32x64xf32> to vector<32x64xf32>
      %c0_22 = arith.constant 0 : index
      %c0_23 = arith.constant 0 : index
      %58 = vector.load %arg17[%c0_22, %c0_23] : memref<32x64xf32, #tpu.memory_space<vmem>>, vector<32x64xf32>
      %c0_24 = arith.constant 0 : index
      %c0_25 = arith.constant 0 : index
      %59 = vector.load %arg16[%c0_24, %c0_25] : memref<32x1xf32, #tpu.memory_space<vmem>>, vector<32x1xf32>
      %60 = tpu.reciprocal %59 {approx = true} : vector<32x1xf32> -> vector<32x1xf32>
      %61 = vector.broadcast %60 : vector<32x1xf32> to vector<32x64xf32>
      %62 = arith.mulf %58, %61 : vector<32x64xf32>
      %63 = arith.subf %62, %57 : vector<32x64xf32>
      %64 = arith.truncf %63 : vector<32x64xf32> to vector<32x64xbf16>
      %c0_26 = arith.constant 0 : index
      %c0_27 = arith.constant 0 : index
      %65 = vector.load %arg9[%c0_26, %c0_27] : memref<64x128xf32, #tpu.memory_space<vmem>>, vector<64x128xf32>
      %66 = arith.truncf %65 : vector<64x128xf32> to vector<64x128xbf16>
      %cst_28 = arith.constant dense<0.000000e+00> : vector<32x128xf32>
      %67 = tpu.matmul %64, %66, %cst_28 {dimension_numbers = #tpu.dot_dimension_numbers<[1], [0], [0], [1], [0, 0, 1, 1], [], []>} : vector<32x64xbf16>, vector<64x128xbf16>, vector<32x128xf32> -> vector<32x128xf32>
      %68 = arith.truncf %57 : vector<32x64xf32> to vector<32x64xbf16>
      %c0_29 = arith.constant 0 : index
      %c0_30 = arith.constant 0 : index
      %69 = vector.load %arg10[%c0_29, %c0_30] : memref<64x128xf32, #tpu.memory_space<vmem>>, vector<64x128xf32>
      %70 = arith.truncf %69 : vector<64x128xf32> to vector<64x128xbf16>
      %cst_31 = arith.constant dense<0.000000e+00> : vector<32x128xf32>
      %71 = tpu.matmul %68, %70, %cst_31 {dimension_numbers = #tpu.dot_dimension_numbers<[1], [0], [0], [1], [0, 0, 1, 1], [], []>} : vector<32x64xbf16>, vector<64x128xbf16>, vector<32x128xf32> -> vector<32x128xf32>
      %72 = arith.addf %67, %71 : vector<32x128xf32>
      %c0_32 = arith.constant 0 : index
      %c0_33 = arith.constant 0 : index
      %73 = vector.load %arg11[%c0_32, %c0_33] : memref<1x128xf32, #tpu.memory_space<vmem>>, vector<1x128xf32>
      %74 = vector.broadcast %73 : vector<1x128xf32> to vector<32x128xf32>
      %75 = arith.mulf %72, %74 : vector<32x128xf32>
      %c0_34 = arith.constant 0 : index
      %c0_35 = arith.constant 0 : index
      %76 = vector.load %arg12[%c0_34, %c0_35] : memref<1x128xf32, #tpu.memory_space<vmem>>, vector<1x128xf32>
      %77 = vector.broadcast %76 : vector<1x128xf32> to vector<32x128xf32>
      %78 = arith.addf %75, %77 : vector<32x128xf32>
      %cst_36 = arith.constant 5.000000e-01 : f32
      %79 = vector.broadcast %cst_36 : f32 to vector<32x128xf32>
      %80 = arith.mulf %79, %78 : vector<32x128xf32>
      %cst_37 = arith.constant 4.471500e-02 : f32
      %81 = vector.broadcast %cst_37 : f32 to vector<32x128xf32>
      %82 = arith.mulf %81, %78 : vector<32x128xf32>
      %83 = arith.mulf %82, %78 : vector<32x128xf32>
      %84 = arith.mulf %83, %78 : vector<32x128xf32>
      %85 = arith.addf %78, %84 : vector<32x128xf32>
      %cst_38 = arith.constant 0.797884583 : f32
      %86 = vector.broadcast %cst_38 : f32 to vector<32x128xf32>
      %87 = arith.mulf %86, %85 : vector<32x128xf32>
      %88 = math.tanh %87 : vector<32x128xf32>
      %cst_39 = arith.constant 1.000000e+00 : f32
      %89 = vector.broadcast %cst_39 : f32 to vector<32x128xf32>
      %90 = arith.addf %89, %88 : vector<32x128xf32>
      %91 = arith.mulf %80, %90 : vector<32x128xf32>
      %c0_40 = arith.constant 0 : index
      %c0_41 = arith.constant 0 : index
      %c0_42 = arith.constant 0 : index
      %92 = vector.load %arg13[%c0_40, %c0_41, %c0_42] : memref<1x32x128xf32, #tpu.memory_space<vmem>>, vector<1x32x128xf32>
      %93 = vector.shape_cast %92 : vector<1x32x128xf32> to vector<32x128xf32>
      %94 = vector.shape_cast %91 : vector<32x128xf32> to vector<1x32x128xf32>
      tpu.vector_store %arg13[%c0_40, %c0_41, %c0_42], %94 {strides = array<i32>} : memref<1x32x128xf32, #tpu.memory_space<vmem>>, vector<1x32x128xf32>,
    } else {
    }
    return
  }
  func.func @transform_0(%arg0: i32, %arg1: i32, %arg2: i32) -> (i32, i32, i32) {
    %c0_i32 = arith.constant 0 : i32
    %c0_i32_0 = arith.constant 0 : i32
    %c0_i32_1 = arith.constant 0 : i32
    return %arg0, %c0_i32, %c0_i32_0 : i32, i32, i32
  }
  func.func @transform_1(%arg0: i32, %arg1: i32, %arg2: i32) -> (i32, i32, i32) {
    %c0_i32 = arith.constant 0 : i32
    %c0_i32_0 = arith.constant 0 : i32
    return %arg0, %c0_i32, %arg2 : i32, i32, i32
  }
  func.func @transform_2(%arg0: i32, %arg1: i32, %arg2: i32) -> (i32, i32, i32) {
    %c0_i32 = arith.constant 0 : i32
    %c0_i32_0 = arith.constant 0 : i32
    %c0_i32_1 = arith.constant 0 : i32
    return %arg0, %c0_i32, %c0_i32_0 : i32, i32, i32
  }
  func.func @transform_3(%arg0: i32, %arg1: i32, %arg2: i32) -> (i32, i32, i32) {
    %c0_i32 = arith.constant 0 : i32
    %c0_i32_0 = arith.constant 0 : i32
    return %arg0, %arg2, %c0_i32 : i32, i32, i32
  }
  func.func @transform_4(%arg0: i32, %arg1: i32, %arg2: i32) -> (i32, i32) {
    %c0_i32 = arith.constant 0 : i32
    %c0_i32_0 = arith.constant 0 : i32
    %c0_i32_1 = arith.constant 0 : i32
    return %c0_i32, %c0_i32_0 : i32, i32
  }
  func.func @transform_5(%arg0: i32, %arg1: i32, %arg2: i32) -> (i32, i32) {
    %c0_i32 = arith.constant 0 : i32
    %c0_i32_0 = arith.constant 0 : i32
    %c0_i32_1 = arith.constant 0 : i32
    return %c0_i32, %c0_i32_0 : i32, i32
  }
  func.func @transform_6(%arg0: i32, %arg1: i32, %arg2: i32) -> (i32, i32) {
    %c0_i32 = arith.constant 0 : i32
    %c0_i32_0 = arith.constant 0 : i32
    %c0_i32_1 = arith.constant 0 : i32
    return %c0_i32, %c0_i32_0 : i32, i32
  }
  func.func @transform_7(%arg0: i32, %arg1: i32, %arg2: i32) -> (i32, i32) {
    %c0_i32 = arith.constant 0 : i32
    %c0_i32_0 = arith.constant 0 : i32
    %c0_i32_1 = arith.constant 0 : i32
    return %c0_i32, %c0_i32_0 : i32, i32
  }
  func.func @transform_8(%arg0: i32, %arg1: i32, %arg2: i32) -> (i32, i32) {
    %c0_i32 = arith.constant 0 : i32
    %c0_i32_0 = arith.constant 0 : i32
    %c0_i32_1 = arith.constant 0 : i32
    return %c0_i32, %c0_i32_0 : i32, i32
  }
  func.func @transform_9(%arg0: i32, %arg1: i32, %arg2: i32) -> (i32, i32) {
    %c0_i32 = arith.constant 0 : i32
    %c0_i32_0 = arith.constant 0 : i32
    %c0_i32_1 = arith.constant 0 : i32
    return %c0_i32, %c0_i32_0 : i32, i32
  }
  func.func @transform_10(%arg0: i32, %arg1: i32, %arg2: i32) -> (i32, i32, i32) {
    %c0_i32 = arith.constant 0 : i32
    %c0_i32_0 = arith.constant 0 : i32
    %c0_i32_1 = arith.constant 0 : i32
    return %arg0, %c0_i32, %c0_i32_0 : i32, i32, i32
  }
}

module attributes {stable_mosaic.version = 11 : i64} {
  func.func @_diffconv_kernel(%arg0: i32, %arg1: i32, %arg2: i32, %arg3: memref<1x64x3xf32, #tpu.memory_space<vmem>>, %arg4: memref<1x3x64xf32, #tpu.memory_space<vmem>>, %arg5: memref<1x64x32xf32, #tpu.memory_space<vmem>>, %arg6: memref<1x64x32xf32, #tpu.memory_space<vmem>>, %arg7: memref<32x32xf32, #tpu.memory_space<vmem>>, %arg8: memref<32x32xf32, #tpu.memory_space<vmem>>, %arg9: memref<32x64xf32, #tpu.memory_space<vmem>>, %arg10: memref<32x64xf32, #tpu.memory_space<vmem>>, %arg11: memref<1x64xf32, #tpu.memory_space<vmem>>, %arg12: memref<1x64xf32, #tpu.memory_space<vmem>>, %arg13: memref<1x64x64xf32, #tpu.memory_space<vmem>>, %arg14: memref<64x1xf32, #tpu.memory_space<vmem>>, %arg15: memref<64x1xf32, #tpu.memory_space<vmem>>, %arg16: memref<64x1xf32, #tpu.memory_space<vmem>>, %arg17: memref<64x32xf32, #tpu.memory_space<vmem>>, %arg18: memref<64x32xbf16, #tpu.memory_space<vmem>>) attributes {dimension_semantics = [#tpu.dimension_semantics<parallel>, #tpu.dimension_semantics<arbitrary>, #tpu.dimension_semantics<arbitrary>], iteration_bounds = array<i64: 2, 2, 1>, scalar_prefetch = 0 : i64, scratch_operands = 5 : i64, tpu.core_type = #tpu.core_type<tc>, window_params = [{transform_indices = @transform_0, window_bounds = array<i64: 1, 64, 3>}, {transform_indices = @transform_1, window_bounds = array<i64: 1, 3, 64>}, {transform_indices = @transform_2, window_bounds = array<i64: 1, 64, 32>}, {transform_indices = @transform_3, window_bounds = array<i64: 1, 64, 32>}, {pipeline_mode = #tpu.pipeline_mode<synchronous>, transform_indices = @transform_4, window_bounds = array<i64: 32, 32>}, {pipeline_mode = #tpu.pipeline_mode<synchronous>, transform_indices = @transform_5, window_bounds = array<i64: 32, 32>}, {pipeline_mode = #tpu.pipeline_mode<synchronous>, transform_indices = @transform_6, window_bounds = array<i64: 32, 64>}, {pipeline_mode = #tpu.pipeline_mode<synchronous>, transform_indices = @transform_7, window_bounds = array<i64: 32, 64>}, {pipeline_mode = #tpu.pipeline_mode<synchronous>, transform_indices = @transform_8, window_bounds = array<i64: 1, 64>}, {pipeline_mode = #tpu.pipeline_mode<synchronous>, transform_indices = @transform_9, window_bounds = array<i64: 1, 64>}, {transform_indices = @transform_10, window_bounds = array<i64: 1, 64, 64>}]} {
    %c0 = arith.constant 0 : index
    %c0_0 = arith.constant 0 : index
    %c0_1 = arith.constant 0 : index
    %0 = vector.load %arg3[%c0, %c0_0, %c0_1] : memref<1x64x3xf32, #tpu.memory_space<vmem>>, vector<1x64x3xf32>
    %1 = vector.shape_cast %0 : vector<1x64x3xf32> to vector<64x3xf32>
    %c0_2 = arith.constant 0 : index
    %c0_3 = arith.constant 0 : index
    %c0_4 = arith.constant 0 : index
    %2 = vector.load %arg4[%c0_2, %c0_3, %c0_4] : memref<1x3x64xf32, #tpu.memory_space<vmem>>, vector<1x3x64xf32>
    %3 = vector.shape_cast %2 : vector<1x3x64xf32> to vector<3x64xf32>
    %4 = arith.mulf %1, %1 : vector<64x3xf32>
    %cst = arith.constant dense<0.000000e+00> : vector<64xf32>
    %5 = vector.multi_reduction <add>, %4, %cst [1] : vector<64x3xf32> to vector<64xf32>
    %6 = vector.shape_cast %5 : vector<64xf32> to vector<64x1xf32>
    %7 = arith.mulf %3, %3 : vector<3x64xf32>
    %cst_5 = arith.constant dense<0.000000e+00> : vector<64xf32>
    %8 = vector.multi_reduction <add>, %7, %cst_5 [0] : vector<3x64xf32> to vector<64xf32>
    %9 = vector.shape_cast %8 : vector<64xf32> to vector<1x64xf32>
    %10 = vector.extract_strided_slice %1 {offsets = [0, 0], sizes = [64, 1], strides = [1, 1]} : vector<64x3xf32> to vector<64x1xf32>
    %11 = vector.extract_strided_slice %3 {offsets = [0, 0], sizes = [1, 64], strides = [1, 1]} : vector<3x64xf32> to vector<1x64xf32>
    %12 = vector.broadcast %10 : vector<64x1xf32> to vector<64x64xf32>
    %13 = vector.broadcast %11 : vector<1x64xf32> to vector<64x64xf32>
    %14 = arith.mulf %12, %13 : vector<64x64xf32>
    %15 = vector.extract_strided_slice %1 {offsets = [0, 1], sizes = [64, 1], strides = [1, 1]} : vector<64x3xf32> to vector<64x1xf32>
    %16 = vector.extract_strided_slice %3 {offsets = [1, 0], sizes = [1, 64], strides = [1, 1]} : vector<3x64xf32> to vector<1x64xf32>
    %17 = vector.broadcast %15 : vector<64x1xf32> to vector<64x64xf32>
    %18 = vector.broadcast %16 : vector<1x64xf32> to vector<64x64xf32>
    %19 = arith.mulf %17, %18 : vector<64x64xf32>
    %20 = arith.addf %14, %19 : vector<64x64xf32>
    %21 = vector.extract_strided_slice %1 {offsets = [0, 2], sizes = [64, 1], strides = [1, 1]} : vector<64x3xf32> to vector<64x1xf32>
    %22 = vector.extract_strided_slice %3 {offsets = [2, 0], sizes = [1, 64], strides = [1, 1]} : vector<3x64xf32> to vector<1x64xf32>
    %23 = vector.broadcast %21 : vector<64x1xf32> to vector<64x64xf32>
    %24 = vector.broadcast %22 : vector<1x64xf32> to vector<64x64xf32>
    %25 = arith.mulf %23, %24 : vector<64x64xf32>
    %26 = arith.addf %20, %25 : vector<64x64xf32>
    %27 = vector.broadcast %6 : vector<64x1xf32> to vector<64x64xf32>
    %28 = vector.broadcast %9 : vector<1x64xf32> to vector<64x64xf32>
    %29 = arith.addf %27, %28 : vector<64x64xf32>
    %cst_6 = arith.constant 2.000000e+00 : f32
    %30 = vector.broadcast %cst_6 : f32 to vector<64x64xf32>
    %31 = arith.mulf %30, %26 : vector<64x64xf32>
    %32 = arith.subf %29, %31 : vector<64x64xf32>
    %cst_7 = arith.constant 0.000000e+00 : f32
    %33 = vector.broadcast %cst_7 : f32 to vector<64x64xf32>
    %34 = arith.maximumf %32, %33 : vector<64x64xf32>
    %c0_i32 = arith.constant 0 : i32
    %35 = arith.cmpi eq, %arg1, %c0_i32 : i32
    %c0_i32_8 = arith.constant 0 : i32
    %36 = arith.cmpi eq, %arg2, %c0_i32_8 : i32
    %37 = arith.andi %35, %36 : i1
    %38 = arith.extui %37 : i1 to i32
    %c0_i32_9 = arith.constant 0 : i32
    %39 = arith.cmpi ne, %38, %c0_i32_9 : i32
    scf.if %39 {
      %cst_19 = arith.constant 0.000000e+00 : f32
      %56 = vector.broadcast %cst_19 : f32 to vector<64x1xf32>
      %c0_20 = arith.constant 0 : index
      %c0_21 = arith.constant 0 : index
      %57 = vector.load %arg14[%c0_20, %c0_21] : memref<64x1xf32, #tpu.memory_space<vmem>>, vector<64x1xf32>
      tpu.vector_store %arg14[%c0_20, %c0_21], %56 {strides = array<i32>} : memref<64x1xf32, #tpu.memory_space<vmem>>, vector<64x1xf32>,
    } else {
    }
    %c0_i32_10 = arith.constant 0 : i32
    %40 = arith.cmpi eq, %arg1, %c0_i32_10 : i32
    %41 = arith.extui %40 : i1 to i32
    %c0_i32_11 = arith.constant 0 : i32
    %42 = arith.cmpi ne, %41, %c0_i32_11 : i32
    scf.if %42 {
      %c0_19 = arith.constant 0 : index
      %c0_20 = arith.constant 0 : index
      %56 = vector.load %arg14[%c0_19, %c0_20] : memref<64x1xf32, #tpu.memory_space<vmem>>, vector<64x1xf32>
      %cst_21 = arith.constant 0.00999999977 : f32
      %57 = vector.broadcast %cst_21 : f32 to vector<64x64xf32>
      %58 = arith.cmpf olt, %34, %57 : vector<64x64xf32>
      %59 = arith.extui %58 : vector<64x64xi1> to vector<64x64xi32>
      %60 = arith.sitofp %59 : vector<64x64xi32> to vector<64x64xf32>
      %cst_22 = arith.constant dense<0.000000e+00> : vector<64xf32>
      %61 = vector.multi_reduction <add>, %60, %cst_22 [1] : vector<64x64xf32> to vector<64xf32>
      %62 = vector.shape_cast %61 : vector<64xf32> to vector<64x1xf32>
      %63 = arith.addf %56, %62 : vector<64x1xf32>
      %c0_23 = arith.constant 0 : index
      %c0_24 = arith.constant 0 : index
      %64 = vector.load %arg14[%c0_23, %c0_24] : memref<64x1xf32, #tpu.memory_space<vmem>>, vector<64x1xf32>
      tpu.vector_store %arg14[%c0_23, %c0_24], %63 {strides = array<i32>} : memref<64x1xf32, #tpu.memory_space<vmem>>, vector<64x1xf32>,
    } else {
    }
    %c1_i32 = arith.constant 1 : i32
    %43 = arith.cmpi eq, %arg1, %c1_i32 : i32
    %c0_i32_12 = arith.constant 0 : i32
    %44 = arith.cmpi eq, %arg2, %c0_i32_12 : i32
    %45 = arith.andi %43, %44 : i1
    %46 = arith.extui %45 : i1 to i32
    %c0_i32_13 = arith.constant 0 : i32
    %47 = arith.cmpi ne, %46, %c0_i32_13 : i32
    scf.if %47 {
      %cst_19 = arith.constant -1.000000e+30 : f32
      %56 = vector.broadcast %cst_19 : f32 to vector<64x1xf32>
      %c0_20 = arith.constant 0 : index
      %c0_21 = arith.constant 0 : index
      %57 = vector.load %arg15[%c0_20, %c0_21] : memref<64x1xf32, #tpu.memory_space<vmem>>, vector<64x1xf32>
      tpu.vector_store %arg15[%c0_20, %c0_21], %56 {strides = array<i32>} : memref<64x1xf32, #tpu.memory_space<vmem>>, vector<64x1xf32>,
      %cst_22 = arith.constant 0.000000e+00 : f32
      %58 = vector.broadcast %cst_22 : f32 to vector<64x1xf32>
      %c0_23 = arith.constant 0 : index
      %c0_24 = arith.constant 0 : index
      %59 = vector.load %arg16[%c0_23, %c0_24] : memref<64x1xf32, #tpu.memory_space<vmem>>, vector<64x1xf32>
      tpu.vector_store %arg16[%c0_23, %c0_24], %58 {strides = array<i32>} : memref<64x1xf32, #tpu.memory_space<vmem>>, vector<64x1xf32>,
      %cst_25 = arith.constant 0.000000e+00 : f32
      %60 = vector.broadcast %cst_25 : f32 to vector<64x32xf32>
      %c0_26 = arith.constant 0 : index
      %c0_27 = arith.constant 0 : index
      %61 = vector.load %arg17[%c0_26, %c0_27] : memref<64x32xf32, #tpu.memory_space<vmem>>, vector<64x32xf32>
      tpu.vector_store %arg17[%c0_26, %c0_27], %60 {strides = array<i32>} : memref<64x32xf32, #tpu.memory_space<vmem>>, vector<64x32xf32>,
      %c0_28 = arith.constant 0 : index
      %c0_29 = arith.constant 0 : index
      %c0_30 = arith.constant 0 : index
      %62 = vector.load %arg5[%c0_28, %c0_29, %c0_30] : memref<1x64x32xf32, #tpu.memory_space<vmem>>, vector<1x64x32xf32>
      %63 = vector.shape_cast %62 : vector<1x64x32xf32> to vector<64x32xf32>
      %64 = arith.truncf %63 : vector<64x32xf32> to vector<64x32xbf16>
      %c0_31 = arith.constant 0 : index
      %c0_32 = arith.constant 0 : index
      %65 = vector.load %arg7[%c0_31, %c0_32] : memref<32x32xf32, #tpu.memory_space<vmem>>, vector<32x32xf32>
      %66 = arith.truncf %65 : vector<32x32xf32> to vector<32x32xbf16>
      %cst_33 = arith.constant dense<0.000000e+00> : vector<64x32xf32>
      %67 = tpu.matmul %64, %66, %cst_33 {dimension_numbers = #tpu.dot_dimension_numbers<[1], [0], [0], [1], [0, 0, 1, 1], [], []>} : vector<64x32xbf16>, vector<32x32xbf16>, vector<64x32xf32> -> vector<64x32xf32>
      %cst_34 = arith.constant 0.176776692 : f32
      %68 = vector.broadcast %cst_34 : f32 to vector<64x32xf32>
      %69 = arith.mulf %67, %68 : vector<64x32xf32>
      %70 = arith.truncf %69 : vector<64x32xf32> to vector<64x32xbf16>
      %c0_35 = arith.constant 0 : index
      %c0_36 = arith.constant 0 : index
      %71 = vector.load %arg18[%c0_35, %c0_36] : memref<64x32xbf16, #tpu.memory_space<vmem>>, vector<64x32xbf16>
      tpu.vector_store %arg18[%c0_35, %c0_36], %70 {strides = array<i32>} : memref<64x32xbf16, #tpu.memory_space<vmem>>, vector<64x32xbf16>,
    } else {
    }
    %c1_i32_14 = arith.constant 1 : i32
    %48 = arith.cmpi eq, %arg1, %c1_i32_14 : i32
    %49 = arith.extui %48 : i1 to i32
    %c0_i32_15 = arith.constant 0 : i32
    %50 = arith.cmpi ne, %49, %c0_i32_15 : i32
    scf.if %50 {
      %c0_19 = arith.constant 0 : index
      %c0_20 = arith.constant 0 : index
      %c0_21 = arith.constant 0 : index
      %56 = vector.load %arg6[%c0_19, %c0_20, %c0_21] : memref<1x64x32xf32, #tpu.memory_space<vmem>>, vector<1x64x32xf32>
      %57 = vector.shape_cast %56 : vector<1x64x32xf32> to vector<64x32xf32>
      %58 = arith.truncf %57 : vector<64x32xf32> to vector<64x32xbf16>
      %c0_22 = arith.constant 0 : index
      %c0_23 = arith.constant 0 : index
      %59 = vector.load %arg8[%c0_22, %c0_23] : memref<32x32xf32, #tpu.memory_space<vmem>>, vector<32x32xf32>
      %60 = arith.truncf %59 : vector<32x32xf32> to vector<32x32xbf16>
      %cst_24 = arith.constant dense<0.000000e+00> : vector<64x32xf32>
      %61 = tpu.matmul %58, %60, %cst_24 {dimension_numbers = #tpu.dot_dimension_numbers<[1], [0], [0], [1], [0, 0, 1, 1], [], []>} : vector<64x32xbf16>, vector<32x32xbf16>, vector<64x32xf32> -> vector<64x32xf32>
      %c0_25 = arith.constant 0 : index
      %c0_26 = arith.constant 0 : index
      %62 = vector.load %arg14[%c0_25, %c0_26] : memref<64x1xf32, #tpu.memory_space<vmem>>, vector<64x1xf32>
      %cst_27 = arith.constant 1.562500e-02 : f32
      %63 = vector.broadcast %cst_27 : f32 to vector<64x1xf32>
      %64 = arith.mulf %62, %63 : vector<64x1xf32>
      %cst_28 = arith.constant 1.000000e+00 : f32
      %65 = vector.broadcast %cst_28 : f32 to vector<64x1xf32>
      %66 = arith.addf %65, %64 : vector<64x1xf32>
      %cst_29 = arith.constant 0.00999999977 : f32
      %67 = vector.broadcast %cst_29 : f32 to vector<64x1xf32>
      %68 = arith.mulf %67, %66 : vector<64x1xf32>
      %69 = vector.broadcast %68 : vector<64x1xf32> to vector<64x64xf32>
      %70 = arith.cmpf olt, %34, %69 : vector<64x64xf32>
      %c0_30 = arith.constant 0 : index
      %c0_31 = arith.constant 0 : index
      %71 = vector.load %arg18[%c0_30, %c0_31] : memref<64x32xbf16, #tpu.memory_space<vmem>>, vector<64x32xbf16>
      %72 = arith.truncf %61 : vector<64x32xf32> to vector<64x32xbf16>
      %cst_32 = arith.constant dense<0.000000e+00> : vector<64x64xf32>
      %73 = tpu.matmul %71, %72, %cst_32 {dimension_numbers = #tpu.dot_dimension_numbers<[1], [1], [0], [0], [0, 0, 1, 0], [], []>} : vector<64x32xbf16>, vector<64x32xbf16>, vector<64x64xf32> -> vector<64x64xf32>
      %cst_33 = arith.constant -1.000000e+30 : f32
      %74 = vector.broadcast %cst_33 : f32 to vector<64x64xf32>
      %75 = arith.select %70, %73, %74 : vector<64x64xi1>, vector<64x64xf32>
      %c0_34 = arith.constant 0 : index
      %c0_35 = arith.constant 0 : index
      %76 = vector.load %arg15[%c0_34, %c0_35] : memref<64x1xf32, #tpu.memory_space<vmem>>, vector<64x1xf32>
      %cst_36 = arith.constant dense<0xFF800000> : vector<64xf32>
      %77 = vector.multi_reduction <maximumf>, %75, %cst_36 [1] : vector<64x64xf32> to vector<64xf32>
      %78 = vector.shape_cast %77 : vector<64xf32> to vector<64x1xf32>
      %79 = arith.maximumf %76, %78 : vector<64x1xf32>
      %c0_37 = arith.constant 0 : index
      %c0_38 = arith.constant 0 : index
      %80 = vector.load %arg15[%c0_37, %c0_38] : memref<64x1xf32, #tpu.memory_space<vmem>>, vector<64x1xf32>
      %81 = arith.subf %80, %79 : vector<64x1xf32>
      %82 = math.exp %81 : vector<64x1xf32>
      %83 = vector.broadcast %79 : vector<64x1xf32> to vector<64x64xf32>
      %84 = arith.subf %75, %83 : vector<64x64xf32>
      %85 = math.exp %84 : vector<64x64xf32>
      %c0_39 = arith.constant 0 : index
      %c0_40 = arith.constant 0 : index
      %86 = vector.load %arg16[%c0_39, %c0_40] : memref<64x1xf32, #tpu.memory_space<vmem>>, vector<64x1xf32>
      %87 = arith.mulf %82, %86 : vector<64x1xf32>
      %cst_41 = arith.constant dense<0.000000e+00> : vector<64xf32>
      %88 = vector.multi_reduction <add>, %85, %cst_41 [1] : vector<64x64xf32> to vector<64xf32>
      %89 = vector.shape_cast %88 : vector<64xf32> to vector<64x1xf32>
      %90 = arith.addf %87, %89 : vector<64x1xf32>
      %c0_42 = arith.constant 0 : index
      %c0_43 = arith.constant 0 : index
      %91 = vector.load %arg16[%c0_42, %c0_43] : memref<64x1xf32, #tpu.memory_space<vmem>>, vector<64x1xf32>
      tpu.vector_store %arg16[%c0_42, %c0_43], %90 {strides = array<i32>} : memref<64x1xf32, #tpu.memory_space<vmem>>, vector<64x1xf32>,
      %c0_44 = arith.constant 0 : index
      %c0_45 = arith.constant 0 : index
      %92 = vector.load %arg17[%c0_44, %c0_45] : memref<64x32xf32, #tpu.memory_space<vmem>>, vector<64x32xf32>
      %93 = vector.broadcast %82 : vector<64x1xf32> to vector<64x32xf32>
      %94 = arith.mulf %93, %92 : vector<64x32xf32>
      %95 = arith.truncf %85 : vector<64x64xf32> to vector<64x64xbf16>
      %96 = arith.truncf %57 : vector<64x32xf32> to vector<64x32xbf16>
      %cst_46 = arith.constant dense<0.000000e+00> : vector<64x32xf32>
      %97 = tpu.matmul %95, %96, %cst_46 {dimension_numbers = #tpu.dot_dimension_numbers<[1], [0], [0], [1], [0, 0, 1, 1], [], []>} : vector<64x64xbf16>, vector<64x32xbf16>, vector<64x32xf32> -> vector<64x32xf32>
      %98 = arith.addf %94, %97 : vector<64x32xf32>
      %c0_47 = arith.constant 0 : index
      %c0_48 = arith.constant 0 : index
      %99 = vector.load %arg17[%c0_47, %c0_48] : memref<64x32xf32, #tpu.memory_space<vmem>>, vector<64x32xf32>
      tpu.vector_store %arg17[%c0_47, %c0_48], %98 {strides = array<i32>} : memref<64x32xf32, #tpu.memory_space<vmem>>, vector<64x32xf32>,
      %c0_49 = arith.constant 0 : index
      %c0_50 = arith.constant 0 : index
      %100 = vector.load %arg15[%c0_49, %c0_50] : memref<64x1xf32, #tpu.memory_space<vmem>>, vector<64x1xf32>
      tpu.vector_store %arg15[%c0_49, %c0_50], %79 {strides = array<i32>} : memref<64x1xf32, #tpu.memory_space<vmem>>, vector<64x1xf32>,
    } else {
    }
    %c1_i32_16 = arith.constant 1 : i32
    %51 = arith.cmpi eq, %arg1, %c1_i32_16 : i32
    %c0_i32_17 = arith.constant 0 : i32
    %52 = arith.cmpi eq, %arg2, %c0_i32_17 : i32
    %53 = arith.andi %51, %52 : i1
    %54 = arith.extui %53 : i1 to i32
    %c0_i32_18 = arith.constant 0 : i32
    %55 = arith.cmpi ne, %54, %c0_i32_18 : i32
    scf.if %55 {
      %c0_19 = arith.constant 0 : index
      %c0_20 = arith.constant 0 : index
      %c0_21 = arith.constant 0 : index
      %56 = vector.load %arg5[%c0_19, %c0_20, %c0_21] : memref<1x64x32xf32, #tpu.memory_space<vmem>>, vector<1x64x32xf32>
      %57 = vector.shape_cast %56 : vector<1x64x32xf32> to vector<64x32xf32>
      %c0_22 = arith.constant 0 : index
      %c0_23 = arith.constant 0 : index
      %58 = vector.load %arg17[%c0_22, %c0_23] : memref<64x32xf32, #tpu.memory_space<vmem>>, vector<64x32xf32>
      %c0_24 = arith.constant 0 : index
      %c0_25 = arith.constant 0 : index
      %59 = vector.load %arg16[%c0_24, %c0_25] : memref<64x1xf32, #tpu.memory_space<vmem>>, vector<64x1xf32>
      %60 = tpu.reciprocal %59 {approx = true} : vector<64x1xf32> -> vector<64x1xf32>
      %61 = vector.broadcast %60 : vector<64x1xf32> to vector<64x32xf32>
      %62 = arith.mulf %58, %61 : vector<64x32xf32>
      %63 = arith.subf %62, %57 : vector<64x32xf32>
      %64 = arith.truncf %63 : vector<64x32xf32> to vector<64x32xbf16>
      %c0_26 = arith.constant 0 : index
      %c0_27 = arith.constant 0 : index
      %65 = vector.load %arg9[%c0_26, %c0_27] : memref<32x64xf32, #tpu.memory_space<vmem>>, vector<32x64xf32>
      %66 = arith.truncf %65 : vector<32x64xf32> to vector<32x64xbf16>
      %cst_28 = arith.constant dense<0.000000e+00> : vector<64x64xf32>
      %67 = tpu.matmul %64, %66, %cst_28 {dimension_numbers = #tpu.dot_dimension_numbers<[1], [0], [0], [1], [0, 0, 1, 1], [], []>} : vector<64x32xbf16>, vector<32x64xbf16>, vector<64x64xf32> -> vector<64x64xf32>
      %68 = arith.truncf %57 : vector<64x32xf32> to vector<64x32xbf16>
      %c0_29 = arith.constant 0 : index
      %c0_30 = arith.constant 0 : index
      %69 = vector.load %arg10[%c0_29, %c0_30] : memref<32x64xf32, #tpu.memory_space<vmem>>, vector<32x64xf32>
      %70 = arith.truncf %69 : vector<32x64xf32> to vector<32x64xbf16>
      %cst_31 = arith.constant dense<0.000000e+00> : vector<64x64xf32>
      %71 = tpu.matmul %68, %70, %cst_31 {dimension_numbers = #tpu.dot_dimension_numbers<[1], [0], [0], [1], [0, 0, 1, 1], [], []>} : vector<64x32xbf16>, vector<32x64xbf16>, vector<64x64xf32> -> vector<64x64xf32>
      %72 = arith.addf %67, %71 : vector<64x64xf32>
      %c0_32 = arith.constant 0 : index
      %c0_33 = arith.constant 0 : index
      %73 = vector.load %arg11[%c0_32, %c0_33] : memref<1x64xf32, #tpu.memory_space<vmem>>, vector<1x64xf32>
      %74 = vector.broadcast %73 : vector<1x64xf32> to vector<64x64xf32>
      %75 = arith.mulf %72, %74 : vector<64x64xf32>
      %c0_34 = arith.constant 0 : index
      %c0_35 = arith.constant 0 : index
      %76 = vector.load %arg12[%c0_34, %c0_35] : memref<1x64xf32, #tpu.memory_space<vmem>>, vector<1x64xf32>
      %77 = vector.broadcast %76 : vector<1x64xf32> to vector<64x64xf32>
      %78 = arith.addf %75, %77 : vector<64x64xf32>
      %cst_36 = arith.constant 5.000000e-01 : f32
      %79 = vector.broadcast %cst_36 : f32 to vector<64x64xf32>
      %80 = arith.mulf %79, %78 : vector<64x64xf32>
      %cst_37 = arith.constant 4.471500e-02 : f32
      %81 = vector.broadcast %cst_37 : f32 to vector<64x64xf32>
      %82 = arith.mulf %81, %78 : vector<64x64xf32>
      %83 = arith.mulf %82, %78 : vector<64x64xf32>
      %84 = arith.mulf %83, %78 : vector<64x64xf32>
      %85 = arith.addf %78, %84 : vector<64x64xf32>
      %cst_38 = arith.constant 0.797884583 : f32
      %86 = vector.broadcast %cst_38 : f32 to vector<64x64xf32>
      %87 = arith.mulf %86, %85 : vector<64x64xf32>
      %88 = math.tanh %87 : vector<64x64xf32>
      %cst_39 = arith.constant 1.000000e+00 : f32
      %89 = vector.broadcast %cst_39 : f32 to vector<64x64xf32>
      %90 = arith.addf %89, %88 : vector<64x64xf32>
      %91 = arith.mulf %80, %90 : vector<64x64xf32>
      %c0_40 = arith.constant 0 : index
      %c0_41 = arith.constant 0 : index
      %c0_42 = arith.constant 0 : index
      %92 = vector.load %arg13[%c0_40, %c0_41, %c0_42] : memref<1x64x64xf32, #tpu.memory_space<vmem>>, vector<1x64x64xf32>
      %93 = vector.shape_cast %92 : vector<1x64x64xf32> to vector<64x64xf32>
      %94 = vector.shape_cast %91 : vector<64x64xf32> to vector<1x64x64xf32>
      tpu.vector_store %arg13[%c0_40, %c0_41, %c0_42], %94 {strides = array<i32>} : memref<1x64x64xf32, #tpu.memory_space<vmem>>, vector<1x64x64xf32>,
    } else {
    }
    return
  }
  func.func @transform_0(%arg0: i32, %arg1: i32, %arg2: i32) -> (i32, i32, i32) {
    %c0_i32 = arith.constant 0 : i32
    %c0_i32_0 = arith.constant 0 : i32
    %c0_i32_1 = arith.constant 0 : i32
    return %arg0, %c0_i32, %c0_i32_0 : i32, i32, i32
  }
  func.func @transform_1(%arg0: i32, %arg1: i32, %arg2: i32) -> (i32, i32, i32) {
    %c0_i32 = arith.constant 0 : i32
    %c0_i32_0 = arith.constant 0 : i32
    return %arg0, %c0_i32, %arg2 : i32, i32, i32
  }
  func.func @transform_2(%arg0: i32, %arg1: i32, %arg2: i32) -> (i32, i32, i32) {
    %c0_i32 = arith.constant 0 : i32
    %c0_i32_0 = arith.constant 0 : i32
    %c0_i32_1 = arith.constant 0 : i32
    return %arg0, %c0_i32, %c0_i32_0 : i32, i32, i32
  }
  func.func @transform_3(%arg0: i32, %arg1: i32, %arg2: i32) -> (i32, i32, i32) {
    %c0_i32 = arith.constant 0 : i32
    %c0_i32_0 = arith.constant 0 : i32
    return %arg0, %arg2, %c0_i32 : i32, i32, i32
  }
  func.func @transform_4(%arg0: i32, %arg1: i32, %arg2: i32) -> (i32, i32) {
    %c0_i32 = arith.constant 0 : i32
    %c0_i32_0 = arith.constant 0 : i32
    %c0_i32_1 = arith.constant 0 : i32
    return %c0_i32, %c0_i32_0 : i32, i32
  }
  func.func @transform_5(%arg0: i32, %arg1: i32, %arg2: i32) -> (i32, i32) {
    %c0_i32 = arith.constant 0 : i32
    %c0_i32_0 = arith.constant 0 : i32
    %c0_i32_1 = arith.constant 0 : i32
    return %c0_i32, %c0_i32_0 : i32, i32
  }
  func.func @transform_6(%arg0: i32, %arg1: i32, %arg2: i32) -> (i32, i32) {
    %c0_i32 = arith.constant 0 : i32
    %c0_i32_0 = arith.constant 0 : i32
    %c0_i32_1 = arith.constant 0 : i32
    return %c0_i32, %c0_i32_0 : i32, i32
  }
  func.func @transform_7(%arg0: i32, %arg1: i32, %arg2: i32) -> (i32, i32) {
    %c0_i32 = arith.constant 0 : i32
    %c0_i32_0 = arith.constant 0 : i32
    %c0_i32_1 = arith.constant 0 : i32
    return %c0_i32, %c0_i32_0 : i32, i32
  }
  func.func @transform_8(%arg0: i32, %arg1: i32, %arg2: i32) -> (i32, i32) {
    %c0_i32 = arith.constant 0 : i32
    %c0_i32_0 = arith.constant 0 : i32
    %c0_i32_1 = arith.constant 0 : i32
    return %c0_i32, %c0_i32_0 : i32, i32
  }
  func.func @transform_9(%arg0: i32, %arg1: i32, %arg2: i32) -> (i32, i32) {
    %c0_i32 = arith.constant 0 : i32
    %c0_i32_0 = arith.constant 0 : i32
    %c0_i32_1 = arith.constant 0 : i32
    return %c0_i32, %c0_i32_0 : i32, i32
  }
  func.func @transform_10(%arg0: i32, %arg1: i32, %arg2: i32) -> (i32, i32, i32) {
    %c0_i32 = arith.constant 0 : i32
    %c0_i32_0 = arith.constant 0 : i32
    %c0_i32_1 = arith.constant 0 : i32
    return %arg0, %c0_i32, %c0_i32_0 : i32, i32, i32
  }
}

module attributes {stable_mosaic.version = 11 : i64} {
  func.func @_diffconv_kernel(%arg0: i32, %arg1: i32, %arg2: i32, %arg3: memref<1x16x3xf32, #tpu.memory_space<vmem>>, %arg4: memref<1x3x32xf32, #tpu.memory_space<vmem>>, %arg5: memref<1x16x128xf32, #tpu.memory_space<vmem>>, %arg6: memref<1x32x128xf32, #tpu.memory_space<vmem>>, %arg7: memref<128x128xf32, #tpu.memory_space<vmem>>, %arg8: memref<128x128xf32, #tpu.memory_space<vmem>>, %arg9: memref<128x256xf32, #tpu.memory_space<vmem>>, %arg10: memref<128x256xf32, #tpu.memory_space<vmem>>, %arg11: memref<1x256xf32, #tpu.memory_space<vmem>>, %arg12: memref<1x256xf32, #tpu.memory_space<vmem>>, %arg13: memref<1x16x256xf32, #tpu.memory_space<vmem>>, %arg14: memref<16x1xf32, #tpu.memory_space<vmem>>, %arg15: memref<16x1xf32, #tpu.memory_space<vmem>>, %arg16: memref<16x1xf32, #tpu.memory_space<vmem>>, %arg17: memref<16x128xf32, #tpu.memory_space<vmem>>, %arg18: memref<16x128xbf16, #tpu.memory_space<vmem>>) attributes {dimension_semantics = [#tpu.dimension_semantics<parallel>, #tpu.dimension_semantics<arbitrary>, #tpu.dimension_semantics<arbitrary>], iteration_bounds = array<i64: 2, 2, 1>, scalar_prefetch = 0 : i64, scratch_operands = 5 : i64, tpu.core_type = #tpu.core_type<tc>, window_params = [{transform_indices = @transform_0, window_bounds = array<i64: 1, 16, 3>}, {transform_indices = @transform_1, window_bounds = array<i64: 1, 3, 32>}, {transform_indices = @transform_2, window_bounds = array<i64: 1, 16, 128>}, {transform_indices = @transform_3, window_bounds = array<i64: 1, 32, 128>}, {pipeline_mode = #tpu.pipeline_mode<synchronous>, transform_indices = @transform_4, window_bounds = array<i64: 128, 128>}, {pipeline_mode = #tpu.pipeline_mode<synchronous>, transform_indices = @transform_5, window_bounds = array<i64: 128, 128>}, {pipeline_mode = #tpu.pipeline_mode<synchronous>, transform_indices = @transform_6, window_bounds = array<i64: 128, 256>}, {pipeline_mode = #tpu.pipeline_mode<synchronous>, transform_indices = @transform_7, window_bounds = array<i64: 128, 256>}, {pipeline_mode = #tpu.pipeline_mode<synchronous>, transform_indices = @transform_8, window_bounds = array<i64: 1, 256>}, {pipeline_mode = #tpu.pipeline_mode<synchronous>, transform_indices = @transform_9, window_bounds = array<i64: 1, 256>}, {transform_indices = @transform_10, window_bounds = array<i64: 1, 16, 256>}]} {
    %c0 = arith.constant 0 : index
    %c0_0 = arith.constant 0 : index
    %c0_1 = arith.constant 0 : index
    %0 = vector.load %arg3[%c0, %c0_0, %c0_1] : memref<1x16x3xf32, #tpu.memory_space<vmem>>, vector<1x16x3xf32>
    %1 = vector.shape_cast %0 : vector<1x16x3xf32> to vector<16x3xf32>
    %c0_2 = arith.constant 0 : index
    %c0_3 = arith.constant 0 : index
    %c0_4 = arith.constant 0 : index
    %2 = vector.load %arg4[%c0_2, %c0_3, %c0_4] : memref<1x3x32xf32, #tpu.memory_space<vmem>>, vector<1x3x32xf32>
    %3 = vector.shape_cast %2 : vector<1x3x32xf32> to vector<3x32xf32>
    %4 = arith.mulf %1, %1 : vector<16x3xf32>
    %cst = arith.constant dense<0.000000e+00> : vector<16xf32>
    %5 = vector.multi_reduction <add>, %4, %cst [1] : vector<16x3xf32> to vector<16xf32>
    %6 = vector.shape_cast %5 : vector<16xf32> to vector<16x1xf32>
    %7 = arith.mulf %3, %3 : vector<3x32xf32>
    %cst_5 = arith.constant dense<0.000000e+00> : vector<32xf32>
    %8 = vector.multi_reduction <add>, %7, %cst_5 [0] : vector<3x32xf32> to vector<32xf32>
    %9 = vector.shape_cast %8 : vector<32xf32> to vector<1x32xf32>
    %10 = vector.extract_strided_slice %1 {offsets = [0, 0], sizes = [16, 1], strides = [1, 1]} : vector<16x3xf32> to vector<16x1xf32>
    %11 = vector.extract_strided_slice %3 {offsets = [0, 0], sizes = [1, 32], strides = [1, 1]} : vector<3x32xf32> to vector<1x32xf32>
    %12 = vector.broadcast %10 : vector<16x1xf32> to vector<16x32xf32>
    %13 = vector.broadcast %11 : vector<1x32xf32> to vector<16x32xf32>
    %14 = arith.mulf %12, %13 : vector<16x32xf32>
    %15 = vector.extract_strided_slice %1 {offsets = [0, 1], sizes = [16, 1], strides = [1, 1]} : vector<16x3xf32> to vector<16x1xf32>
    %16 = vector.extract_strided_slice %3 {offsets = [1, 0], sizes = [1, 32], strides = [1, 1]} : vector<3x32xf32> to vector<1x32xf32>
    %17 = vector.broadcast %15 : vector<16x1xf32> to vector<16x32xf32>
    %18 = vector.broadcast %16 : vector<1x32xf32> to vector<16x32xf32>
    %19 = arith.mulf %17, %18 : vector<16x32xf32>
    %20 = arith.addf %14, %19 : vector<16x32xf32>
    %21 = vector.extract_strided_slice %1 {offsets = [0, 2], sizes = [16, 1], strides = [1, 1]} : vector<16x3xf32> to vector<16x1xf32>
    %22 = vector.extract_strided_slice %3 {offsets = [2, 0], sizes = [1, 32], strides = [1, 1]} : vector<3x32xf32> to vector<1x32xf32>
    %23 = vector.broadcast %21 : vector<16x1xf32> to vector<16x32xf32>
    %24 = vector.broadcast %22 : vector<1x32xf32> to vector<16x32xf32>
    %25 = arith.mulf %23, %24 : vector<16x32xf32>
    %26 = arith.addf %20, %25 : vector<16x32xf32>
    %27 = vector.broadcast %6 : vector<16x1xf32> to vector<16x32xf32>
    %28 = vector.broadcast %9 : vector<1x32xf32> to vector<16x32xf32>
    %29 = arith.addf %27, %28 : vector<16x32xf32>
    %cst_6 = arith.constant 2.000000e+00 : f32
    %30 = vector.broadcast %cst_6 : f32 to vector<16x32xf32>
    %31 = arith.mulf %30, %26 : vector<16x32xf32>
    %32 = arith.subf %29, %31 : vector<16x32xf32>
    %cst_7 = arith.constant 0.000000e+00 : f32
    %33 = vector.broadcast %cst_7 : f32 to vector<16x32xf32>
    %34 = arith.maximumf %32, %33 : vector<16x32xf32>
    %c0_i32 = arith.constant 0 : i32
    %35 = arith.cmpi eq, %arg1, %c0_i32 : i32
    %c0_i32_8 = arith.constant 0 : i32
    %36 = arith.cmpi eq, %arg2, %c0_i32_8 : i32
    %37 = arith.andi %35, %36 : i1
    %38 = arith.extui %37 : i1 to i32
    %c0_i32_9 = arith.constant 0 : i32
    %39 = arith.cmpi ne, %38, %c0_i32_9 : i32
    scf.if %39 {
      %cst_19 = arith.constant 0.000000e+00 : f32
      %56 = vector.broadcast %cst_19 : f32 to vector<16x1xf32>
      %c0_20 = arith.constant 0 : index
      %c0_21 = arith.constant 0 : index
      %57 = vector.load %arg14[%c0_20, %c0_21] : memref<16x1xf32, #tpu.memory_space<vmem>>, vector<16x1xf32>
      tpu.vector_store %arg14[%c0_20, %c0_21], %56 {strides = array<i32>} : memref<16x1xf32, #tpu.memory_space<vmem>>, vector<16x1xf32>,
    } else {
    }
    %c0_i32_10 = arith.constant 0 : i32
    %40 = arith.cmpi eq, %arg1, %c0_i32_10 : i32
    %41 = arith.extui %40 : i1 to i32
    %c0_i32_11 = arith.constant 0 : i32
    %42 = arith.cmpi ne, %41, %c0_i32_11 : i32
    scf.if %42 {
      %c0_19 = arith.constant 0 : index
      %c0_20 = arith.constant 0 : index
      %56 = vector.load %arg14[%c0_19, %c0_20] : memref<16x1xf32, #tpu.memory_space<vmem>>, vector<16x1xf32>
      %cst_21 = arith.constant 1.600000e-01 : f32
      %57 = vector.broadcast %cst_21 : f32 to vector<16x32xf32>
      %58 = arith.cmpf olt, %34, %57 : vector<16x32xf32>
      %59 = arith.extui %58 : vector<16x32xi1> to vector<16x32xi32>
      %60 = arith.sitofp %59 : vector<16x32xi32> to vector<16x32xf32>
      %cst_22 = arith.constant dense<0.000000e+00> : vector<16xf32>
      %61 = vector.multi_reduction <add>, %60, %cst_22 [1] : vector<16x32xf32> to vector<16xf32>
      %62 = vector.shape_cast %61 : vector<16xf32> to vector<16x1xf32>
      %63 = arith.addf %56, %62 : vector<16x1xf32>
      %c0_23 = arith.constant 0 : index
      %c0_24 = arith.constant 0 : index
      %64 = vector.load %arg14[%c0_23, %c0_24] : memref<16x1xf32, #tpu.memory_space<vmem>>, vector<16x1xf32>
      tpu.vector_store %arg14[%c0_23, %c0_24], %63 {strides = array<i32>} : memref<16x1xf32, #tpu.memory_space<vmem>>, vector<16x1xf32>,
    } else {
    }
    %c1_i32 = arith.constant 1 : i32
    %43 = arith.cmpi eq, %arg1, %c1_i32 : i32
    %c0_i32_12 = arith.constant 0 : i32
    %44 = arith.cmpi eq, %arg2, %c0_i32_12 : i32
    %45 = arith.andi %43, %44 : i1
    %46 = arith.extui %45 : i1 to i32
    %c0_i32_13 = arith.constant 0 : i32
    %47 = arith.cmpi ne, %46, %c0_i32_13 : i32
    scf.if %47 {
      %cst_19 = arith.constant -1.000000e+30 : f32
      %56 = vector.broadcast %cst_19 : f32 to vector<16x1xf32>
      %c0_20 = arith.constant 0 : index
      %c0_21 = arith.constant 0 : index
      %57 = vector.load %arg15[%c0_20, %c0_21] : memref<16x1xf32, #tpu.memory_space<vmem>>, vector<16x1xf32>
      tpu.vector_store %arg15[%c0_20, %c0_21], %56 {strides = array<i32>} : memref<16x1xf32, #tpu.memory_space<vmem>>, vector<16x1xf32>,
      %cst_22 = arith.constant 0.000000e+00 : f32
      %58 = vector.broadcast %cst_22 : f32 to vector<16x1xf32>
      %c0_23 = arith.constant 0 : index
      %c0_24 = arith.constant 0 : index
      %59 = vector.load %arg16[%c0_23, %c0_24] : memref<16x1xf32, #tpu.memory_space<vmem>>, vector<16x1xf32>
      tpu.vector_store %arg16[%c0_23, %c0_24], %58 {strides = array<i32>} : memref<16x1xf32, #tpu.memory_space<vmem>>, vector<16x1xf32>,
      %cst_25 = arith.constant 0.000000e+00 : f32
      %60 = vector.broadcast %cst_25 : f32 to vector<16x128xf32>
      %c0_26 = arith.constant 0 : index
      %c0_27 = arith.constant 0 : index
      %61 = vector.load %arg17[%c0_26, %c0_27] : memref<16x128xf32, #tpu.memory_space<vmem>>, vector<16x128xf32>
      tpu.vector_store %arg17[%c0_26, %c0_27], %60 {strides = array<i32>} : memref<16x128xf32, #tpu.memory_space<vmem>>, vector<16x128xf32>,
      %c0_28 = arith.constant 0 : index
      %c0_29 = arith.constant 0 : index
      %c0_30 = arith.constant 0 : index
      %62 = vector.load %arg5[%c0_28, %c0_29, %c0_30] : memref<1x16x128xf32, #tpu.memory_space<vmem>>, vector<1x16x128xf32>
      %63 = vector.shape_cast %62 : vector<1x16x128xf32> to vector<16x128xf32>
      %64 = arith.truncf %63 : vector<16x128xf32> to vector<16x128xbf16>
      %c0_31 = arith.constant 0 : index
      %c0_32 = arith.constant 0 : index
      %65 = vector.load %arg7[%c0_31, %c0_32] : memref<128x128xf32, #tpu.memory_space<vmem>>, vector<128x128xf32>
      %66 = arith.truncf %65 : vector<128x128xf32> to vector<128x128xbf16>
      %cst_33 = arith.constant dense<0.000000e+00> : vector<16x128xf32>
      %67 = tpu.matmul %64, %66, %cst_33 {dimension_numbers = #tpu.dot_dimension_numbers<[1], [0], [0], [1], [0, 0, 1, 1], [], []>} : vector<16x128xbf16>, vector<128x128xbf16>, vector<16x128xf32> -> vector<16x128xf32>
      %cst_34 = arith.constant 0.0883883461 : f32
      %68 = vector.broadcast %cst_34 : f32 to vector<16x128xf32>
      %69 = arith.mulf %67, %68 : vector<16x128xf32>
      %70 = arith.truncf %69 : vector<16x128xf32> to vector<16x128xbf16>
      %c0_35 = arith.constant 0 : index
      %c0_36 = arith.constant 0 : index
      %71 = vector.load %arg18[%c0_35, %c0_36] : memref<16x128xbf16, #tpu.memory_space<vmem>>, vector<16x128xbf16>
      tpu.vector_store %arg18[%c0_35, %c0_36], %70 {strides = array<i32>} : memref<16x128xbf16, #tpu.memory_space<vmem>>, vector<16x128xbf16>,
    } else {
    }
    %c1_i32_14 = arith.constant 1 : i32
    %48 = arith.cmpi eq, %arg1, %c1_i32_14 : i32
    %49 = arith.extui %48 : i1 to i32
    %c0_i32_15 = arith.constant 0 : i32
    %50 = arith.cmpi ne, %49, %c0_i32_15 : i32
    scf.if %50 {
      %c0_19 = arith.constant 0 : index
      %c0_20 = arith.constant 0 : index
      %c0_21 = arith.constant 0 : index
      %56 = vector.load %arg6[%c0_19, %c0_20, %c0_21] : memref<1x32x128xf32, #tpu.memory_space<vmem>>, vector<1x32x128xf32>
      %57 = vector.shape_cast %56 : vector<1x32x128xf32> to vector<32x128xf32>
      %58 = arith.truncf %57 : vector<32x128xf32> to vector<32x128xbf16>
      %c0_22 = arith.constant 0 : index
      %c0_23 = arith.constant 0 : index
      %59 = vector.load %arg8[%c0_22, %c0_23] : memref<128x128xf32, #tpu.memory_space<vmem>>, vector<128x128xf32>
      %60 = arith.truncf %59 : vector<128x128xf32> to vector<128x128xbf16>
      %cst_24 = arith.constant dense<0.000000e+00> : vector<32x128xf32>
      %61 = tpu.matmul %58, %60, %cst_24 {dimension_numbers = #tpu.dot_dimension_numbers<[1], [0], [0], [1], [0, 0, 1, 1], [], []>} : vector<32x128xbf16>, vector<128x128xbf16>, vector<32x128xf32> -> vector<32x128xf32>
      %c0_25 = arith.constant 0 : index
      %c0_26 = arith.constant 0 : index
      %62 = vector.load %arg14[%c0_25, %c0_26] : memref<16x1xf32, #tpu.memory_space<vmem>>, vector<16x1xf32>
      %cst_27 = arith.constant 3.125000e-02 : f32
      %63 = vector.broadcast %cst_27 : f32 to vector<16x1xf32>
      %64 = arith.mulf %62, %63 : vector<16x1xf32>
      %cst_28 = arith.constant 1.000000e+00 : f32
      %65 = vector.broadcast %cst_28 : f32 to vector<16x1xf32>
      %66 = arith.addf %65, %64 : vector<16x1xf32>
      %cst_29 = arith.constant 1.600000e-01 : f32
      %67 = vector.broadcast %cst_29 : f32 to vector<16x1xf32>
      %68 = arith.mulf %67, %66 : vector<16x1xf32>
      %69 = vector.broadcast %68 : vector<16x1xf32> to vector<16x32xf32>
      %70 = arith.cmpf olt, %34, %69 : vector<16x32xf32>
      %c0_30 = arith.constant 0 : index
      %c0_31 = arith.constant 0 : index
      %71 = vector.load %arg18[%c0_30, %c0_31] : memref<16x128xbf16, #tpu.memory_space<vmem>>, vector<16x128xbf16>
      %72 = arith.truncf %61 : vector<32x128xf32> to vector<32x128xbf16>
      %cst_32 = arith.constant dense<0.000000e+00> : vector<16x32xf32>
      %73 = tpu.matmul %71, %72, %cst_32 {dimension_numbers = #tpu.dot_dimension_numbers<[1], [1], [0], [0], [0, 0, 1, 0], [], []>} : vector<16x128xbf16>, vector<32x128xbf16>, vector<16x32xf32> -> vector<16x32xf32>
      %cst_33 = arith.constant -1.000000e+30 : f32
      %74 = vector.broadcast %cst_33 : f32 to vector<16x32xf32>
      %75 = arith.select %70, %73, %74 : vector<16x32xi1>, vector<16x32xf32>
      %c0_34 = arith.constant 0 : index
      %c0_35 = arith.constant 0 : index
      %76 = vector.load %arg15[%c0_34, %c0_35] : memref<16x1xf32, #tpu.memory_space<vmem>>, vector<16x1xf32>
      %cst_36 = arith.constant dense<0xFF800000> : vector<16xf32>
      %77 = vector.multi_reduction <maximumf>, %75, %cst_36 [1] : vector<16x32xf32> to vector<16xf32>
      %78 = vector.shape_cast %77 : vector<16xf32> to vector<16x1xf32>
      %79 = arith.maximumf %76, %78 : vector<16x1xf32>
      %c0_37 = arith.constant 0 : index
      %c0_38 = arith.constant 0 : index
      %80 = vector.load %arg15[%c0_37, %c0_38] : memref<16x1xf32, #tpu.memory_space<vmem>>, vector<16x1xf32>
      %81 = arith.subf %80, %79 : vector<16x1xf32>
      %82 = math.exp %81 : vector<16x1xf32>
      %83 = vector.broadcast %79 : vector<16x1xf32> to vector<16x32xf32>
      %84 = arith.subf %75, %83 : vector<16x32xf32>
      %85 = math.exp %84 : vector<16x32xf32>
      %c0_39 = arith.constant 0 : index
      %c0_40 = arith.constant 0 : index
      %86 = vector.load %arg16[%c0_39, %c0_40] : memref<16x1xf32, #tpu.memory_space<vmem>>, vector<16x1xf32>
      %87 = arith.mulf %82, %86 : vector<16x1xf32>
      %cst_41 = arith.constant dense<0.000000e+00> : vector<16xf32>
      %88 = vector.multi_reduction <add>, %85, %cst_41 [1] : vector<16x32xf32> to vector<16xf32>
      %89 = vector.shape_cast %88 : vector<16xf32> to vector<16x1xf32>
      %90 = arith.addf %87, %89 : vector<16x1xf32>
      %c0_42 = arith.constant 0 : index
      %c0_43 = arith.constant 0 : index
      %91 = vector.load %arg16[%c0_42, %c0_43] : memref<16x1xf32, #tpu.memory_space<vmem>>, vector<16x1xf32>
      tpu.vector_store %arg16[%c0_42, %c0_43], %90 {strides = array<i32>} : memref<16x1xf32, #tpu.memory_space<vmem>>, vector<16x1xf32>,
      %c0_44 = arith.constant 0 : index
      %c0_45 = arith.constant 0 : index
      %92 = vector.load %arg17[%c0_44, %c0_45] : memref<16x128xf32, #tpu.memory_space<vmem>>, vector<16x128xf32>
      %93 = vector.broadcast %82 : vector<16x1xf32> to vector<16x128xf32>
      %94 = arith.mulf %93, %92 : vector<16x128xf32>
      %95 = arith.truncf %85 : vector<16x32xf32> to vector<16x32xbf16>
      %96 = arith.truncf %57 : vector<32x128xf32> to vector<32x128xbf16>
      %cst_46 = arith.constant dense<0.000000e+00> : vector<16x128xf32>
      %97 = tpu.matmul %95, %96, %cst_46 {dimension_numbers = #tpu.dot_dimension_numbers<[1], [0], [0], [1], [0, 0, 1, 1], [], []>} : vector<16x32xbf16>, vector<32x128xbf16>, vector<16x128xf32> -> vector<16x128xf32>
      %98 = arith.addf %94, %97 : vector<16x128xf32>
      %c0_47 = arith.constant 0 : index
      %c0_48 = arith.constant 0 : index
      %99 = vector.load %arg17[%c0_47, %c0_48] : memref<16x128xf32, #tpu.memory_space<vmem>>, vector<16x128xf32>
      tpu.vector_store %arg17[%c0_47, %c0_48], %98 {strides = array<i32>} : memref<16x128xf32, #tpu.memory_space<vmem>>, vector<16x128xf32>,
      %c0_49 = arith.constant 0 : index
      %c0_50 = arith.constant 0 : index
      %100 = vector.load %arg15[%c0_49, %c0_50] : memref<16x1xf32, #tpu.memory_space<vmem>>, vector<16x1xf32>
      tpu.vector_store %arg15[%c0_49, %c0_50], %79 {strides = array<i32>} : memref<16x1xf32, #tpu.memory_space<vmem>>, vector<16x1xf32>,
    } else {
    }
    %c1_i32_16 = arith.constant 1 : i32
    %51 = arith.cmpi eq, %arg1, %c1_i32_16 : i32
    %c0_i32_17 = arith.constant 0 : i32
    %52 = arith.cmpi eq, %arg2, %c0_i32_17 : i32
    %53 = arith.andi %51, %52 : i1
    %54 = arith.extui %53 : i1 to i32
    %c0_i32_18 = arith.constant 0 : i32
    %55 = arith.cmpi ne, %54, %c0_i32_18 : i32
    scf.if %55 {
      %c0_19 = arith.constant 0 : index
      %c0_20 = arith.constant 0 : index
      %c0_21 = arith.constant 0 : index
      %56 = vector.load %arg5[%c0_19, %c0_20, %c0_21] : memref<1x16x128xf32, #tpu.memory_space<vmem>>, vector<1x16x128xf32>
      %57 = vector.shape_cast %56 : vector<1x16x128xf32> to vector<16x128xf32>
      %c0_22 = arith.constant 0 : index
      %c0_23 = arith.constant 0 : index
      %58 = vector.load %arg17[%c0_22, %c0_23] : memref<16x128xf32, #tpu.memory_space<vmem>>, vector<16x128xf32>
      %c0_24 = arith.constant 0 : index
      %c0_25 = arith.constant 0 : index
      %59 = vector.load %arg16[%c0_24, %c0_25] : memref<16x1xf32, #tpu.memory_space<vmem>>, vector<16x1xf32>
      %60 = tpu.reciprocal %59 {approx = true} : vector<16x1xf32> -> vector<16x1xf32>
      %61 = vector.broadcast %60 : vector<16x1xf32> to vector<16x128xf32>
      %62 = arith.mulf %58, %61 : vector<16x128xf32>
      %63 = arith.subf %62, %57 : vector<16x128xf32>
      %64 = arith.truncf %63 : vector<16x128xf32> to vector<16x128xbf16>
      %c0_26 = arith.constant 0 : index
      %c0_27 = arith.constant 0 : index
      %65 = vector.load %arg9[%c0_26, %c0_27] : memref<128x256xf32, #tpu.memory_space<vmem>>, vector<128x256xf32>
      %66 = arith.truncf %65 : vector<128x256xf32> to vector<128x256xbf16>
      %cst_28 = arith.constant dense<0.000000e+00> : vector<16x256xf32>
      %67 = tpu.matmul %64, %66, %cst_28 {dimension_numbers = #tpu.dot_dimension_numbers<[1], [0], [0], [1], [0, 0, 1, 1], [], []>} : vector<16x128xbf16>, vector<128x256xbf16>, vector<16x256xf32> -> vector<16x256xf32>
      %68 = arith.truncf %57 : vector<16x128xf32> to vector<16x128xbf16>
      %c0_29 = arith.constant 0 : index
      %c0_30 = arith.constant 0 : index
      %69 = vector.load %arg10[%c0_29, %c0_30] : memref<128x256xf32, #tpu.memory_space<vmem>>, vector<128x256xf32>
      %70 = arith.truncf %69 : vector<128x256xf32> to vector<128x256xbf16>
      %cst_31 = arith.constant dense<0.000000e+00> : vector<16x256xf32>
      %71 = tpu.matmul %68, %70, %cst_31 {dimension_numbers = #tpu.dot_dimension_numbers<[1], [0], [0], [1], [0, 0, 1, 1], [], []>} : vector<16x128xbf16>, vector<128x256xbf16>, vector<16x256xf32> -> vector<16x256xf32>
      %72 = arith.addf %67, %71 : vector<16x256xf32>
      %c0_32 = arith.constant 0 : index
      %c0_33 = arith.constant 0 : index
      %73 = vector.load %arg11[%c0_32, %c0_33] : memref<1x256xf32, #tpu.memory_space<vmem>>, vector<1x256xf32>
      %74 = vector.broadcast %73 : vector<1x256xf32> to vector<16x256xf32>
      %75 = arith.mulf %72, %74 : vector<16x256xf32>
      %c0_34 = arith.constant 0 : index
      %c0_35 = arith.constant 0 : index
      %76 = vector.load %arg12[%c0_34, %c0_35] : memref<1x256xf32, #tpu.memory_space<vmem>>, vector<1x256xf32>
      %77 = vector.broadcast %76 : vector<1x256xf32> to vector<16x256xf32>
      %78 = arith.addf %75, %77 : vector<16x256xf32>
      %cst_36 = arith.constant 5.000000e-01 : f32
      %79 = vector.broadcast %cst_36 : f32 to vector<16x256xf32>
      %80 = arith.mulf %79, %78 : vector<16x256xf32>
      %cst_37 = arith.constant 4.471500e-02 : f32
      %81 = vector.broadcast %cst_37 : f32 to vector<16x256xf32>
      %82 = arith.mulf %81, %78 : vector<16x256xf32>
      %83 = arith.mulf %82, %78 : vector<16x256xf32>
      %84 = arith.mulf %83, %78 : vector<16x256xf32>
      %85 = arith.addf %78, %84 : vector<16x256xf32>
      %cst_38 = arith.constant 0.797884583 : f32
      %86 = vector.broadcast %cst_38 : f32 to vector<16x256xf32>
      %87 = arith.mulf %86, %85 : vector<16x256xf32>
      %88 = math.tanh %87 : vector<16x256xf32>
      %cst_39 = arith.constant 1.000000e+00 : f32
      %89 = vector.broadcast %cst_39 : f32 to vector<16x256xf32>
      %90 = arith.addf %89, %88 : vector<16x256xf32>
      %91 = arith.mulf %80, %90 : vector<16x256xf32>
      %c0_40 = arith.constant 0 : index
      %c0_41 = arith.constant 0 : index
      %c0_42 = arith.constant 0 : index
      %92 = vector.load %arg13[%c0_40, %c0_41, %c0_42] : memref<1x16x256xf32, #tpu.memory_space<vmem>>, vector<1x16x256xf32>
      %93 = vector.shape_cast %92 : vector<1x16x256xf32> to vector<16x256xf32>
      %94 = vector.shape_cast %91 : vector<16x256xf32> to vector<1x16x256xf32>
      tpu.vector_store %arg13[%c0_40, %c0_41, %c0_42], %94 {strides = array<i32>} : memref<1x16x256xf32, #tpu.memory_space<vmem>>, vector<1x16x256xf32>,
    } else {
    }
    return
  }
  func.func @transform_0(%arg0: i32, %arg1: i32, %arg2: i32) -> (i32, i32, i32) {
    %c0_i32 = arith.constant 0 : i32
    %c0_i32_0 = arith.constant 0 : i32
    %c0_i32_1 = arith.constant 0 : i32
    return %arg0, %c0_i32, %c0_i32_0 : i32, i32, i32
  }
  func.func @transform_1(%arg0: i32, %arg1: i32, %arg2: i32) -> (i32, i32, i32) {
    %c0_i32 = arith.constant 0 : i32
    %c0_i32_0 = arith.constant 0 : i32
    return %arg0, %c0_i32, %arg2 : i32, i32, i32
  }
  func.func @transform_2(%arg0: i32, %arg1: i32, %arg2: i32) -> (i32, i32, i32) {
    %c0_i32 = arith.constant 0 : i32
    %c0_i32_0 = arith.constant 0 : i32
    %c0_i32_1 = arith.constant 0 : i32
    return %arg0, %c0_i32, %c0_i32_0 : i32, i32, i32
  }
  func.func @transform_3(%arg0: i32, %arg1: i32, %arg2: i32) -> (i32, i32, i32) {
    %c0_i32 = arith.constant 0 : i32
    %c0_i32_0 = arith.constant 0 : i32
    return %arg0, %arg2, %c0_i32 : i32, i32, i32
  }
  func.func @transform_4(%arg0: i32, %arg1: i32, %arg2: i32) -> (i32, i32) {
    %c0_i32 = arith.constant 0 : i32
    %c0_i32_0 = arith.constant 0 : i32
    %c0_i32_1 = arith.constant 0 : i32
    return %c0_i32, %c0_i32_0 : i32, i32
  }
  func.func @transform_5(%arg0: i32, %arg1: i32, %arg2: i32) -> (i32, i32) {
    %c0_i32 = arith.constant 0 : i32
    %c0_i32_0 = arith.constant 0 : i32
    %c0_i32_1 = arith.constant 0 : i32
    return %c0_i32, %c0_i32_0 : i32, i32
  }
  func.func @transform_6(%arg0: i32, %arg1: i32, %arg2: i32) -> (i32, i32) {
    %c0_i32 = arith.constant 0 : i32
    %c0_i32_0 = arith.constant 0 : i32
    %c0_i32_1 = arith.constant 0 : i32
    return %c0_i32, %c0_i32_0 : i32, i32
  }
  func.func @transform_7(%arg0: i32, %arg1: i32, %arg2: i32) -> (i32, i32) {
    %c0_i32 = arith.constant 0 : i32
    %c0_i32_0 = arith.constant 0 : i32
    %c0_i32_1 = arith.constant 0 : i32
    return %c0_i32, %c0_i32_0 : i32, i32
  }
  func.func @transform_8(%arg0: i32, %arg1: i32, %arg2: i32) -> (i32, i32) {
    %c0_i32 = arith.constant 0 : i32
    %c0_i32_0 = arith.constant 0 : i32
    %c0_i32_1 = arith.constant 0 : i32
    return %c0_i32, %c0_i32_0 : i32, i32
  }
  func.func @transform_9(%arg0: i32, %arg1: i32, %arg2: i32) -> (i32, i32) {
    %c0_i32 = arith.constant 0 : i32
    %c0_i32_0 = arith.constant 0 : i32
    %c0_i32_1 = arith.constant 0 : i32
    return %c0_i32, %c0_i32_0 : i32, i32
  }
  func.func @transform_10(%arg0: i32, %arg1: i32, %arg2: i32) -> (i32, i32, i32) {
    %c0_i32 = arith.constant 0 : i32
    %c0_i32_0 = arith.constant 0 : i32
    %c0_i32_1 = arith.constant 0 : i32
    return %arg0, %c0_i32, %c0_i32_0 : i32, i32, i32
  }
}

module attributes {stable_mosaic.version = 11 : i64} {
  func.func @_diffconv_kernel(%arg0: i32, %arg1: i32, %arg2: i32, %arg3: memref<1x8x3xf32, #tpu.memory_space<vmem>>, %arg4: memref<1x3x16xf32, #tpu.memory_space<vmem>>, %arg5: memref<1x8x256xf32, #tpu.memory_space<vmem>>, %arg6: memref<1x16x256xf32, #tpu.memory_space<vmem>>, %arg7: memref<256x256xf32, #tpu.memory_space<vmem>>, %arg8: memref<256x256xf32, #tpu.memory_space<vmem>>, %arg9: memref<256x512xf32, #tpu.memory_space<vmem>>, %arg10: memref<256x512xf32, #tpu.memory_space<vmem>>, %arg11: memref<1x512xf32, #tpu.memory_space<vmem>>, %arg12: memref<1x512xf32, #tpu.memory_space<vmem>>, %arg13: memref<1x8x512xf32, #tpu.memory_space<vmem>>, %arg14: memref<8x1xf32, #tpu.memory_space<vmem>>, %arg15: memref<8x1xf32, #tpu.memory_space<vmem>>, %arg16: memref<8x1xf32, #tpu.memory_space<vmem>>, %arg17: memref<8x256xf32, #tpu.memory_space<vmem>>, %arg18: memref<8x256xbf16, #tpu.memory_space<vmem>>) attributes {dimension_semantics = [#tpu.dimension_semantics<parallel>, #tpu.dimension_semantics<arbitrary>, #tpu.dimension_semantics<arbitrary>], iteration_bounds = array<i64: 2, 2, 1>, scalar_prefetch = 0 : i64, scratch_operands = 5 : i64, tpu.core_type = #tpu.core_type<tc>, window_params = [{transform_indices = @transform_0, window_bounds = array<i64: 1, 8, 3>}, {transform_indices = @transform_1, window_bounds = array<i64: 1, 3, 16>}, {transform_indices = @transform_2, window_bounds = array<i64: 1, 8, 256>}, {transform_indices = @transform_3, window_bounds = array<i64: 1, 16, 256>}, {pipeline_mode = #tpu.pipeline_mode<synchronous>, transform_indices = @transform_4, window_bounds = array<i64: 256, 256>}, {pipeline_mode = #tpu.pipeline_mode<synchronous>, transform_indices = @transform_5, window_bounds = array<i64: 256, 256>}, {pipeline_mode = #tpu.pipeline_mode<synchronous>, transform_indices = @transform_6, window_bounds = array<i64: 256, 512>}, {pipeline_mode = #tpu.pipeline_mode<synchronous>, transform_indices = @transform_7, window_bounds = array<i64: 256, 512>}, {pipeline_mode = #tpu.pipeline_mode<synchronous>, transform_indices = @transform_8, window_bounds = array<i64: 1, 512>}, {pipeline_mode = #tpu.pipeline_mode<synchronous>, transform_indices = @transform_9, window_bounds = array<i64: 1, 512>}, {transform_indices = @transform_10, window_bounds = array<i64: 1, 8, 512>}]} {
    %c0 = arith.constant 0 : index
    %c0_0 = arith.constant 0 : index
    %c0_1 = arith.constant 0 : index
    %0 = vector.load %arg3[%c0, %c0_0, %c0_1] : memref<1x8x3xf32, #tpu.memory_space<vmem>>, vector<1x8x3xf32>
    %1 = vector.shape_cast %0 : vector<1x8x3xf32> to vector<8x3xf32>
    %c0_2 = arith.constant 0 : index
    %c0_3 = arith.constant 0 : index
    %c0_4 = arith.constant 0 : index
    %2 = vector.load %arg4[%c0_2, %c0_3, %c0_4] : memref<1x3x16xf32, #tpu.memory_space<vmem>>, vector<1x3x16xf32>
    %3 = vector.shape_cast %2 : vector<1x3x16xf32> to vector<3x16xf32>
    %4 = arith.mulf %1, %1 : vector<8x3xf32>
    %cst = arith.constant dense<0.000000e+00> : vector<8xf32>
    %5 = vector.multi_reduction <add>, %4, %cst [1] : vector<8x3xf32> to vector<8xf32>
    %6 = vector.shape_cast %5 : vector<8xf32> to vector<8x1xf32>
    %7 = arith.mulf %3, %3 : vector<3x16xf32>
    %cst_5 = arith.constant dense<0.000000e+00> : vector<16xf32>
    %8 = vector.multi_reduction <add>, %7, %cst_5 [0] : vector<3x16xf32> to vector<16xf32>
    %9 = vector.shape_cast %8 : vector<16xf32> to vector<1x16xf32>
    %10 = vector.extract_strided_slice %1 {offsets = [0, 0], sizes = [8, 1], strides = [1, 1]} : vector<8x3xf32> to vector<8x1xf32>
    %11 = vector.extract_strided_slice %3 {offsets = [0, 0], sizes = [1, 16], strides = [1, 1]} : vector<3x16xf32> to vector<1x16xf32>
    %12 = vector.broadcast %10 : vector<8x1xf32> to vector<8x16xf32>
    %13 = vector.broadcast %11 : vector<1x16xf32> to vector<8x16xf32>
    %14 = arith.mulf %12, %13 : vector<8x16xf32>
    %15 = vector.extract_strided_slice %1 {offsets = [0, 1], sizes = [8, 1], strides = [1, 1]} : vector<8x3xf32> to vector<8x1xf32>
    %16 = vector.extract_strided_slice %3 {offsets = [1, 0], sizes = [1, 16], strides = [1, 1]} : vector<3x16xf32> to vector<1x16xf32>
    %17 = vector.broadcast %15 : vector<8x1xf32> to vector<8x16xf32>
    %18 = vector.broadcast %16 : vector<1x16xf32> to vector<8x16xf32>
    %19 = arith.mulf %17, %18 : vector<8x16xf32>
    %20 = arith.addf %14, %19 : vector<8x16xf32>
    %21 = vector.extract_strided_slice %1 {offsets = [0, 2], sizes = [8, 1], strides = [1, 1]} : vector<8x3xf32> to vector<8x1xf32>
    %22 = vector.extract_strided_slice %3 {offsets = [2, 0], sizes = [1, 16], strides = [1, 1]} : vector<3x16xf32> to vector<1x16xf32>
    %23 = vector.broadcast %21 : vector<8x1xf32> to vector<8x16xf32>
    %24 = vector.broadcast %22 : vector<1x16xf32> to vector<8x16xf32>
    %25 = arith.mulf %23, %24 : vector<8x16xf32>
    %26 = arith.addf %20, %25 : vector<8x16xf32>
    %27 = vector.broadcast %6 : vector<8x1xf32> to vector<8x16xf32>
    %28 = vector.broadcast %9 : vector<1x16xf32> to vector<8x16xf32>
    %29 = arith.addf %27, %28 : vector<8x16xf32>
    %cst_6 = arith.constant 2.000000e+00 : f32
    %30 = vector.broadcast %cst_6 : f32 to vector<8x16xf32>
    %31 = arith.mulf %30, %26 : vector<8x16xf32>
    %32 = arith.subf %29, %31 : vector<8x16xf32>
    %cst_7 = arith.constant 0.000000e+00 : f32
    %33 = vector.broadcast %cst_7 : f32 to vector<8x16xf32>
    %34 = arith.maximumf %32, %33 : vector<8x16xf32>
    %c0_i32 = arith.constant 0 : i32
    %35 = arith.cmpi eq, %arg1, %c0_i32 : i32
    %c0_i32_8 = arith.constant 0 : i32
    %36 = arith.cmpi eq, %arg2, %c0_i32_8 : i32
    %37 = arith.andi %35, %36 : i1
    %38 = arith.extui %37 : i1 to i32
    %c0_i32_9 = arith.constant 0 : i32
    %39 = arith.cmpi ne, %38, %c0_i32_9 : i32
    scf.if %39 {
      %cst_19 = arith.constant 0.000000e+00 : f32
      %56 = vector.broadcast %cst_19 : f32 to vector<8x1xf32>
      %c0_20 = arith.constant 0 : index
      %c0_21 = arith.constant 0 : index
      %57 = vector.load %arg14[%c0_20, %c0_21] : memref<8x1xf32, #tpu.memory_space<vmem>>, vector<8x1xf32>
      tpu.vector_store %arg14[%c0_20, %c0_21], %56 {strides = array<i32>} : memref<8x1xf32, #tpu.memory_space<vmem>>, vector<8x1xf32>,
    } else {
    }
    %c0_i32_10 = arith.constant 0 : i32
    %40 = arith.cmpi eq, %arg1, %c0_i32_10 : i32
    %41 = arith.extui %40 : i1 to i32
    %c0_i32_11 = arith.constant 0 : i32
    %42 = arith.cmpi ne, %41, %c0_i32_11 : i32
    scf.if %42 {
      %c0_19 = arith.constant 0 : index
      %c0_20 = arith.constant 0 : index
      %56 = vector.load %arg14[%c0_19, %c0_20] : memref<8x1xf32, #tpu.memory_space<vmem>>, vector<8x1xf32>
      %cst_21 = arith.constant 6.400000e-01 : f32
      %57 = vector.broadcast %cst_21 : f32 to vector<8x16xf32>
      %58 = arith.cmpf olt, %34, %57 : vector<8x16xf32>
      %59 = arith.extui %58 : vector<8x16xi1> to vector<8x16xi32>
      %60 = arith.sitofp %59 : vector<8x16xi32> to vector<8x16xf32>
      %cst_22 = arith.constant dense<0.000000e+00> : vector<8xf32>
      %61 = vector.multi_reduction <add>, %60, %cst_22 [1] : vector<8x16xf32> to vector<8xf32>
      %62 = vector.shape_cast %61 : vector<8xf32> to vector<8x1xf32>
      %63 = arith.addf %56, %62 : vector<8x1xf32>
      %c0_23 = arith.constant 0 : index
      %c0_24 = arith.constant 0 : index
      %64 = vector.load %arg14[%c0_23, %c0_24] : memref<8x1xf32, #tpu.memory_space<vmem>>, vector<8x1xf32>
      tpu.vector_store %arg14[%c0_23, %c0_24], %63 {strides = array<i32>} : memref<8x1xf32, #tpu.memory_space<vmem>>, vector<8x1xf32>,
    } else {
    }
    %c1_i32 = arith.constant 1 : i32
    %43 = arith.cmpi eq, %arg1, %c1_i32 : i32
    %c0_i32_12 = arith.constant 0 : i32
    %44 = arith.cmpi eq, %arg2, %c0_i32_12 : i32
    %45 = arith.andi %43, %44 : i1
    %46 = arith.extui %45 : i1 to i32
    %c0_i32_13 = arith.constant 0 : i32
    %47 = arith.cmpi ne, %46, %c0_i32_13 : i32
    scf.if %47 {
      %cst_19 = arith.constant -1.000000e+30 : f32
      %56 = vector.broadcast %cst_19 : f32 to vector<8x1xf32>
      %c0_20 = arith.constant 0 : index
      %c0_21 = arith.constant 0 : index
      %57 = vector.load %arg15[%c0_20, %c0_21] : memref<8x1xf32, #tpu.memory_space<vmem>>, vector<8x1xf32>
      tpu.vector_store %arg15[%c0_20, %c0_21], %56 {strides = array<i32>} : memref<8x1xf32, #tpu.memory_space<vmem>>, vector<8x1xf32>,
      %cst_22 = arith.constant 0.000000e+00 : f32
      %58 = vector.broadcast %cst_22 : f32 to vector<8x1xf32>
      %c0_23 = arith.constant 0 : index
      %c0_24 = arith.constant 0 : index
      %59 = vector.load %arg16[%c0_23, %c0_24] : memref<8x1xf32, #tpu.memory_space<vmem>>, vector<8x1xf32>
      tpu.vector_store %arg16[%c0_23, %c0_24], %58 {strides = array<i32>} : memref<8x1xf32, #tpu.memory_space<vmem>>, vector<8x1xf32>,
      %cst_25 = arith.constant 0.000000e+00 : f32
      %60 = vector.broadcast %cst_25 : f32 to vector<8x256xf32>
      %c0_26 = arith.constant 0 : index
      %c0_27 = arith.constant 0 : index
      %61 = vector.load %arg17[%c0_26, %c0_27] : memref<8x256xf32, #tpu.memory_space<vmem>>, vector<8x256xf32>
      tpu.vector_store %arg17[%c0_26, %c0_27], %60 {strides = array<i32>} : memref<8x256xf32, #tpu.memory_space<vmem>>, vector<8x256xf32>,
      %c0_28 = arith.constant 0 : index
      %c0_29 = arith.constant 0 : index
      %c0_30 = arith.constant 0 : index
      %62 = vector.load %arg5[%c0_28, %c0_29, %c0_30] : memref<1x8x256xf32, #tpu.memory_space<vmem>>, vector<1x8x256xf32>
      %63 = vector.shape_cast %62 : vector<1x8x256xf32> to vector<8x256xf32>
      %64 = arith.truncf %63 : vector<8x256xf32> to vector<8x256xbf16>
      %c0_31 = arith.constant 0 : index
      %c0_32 = arith.constant 0 : index
      %65 = vector.load %arg7[%c0_31, %c0_32] : memref<256x256xf32, #tpu.memory_space<vmem>>, vector<256x256xf32>
      %66 = arith.truncf %65 : vector<256x256xf32> to vector<256x256xbf16>
      %cst_33 = arith.constant dense<0.000000e+00> : vector<8x256xf32>
      %67 = tpu.matmul %64, %66, %cst_33 {dimension_numbers = #tpu.dot_dimension_numbers<[1], [0], [0], [1], [0, 0, 1, 1], [], []>} : vector<8x256xbf16>, vector<256x256xbf16>, vector<8x256xf32> -> vector<8x256xf32>
      %cst_34 = arith.constant 6.250000e-02 : f32
      %68 = vector.broadcast %cst_34 : f32 to vector<8x256xf32>
      %69 = arith.mulf %67, %68 : vector<8x256xf32>
      %70 = arith.truncf %69 : vector<8x256xf32> to vector<8x256xbf16>
      %c0_35 = arith.constant 0 : index
      %c0_36 = arith.constant 0 : index
      %71 = vector.load %arg18[%c0_35, %c0_36] : memref<8x256xbf16, #tpu.memory_space<vmem>>, vector<8x256xbf16>
      tpu.vector_store %arg18[%c0_35, %c0_36], %70 {strides = array<i32>} : memref<8x256xbf16, #tpu.memory_space<vmem>>, vector<8x256xbf16>,
    } else {
    }
    %c1_i32_14 = arith.constant 1 : i32
    %48 = arith.cmpi eq, %arg1, %c1_i32_14 : i32
    %49 = arith.extui %48 : i1 to i32
    %c0_i32_15 = arith.constant 0 : i32
    %50 = arith.cmpi ne, %49, %c0_i32_15 : i32
    scf.if %50 {
      %c0_19 = arith.constant 0 : index
      %c0_20 = arith.constant 0 : index
      %c0_21 = arith.constant 0 : index
      %56 = vector.load %arg6[%c0_19, %c0_20, %c0_21] : memref<1x16x256xf32, #tpu.memory_space<vmem>>, vector<1x16x256xf32>
      %57 = vector.shape_cast %56 : vector<1x16x256xf32> to vector<16x256xf32>
      %58 = arith.truncf %57 : vector<16x256xf32> to vector<16x256xbf16>
      %c0_22 = arith.constant 0 : index
      %c0_23 = arith.constant 0 : index
      %59 = vector.load %arg8[%c0_22, %c0_23] : memref<256x256xf32, #tpu.memory_space<vmem>>, vector<256x256xf32>
      %60 = arith.truncf %59 : vector<256x256xf32> to vector<256x256xbf16>
      %cst_24 = arith.constant dense<0.000000e+00> : vector<16x256xf32>
      %61 = tpu.matmul %58, %60, %cst_24 {dimension_numbers = #tpu.dot_dimension_numbers<[1], [0], [0], [1], [0, 0, 1, 1], [], []>} : vector<16x256xbf16>, vector<256x256xbf16>, vector<16x256xf32> -> vector<16x256xf32>
      %c0_25 = arith.constant 0 : index
      %c0_26 = arith.constant 0 : index
      %62 = vector.load %arg14[%c0_25, %c0_26] : memref<8x1xf32, #tpu.memory_space<vmem>>, vector<8x1xf32>
      %cst_27 = arith.constant 6.250000e-02 : f32
      %63 = vector.broadcast %cst_27 : f32 to vector<8x1xf32>
      %64 = arith.mulf %62, %63 : vector<8x1xf32>
      %cst_28 = arith.constant 1.000000e+00 : f32
      %65 = vector.broadcast %cst_28 : f32 to vector<8x1xf32>
      %66 = arith.addf %65, %64 : vector<8x1xf32>
      %cst_29 = arith.constant 6.400000e-01 : f32
      %67 = vector.broadcast %cst_29 : f32 to vector<8x1xf32>
      %68 = arith.mulf %67, %66 : vector<8x1xf32>
      %69 = vector.broadcast %68 : vector<8x1xf32> to vector<8x16xf32>
      %70 = arith.cmpf olt, %34, %69 : vector<8x16xf32>
      %c0_30 = arith.constant 0 : index
      %c0_31 = arith.constant 0 : index
      %71 = vector.load %arg18[%c0_30, %c0_31] : memref<8x256xbf16, #tpu.memory_space<vmem>>, vector<8x256xbf16>
      %72 = arith.truncf %61 : vector<16x256xf32> to vector<16x256xbf16>
      %cst_32 = arith.constant dense<0.000000e+00> : vector<8x16xf32>
      %73 = tpu.matmul %71, %72, %cst_32 {dimension_numbers = #tpu.dot_dimension_numbers<[1], [1], [0], [0], [0, 0, 1, 0], [], []>} : vector<8x256xbf16>, vector<16x256xbf16>, vector<8x16xf32> -> vector<8x16xf32>
      %cst_33 = arith.constant -1.000000e+30 : f32
      %74 = vector.broadcast %cst_33 : f32 to vector<8x16xf32>
      %75 = arith.select %70, %73, %74 : vector<8x16xi1>, vector<8x16xf32>
      %c0_34 = arith.constant 0 : index
      %c0_35 = arith.constant 0 : index
      %76 = vector.load %arg15[%c0_34, %c0_35] : memref<8x1xf32, #tpu.memory_space<vmem>>, vector<8x1xf32>
      %cst_36 = arith.constant dense<0xFF800000> : vector<8xf32>
      %77 = vector.multi_reduction <maximumf>, %75, %cst_36 [1] : vector<8x16xf32> to vector<8xf32>
      %78 = vector.shape_cast %77 : vector<8xf32> to vector<8x1xf32>
      %79 = arith.maximumf %76, %78 : vector<8x1xf32>
      %c0_37 = arith.constant 0 : index
      %c0_38 = arith.constant 0 : index
      %80 = vector.load %arg15[%c0_37, %c0_38] : memref<8x1xf32, #tpu.memory_space<vmem>>, vector<8x1xf32>
      %81 = arith.subf %80, %79 : vector<8x1xf32>
      %82 = math.exp %81 : vector<8x1xf32>
      %83 = vector.broadcast %79 : vector<8x1xf32> to vector<8x16xf32>
      %84 = arith.subf %75, %83 : vector<8x16xf32>
      %85 = math.exp %84 : vector<8x16xf32>
      %c0_39 = arith.constant 0 : index
      %c0_40 = arith.constant 0 : index
      %86 = vector.load %arg16[%c0_39, %c0_40] : memref<8x1xf32, #tpu.memory_space<vmem>>, vector<8x1xf32>
      %87 = arith.mulf %82, %86 : vector<8x1xf32>
      %cst_41 = arith.constant dense<0.000000e+00> : vector<8xf32>
      %88 = vector.multi_reduction <add>, %85, %cst_41 [1] : vector<8x16xf32> to vector<8xf32>
      %89 = vector.shape_cast %88 : vector<8xf32> to vector<8x1xf32>
      %90 = arith.addf %87, %89 : vector<8x1xf32>
      %c0_42 = arith.constant 0 : index
      %c0_43 = arith.constant 0 : index
      %91 = vector.load %arg16[%c0_42, %c0_43] : memref<8x1xf32, #tpu.memory_space<vmem>>, vector<8x1xf32>
      tpu.vector_store %arg16[%c0_42, %c0_43], %90 {strides = array<i32>} : memref<8x1xf32, #tpu.memory_space<vmem>>, vector<8x1xf32>,
      %c0_44 = arith.constant 0 : index
      %c0_45 = arith.constant 0 : index
      %92 = vector.load %arg17[%c0_44, %c0_45] : memref<8x256xf32, #tpu.memory_space<vmem>>, vector<8x256xf32>
      %93 = vector.broadcast %82 : vector<8x1xf32> to vector<8x256xf32>
      %94 = arith.mulf %93, %92 : vector<8x256xf32>
      %95 = arith.truncf %85 : vector<8x16xf32> to vector<8x16xbf16>
      %96 = arith.truncf %57 : vector<16x256xf32> to vector<16x256xbf16>
      %cst_46 = arith.constant dense<0.000000e+00> : vector<8x256xf32>
      %97 = tpu.matmul %95, %96, %cst_46 {dimension_numbers = #tpu.dot_dimension_numbers<[1], [0], [0], [1], [0, 0, 1, 1], [], []>} : vector<8x16xbf16>, vector<16x256xbf16>, vector<8x256xf32> -> vector<8x256xf32>
      %98 = arith.addf %94, %97 : vector<8x256xf32>
      %c0_47 = arith.constant 0 : index
      %c0_48 = arith.constant 0 : index
      %99 = vector.load %arg17[%c0_47, %c0_48] : memref<8x256xf32, #tpu.memory_space<vmem>>, vector<8x256xf32>
      tpu.vector_store %arg17[%c0_47, %c0_48], %98 {strides = array<i32>} : memref<8x256xf32, #tpu.memory_space<vmem>>, vector<8x256xf32>,
      %c0_49 = arith.constant 0 : index
      %c0_50 = arith.constant 0 : index
      %100 = vector.load %arg15[%c0_49, %c0_50] : memref<8x1xf32, #tpu.memory_space<vmem>>, vector<8x1xf32>
      tpu.vector_store %arg15[%c0_49, %c0_50], %79 {strides = array<i32>} : memref<8x1xf32, #tpu.memory_space<vmem>>, vector<8x1xf32>,
    } else {
    }
    %c1_i32_16 = arith.constant 1 : i32
    %51 = arith.cmpi eq, %arg1, %c1_i32_16 : i32
    %c0_i32_17 = arith.constant 0 : i32
    %52 = arith.cmpi eq, %arg2, %c0_i32_17 : i32
    %53 = arith.andi %51, %52 : i1
    %54 = arith.extui %53 : i1 to i32
    %c0_i32_18 = arith.constant 0 : i32
    %55 = arith.cmpi ne, %54, %c0_i32_18 : i32
    scf.if %55 {
      %c0_19 = arith.constant 0 : index
      %c0_20 = arith.constant 0 : index
      %c0_21 = arith.constant 0 : index
      %56 = vector.load %arg5[%c0_19, %c0_20, %c0_21] : memref<1x8x256xf32, #tpu.memory_space<vmem>>, vector<1x8x256xf32>
      %57 = vector.shape_cast %56 : vector<1x8x256xf32> to vector<8x256xf32>
      %c0_22 = arith.constant 0 : index
      %c0_23 = arith.constant 0 : index
      %58 = vector.load %arg17[%c0_22, %c0_23] : memref<8x256xf32, #tpu.memory_space<vmem>>, vector<8x256xf32>
      %c0_24 = arith.constant 0 : index
      %c0_25 = arith.constant 0 : index
      %59 = vector.load %arg16[%c0_24, %c0_25] : memref<8x1xf32, #tpu.memory_space<vmem>>, vector<8x1xf32>
      %60 = tpu.reciprocal %59 {approx = true} : vector<8x1xf32> -> vector<8x1xf32>
      %61 = vector.broadcast %60 : vector<8x1xf32> to vector<8x256xf32>
      %62 = arith.mulf %58, %61 : vector<8x256xf32>
      %63 = arith.subf %62, %57 : vector<8x256xf32>
      %64 = arith.truncf %63 : vector<8x256xf32> to vector<8x256xbf16>
      %c0_26 = arith.constant 0 : index
      %c0_27 = arith.constant 0 : index
      %65 = vector.load %arg9[%c0_26, %c0_27] : memref<256x512xf32, #tpu.memory_space<vmem>>, vector<256x512xf32>
      %66 = arith.truncf %65 : vector<256x512xf32> to vector<256x512xbf16>
      %cst_28 = arith.constant dense<0.000000e+00> : vector<8x512xf32>
      %67 = tpu.matmul %64, %66, %cst_28 {dimension_numbers = #tpu.dot_dimension_numbers<[1], [0], [0], [1], [0, 0, 1, 1], [], []>} : vector<8x256xbf16>, vector<256x512xbf16>, vector<8x512xf32> -> vector<8x512xf32>
      %68 = arith.truncf %57 : vector<8x256xf32> to vector<8x256xbf16>
      %c0_29 = arith.constant 0 : index
      %c0_30 = arith.constant 0 : index
      %69 = vector.load %arg10[%c0_29, %c0_30] : memref<256x512xf32, #tpu.memory_space<vmem>>, vector<256x512xf32>
      %70 = arith.truncf %69 : vector<256x512xf32> to vector<256x512xbf16>
      %cst_31 = arith.constant dense<0.000000e+00> : vector<8x512xf32>
      %71 = tpu.matmul %68, %70, %cst_31 {dimension_numbers = #tpu.dot_dimension_numbers<[1], [0], [0], [1], [0, 0, 1, 1], [], []>} : vector<8x256xbf16>, vector<256x512xbf16>, vector<8x512xf32> -> vector<8x512xf32>
      %72 = arith.addf %67, %71 : vector<8x512xf32>
      %c0_32 = arith.constant 0 : index
      %c0_33 = arith.constant 0 : index
      %73 = vector.load %arg11[%c0_32, %c0_33] : memref<1x512xf32, #tpu.memory_space<vmem>>, vector<1x512xf32>
      %74 = vector.broadcast %73 : vector<1x512xf32> to vector<8x512xf32>
      %75 = arith.mulf %72, %74 : vector<8x512xf32>
      %c0_34 = arith.constant 0 : index
      %c0_35 = arith.constant 0 : index
      %76 = vector.load %arg12[%c0_34, %c0_35] : memref<1x512xf32, #tpu.memory_space<vmem>>, vector<1x512xf32>
      %77 = vector.broadcast %76 : vector<1x512xf32> to vector<8x512xf32>
      %78 = arith.addf %75, %77 : vector<8x512xf32>
      %cst_36 = arith.constant 5.000000e-01 : f32
      %79 = vector.broadcast %cst_36 : f32 to vector<8x512xf32>
      %80 = arith.mulf %79, %78 : vector<8x512xf32>
      %cst_37 = arith.constant 4.471500e-02 : f32
      %81 = vector.broadcast %cst_37 : f32 to vector<8x512xf32>
      %82 = arith.mulf %81, %78 : vector<8x512xf32>
      %83 = arith.mulf %82, %78 : vector<8x512xf32>
      %84 = arith.mulf %83, %78 : vector<8x512xf32>
      %85 = arith.addf %78, %84 : vector<8x512xf32>
      %cst_38 = arith.constant 0.797884583 : f32
      %86 = vector.broadcast %cst_38 : f32 to vector<8x512xf32>
      %87 = arith.mulf %86, %85 : vector<8x512xf32>
      %88 = math.tanh %87 : vector<8x512xf32>
      %cst_39 = arith.constant 1.000000e+00 : f32
      %89 = vector.broadcast %cst_39 : f32 to vector<8x512xf32>
      %90 = arith.addf %89, %88 : vector<8x512xf32>
      %91 = arith.mulf %80, %90 : vector<8x512xf32>
      %c0_40 = arith.constant 0 : index
      %c0_41 = arith.constant 0 : index
      %c0_42 = arith.constant 0 : index
      %92 = vector.load %arg13[%c0_40, %c0_41, %c0_42] : memref<1x8x512xf32, #tpu.memory_space<vmem>>, vector<1x8x512xf32>
      %93 = vector.shape_cast %92 : vector<1x8x512xf32> to vector<8x512xf32>
      %94 = vector.shape_cast %91 : vector<8x512xf32> to vector<1x8x512xf32>
      tpu.vector_store %arg13[%c0_40, %c0_41, %c0_42], %94 {strides = array<i32>} : memref<1x8x512xf32, #tpu.memory_space<vmem>>, vector<1x8x512xf32>,
    } else {
    }
    return
  }
  func.func @transform_0(%arg0: i32, %arg1: i32, %arg2: i32) -> (i32, i32, i32) {
    %c0_i32 = arith.constant 0 : i32
    %c0_i32_0 = arith.constant 0 : i32
    %c0_i32_1 = arith.constant 0 : i32
    return %arg0, %c0_i32, %c0_i32_0 : i32, i32, i32
  }
  func.func @transform_1(%arg0: i32, %arg1: i32, %arg2: i32) -> (i32, i32, i32) {
    %c0_i32 = arith.constant 0 : i32
    %c0_i32_0 = arith.constant 0 : i32
    return %arg0, %c0_i32, %arg2 : i32, i32, i32
  }
  func.func @transform_2(%arg0: i32, %arg1: i32, %arg2: i32) -> (i32, i32, i32) {
    %c0_i32 = arith.constant 0 : i32
    %c0_i32_0 = arith.constant 0 : i32
    %c0_i32_1 = arith.constant 0 : i32
    return %arg0, %c0_i32, %c0_i32_0 : i32, i32, i32
  }
  func.func @transform_3(%arg0: i32, %arg1: i32, %arg2: i32) -> (i32, i32, i32) {
    %c0_i32 = arith.constant 0 : i32
    %c0_i32_0 = arith.constant 0 : i32
    return %arg0, %arg2, %c0_i32 : i32, i32, i32
  }
  func.func @transform_4(%arg0: i32, %arg1: i32, %arg2: i32) -> (i32, i32) {
    %c0_i32 = arith.constant 0 : i32
    %c0_i32_0 = arith.constant 0 : i32
    %c0_i32_1 = arith.constant 0 : i32
    return %c0_i32, %c0_i32_0 : i32, i32
  }
  func.func @transform_5(%arg0: i32, %arg1: i32, %arg2: i32) -> (i32, i32) {
    %c0_i32 = arith.constant 0 : i32
    %c0_i32_0 = arith.constant 0 : i32
    %c0_i32_1 = arith.constant 0 : i32
    return %c0_i32, %c0_i32_0 : i32, i32
  }
  func.func @transform_6(%arg0: i32, %arg1: i32, %arg2: i32) -> (i32, i32) {
    %c0_i32 = arith.constant 0 : i32
    %c0_i32_0 = arith.constant 0 : i32
    %c0_i32_1 = arith.constant 0 : i32
    return %c0_i32, %c0_i32_0 : i32, i32
  }
  func.func @transform_7(%arg0: i32, %arg1: i32, %arg2: i32) -> (i32, i32) {
    %c0_i32 = arith.constant 0 : i32
    %c0_i32_0 = arith.constant 0 : i32
    %c0_i32_1 = arith.constant 0 : i32
    return %c0_i32, %c0_i32_0 : i32, i32
  }
  func.func @transform_8(%arg0: i32, %arg1: i32, %arg2: i32) -> (i32, i32) {
    %c0_i32 = arith.constant 0 : i32
    %c0_i32_0 = arith.constant 0 : i32
    %c0_i32_1 = arith.constant 0 : i32
    return %c0_i32, %c0_i32_0 : i32, i32
  }
  func.func @transform_9(%arg0: i32, %arg1: i32, %arg2: i32) -> (i32, i32) {
    %c0_i32 = arith.constant 0 : i32
    %c0_i32_0 = arith.constant 0 : i32
    %c0_i32_1 = arith.constant 0 : i32
    return %c0_i32, %c0_i32_0 : i32, i32
  }
  func.func @transform_10(%arg0: i32, %arg1: i32, %arg2: i32) -> (i32, i32, i32) {
    %c0_i32 = arith.constant 0 : i32
    %c0_i32_0 = arith.constant 0 : i32
    %c0_i32_1 = arith.constant 0 : i32
    return %arg0, %c0_i32, %c0_i32_0 : i32, i32, i32
  }
}

module attributes {stable_mosaic.version = 11 : i64} {
  func.func @_pool_kernel(%arg0: i32, %arg1: memref<1x8x128xf32, #tpu.memory_space<vmem>>, %arg2: memref<1x1x128xf32, #tpu.memory_space<vmem>>, %arg3: memref<1x1x128xf32, #tpu.memory_space<vmem>>) attributes {dimension_semantics = [#tpu.dimension_semantics<parallel>], iteration_bounds = array<i64: 2>, scalar_prefetch = 0 : i64, scratch_operands = 0 : i64, tpu.core_type = #tpu.core_type<tc>, window_params = [{transform_indices = @transform_0, window_bounds = array<i64: 1, 8, 128>}, {transform_indices = @transform_1, window_bounds = array<i64: 1, 1, 128>}, {transform_indices = @transform_2, window_bounds = array<i64: 1, 1, 128>}]} {
    %c0 = arith.constant 0 : index
    %c0_0 = arith.constant 0 : index
    %c0_1 = arith.constant 0 : index
    %0 = vector.load %arg1[%c0, %c0_0, %c0_1] : memref<1x8x128xf32, #tpu.memory_space<vmem>>, vector<1x8x128xf32>
    %1 = vector.shape_cast %0 : vector<1x8x128xf32> to vector<8x128xf32>
    %cst = arith.constant dense<0xFF800000> : vector<128xf32>
    %2 = vector.multi_reduction <maximumf>, %1, %cst [0] : vector<8x128xf32> to vector<128xf32>
    %3 = vector.shape_cast %2 : vector<128xf32> to vector<1x128xf32>
    %c0_2 = arith.constant 0 : index
    %c0_3 = arith.constant 0 : index
    %c0_4 = arith.constant 0 : index
    %4 = vector.load %arg2[%c0_2, %c0_3, %c0_4] : memref<1x1x128xf32, #tpu.memory_space<vmem>>, vector<1x1x128xf32>
    %5 = vector.shape_cast %4 : vector<1x1x128xf32> to vector<1x128xf32>
    %6 = vector.shape_cast %3 : vector<1x128xf32> to vector<1x1x128xf32>
    tpu.vector_store %arg2[%c0_2, %c0_3, %c0_4], %6 {strides = array<i32>} : memref<1x1x128xf32, #tpu.memory_space<vmem>>, vector<1x1x128xf32>,
    %cst_5 = arith.constant dense<0.000000e+00> : vector<128xf32>
    %7 = vector.multi_reduction <add>, %1, %cst_5 [0] : vector<8x128xf32> to vector<128xf32>
    %8 = vector.shape_cast %7 : vector<128xf32> to vector<1x128xf32>
    %cst_6 = arith.constant 8.000000e+00 : f32
    %9 = vector.broadcast %cst_6 : f32 to vector<1x128xf32>
    %10 = arith.divf %8, %9 : vector<1x128xf32>
    %c0_7 = arith.constant 0 : index
    %c0_8 = arith.constant 0 : index
    %c0_9 = arith.constant 0 : index
    %11 = vector.load %arg3[%c0_7, %c0_8, %c0_9] : memref<1x1x128xf32, #tpu.memory_space<vmem>>, vector<1x1x128xf32>
    %12 = vector.shape_cast %11 : vector<1x1x128xf32> to vector<1x128xf32>
    %13 = vector.shape_cast %10 : vector<1x128xf32> to vector<1x1x128xf32>
    tpu.vector_store %arg3[%c0_7, %c0_8, %c0_9], %13 {strides = array<i32>} : memref<1x1x128xf32, #tpu.memory_space<vmem>>, vector<1x1x128xf32>,
    return
  }
  func.func @transform_0(%arg0: i32) -> (i32, i32, i32) {
    %c0_i32 = arith.constant 0 : i32
    %c0_i32_0 = arith.constant 0 : i32
    %c0_i32_1 = arith.constant 0 : i32
    return %arg0, %c0_i32, %c0_i32_0 : i32, i32, i32
  }
  func.func @transform_1(%arg0: i32) -> (i32, i32, i32) {
    %c0_i32 = arith.constant 0 : i32
    %c0_i32_0 = arith.constant 0 : i32
    %c0_i32_1 = arith.constant 0 : i32
    return %arg0, %c0_i32, %c0_i32_0 : i32, i32, i32
  }
  func.func @transform_2(%arg0: i32) -> (i32, i32, i32) {
    %c0_i32 = arith.constant 0 : i32
    %c0_i32_0 = arith.constant 0 : i32
    %c0_i32_1 = arith.constant 0 : i32
    return %arg0, %c0_i32, %c0_i32_0 : i32, i32, i32
  }
}

module attributes {stable_mosaic.version = 11 : i64} {
  func.func @_linear_kernel(%arg0: i32, %arg1: memref<16x512xf32, #tpu.memory_space<vmem>>, %arg2: memref<512x128xf32, #tpu.memory_space<vmem>>, %arg3: memref<1x128xf32, #tpu.memory_space<vmem>>, %arg4: memref<1x128xf32, #tpu.memory_space<vmem>>, %arg5: memref<16x128xf32, #tpu.memory_space<vmem>>) attributes {dimension_semantics = [#tpu.dimension_semantics<parallel>], iteration_bounds = array<i64: 1>, scalar_prefetch = 0 : i64, scratch_operands = 0 : i64, tpu.core_type = #tpu.core_type<tc>, window_params = [{transform_indices = @transform_0, window_bounds = array<i64: 16, 512>}, {pipeline_mode = #tpu.pipeline_mode<synchronous>, transform_indices = @transform_1, window_bounds = array<i64: 512, 128>}, {pipeline_mode = #tpu.pipeline_mode<synchronous>, transform_indices = @transform_2, window_bounds = array<i64: 1, 128>}, {pipeline_mode = #tpu.pipeline_mode<synchronous>, transform_indices = @transform_3, window_bounds = array<i64: 1, 128>}, {transform_indices = @transform_4, window_bounds = array<i64: 16, 128>}]} {
    %c0 = arith.constant 0 : index
    %c0_0 = arith.constant 0 : index
    %0 = vector.load %arg1[%c0, %c0_0] : memref<16x512xf32, #tpu.memory_space<vmem>>, vector<16x512xf32>
    %1 = arith.truncf %0 : vector<16x512xf32> to vector<16x512xbf16>
    %c0_1 = arith.constant 0 : index
    %c0_2 = arith.constant 0 : index
    %2 = vector.load %arg2[%c0_1, %c0_2] : memref<512x128xf32, #tpu.memory_space<vmem>>, vector<512x128xf32>
    %3 = arith.truncf %2 : vector<512x128xf32> to vector<512x128xbf16>
    %cst = arith.constant dense<0.000000e+00> : vector<16x128xf32>
    %4 = tpu.matmul %1, %3, %cst {dimension_numbers = #tpu.dot_dimension_numbers<[1], [0], [0], [1], [0, 0, 1, 1], [], []>} : vector<16x512xbf16>, vector<512x128xbf16>, vector<16x128xf32> -> vector<16x128xf32>
    %c0_3 = arith.constant 0 : index
    %c0_4 = arith.constant 0 : index
    %5 = vector.load %arg3[%c0_3, %c0_4] : memref<1x128xf32, #tpu.memory_space<vmem>>, vector<1x128xf32>
    %6 = vector.broadcast %5 : vector<1x128xf32> to vector<16x128xf32>
    %7 = arith.mulf %4, %6 : vector<16x128xf32>
    %c0_5 = arith.constant 0 : index
    %c0_6 = arith.constant 0 : index
    %8 = vector.load %arg4[%c0_5, %c0_6] : memref<1x128xf32, #tpu.memory_space<vmem>>, vector<1x128xf32>
    %9 = vector.broadcast %8 : vector<1x128xf32> to vector<16x128xf32>
    %10 = arith.addf %7, %9 : vector<16x128xf32>
    %cst_7 = arith.constant 5.000000e-01 : f32
    %11 = vector.broadcast %cst_7 : f32 to vector<16x128xf32>
    %12 = arith.mulf %11, %10 : vector<16x128xf32>
    %cst_8 = arith.constant 4.471500e-02 : f32
    %13 = vector.broadcast %cst_8 : f32 to vector<16x128xf32>
    %14 = arith.mulf %13, %10 : vector<16x128xf32>
    %15 = arith.mulf %14, %10 : vector<16x128xf32>
    %16 = arith.mulf %15, %10 : vector<16x128xf32>
    %17 = arith.addf %10, %16 : vector<16x128xf32>
    %cst_9 = arith.constant 0.797884583 : f32
    %18 = vector.broadcast %cst_9 : f32 to vector<16x128xf32>
    %19 = arith.mulf %18, %17 : vector<16x128xf32>
    %20 = math.tanh %19 : vector<16x128xf32>
    %cst_10 = arith.constant 1.000000e+00 : f32
    %21 = vector.broadcast %cst_10 : f32 to vector<16x128xf32>
    %22 = arith.addf %21, %20 : vector<16x128xf32>
    %23 = arith.mulf %12, %22 : vector<16x128xf32>
    %c0_11 = arith.constant 0 : index
    %c0_12 = arith.constant 0 : index
    %24 = vector.load %arg5[%c0_11, %c0_12] : memref<16x128xf32, #tpu.memory_space<vmem>>, vector<16x128xf32>
    tpu.vector_store %arg5[%c0_11, %c0_12], %23 {strides = array<i32>} : memref<16x128xf32, #tpu.memory_space<vmem>>, vector<16x128xf32>,
    return
  }
  func.func @transform_0(%arg0: i32) -> (i32, i32) {
    %c0_i32 = arith.constant 0 : i32
    %c0_i32_0 = arith.constant 0 : i32
    return %arg0, %c0_i32 : i32, i32
  }
  func.func @transform_1(%arg0: i32) -> (i32, i32) {
    %c0_i32 = arith.constant 0 : i32
    %c0_i32_0 = arith.constant 0 : i32
    %c0_i32_1 = arith.constant 0 : i32
    return %c0_i32, %c0_i32_0 : i32, i32
  }
  func.func @transform_2(%arg0: i32) -> (i32, i32) {
    %c0_i32 = arith.constant 0 : i32
    %c0_i32_0 = arith.constant 0 : i32
    %c0_i32_1 = arith.constant 0 : i32
    return %c0_i32, %c0_i32_0 : i32, i32
  }
  func.func @transform_3(%arg0: i32) -> (i32, i32) {
    %c0_i32 = arith.constant 0 : i32
    %c0_i32_0 = arith.constant 0 : i32
    %c0_i32_1 = arith.constant 0 : i32
    return %c0_i32, %c0_i32_0 : i32, i32
  }
  func.func @transform_4(%arg0: i32) -> (i32, i32) {
    %c0_i32 = arith.constant 0 : i32
    %c0_i32_0 = arith.constant 0 : i32
    return %arg0, %c0_i32 : i32, i32
  }
}

module attributes {stable_mosaic.version = 11 : i64} {
  func.func @_linear_kernel(%arg0: i32, %arg1: memref<2x256xf32, #tpu.memory_space<vmem>>, %arg2: memref<256x512xf32, #tpu.memory_space<vmem>>, %arg3: memref<1x512xf32, #tpu.memory_space<vmem>>, %arg4: memref<1x512xf32, #tpu.memory_space<vmem>>, %arg5: memref<2x512xf32, #tpu.memory_space<vmem>>) attributes {dimension_semantics = [#tpu.dimension_semantics<parallel>], iteration_bounds = array<i64: 1>, scalar_prefetch = 0 : i64, scratch_operands = 0 : i64, tpu.core_type = #tpu.core_type<tc>, window_params = [{transform_indices = @transform_0, window_bounds = array<i64: 2, 256>}, {pipeline_mode = #tpu.pipeline_mode<synchronous>, transform_indices = @transform_1, window_bounds = array<i64: 256, 512>}, {pipeline_mode = #tpu.pipeline_mode<synchronous>, transform_indices = @transform_2, window_bounds = array<i64: 1, 512>}, {pipeline_mode = #tpu.pipeline_mode<synchronous>, transform_indices = @transform_3, window_bounds = array<i64: 1, 512>}, {transform_indices = @transform_4, window_bounds = array<i64: 2, 512>}]} {
    %c0 = arith.constant 0 : index
    %c0_0 = arith.constant 0 : index
    %0 = vector.load %arg1[%c0, %c0_0] : memref<2x256xf32, #tpu.memory_space<vmem>>, vector<2x256xf32>
    %1 = arith.truncf %0 : vector<2x256xf32> to vector<2x256xbf16>
    %c0_1 = arith.constant 0 : index
    %c0_2 = arith.constant 0 : index
    %2 = vector.load %arg2[%c0_1, %c0_2] : memref<256x512xf32, #tpu.memory_space<vmem>>, vector<256x512xf32>
    %3 = arith.truncf %2 : vector<256x512xf32> to vector<256x512xbf16>
    %cst = arith.constant dense<0.000000e+00> : vector<2x512xf32>
    %4 = tpu.matmul %1, %3, %cst {dimension_numbers = #tpu.dot_dimension_numbers<[1], [0], [0], [1], [0, 0, 1, 1], [], []>} : vector<2x256xbf16>, vector<256x512xbf16>, vector<2x512xf32> -> vector<2x512xf32>
    %c0_3 = arith.constant 0 : index
    %c0_4 = arith.constant 0 : index
    %5 = vector.load %arg3[%c0_3, %c0_4] : memref<1x512xf32, #tpu.memory_space<vmem>>, vector<1x512xf32>
    %6 = vector.broadcast %5 : vector<1x512xf32> to vector<2x512xf32>
    %7 = arith.mulf %4, %6 : vector<2x512xf32>
    %c0_5 = arith.constant 0 : index
    %c0_6 = arith.constant 0 : index
    %8 = vector.load %arg4[%c0_5, %c0_6] : memref<1x512xf32, #tpu.memory_space<vmem>>, vector<1x512xf32>
    %9 = vector.broadcast %8 : vector<1x512xf32> to vector<2x512xf32>
    %10 = arith.addf %7, %9 : vector<2x512xf32>
    %cst_7 = arith.constant 5.000000e-01 : f32
    %11 = vector.broadcast %cst_7 : f32 to vector<2x512xf32>
    %12 = arith.mulf %11, %10 : vector<2x512xf32>
    %cst_8 = arith.constant 4.471500e-02 : f32
    %13 = vector.broadcast %cst_8 : f32 to vector<2x512xf32>
    %14 = arith.mulf %13, %10 : vector<2x512xf32>
    %15 = arith.mulf %14, %10 : vector<2x512xf32>
    %16 = arith.mulf %15, %10 : vector<2x512xf32>
    %17 = arith.addf %10, %16 : vector<2x512xf32>
    %cst_9 = arith.constant 0.797884583 : f32
    %18 = vector.broadcast %cst_9 : f32 to vector<2x512xf32>
    %19 = arith.mulf %18, %17 : vector<2x512xf32>
    %20 = math.tanh %19 : vector<2x512xf32>
    %cst_10 = arith.constant 1.000000e+00 : f32
    %21 = vector.broadcast %cst_10 : f32 to vector<2x512xf32>
    %22 = arith.addf %21, %20 : vector<2x512xf32>
    %23 = arith.mulf %12, %22 : vector<2x512xf32>
    %c0_11 = arith.constant 0 : index
    %c0_12 = arith.constant 0 : index
    %24 = vector.load %arg5[%c0_11, %c0_12] : memref<2x512xf32, #tpu.memory_space<vmem>>, vector<2x512xf32>
    tpu.vector_store %arg5[%c0_11, %c0_12], %23 {strides = array<i32>} : memref<2x512xf32, #tpu.memory_space<vmem>>, vector<2x512xf32>,
    return
  }
  func.func @transform_0(%arg0: i32) -> (i32, i32) {
    %c0_i32 = arith.constant 0 : i32
    %c0_i32_0 = arith.constant 0 : i32
    return %arg0, %c0_i32 : i32, i32
  }
  func.func @transform_1(%arg0: i32) -> (i32, i32) {
    %c0_i32 = arith.constant 0 : i32
    %c0_i32_0 = arith.constant 0 : i32
    %c0_i32_1 = arith.constant 0 : i32
    return %c0_i32, %c0_i32_0 : i32, i32
  }
  func.func @transform_2(%arg0: i32) -> (i32, i32) {
    %c0_i32 = arith.constant 0 : i32
    %c0_i32_0 = arith.constant 0 : i32
    %c0_i32_1 = arith.constant 0 : i32
    return %c0_i32, %c0_i32_0 : i32, i32
  }
  func.func @transform_3(%arg0: i32) -> (i32, i32) {
    %c0_i32 = arith.constant 0 : i32
    %c0_i32_0 = arith.constant 0 : i32
    %c0_i32_1 = arith.constant 0 : i32
    return %c0_i32, %c0_i32_0 : i32, i32
  }
  func.func @transform_4(%arg0: i32) -> (i32, i32) {
    %c0_i32 = arith.constant 0 : i32
    %c0_i32_0 = arith.constant 0 : i32
    return %arg0, %c0_i32 : i32, i32
  }
}

module attributes {stable_mosaic.version = 11 : i64} {
  func.func @_linear_kernel(%arg0: i32, %arg1: memref<2x512xf32, #tpu.memory_space<vmem>>, %arg2: memref<512x40xf32, #tpu.memory_space<vmem>>, %arg3: memref<1x40xf32, #tpu.memory_space<vmem>>, %arg4: memref<1x40xf32, #tpu.memory_space<vmem>>, %arg5: memref<2x40xf32, #tpu.memory_space<vmem>>) attributes {dimension_semantics = [#tpu.dimension_semantics<parallel>], iteration_bounds = array<i64: 1>, scalar_prefetch = 0 : i64, scratch_operands = 0 : i64, tpu.core_type = #tpu.core_type<tc>, window_params = [{transform_indices = @transform_0, window_bounds = array<i64: 2, 512>}, {pipeline_mode = #tpu.pipeline_mode<synchronous>, transform_indices = @transform_1, window_bounds = array<i64: 512, 40>}, {pipeline_mode = #tpu.pipeline_mode<synchronous>, transform_indices = @transform_2, window_bounds = array<i64: 1, 40>}, {pipeline_mode = #tpu.pipeline_mode<synchronous>, transform_indices = @transform_3, window_bounds = array<i64: 1, 40>}, {transform_indices = @transform_4, window_bounds = array<i64: 2, 40>}]} {
    %c0 = arith.constant 0 : index
    %c0_0 = arith.constant 0 : index
    %0 = vector.load %arg1[%c0, %c0_0] : memref<2x512xf32, #tpu.memory_space<vmem>>, vector<2x512xf32>
    %1 = arith.truncf %0 : vector<2x512xf32> to vector<2x512xbf16>
    %c0_1 = arith.constant 0 : index
    %c0_2 = arith.constant 0 : index
    %2 = vector.load %arg2[%c0_1, %c0_2] : memref<512x40xf32, #tpu.memory_space<vmem>>, vector<512x40xf32>
    %3 = arith.truncf %2 : vector<512x40xf32> to vector<512x40xbf16>
    %cst = arith.constant dense<0.000000e+00> : vector<2x40xf32>
    %4 = tpu.matmul %1, %3, %cst {dimension_numbers = #tpu.dot_dimension_numbers<[1], [0], [0], [1], [0, 0, 1, 1], [], []>} : vector<2x512xbf16>, vector<512x40xbf16>, vector<2x40xf32> -> vector<2x40xf32>
    %c0_3 = arith.constant 0 : index
    %c0_4 = arith.constant 0 : index
    %5 = vector.load %arg3[%c0_3, %c0_4] : memref<1x40xf32, #tpu.memory_space<vmem>>, vector<1x40xf32>
    %6 = vector.broadcast %5 : vector<1x40xf32> to vector<2x40xf32>
    %7 = arith.mulf %4, %6 : vector<2x40xf32>
    %c0_5 = arith.constant 0 : index
    %c0_6 = arith.constant 0 : index
    %8 = vector.load %arg4[%c0_5, %c0_6] : memref<1x40xf32, #tpu.memory_space<vmem>>, vector<1x40xf32>
    %9 = vector.broadcast %8 : vector<1x40xf32> to vector<2x40xf32>
    %10 = arith.addf %7, %9 : vector<2x40xf32>
    %c0_7 = arith.constant 0 : index
    %c0_8 = arith.constant 0 : index
    %11 = vector.load %arg5[%c0_7, %c0_8] : memref<2x40xf32, #tpu.memory_space<vmem>>, vector<2x40xf32>
    tpu.vector_store %arg5[%c0_7, %c0_8], %10 {strides = array<i32>} : memref<2x40xf32, #tpu.memory_space<vmem>>, vector<2x40xf32>,
    return
  }
  func.func @transform_0(%arg0: i32) -> (i32, i32) {
    %c0_i32 = arith.constant 0 : i32
    %c0_i32_0 = arith.constant 0 : i32
    return %arg0, %c0_i32 : i32, i32
  }
  func.func @transform_1(%arg0: i32) -> (i32, i32) {
    %c0_i32 = arith.constant 0 : i32
    %c0_i32_0 = arith.constant 0 : i32
    %c0_i32_1 = arith.constant 0 : i32
    return %c0_i32, %c0_i32_0 : i32, i32
  }
  func.func @transform_2(%arg0: i32) -> (i32, i32) {
    %c0_i32 = arith.constant 0 : i32
    %c0_i32_0 = arith.constant 0 : i32
    %c0_i32_1 = arith.constant 0 : i32
    return %c0_i32, %c0_i32_0 : i32, i32
  }
  func.func @transform_3(%arg0: i32) -> (i32, i32) {
    %c0_i32 = arith.constant 0 : i32
    %c0_i32_0 = arith.constant 0 : i32
    %c0_i32_1 = arith.constant 0 : i32
    return %c0_i32, %c0_i32_0 : i32, i32
  }
  func.func @transform_4(%arg0: i32) -> (i32, i32) {
    %c0_i32 = arith.constant 0 : i32
    %c0_i32_0 = arith.constant 0 : i32
    return %arg0, %c0_i32 : i32, i32
  }
}

</mosaic_0001>

<llo_original>
// kernel: model_forward.9
$region0: #{model_forward.9}
  #allocation0 [shape = 'u32[]', space=smem, size = 0x4, offset = 0x4, fixed_abs, tag = 'smem constant byte address 0x4 - core index']
  #allocation1 [shape = 'u32[72,128]{1,0:T(1,128)}', space=vmem, size = 0x9000, scoped, tag = 'internal scratch']
  %s0 = inlined_call_operand.vmem [shape: f32[128,3], index: 0, kind: input, shape index: {}]
  %s1 = inlined_call_operand.vmem [shape: f32[3,32], index: 1, kind: input, shape index: {}]
  %s2 = inlined_call_operand.vmem [shape: f32[1,32], index: 2, kind: input, shape index: {}]
  %s3 = inlined_call_operand.vmem [shape: f32[1,32], index: 3, kind: input, shape index: {}]
  %s4 = inlined_call_operand.vmem [shape: f32[128,32], index: 4, kind: output, shape index: {}]
  %s5 = sld [smem:[#allocation0]]
  $region26: #{model_forward.9} parent=0
    _
  %s7 = ssub.s32 1, %s5
  %s8 = scalar_select 0, %s7, %s5
  // Predicated region
  $region2: #{model_forward.9} parent=0 // pred_check
    _
  $region3: #{model_forward.9} parent=0 // pred_check_branch
    %10 = sbr.rel (0) target = $region5
  $region4: #{model_forward.9} parent=0 // pred_region
    _
  $region5: #{model_forward.9} parent=0 // pred_fallthru
    _
  // Predicated region
  $region6: #{model_forward.9} parent=0 // pred_check
    _
  $region7: #{model_forward.9} parent=0 // pred_check_branch
    %12 = sbr.rel (0) target = $region9
  $region8: #{model_forward.9} parent=0 // pred_region
    _
  $region9: #{model_forward.9} parent=0 // pred_fallthru
    _
  // Predicated region
  $region10: #{model_forward.9} parent=0 // pred_check
    _
  $region11: #{model_forward.9} parent=0 // pred_check_branch
    %14 = sbr.rel (0) target = $region13
  $region12: #{model_forward.9} parent=0 // pred_region
    _
  $region13: #{model_forward.9} parent=0 // pred_fallthru
    _
  // Predicated region
  $region14: #{model_forward.9} parent=0 // pred_check
    _
  $region15: #{model_forward.9} parent=0 // pred_check_branch
    %16 = sbr.rel (0) target = $region17
  $region16: #{model_forward.9} parent=0 // pred_region
    _
  $region17: #{model_forward.9} parent=0 // pred_fallthru
    _
  %v18 = vld [vmem:[%s0] sm:$0xff]
  %v19 = vld [vmem:[%s0 + $0x8] sm:$0xff]
  %v20 = vld [vmem:[%s0 + $0x10] sm:$0xff]
  %v21 = vld [vmem:[%s0 + $0x18] sm:$0xff]
  %v22 = vld [vmem:[%s0 + $0x20] sm:$0xff]
  %v23 = vld [vmem:[%s0 + $0x28] sm:$0xff]
  %v24 = vld [vmem:[%s0 + $0x30] sm:$0xff]
  %v25 = vld [vmem:[%s0 + $0x38] sm:$0xff]
  %v26 = vld [vmem:[%s0 + $0x40] sm:$0xff]
  %v27 = vld [vmem:[%s0 + $0x48] sm:$0xff]
  %v28 = vld [vmem:[%s0 + $0x50] sm:$0xff]
  %v29 = vld [vmem:[%s0 + $0x58] sm:$0xff]
  %v30 = vld [vmem:[%s0 + $0x60] sm:$0xff]
  %v31 = vld [vmem:[%s0 + $0x68] sm:$0xff]
  %v32 = vld [vmem:[%s0 + $0x70] sm:$0xff]
  %v33 = vld [vmem:[%s0 + $0x78] sm:$0xff]
  %v34 = vpack.c.bf16 %v19, %v18
  %v35 = vpack.c.bf16 %v21, %v20
  %v36 = vpack.c.bf16 %v23, %v22
  %v37 = vpack.c.bf16 %v25, %v24
  %v38 = vpack.c.bf16 %v27, %v26
  %v39 = vpack.c.bf16 %v29, %v28
  %v40 = vpack.c.bf16 %v31, %v30
  %v41 = vpack.c.bf16 %v33, %v32
  %v42 = vld [vmem:[%s1] sm:$0x7]
  %v43 = vpack.c.bf16 %v42, %v42
  %vm44 = vcmask 23552
  %v46 = vsel %vm44, %v34, 0
  %v49 = vsel %vm44, %v35, 0
  %v52 = vsel %vm44, %v36, 0
  %v55 = vsel %vm44, %v37, 0
  %v58 = vsel %vm44, %v38, 0
  %v61 = vsel %vm44, %v39, 0
  %v64 = vsel %vm44, %v40, 0
  %v67 = vsel %vm44, %v41, 0
  %vm69 = vcmask 1040384
  %vm70 = vcmask 1041408
  %v71 = vsel %vm69, 4294967295, 65535
  %v72 = vsel %vm70, %v71, 0
  %v74 = vand.u32 %v43, %v72
  %76 = vmatpush.bf16.msra.mxu0 0
  %77 = vmatpush.bf16.msra.mxu0 0
  %78 = vmatpush.bf16.msra.mxu0 0
  %79 = vmatpush.bf16.msra.mxu0 0
  %80 = vmatpush.bf16.msra.mxu0 0
  %81 = vmatpush.bf16.msra.mxu0 0
  %82 = vmatpush.bf16.msra.mxu0 0
  %83 = vmatpush.bf16.msra.mxu0 %v74
  %84 = vmatmul.bf16.gmra.mxu0 %v46
  %v85 = vpop.f32.mrf.mxu0
  %v86 = vadd.f32 0.0, %v85
  %v87 = vpop.f32.mrf.mxu0
  %v88 = vadd.f32 0.0, %v87
  %89 = vmatmul.bf16.gmra.mxu0 %v49
  %v90 = vpop.f32.mrf.mxu0
  %v91 = vadd.f32 0.0, %v90
  %v92 = vpop.f32.mrf.mxu0
  %v93 = vadd.f32 0.0, %v92
  %94 = vmatmul.bf16.gmra.mxu0 %v52
  %v95 = vpop.f32.mrf.mxu0
  %v96 = vadd.f32 0.0, %v95
  %v97 = vpop.f32.mrf.mxu0
  %v98 = vadd.f32 0.0, %v97
  %99 = vmatmul.bf16.gmra.mxu0 %v55
  %v100 = vpop.f32.mrf.mxu0
  %v101 = vadd.f32 0.0, %v100
  %v102 = vpop.f32.mrf.mxu0
  %v103 = vadd.f32 0.0, %v102
  %104 = vmatmul.bf16.gmra.mxu0 %v58
  %v105 = vpop.f32.mrf.mxu0
  %v106 = vadd.f32 0.0, %v105
  %v107 = vpop.f32.mrf.mxu0
  %v108 = vadd.f32 0.0, %v107
  %109 = vmatmul.bf16.gmra.mxu0 %v61
  %v110 = vpop.f32.mrf.mxu0
  %v111 = vadd.f32 0.0, %v110
  %v112 = vpop.f32.mrf.mxu0
  %v113 = vadd.f32 0.0, %v112
  %114 = vmatmul.bf16.gmra.mxu0 %v64
  %v115 = vpop.f32.mrf.mxu0
  %v116 = vadd.f32 0.0, %v115
  %v117 = vpop.f32.mrf.mxu0
  %v118 = vadd.f32 0.0, %v117
  %119 = vmatmul.bf16.gmra.mxu0 %v67
  %v120 = vpop.f32.mrf.mxu0
  %v121 = vadd.f32 0.0, %v120
  %v122 = vpop.f32.mrf.mxu0
  %v123 = vadd.f32 0.0, %v122
  %124 = vdwg.mxu0
  %v125 = vld [vmem:[%s2] sm:$0x1]
  %v127 = vperm.slane %v125, 0
  %v129 = vmul.f32 %v86, %v127
  %v130 = vmul.f32 %v88, %v127
  %v131 = vmul.f32 %v91, %v127
  %v132 = vmul.f32 %v93, %v127
  %v133 = vmul.f32 %v96, %v127
  %v134 = vmul.f32 %v98, %v127
  %v135 = vmul.f32 %v101, %v127
  %v136 = vmul.f32 %v103, %v127
  %v137 = vmul.f32 %v106, %v127
  %v138 = vmul.f32 %v108, %v127
  %v139 = vmul.f32 %v111, %v127
  %v140 = vmul.f32 %v113, %v127
  %v141 = vmul.f32 %v116, %v127
  %v142 = vmul.f32 %v118, %v127
  %v143 = vmul.f32 %v121, %v127
  %v144 = vmul.f32 %v123, %v127
  %v145 = vld [vmem:[%s3] sm:$0x1]
  %v147 = vperm.slane %v145, 0
  %v149 = vadd.f32 %v129, %v147
  %v150 = vadd.f32 %v130, %v147
  %v151 = vadd.f32 %v131, %v147
  %v152 = vadd.f32 %v132, %v147
  %v153 = vadd.f32 %v133, %v147
  %v154 = vadd.f32 %v134, %v147
  %v155 = vadd.f32 %v135, %v147
  %v156 = vadd.f32 %v136, %v147
  %v157 = vadd.f32 %v137, %v147
  %v158 = vadd.f32 %v138, %v147
  %v159 = vadd.f32 %v139, %v147
  %v160 = vadd.f32 %v140, %v147
  %v161 = vadd.f32 %v141, %v147
  %v162 = vadd.f32 %v142, %v147
  %v163 = vadd.f32 %v143, %v147
  %v164 = vadd.f32 %v144, %v147
  %v165 = vmul.f32 %v149, 0.5
  %v166 = vmul.f32 %v150, 0.5
  %v167 = vmul.f32 %v151, 0.5
  %v168 = vmul.f32 %v152, 0.5
  %v169 = vmul.f32 %v153, 0.5
  %v170 = vmul.f32 %v154, 0.5
  %v171 = vmul.f32 %v155, 0.5
  %v172 = vmul.f32 %v156, 0.5
  %v173 = vmul.f32 %v157, 0.5
  %v174 = vmul.f32 %v158, 0.5
  %v175 = vmul.f32 %v159, 0.5
  %v176 = vmul.f32 %v160, 0.5
  %v177 = vmul.f32 %v161, 0.5
  %v178 = vmul.f32 %v162, 0.5
  %v179 = vmul.f32 %v163, 0.5
  %v180 = vmul.f32 %v164, 0.5
  %v181 = vmul.f32 %v149, 0.044715
  %v182 = vmul.f32 %v150, 0.044715
  %v183 = vmul.f32 %v151, 0.044715
  %v184 = vmul.f32 %v152, 0.044715
  %v185 = vmul.f32 %v153, 0.044715
  %v186 = vmul.f32 %v154, 0.044715
  %v187 = vmul.f32 %v155, 0.044715
  %v188 = vmul.f32 %v156, 0.044715
  %v189 = vmul.f32 %v157, 0.044715
  %v190 = vmul.f32 %v158, 0.044715
  %v191 = vmul.f32 %v159, 0.044715
  %v192 = vmul.f32 %v160, 0.044715
  %v193 = vmul.f32 %v161, 0.044715
  %v194 = vmul.f32 %v162, 0.044715
  %v195 = vmul.f32 %v163, 0.044715
  %v196 = vmul.f32 %v164, 0.044715
  %v197 = vmul.f32 %v181, %v149
  %v198 = vmul.f32 %v182, %v150
  %v199 = vmul.f32 %v183, %v151
  %v200 = vmul.f32 %v184, %v152
  %v201 = vmul.f32 %v185, %v153
  %v202 = vmul.f32 %v186, %v154
  %v203 = vmul.f32 %v187, %v155
  %v204 = vmul.f32 %v188, %v156
  %v205 = vmul.f32 %v189, %v157
  %v206 = vmul.f32 %v190, %v158
  %v207 = vmul.f32 %v191, %v159
  %v208 = vmul.f32 %v192, %v160
  %v209 = vmul.f32 %v193, %v161
  %v210 = vmul.f32 %v194, %v162
  %v211 = vmul.f32 %v195, %v163
  %v212 = vmul.f32 %v196, %v164
  %v213 = vmul.f32 %v197, %v149
  %v214 = vmul.f32 %v198, %v150
  %v215 = vmul.f32 %v199, %v151
  %v216 = vmul.f32 %v200, %v152
  %v217 = vmul.f32 %v201, %v153
  %v218 = vmul.f32 %v202, %v154
  %v219 = vmul.f32 %v203, %v155
  %v220 = vmul.f32 %v204, %v156
  %v221 = vmul.f32 %v205, %v157
  %v222 = vmul.f32 %v206, %v158
  %v223 = vmul.f32 %v207, %v159
  %v224 = vmul.f32 %v208, %v160
  %v225 = vmul.f32 %v209, %v161
  %v226 = vmul.f32 %v210, %v162
  %v227 = vmul.f32 %v211, %v163
  %v228 = vmul.f32 %v212, %v164
  %v229 = vadd.f32 %v149, %v213
  %v230 = vadd.f32 %v150, %v214
  %v231 = vadd.f32 %v151, %v215
  %v232 = vadd.f32 %v152, %v216
  %v233 = vadd.f32 %v153, %v217
  %v234 = vadd.f32 %v154, %v218
  %v235 = vadd.f32 %v155, %v219
  %v236 = vadd.f32 %v156, %v220
  %v237 = vadd.f32 %v157, %v221
  %v238 = vadd.f32 %v158, %v222
  %v239 = vadd.f32 %v159, %v223
  %v240 = vadd.f32 %v160, %v224
  %v241 = vadd.f32 %v161, %v225
  %v242 = vadd.f32 %v162, %v226
  %v243 = vadd.f32 %v163, %v227
  %v244 = vadd.f32 %v164, %v228
  %v245 = vmul.f32 %v229, 0.7978846
  %v246 = vmul.f32 %v230, 0.7978846
  %v247 = vmul.f32 %v231, 0.7978846
  %v248 = vmul.f32 %v232, 0.7978846
  %v249 = vmul.f32 %v233, 0.7978846
  %v250 = vmul.f32 %v234, 0.7978846
  %v251 = vmul.f32 %v235, 0.7978846
  %v252 = vmul.f32 %v236, 0.7978846
  %v253 = vmul.f32 %v237, 0.7978846
  %v254 = vmul.f32 %v238, 0.7978846
  %v255 = vmul.f32 %v239, 0.7978846
  %v256 = vmul.f32 %v240, 0.7978846
  %v257 = vmul.f32 %v241, 0.7978846
  %v258 = vmul.f32 %v242, 0.7978846
  %v259 = vmul.f32 %v243, 0.7978846
  %v260 = vmul.f32 %v244, 0.7978846
  %v261 = vtanh.pop %v245
  %v262 = vtanh.pop %v246
  %v263 = vtanh.pop %v247
  %v264 = vtanh.pop %v248
  %v265 = vtanh.pop %v249
  %v266 = vtanh.pop %v250
  %v267 = vtanh.pop %v251
  %v268 = vtanh.pop %v252
  %v269 = vtanh.pop %v253
  %v270 = vtanh.pop %v254
  %v271 = vtanh.pop %v255
  %v272 = vtanh.pop %v256
  %v273 = vtanh.pop %v257
  %v274 = vtanh.pop %v258
  %v275 = vtanh.pop %v259
  %v276 = vtanh.pop %v260
  %v277 = vadd.f32 %v261, 1.0
  %v278 = vadd.f32 %v262, 1.0
  %v279 = vadd.f32 %v263, 1.0
  %v280 = vadd.f32 %v264, 1.0
  %v281 = vadd.f32 %v265, 1.0
  %v282 = vadd.f32 %v266, 1.0
  %v283 = vadd.f32 %v267, 1.0
  %v284 = vadd.f32 %v268, 1.0
  %v285 = vadd.f32 %v269, 1.0
  %v286 = vadd.f32 %v270, 1.0
  %v287 = vadd.f32 %v271, 1.0
  %v288 = vadd.f32 %v272, 1.0
  %v289 = vadd.f32 %v273, 1.0
  %v290 = vadd.f32 %v274, 1.0
  %v291 = vadd.f32 %v275, 1.0
  %v292 = vadd.f32 %v276, 1.0
  %v293 = vmul.f32 %v165, %v277
  %v294 = vmul.f32 %v166, %v278
  %v295 = vmul.f32 %v167, %v279
  %v296 = vmul.f32 %v168, %v280
  %v297 = vmul.f32 %v169, %v281
  %v298 = vmul.f32 %v170, %v282
  %v299 = vmul.f32 %v171, %v283
  %v300 = vmul.f32 %v172, %v284
  %v301 = vmul.f32 %v173, %v285
  %v302 = vmul.f32 %v174, %v286
  %v303 = vmul.f32 %v175, %v287
  %v304 = vmul.f32 %v176, %v288
  %v305 = vmul.f32 %v177, %v289
  %v306 = vmul.f32 %v178, %v290
  %v307 = vmul.f32 %v179, %v291
  %v308 = vmul.f32 %v180, %v292
  %vm309 = vcmask 261120
  %310 = vst.msk [vmem:[%s4] sm:$0xff] %vm309, %v293
  %311 = vst.msk [vmem:[%s4 + $0x8] sm:$0xff] %vm309, %v294
  %312 = vst.msk [vmem:[%s4 + $0x10] sm:$0xff] %vm309, %v295
  %313 = vst.msk [vmem:[%s4 + $0x18] sm:$0xff] %vm309, %v296
  %314 = vst.msk [vmem:[%s4 + $0x20] sm:$0xff] %vm309, %v297
  %315 = vst.msk [vmem:[%s4 + $0x28] sm:$0xff] %vm309, %v298
  %316 = vst.msk [vmem:[%s4 + $0x30] sm:$0xff] %vm309, %v299
  %317 = vst.msk [vmem:[%s4 + $0x38] sm:$0xff] %vm309, %v300
  %318 = vst.msk [vmem:[%s4 + $0x40] sm:$0xff] %vm309, %v301
  %319 = vst.msk [vmem:[%s4 + $0x48] sm:$0xff] %vm309, %v302
  %320 = vst.msk [vmem:[%s4 + $0x50] sm:$0xff] %vm309, %v303
  %321 = vst.msk [vmem:[%s4 + $0x58] sm:$0xff] %vm309, %v304
  %322 = vst.msk [vmem:[%s4 + $0x60] sm:$0xff] %vm309, %v305
  %323 = vst.msk [vmem:[%s4 + $0x68] sm:$0xff] %vm309, %v306
  %324 = vst.msk [vmem:[%s4 + $0x70] sm:$0xff] %vm309, %v307
  %325 = vst.msk [vmem:[%s4 + $0x78] sm:$0xff] %vm309, %v308
  // Predicated region
  $region18: #{model_forward.9} parent=0 // pred_check
    _
  $region19: #{model_forward.9} parent=0 // pred_check_branch
    %327 = sbr.rel (0) target = $region21
  $region20: #{model_forward.9} parent=0 // pred_region
    _
  $region21: #{model_forward.9} parent=0 // pred_fallthru
    _
  // Predicated region
  $region22: #{model_forward.9} parent=0 // pred_check
    _
  $region23: #{model_forward.9} parent=0 // pred_check_branch
    %329 = sbr.rel (0) target = $region25
  $region24: #{model_forward.9} parent=0 // pred_region
    _
  $region25: #{model_forward.9} parent=0 // pred_fallthru
    _

// kernel: model_forward.11
$region0: #{model_forward.11}
  #allocation0 [shape = 'u32[]', space=smem, size = 0x4, offset = 0x4, fixed_abs, tag = 'smem constant byte address 0x4 - core index']
  #allocation1 [shape = 'u32[72,128]{1,0:T(1,128)}', space=vmem, size = 0x9000, scoped, tag = 'internal scratch']
  #allocation2 [shape = 'f32[32,1]{1,0:T(8,128)}', space=vmem, size = 0x4000, scoped, tag = 'scratch operand']
  #allocation3 [shape = 'f32[32,1]{1,0:T(8,128)}', space=vmem, size = 0x4000, scoped, tag = 'scratch operand']
  #allocation4 [shape = 'f32[32,1]{1,0:T(8,128)}', space=vmem, size = 0x4000, scoped, tag = 'scratch operand']
  #allocation5 [shape = 'f32[32,64]{1,0:T(8,128)}', space=vmem, size = 0x4000, scoped, tag = 'scratch operand']
  #allocation6 [shape = 'bf16[32,64]{1,0:T(8,128)(2,1)}', space=vmem, size = 0x2000, scoped, tag = 'scratch operand']
  %s0 = inlined_call_operand.vmem [shape: f32[2,32,3], index: 0, kind: input, shape index: {}]
  %s1 = inlined_call_operand.vmem [shape: f32[2,3,64], index: 1, kind: input, shape index: {}]
  %s2 = inlined_call_operand.vmem [shape: f32[2,32,64], index: 2, kind: input, shape index: {}]
  %s3 = inlined_call_operand.vmem [shape: f32[2,64,64], index: 3, kind: input, shape index: {}]
  %s4 = inlined_call_operand.hbm [shape: f32[64,64], index: 4, kind: input, shape index: {}]
  %s5 = inlined_call_operand.hbm [shape: f32[64,64], index: 5, kind: input, shape index: {}]
  %s6 = inlined_call_operand.vmem [shape: f32[64,128], index: 6, kind: input, shape index: {}]
  %s7 = inlined_call_operand.vmem [shape: f32[64,128], index: 7, kind: input, shape index: {}]
  %s8 = inlined_call_operand.vmem [shape: f32[1,128], index: 8, kind: input, shape index: {}]
  %s9 = inlined_call_operand.vmem [shape: f32[1,128], index: 9, kind: input, shape index: {}]
  %s10 = inlined_call_operand.vmem [shape: f32[2,32,128], index: 10, kind: output, shape index: {}]
  %s11 = sld [smem:[#allocation0]]
  $region101: #{model_forward.11} parent=0
    _
  %s13 = ssub.s32 1, %s11
  %s14 = scalar_select 0, %s13, %s11
  $region1: #{model_forward.11} parent=0
    #allocation7 [shape = 'u8[32768]{0}', space=vmem, size = 0x8000, scoped, tag = 'input window, operand 4, single buffered']
    #allocation8 [shape = 's32[2]{0}', space=sflag, size = 0x8, scoped, tag = 'scoped memory for model_forward.11']
    #allocation9 [shape = 'u8[32768]{0}', space=vmem, size = 0x8000, scoped, tag = 'input window, operand 5, single buffered']
    #allocation10 [shape = 's32[1]{0}', space=sflag, size = 0x4, scoped, tag = 'scoped memory for model_forward.11']
    %15 = vsyncpa [#allocation8], 0
    %16 = vsyncpa [#allocation10], 0
    loop: start=0, step=1, limit=6
    $region2: #{model_forward.11} parent=1 // loop_pre_header
      _
    $region3: #{model_forward.11} parent=1 // loop_header
      %s18 = sphi 0, %s22
      %p19 = scmp.ge.s32.totalorder %s18, 6
      %s25 = sphi 0, %s44
      %s26 = sphi 0, %s40
      %s27 = sphi 0, %s36
      %s28 = sphi 0, %s25
      %s29 = sphi 0, %s26
      %s30 = sphi 0, %s27
      %s31 = sphi 0, %s28
      %s32 = sphi 0, %s29
      %s33 = sphi 0, %s30
      %s47 = sphi 0, %s49
      %s50 = sphi 0, %s47
      %s51 = sphi 0, %s50
      %s67 = sphi 0, %s51
      %s75 = sphi 0, %s77
      %s78 = sphi 0, %s75
      %s79 = sphi 0, %s78
      %s95 = sphi 0, %s79
      %s101 = sphi 0, %s103
      %s104 = sphi 0, %s101
      %s105 = sphi 0, %s104
      %s121 = sphi 0, %s105
      %s129 = sphi 0, %s131
      %s132 = sphi 0, %s129
      %s133 = sphi 0, %s132
      %s149 = sphi 0, %s133
      %s153 = sphi 0, %s153
      %s155 = sphi 0, %s153
      %s156 = sphi 0, %s155
      %s170 = sphi 0, %s156
      %s174 = sphi 0, %s174
      %s176 = sphi 0, %s174
      %s177 = sphi 0, %s176
      %s191 = sphi 0, %s177
      %s195 = sphi 0, %s195
      %s197 = sphi 0, %s195
      %s198 = sphi 0, %s197
      %s212 = sphi 0, %s198
      %s216 = sphi 0, %s216
      %s218 = sphi 0, %s216
      %s219 = sphi 0, %s218
      %s233 = sphi 0, %s219
      %s237 = sphi 0, %s237
      %s239 = sphi 0, %s237
      %s240 = sphi 0, %s239
      %s254 = sphi 0, %s240
      %s258 = sphi 0, %s258
      %s260 = sphi 0, %s258
      %s261 = sphi 0, %s260
      %s275 = sphi 0, %s261
      %s281 = sphi 0, %s283
      %s284 = sphi 0, %s281
      %s285 = sphi 0, %s284
      %s301 = sphi 0, %s285
    $region4: #{model_forward.11} parent=1 // loop_header_branch
      %21 = sbr.rel (%p19) target = $region8
    $region5: #{model_forward.11} parent=1 // loop_body
      %s23 = ssub.s32 %s18, 1
      %s24 = ssub.s32 %s18, 2
      %s34 = sadd.s32 1, %s27
      %p35 = scmp.ge.s32.totalorder %s34, 1
      %s36 = scalar_select %p35, 0, %s34
      %s37 = sadd.s32 1, %s26
      %s38 = scalar_select %p35, %s37, %s26
      %p39 = scmp.ge.s32.totalorder %s38, 2
      %s40 = scalar_select %p39, 0, %s38
      %s41 = sadd.s32 1, %s25
      %s42 = scalar_select %p39, %s41, %s25
      %p43 = scmp.ge.s32.totalorder %s42, 2
      %s44 = scalar_select %p43, 0, %s42
      %s45 = ssub.s32 %s25, %s44
      %p46 = scmp.eq.s32.totalorder %s45, 0
      %s48 = sadd.s32 %s47, 1
      %s49 = scalar_select %p46, %s47, %s48
      %p52 = pneg %p46
      %p53 = scmp.eq.s32.totalorder %s18, 3
      %p54 = por %p52, %p53
      %p55 = scmp.ne.s32.totalorder %s47, %s50
      %p56 = scmp.eq.s32.totalorder %s18, 0
      %p57 = por %p55, %p56
      %p58 = scmp.ne.s32.totalorder %s47, %s50
      %p59 = scmp.eq.s32.totalorder %s23, 3
      %p60 = por %p58, %p59
      %p61 = scmp.ne.s32.totalorder %s50, %s51
      %p62 = scmp.eq.s32.totalorder %s23, 0
      %p63 = por %p61, %p62
      %p64 = scmp.ne.s32.totalorder %s50, %s51
      %p65 = scmp.eq.s32.totalorder %s24, 3
      %p66 = por %p64, %p65
      %p68 = scmp.ne.s32.totalorder %s51, %s67
      %p69 = scmp.eq.s32.totalorder %s24, 0
      %p70 = por %p68, %p69
      %s71 = ssub.s32 %s25, %s44
      %s72 = ssub.s32 %s27, %s36
      %s73 = sor.u32 %s71, %s72
      %p74 = scmp.eq.s32.totalorder %s73, 0
      %s76 = sadd.s32 %s75, 1
      %s77 = scalar_select %p74, %s75, %s76
      %p80 = pneg %p74
      %p81 = scmp.eq.s32.totalorder %s18, 3
      %p82 = por %p80, %p81
      %p83 = scmp.ne.s32.totalorder %s75, %s78
      %p84 = scmp.eq.s32.totalorder %s18, 0
      %p85 = por %p83, %p84
      %p86 = scmp.ne.s32.totalorder %s75, %s78
      %p87 = scmp.eq.s32.totalorder %s23, 3
      %p88 = por %p86, %p87
      %p89 = scmp.ne.s32.totalorder %s78, %s79
      %p90 = scmp.eq.s32.totalorder %s23, 0
      %p91 = por %p89, %p90
      %p92 = scmp.ne.s32.totalorder %s78, %s79
      %p93 = scmp.eq.s32.totalorder %s24, 3
      %p94 = por %p92, %p93
      %p96 = scmp.ne.s32.totalorder %s79, %s95
      %p97 = scmp.eq.s32.totalorder %s24, 0
      %p98 = por %p96, %p97
      %s99 = ssub.s32 %s25, %s44
      %p100 = scmp.eq.s32.totalorder %s99, 0
      %s102 = sadd.s32 %s101, 1
      %s103 = scalar_select %p100, %s101, %s102
      %p106 = pneg %p100
      %p107 = scmp.eq.s32.totalorder %s18, 3
      %p108 = por %p106, %p107
      %p109 = scmp.ne.s32.totalorder %s101, %s104
      %p110 = scmp.eq.s32.totalorder %s18, 0
      %p111 = por %p109, %p110
      %p112 = scmp.ne.s32.totalorder %s101, %s104
      %p113 = scmp.eq.s32.totalorder %s23, 3
      %p114 = por %p112, %p113
      %p115 = scmp.ne.s32.totalorder %s104, %s105
      %p116 = scmp.eq.s32.totalorder %s23, 0
      %p117 = por %p115, %p116
      %p118 = scmp.ne.s32.totalorder %s104, %s105
      %p119 = scmp.eq.s32.totalorder %s24, 3
      %p120 = por %p118, %p119
      %p122 = scmp.ne.s32.totalorder %s105, %s121
      %p123 = scmp.eq.s32.totalorder %s24, 0
      %p124 = por %p122, %p123
      %s125 = ssub.s32 %s25, %s44
      %s126 = ssub.s32 %s27, %s36
      %s127 = sor.u32 %s125, %s126
      %p128 = scmp.eq.s32.totalorder %s127, 0
      %s130 = sadd.s32 %s129, 1
      %s131 = scalar_select %p128, %s129, %s130
      %p134 = pneg %p128
      %p135 = scmp.eq.s32.totalorder %s18, 3
      %p136 = por %p134, %p135
      %p137 = scmp.ne.s32.totalorder %s129, %s132
      %p138 = scmp.eq.s32.totalorder %s18, 0
      %p139 = por %p137, %p138
      %p140 = scmp.ne.s32.totalorder %s129, %s132
      %p141 = scmp.eq.s32.totalorder %s23, 3
      %p142 = por %p140, %p141
      %p143 = scmp.ne.s32.totalorder %s132, %s133
      %p144 = scmp.eq.s32.totalorder %s23, 0
      %p145 = por %p143, %p144
      %p146 = scmp.ne.s32.totalorder %s132, %s133
      %p147 = scmp.eq.s32.totalorder %s24, 3
      %p148 = por %p146, %p147
      %p150 = scmp.ne.s32.totalorder %s133, %s149
      %p151 = scmp.eq.s32.totalorder %s24, 0
      %p152 = por %p150, %p151
      %s154 = sadd.s32 %s153, 1
      %p157 = scmp.eq.s32.totalorder %s18, 3
      %p158 = scmp.ne.s32.totalorder %s153, %s155
      %p159 = scmp.eq.s32.totalorder %s18, 0
      %p160 = por %p158, %p159
      %p161 = scmp.ne.s32.totalorder %s153, %s155
      %p162 = scmp.eq.s32.totalorder %s23, 3
      %p163 = por %p161, %p162
      %p164 = scmp.ne.s32.totalorder %s155, %s156
      %p165 = scmp.eq.s32.totalorder %s23, 0
      %p166 = por %p164, %p165
      %p167 = scmp.ne.s32.totalorder %s155, %s156
      %p168 = scmp.eq.s32.totalorder %s24, 3
      %p169 = por %p167, %p168
      %p171 = scmp.ne.s32.totalorder %s156, %s170
      %p172 = scmp.eq.s32.totalorder %s24, 0
      %p173 = por %p171, %p172
      %s175 = sadd.s32 %s174, 1
      %p178 = scmp.eq.s32.totalorder %s18, 3
      %p179 = scmp.ne.s32.totalorder %s174, %s176
      %p180 = scmp.eq.s32.totalorder %s18, 0
      %p181 = por %p179, %p180
      %p182 = scmp.ne.s32.totalorder %s174, %s176
      %p183 = scmp.eq.s32.totalorder %s23, 3
      %p184 = por %p182, %p183
      %p185 = scmp.ne.s32.totalorder %s176, %s177
      %p186 = scmp.eq.s32.totalorder %s23, 0
      %p187 = por %p185, %p186
      %p188 = scmp.ne.s32.totalorder %s176, %s177
      %p189 = scmp.eq.s32.totalorder %s24, 3
      %p190 = por %p188, %p189
      %p192 = scmp.ne.s32.totalorder %s177, %s191
      %p193 = scmp.eq.s32.totalorder %s24, 0
      %p194 = por %p192, %p193
      %s196 = sadd.s32 %s195, 1
      %p199 = scmp.eq.s32.totalorder %s18, 3
      %p200 = scmp.ne.s32.totalorder %s195, %s197
      %p201 = scmp.eq.s32.totalorder %s18, 0
      %p202 = por %p200, %p201
      %p203 = scmp.ne.s32.totalorder %s195, %s197
      %p204 = scmp.eq.s32.totalorder %s23, 3
      %p205 = por %p203, %p204
      %p206 = scmp.ne.s32.totalorder %s197, %s198
      %p207 = scmp.eq.s32.totalorder %s23, 0
      %p208 = por %p206, %p207
      %p209 = scmp.ne.s32.totalorder %s197, %s198
      %p210 = scmp.eq.s32.totalorder %s24, 3
      %p211 = por %p209, %p210
      %p213 = scmp.ne.s32.totalorder %s198, %s212
      %p214 = scmp.eq.s32.totalorder %s24, 0
      %p215 = por %p213, %p214
      %s217 = sadd.s32 %s216, 1
      %p220 = scmp.eq.s32.totalorder %s18, 3
      %p221 = scmp.ne.s32.totalorder %s216, %s218
      %p222 = scmp.eq.s32.totalorder %s18, 0
      %p223 = por %p221, %p222
      %p224 = scmp.ne.s32.totalorder %s216, %s218
      %p225 = scmp.eq.s32.totalorder %s23, 3
      %p226 = por %p224, %p225
      %p227 = scmp.ne.s32.totalorder %s218, %s219
      %p228 = scmp.eq.s32.totalorder %s23, 0
      %p229 = por %p227, %p228
      %p230 = scmp.ne.s32.totalorder %s218, %s219
      %p231 = scmp.eq.s32.totalorder %s24, 3
      %p232 = por %p230, %p231
      %p234 = scmp.ne.s32.totalorder %s219, %s233
      %p235 = scmp.eq.s32.totalorder %s24, 0
      %p236 = por %p234, %p235
      %s238 = sadd.s32 %s237, 1
      %p241 = scmp.eq.s32.totalorder %s18, 3
      %p242 = scmp.ne.s32.totalorder %s237, %s239
      %p243 = scmp.eq.s32.totalorder %s18, 0
      %p244 = por %p242, %p243
      %p245 = scmp.ne.s32.totalorder %s237, %s239
      %p246 = scmp.eq.s32.totalorder %s23, 3
      %p247 = por %p245, %p246
      %p248 = scmp.ne.s32.totalorder %s239, %s240
      %p249 = scmp.eq.s32.totalorder %s23, 0
      %p250 = por %p248, %p249
      %p251 = scmp.ne.s32.totalorder %s239, %s240
      %p252 = scmp.eq.s32.totalorder %s24, 3
      %p253 = por %p251, %p252
      %p255 = scmp.ne.s32.totalorder %s240, %s254
      %p256 = scmp.eq.s32.totalorder %s24, 0
      %p257 = por %p255, %p256
      %s259 = sadd.s32 %s258, 1
      %p262 = scmp.eq.s32.totalorder %s18, 3
      %p263 = scmp.ne.s32.totalorder %s258, %s260
      %p264 = scmp.eq.s32.totalorder %s18, 0
      %p265 = por %p263, %p264
      %p266 = scmp.ne.s32.totalorder %s258, %s260
      %p267 = scmp.eq.s32.totalorder %s23, 3
      %p268 = por %p266, %p267
      %p269 = scmp.ne.s32.totalorder %s260, %s261
      %p270 = scmp.eq.s32.totalorder %s23, 0
      %p271 = por %p269, %p270
      %p272 = scmp.ne.s32.totalorder %s260, %s261
      %p273 = scmp.eq.s32.totalorder %s24, 3
      %p274 = por %p272, %p273
      %p276 = scmp.ne.s32.totalorder %s261, %s275
      %p277 = scmp.eq.s32.totalorder %s24, 0
      %p278 = por %p276, %p277
      %s279 = ssub.s32 %s25, %s44
      %p280 = scmp.eq.s32.totalorder %s279, 0
      %s282 = sadd.s32 %s281, 1
      %s283 = scalar_select %p280, %s281, %s282
      %p286 = pneg %p280
      %p287 = scmp.eq.s32.totalorder %s18, 3
      %p288 = por %p286, %p287
      %p289 = scmp.ne.s32.totalorder %s281, %s284
      %p290 = scmp.eq.s32.totalorder %s18, 0
      %p291 = por %p289, %p290
      %p292 = scmp.ne.s32.totalorder %s281, %s284
      %p293 = scmp.eq.s32.totalorder %s23, 3
      %p294 = por %p292, %p293
      %p295 = scmp.ne.s32.totalorder %s284, %s285
      %p296 = scmp.eq.s32.totalorder %s23, 0
      %p297 = por %p295, %p296
      %p298 = scmp.ne.s32.totalorder %s284, %s285
      %p299 = scmp.eq.s32.totalorder %s24, 3
      %p300 = por %p298, %p299
      %p302 = scmp.ne.s32.totalorder %s285, %s301
      %p303 = scmp.eq.s32.totalorder %s24, 0
      %p304 = por %p302, %p303
      %p305 = scmp.le.s32.totalorder 1, %s18
      %p306 = scmp.lt.s32.totalorder %s18, 5
      %p307 = pnand %p305, %p306
      %p308 = pneg %p307
      // Predicated region
      $region9: #{model_forward.11} parent=5 // pred_check
        _
      $region10: #{model_forward.11} parent=5 // pred_check_branch
        %310 = sbr.rel (%p307) target = $region12
      $region11: #{model_forward.11} parent=5 // pred_region
        %s311 = ssub.s32 %s18, 1
        // Predicated region
        $region13: #{model_forward.11} parent=11 // pred_check
          %p312 = pneg %p166
        $region14: #{model_forward.11} parent=11 // pred_check_branch
          %314 = sbr.rel (%p312) target = $region16
        $region15: #{model_forward.11} parent=11 // pred_region
          %316 = vsyncadd [#allocation8], 0
          %s317 = sshll.u32 %s4, 4
          %s318 = int_to_ptr.hbm [resolvable:$true] %s317
          %s319 = sshll.u32 [#allocation7], 4
          %s320 = int_to_ptr.vmem [resolvable:$true] %s319
          %325 = dma.hbm_to_vmem [thread:$0]  %s318, 1024, %s320, [#allocation8], 128, 128, 8
        $region16: #{model_forward.11} parent=11 // pred_fallthru
          _
        // Predicated region
        $region17: #{model_forward.11} parent=11 // pred_check
          %p326 = pneg %p187
        $region18: #{model_forward.11} parent=11 // pred_check_branch
          %328 = sbr.rel (%p326) target = $region20
        $region19: #{model_forward.11} parent=11 // pred_region
          %330 = vsyncadd [#allocation10], 0
          %s331 = sshll.u32 %s5, 4
          %s332 = int_to_ptr.hbm [resolvable:$true] %s331
          %s333 = sshll.u32 [#allocation9], 4
          %s334 = int_to_ptr.vmem [resolvable:$true] %s333
          %339 = dma.hbm_to_vmem [thread:$0]  %s332, 1024, %s334, [#allocation10], 128, 128, 8
        $region20: #{model_forward.11} parent=11 // pred_fallthru
          _
        // Predicated region
        $region21: #{model_forward.11} parent=11 // pred_check
          %p340 = pneg %p208
        $region22: #{model_forward.11} parent=11 // pred_check_branch
          %342 = sbr.rel (%p340) target = $region24
        $region23: #{model_forward.11} parent=11 // pred_region
          _
        $region24: #{model_forward.11} parent=11 // pred_fallthru
          _
        // Predicated region
        $region25: #{model_forward.11} parent=11 // pred_check
          %p343 = pneg %p229
        $region26: #{model_forward.11} parent=11 // pred_check_branch
          %345 = sbr.rel (%p343) target = $region28
        $region27: #{model_forward.11} parent=11 // pred_region
          _
        $region28: #{model_forward.11} parent=11 // pred_fallthru
          _
        // Predicated region
        $region29: #{model_forward.11} parent=11 // pred_check
          %p346 = pneg %p250
        $region30: #{model_forward.11} parent=11 // pred_check_branch
          %348 = sbr.rel (%p346) target = $region32
        $region31: #{model_forward.11} parent=11 // pred_region
          _
        $region32: #{model_forward.11} parent=11 // pred_fallthru
          _
        // Predicated region
        $region33: #{model_forward.11} parent=11 // pred_check
          %p349 = pneg %p271
        $region34: #{model_forward.11} parent=11 // pred_check_branch
          %351 = sbr.rel (%p349) target = $region36
        $region35: #{model_forward.11} parent=11 // pred_region
          _
        $region36: #{model_forward.11} parent=11 // pred_fallthru
          _
      $region12: #{model_forward.11} parent=5 // pred_fallthru
        _
      %p352 = scmp.lt.s32.totalorder %s18, 4
      // Predicated region
      $region37: #{model_forward.11} parent=5 // pred_check
        %p353 = pneg %p352
      $region38: #{model_forward.11} parent=5 // pred_check_branch
        %355 = sbr.rel (%p353) target = $region40
      $region39: #{model_forward.11} parent=5 // pred_region
        // Predicated region
        $region41: #{model_forward.11} parent=39 // pred_check
          %p356 = pneg %p57
        $region42: #{model_forward.11} parent=39 // pred_check_branch
          %358 = sbr.rel (%p356) target = $region44
        $region43: #{model_forward.11} parent=39 // pred_region
          %p359 = scmp.lt.s32.totalorder %s25, 1
          %s360 = scalar_select %p359, %s25, 1
          %s361 = smul.addr %s360, 4
          %s362 = smul.addr %s361, 8
          %s363 = scalar_lea.vmem %s0, %s362
        $region44: #{model_forward.11} parent=39 // pred_fallthru
          _
        // Predicated region
        $region45: #{model_forward.11} parent=39 // pred_check
          %p364 = pneg %p85
        $region46: #{model_forward.11} parent=39 // pred_check_branch
          %366 = sbr.rel (%p364) target = $region48
        $region47: #{model_forward.11} parent=39 // pred_region
          %p367 = scmp.lt.s32.totalorder %s25, 1
          %s368 = scalar_select %p367, %s25, 1
          %p369 = scmp.lt.s32.totalorder %s27, 0
          %s370 = scalar_select %p369, %s27, 0
          %s371 = sadd.s32 %s370, %s368
          %s372 = smul.addr %s371, 4
          %s373 = scalar_lea.vmem %s1, %s372
        $region48: #{model_forward.11} parent=39 // pred_fallthru
          _
        // Predicated region
        $region49: #{model_forward.11} parent=39 // pred_check
          %p374 = pneg %p111
        $region50: #{model_forward.11} parent=39 // pred_check_branch
          %376 = sbr.rel (%p374) target = $region52
        $region51: #{model_forward.11} parent=39 // pred_region
          %p377 = scmp.lt.s32.totalorder %s25, 1
          %s378 = scalar_select %p377, %s25, 1
          %s379 = smul.addr %s378, 4
          %s380 = smul.addr %s379, 8
          %s381 = scalar_lea.vmem %s2, %s380
        $region52: #{model_forward.11} parent=39 // pred_fallthru
          _
        // Predicated region
        $region53: #{model_forward.11} parent=39 // pred_check
          %p382 = pneg %p139
        $region54: #{model_forward.11} parent=39 // pred_check_branch
          %384 = sbr.rel (%p382) target = $region56
        $region55: #{model_forward.11} parent=39 // pred_region
          %s385 = smul.u32 8, %s27
          %p386 = scmp.lt.s32.totalorder %s25, 1
          %s387 = scalar_select %p386, %s25, 1
          %p388 = scmp.lt.s32.totalorder %s385, 7
          %s389 = scalar_select %p388, %s385, 7
          %s390 = smul.addr %s387, 8
          %s391 = sadd.s32 %s389, %s390
          %s392 = smul.addr %s391, 8
          %s393 = scalar_lea.vmem %s3, %s392
          %s394 = smul.u32 8, %s27
        $region56: #{model_forward.11} parent=39 // pred_fallthru
          _
      $region40: #{model_forward.11} parent=5 // pred_fallthru
        _
      %p395 = scmp.le.s32.totalorder 1, %s18
      %p396 = scmp.lt.s32.totalorder %s18, 5
      %p397 = pnand %p395, %p396
      %p398 = pneg %p397
      // Predicated region
      $region57: #{model_forward.11} parent=5 // pred_check
        _
      $region58: #{model_forward.11} parent=5 // pred_check_branch
        %400 = sbr.rel (%p397) target = $region60
      $region59: #{model_forward.11} parent=5 // pred_region
        %s401 = ssub.s32 %s18, 1
        // Predicated region
        $region61: #{model_forward.11} parent=59 // pred_check
          %p402 = pneg %p166
        $region62: #{model_forward.11} parent=59 // pred_check_branch
          %404 = sbr.rel (%p402) target = $region64
        $region63: #{model_forward.11} parent=59 // pred_region
          %406 = dma.done [#allocation8], 1024
        $region64: #{model_forward.11} parent=59 // pred_fallthru
          _
        // Predicated region
        $region65: #{model_forward.11} parent=59 // pred_check
          %p407 = pneg %p187
        $region66: #{model_forward.11} parent=59 // pred_check_branch
          %409 = sbr.rel (%p407) target = $region68
        $region67: #{model_forward.11} parent=59 // pred_region
          %411 = dma.done [#allocation10], 1024
        $region68: #{model_forward.11} parent=59 // pred_fallthru
          _
        %p412 = scmp.lt.s32.totalorder %s28, 1
        %s413 = scalar_select %p412, %s28, 1
        %s414 = smul.addr %s413, 4
        %s415 = smul.addr %s414, 8
        %s416 = scalar_lea.vmem %s0, %s415
        %p417 = pneg %p63
        %p418 = pneg %p60
        %p419 = scmp.lt.s32.totalorder %s28, 1
        %s420 = scalar_select %p419, %s28, 1
        %p421 = scmp.lt.s32.totalorder %s30, 0
        %s422 = scalar_select %p421, %s30, 0
        %s423 = sadd.s32 %s422, %s420
        %s424 = smul.addr %s423, 4
        %s425 = scalar_lea.vmem %s1, %s424
        %p426 = pneg %p91
        %p427 = pneg %p88
        %p428 = scmp.lt.s32.totalorder %s28, 1
        %s429 = scalar_select %p428, %s28, 1
        %s430 = smul.addr %s429, 4
        %s431 = smul.addr %s430, 8
        %s432 = scalar_lea.vmem %s2, %s431
        %p433 = pneg %p117
        %p434 = pneg %p114
        %s435 = smul.u32 8, %s30
        %p436 = scmp.lt.s32.totalorder %s28, 1
        %s437 = scalar_select %p436, %s28, 1
        %p438 = scmp.lt.s32.totalorder %s435, 7
        %s439 = scalar_select %p438, %s435, 7
        %s440 = smul.addr %s437, 8
        %s441 = sadd.s32 %s439, %s440
        %s442 = smul.addr %s441, 8
        %s443 = scalar_lea.vmem %s3, %s442
        %p444 = pneg %p145
        %p445 = pneg %p142
        %p446 = pneg %p166
        %p447 = pneg %p163
        %p448 = pneg %p187
        %p449 = pneg %p184
        %p450 = pneg %p208
        %p451 = pneg %p205
        %p452 = pneg %p229
        %p453 = pneg %p226
        %p454 = pneg %p250
        %p455 = pneg %p247
        %p456 = pneg %p271
        %p457 = pneg %p268
        %p458 = pneg %p297
        %p459 = pneg %p294
        %p460 = scmp.lt.s32.totalorder %s28, 1
        %s461 = scalar_select %p460, %s28, 1
        %s462 = smul.addr %s461, 4
        %s463 = smul.addr %s462, 8
        %s464 = scalar_lea.vmem %s10, %s463
        %p465 = scmp.lt.s32.totalorder %s28, 1
        %s466 = scalar_select %p465, %s28, 1
        %s467 = smul.addr %s466, 4
        %s468 = smul.addr %s467, 8
        %s469 = scalar_lea.vmem %s0, %s468
        %p470 = scmp.lt.s32.totalorder %s28, 1
        %s471 = scalar_select %p470, %s28, 1
        %p472 = scmp.lt.s32.totalorder %s30, 0
        %s473 = scalar_select %p472, %s30, 0
        %s474 = sadd.s32 %s473, %s471
        %s475 = smul.addr %s474, 4
        %s476 = scalar_lea.vmem %s1, %s475
        %p477 = scmp.lt.s32.totalorder %s28, 1
        %s478 = scalar_select %p477, %s28, 1
        %s479 = smul.addr %s478, 4
        %s480 = smul.addr %s479, 8
        %s481 = scalar_lea.vmem %s2, %s480
        %s482 = smul.u32 8, %s30
        %p483 = scmp.lt.s32.totalorder %s28, 1
        %s484 = scalar_select %p483, %s28, 1
        %p485 = scmp.lt.s32.totalorder %s482, 7
        %s486 = scalar_select %p485, %s482, 7
        %s487 = smul.addr %s484, 8
        %s488 = sadd.s32 %s486, %s487
        %s489 = smul.addr %s488, 8
        %s490 = scalar_lea.vmem %s3, %s489
        %s491 = smul.u32 8, %s30
        %p492 = scmp.lt.s32.totalorder %s28, 1
        %s493 = scalar_select %p492, %s28, 1
        %s494 = smul.addr %s493, 4
        %s495 = smul.addr %s494, 8
        %s496 = scalar_lea.vmem %s10, %s495
        %v498 = vld [vmem:[%s469] sm:$0xff]
        %v499 = vld [vmem:[%s469 + $0x8] sm:$0xff]
        %v500 = vld [vmem:[%s469 + $0x10] sm:$0xff]
        %v501 = vld [vmem:[%s469 + $0x18] sm:$0xff]
        %v502 = vld [vmem:[%s476] sm:$0x7]
        %v503 = vmul.f32 %v498, %v498
        %v504 = vmul.f32 %v499, %v499
        %v505 = vmul.f32 %v500, %v500
        %v506 = vmul.f32 %v501, %v501
        %vm507 = vcmask 23552
        %v508 = vsel %vm507, %v503, 0.0
        %509 = vadd.xlane.f32.xlu0 %v508
        %v510 = vpop.xlane.xlu0 %509
        %v511 = vsel %vm507, %v504, 0.0
        %512 = vadd.xlane.f32.xlu0 %v511
        %v513 = vpop.xlane.xlu0 %512
        %v514 = vsel %vm507, %v505, 0.0
        %515 = vadd.xlane.f32.xlu0 %v514
        %v516 = vpop.xlane.xlu0 %515
        %v517 = vsel %vm507, %v506, 0.0
        %518 = vadd.xlane.f32.xlu0 %v517
        %v519 = vpop.xlane.xlu0 %518
        %v520 = vmul.f32 %v502, %v502
        %vm521 = vcmask 518144
        %v522 = vsel %vm521, %v520, 0.0
        %v523 = vrot.slane %v522, 4
        %v524 = vadd.f32 %v522, %v523
        %v525 = vrot.slane %v524, 2
        %v526 = vadd.f32 %v524, %v525
        %v527 = vrot.slane %v526, 1
        %v528 = vadd.f32 %v526, %v527
        %530 = vset.pattern.permute.xlu0 0
        %531 = vperm.xlu0 %530, %v498
        %v532 = vpop.permute.xlu0 %531
        %535 = vset.pattern.permute.xlu0 0
        %536 = vperm.xlu0 %535, %v499
        %v537 = vpop.permute.xlu0 %536
        %540 = vset.pattern.permute.xlu0 0
        %541 = vperm.xlu0 %540, %v500
        %v542 = vpop.permute.xlu0 %541
        %545 = vset.pattern.permute.xlu0 0
        %546 = vperm.xlu0 %545, %v501
        %v547 = vpop.permute.xlu0 %546
        %v549 = vperm.slane %v502, 0
        %v550 = vmul.f32 %v532, %v549
        %v551 = vmul.f32 %v537, %v549
        %v552 = vmul.f32 %v542, %v549
        %v553 = vmul.f32 %v547, %v549
        %554 = vset.pattern.permute.xlu0 1
        %555 = vperm.xlu0 %554, %v498
        %v556 = vpop.permute.xlu0 %555
        %558 = vset.pattern.permute.xlu0 1
        %559 = vperm.xlu0 %558, %v499
        %v560 = vpop.permute.xlu0 %559
        %562 = vset.pattern.permute.xlu0 1
        %563 = vperm.xlu0 %562, %v500
        %v564 = vpop.permute.xlu0 %563
        %566 = vset.pattern.permute.xlu0 1
        %567 = vperm.xlu0 %566, %v501
        %v568 = vpop.permute.xlu0 %567
        %v570 = vperm.slane %v502, 1
        %v571 = vmul.f32 %v556, %v570
        %v572 = vmul.f32 %v560, %v570
        %v573 = vmul.f32 %v564, %v570
        %v574 = vmul.f32 %v568, %v570
        %v575 = vadd.f32 %v550, %v571
        %v576 = vadd.f32 %v551, %v572
        %v577 = vadd.f32 %v552, %v573
        %v578 = vadd.f32 %v553, %v574
        %579 = vset.pattern.permute.xlu0 2
        %580 = vperm.xlu0 %579, %v498
        %v581 = vpop.permute.xlu0 %580
        %583 = vset.pattern.permute.xlu0 2
        %584 = vperm.xlu0 %583, %v499
        %v585 = vpop.permute.xlu0 %584
        %587 = vset.pattern.permute.xlu0 2
        %588 = vperm.xlu0 %587, %v500
        %v589 = vpop.permute.xlu0 %588
        %591 = vset.pattern.permute.xlu0 2
        %592 = vperm.xlu0 %591, %v501
        %v593 = vpop.permute.xlu0 %592
        %v595 = vperm.slane %v502, 2
        %v596 = vmul.f32 %v581, %v595
        %v597 = vmul.f32 %v585, %v595
        %v598 = vmul.f32 %v589, %v595
        %v599 = vmul.f32 %v593, %v595
        %v600 = vadd.f32 %v575, %v596
        %v601 = vadd.f32 %v576, %v597
        %v602 = vadd.f32 %v577, %v598
        %v603 = vadd.f32 %v578, %v599
        %v604 = vadd.f32 %v510, %v528
        %v605 = vadd.f32 %v513, %v528
        %v606 = vadd.f32 %v516, %v528
        %v607 = vadd.f32 %v519, %v528
        %v608 = vmul.f32 %v600, 2.0
        %v609 = vmul.f32 %v601, 2.0
        %v610 = vmul.f32 %v602, 2.0
        %v611 = vmul.f32 %v603, 2.0
        %v612 = vsub.f32 %v604, %v608
        %v613 = vsub.f32 %v605, %v609
        %v614 = vsub.f32 %v606, %v610
        %v615 = vsub.f32 %v607, %v611
        %v616 = vmax.f32 %v612, 0.0
        %v617 = vmax.f32 %v613, 0.0
        %v618 = vmax.f32 %v614, 0.0
        %v619 = vmax.f32 %v615, 0.0
        %p620 = scmp.eq.s32.totalorder %s29, 0
        %p621 = scmp.eq.s32.totalorder %s30, 0
        %p622 = pnand %p620, %p621
        %p623 = pneg %p622
        // Predicated region
        $region69: #{model_forward.11} parent=59 // pred_check
          _
        $region70: #{model_forward.11} parent=59 // pred_check_branch
          %625 = sbr.rel (%p622) target = $region72
        $region71: #{model_forward.11} parent=59 // pred_region
          %vm626 = vcmask 7168
          %627 = vst.msk [vmem:[#allocation2] sm:$0xff] %vm626, 0.0
          %628 = vst.msk [vmem:[#allocation2 + $0x8] sm:$0xff] %vm626, 0.0
          %629 = vst.msk [vmem:[#allocation2 + $0x10] sm:$0xff] %vm626, 0.0
          %630 = vst.msk [vmem:[#allocation2 + $0x18] sm:$0xff] %vm626, 0.0
        $region72: #{model_forward.11} parent=59 // pred_fallthru
          _
        // Predicated region
        $region73: #{model_forward.11} parent=59 // pred_check
          %p631 = pneg %p620
        $region74: #{model_forward.11} parent=59 // pred_check_branch
          %633 = sbr.rel (%p631) target = $region76
        $region75: #{model_forward.11} parent=59 // pred_region
          %v634 = vld [vmem:[#allocation2] sm:$0xff]
          %v635 = vld [vmem:[#allocation2 + $0x8] sm:$0xff]
          %v636 = vld [vmem:[#allocation2 + $0x10] sm:$0xff]
          %v637 = vld [vmem:[#allocation2 + $0x18] sm:$0xff]
          %vm638 = vcmp.lt.f32.partialorder %v616, 0.04
          %vm639 = vcmp.lt.f32.partialorder %v617, 0.04
          %vm640 = vcmp.lt.f32.partialorder %v618, 0.04
          %vm641 = vcmp.lt.f32.partialorder %v619, 0.04
          %v642 = vsel %vm638, 1, 0
          %v643 = vsel %vm639, 1, 0
          %v644 = vsel %vm640, 1, 0
          %v645 = vsel %vm641, 1, 0
          %v646 = vcvt.s32.f32 %v642
          %v647 = vcvt.s32.f32 %v643
          %v648 = vcvt.s32.f32 %v644
          %v649 = vcvt.s32.f32 %v645
          %vm650 = vcmask 523264
          %v651 = vsel %vm650, %v646, 0.0
          %652 = vadd.xlane.f32.xlu0 %v651
          %v653 = vpop.xlane.xlu0 %652
          %v654 = vsel %vm650, %v647, 0.0
          %655 = vadd.xlane.f32.xlu0 %v654
          %v656 = vpop.xlane.xlu0 %655
          %v657 = vsel %vm650, %v648, 0.0
          %658 = vadd.xlane.f32.xlu0 %v657
          %v659 = vpop.xlane.xlu0 %658
          %v660 = vsel %vm650, %v649, 0.0
          %661 = vadd.xlane.f32.xlu0 %v660
          %v662 = vpop.xlane.xlu0 %661
          %v663 = vadd.f32 %v634, %v653
          %v664 = vadd.f32 %v635, %v656
          %v665 = vadd.f32 %v636, %v659
          %v666 = vadd.f32 %v637, %v662
          %vm667 = vcmask 7168
          %668 = vst.msk [vmem:[#allocation2] sm:$0xff] %vm667, %v663
          %669 = vst.msk [vmem:[#allocation2 + $0x8] sm:$0xff] %vm667, %v664
          %670 = vst.msk [vmem:[#allocation2 + $0x10] sm:$0xff] %vm667, %v665
          %671 = vst.msk [vmem:[#allocation2 + $0x18] sm:$0xff] %vm667, %v666
        $region76: #{model_forward.11} parent=59 // pred_fallthru
          _
        %p672 = scmp.eq.s32.totalorder %s29, 1
        %p673 = pnand %p672, %p621
        %p674 = pneg %p673
        // Predicated region
        $region77: #{model_forward.11} parent=59 // pred_check
          _
        $region78: #{model_forward.11} parent=59 // pred_check_branch
          %676 = sbr.rel (%p673) target = $region80
        $region79: #{model_forward.11} parent=59 // pred_region
          %vm677 = vcmask 7168
          %678 = vst.msk [vmem:[#allocation3] sm:$0xff] %vm677, -1e+30
          %679 = vst.msk [vmem:[#allocation3 + $0x8] sm:$0xff] %vm677, -1e+30
          %680 = vst.msk [vmem:[#allocation3 + $0x10] sm:$0xff] %vm677, -1e+30
          %681 = vst.msk [vmem:[#allocation3 + $0x18] sm:$0xff] %vm677, -1e+30
          %682 = vst.msk [vmem:[#allocation4] sm:$0xff] %vm677, 0.0
          %683 = vst.msk [vmem:[#allocation4 + $0x8] sm:$0xff] %vm677, 0.0
          %684 = vst.msk [vmem:[#allocation4 + $0x10] sm:$0xff] %vm677, 0.0
          %685 = vst.msk [vmem:[#allocation4 + $0x18] sm:$0xff] %vm677, 0.0
          %vm686 = vcmask 523264
          %687 = vst.msk [vmem:[#allocation5] sm:$0xff] %vm686, 0.0
          %688 = vst.msk [vmem:[#allocation5 + $0x8] sm:$0xff] %vm686, 0.0
          %689 = vst.msk [vmem:[#allocation5 + $0x10] sm:$0xff] %vm686, 0.0
          %690 = vst.msk [vmem:[#allocation5 + $0x18] sm:$0xff] %vm686, 0.0
          %v691 = vld [vmem:[%s481] sm:$0xff]
          %v692 = vld [vmem:[%s481 + $0x8] sm:$0xff]
          %v693 = vld [vmem:[%s481 + $0x10] sm:$0xff]
          %v694 = vld [vmem:[%s481 + $0x18] sm:$0xff]
          %v695 = vpack.c.bf16 %v692, %v691
          %v696 = vpack.c.bf16 %v694, %v693
          %v697 = vld [vmem:[#allocation7] sm:$0xff]
          %v698 = vld [vmem:[#allocation7 + $0x8] sm:$0xff]
          %v699 = vld [vmem:[#allocation7 + $0x10] sm:$0xff]
          %v700 = vld [vmem:[#allocation7 + $0x18] sm:$0xff]
          %v701 = vld [vmem:[#allocation7 + $0x20] sm:$0xff]
          %v702 = vld [vmem:[#allocation7 + $0x28] sm:$0xff]
          %v703 = vld [vmem:[#allocation7 + $0x30] sm:$0xff]
          %v704 = vld [vmem:[#allocation7 + $0x38] sm:$0xff]
          %v705 = vpack.c.bf16 %v698, %v697
          %v706 = vpack.c.bf16 %v700, %v699
          %v707 = vpack.c.bf16 %v702, %v701
          %v708 = vpack.c.bf16 %v704, %v703
          %v710 = vsel %vm686, %v695, 0
          %v713 = vsel %vm686, %v696, 0
          %715 = vmatpush.bf16.msra.mxu0 0
          %716 = vmatpush.bf16.msra.mxu0 0
          %717 = vmatpush.bf16.msra.mxu0 0
          %718 = vmatpush.bf16.msra.mxu0 0
          %719 = vmatpush.bf16.msra.mxu0 %v708
          %720 = vmatpush.bf16.msra.mxu0 %v707
          %721 = vmatpush.bf16.msra.mxu0 %v706
          %722 = vmatpush.bf16.msra.mxu0 %v705
          %723 = vmatmul.bf16.gmra.mxu0 %v710
          %v724 = vpop.f32.mrf.mxu0
          %v725 = vadd.f32 0.0, %v724
          %v726 = vpop.f32.mrf.mxu0
          %v727 = vadd.f32 0.0, %v726
          %728 = vmatmul.bf16.gmra.mxu0 %v713
          %v729 = vpop.f32.mrf.mxu0
          %v730 = vadd.f32 0.0, %v729
          %v731 = vpop.f32.mrf.mxu0
          %v732 = vadd.f32 0.0, %v731
          %733 = vdwg.mxu0
          %v734 = vmul.f32 %v725, 0.125
          %v735 = vmul.f32 %v727, 0.125
          %v736 = vmul.f32 %v730, 0.125
          %v737 = vmul.f32 %v732, 0.125
          %v738 = vpack.c.bf16 %v734, %v734
          %v739 = vpack.c.bf16 %v735, %v735
          %v740 = vpack.c.bf16 %v736, %v736
          %v741 = vpack.c.bf16 %v737, %v737
          %vm742 = vcmask 519168
          %743 = vst.msk [vmem:[#allocation6] sm:$0xf] %vm742, %v738
          %744 = vst.msk [vmem:[#allocation6 + $0x4] sm:$0xf] %vm742, %v739
          %745 = vst.msk [vmem:[#allocation6 + $0x8] sm:$0xf] %vm742, %v740
          %746 = vst.msk [vmem:[#allocation6 + $0xc] sm:$0xf] %vm742, %v741
        $region80: #{model_forward.11} parent=59 // pred_fallthru
          _
        // Predicated region
        $region81: #{model_forward.11} parent=59 // pred_check
          %p747 = pneg %p672
        $region82: #{model_forward.11} parent=59 // pred_check_branch
          %749 = sbr.rel (%p747) target = $region84
        $region83: #{model_forward.11} parent=59 // pred_region
          %v750 = vld [vmem:[%s490] sm:$0xff]
          %v751 = vld [vmem:[%s490 + $0x8] sm:$0xff]
          %v752 = vld [vmem:[%s490 + $0x10] sm:$0xff]
          %v753 = vld [vmem:[%s490 + $0x18] sm:$0xff]
          %v754 = vld [vmem:[%s490 + $0x20] sm:$0xff]
          %v755 = vld [vmem:[%s490 + $0x28] sm:$0xff]
          %v756 = vld [vmem:[%s490 + $0x30] sm:$0xff]
          %v757 = vld [vmem:[%s490 + $0x38] sm:$0xff]
          %v758 = vpack.c.bf16 %v751, %v750
          %v759 = vpack.c.bf16 %v753, %v752
          %v760 = vpack.c.bf16 %v755, %v754
          %v761 = vpack.c.bf16 %v757, %v756
          %v762 = vld [vmem:[#allocation9] sm:$0xff]
          %v763 = vld [vmem:[#allocation9 + $0x8] sm:$0xff]
          %v764 = vld [vmem:[#allocation9 + $0x10] sm:$0xff]
          %v765 = vld [vmem:[#allocation9 + $0x18] sm:$0xff]
          %v766 = vld [vmem:[#allocation9 + $0x20] sm:$0xff]
          %v767 = vld [vmem:[#allocation9 + $0x28] sm:$0xff]
          %v768 = vld [vmem:[#allocation9 + $0x30] sm:$0xff]
          %v769 = vld [vmem:[#allocation9 + $0x38] sm:$0xff]
          %v770 = vpack.c.bf16 %v763, %v762
          %v771 = vpack.c.bf16 %v765, %v764
          %v772 = vpack.c.bf16 %v767, %v766
          %v773 = vpack.c.bf16 %v769, %v768
          %vm774 = vcmask 523264
          %v776 = vsel %vm774, %v758, 0
          %v779 = vsel %vm774, %v759, 0
          %v782 = vsel %vm774, %v760, 0
          %v785 = vsel %vm774, %v761, 0
          %787 = vmatpush.bf16.msra.mxu0 0
          %788 = vmatpush.bf16.msra.mxu0 0
          %789 = vmatpush.bf16.msra.mxu0 0
          %790 = vmatpush.bf16.msra.mxu0 0
          %791 = vmatpush.bf16.msra.mxu0 %v773
          %792 = vmatpush.bf16.msra.mxu0 %v772
          %793 = vmatpush.bf16.msra.mxu0 %v771
          %794 = vmatpush.bf16.msra.mxu0 %v770
          %795 = vmatmul.bf16.gmra.mxu0 %v776
          %v796 = vpop.f32.mrf.mxu0
          %v797 = vadd.f32 0.0, %v796
          %v798 = vpop.f32.mrf.mxu0
          %v799 = vadd.f32 0.0, %v798
          %800 = vmatmul.bf16.gmra.mxu0 %v779
          %v801 = vpop.f32.mrf.mxu0
          %v802 = vadd.f32 0.0, %v801
          %v803 = vpop.f32.mrf.mxu0
          %v804 = vadd.f32 0.0, %v803
          %805 = vmatmul.bf16.gmra.mxu0 %v782
          %v806 = vpop.f32.mrf.mxu0
          %v807 = vadd.f32 0.0, %v806
          %v808 = vpop.f32.mrf.mxu0
          %v809 = vadd.f32 0.0, %v808
          %810 = vmatmul.bf16.gmra.mxu0 %v785
          %v811 = vpop.f32.mrf.mxu0
          %v812 = vadd.f32 0.0, %v811
          %v813 = vpop.f32.mrf.mxu0
          %v814 = vadd.f32 0.0, %v813
          %815 = vdwg.mxu0
          %v816 = vld [vmem:[#allocation2] sm:$0xff]
          %v817 = vld [vmem:[#allocation2 + $0x8] sm:$0xff]
          %v818 = vld [vmem:[#allocation2 + $0x10] sm:$0xff]
          %v819 = vld [vmem:[#allocation2 + $0x18] sm:$0xff]
          %v820 = vmul.f32 %v816, 0.015625
          %v821 = vmul.f32 %v817, 0.015625
          %v822 = vmul.f32 %v818, 0.015625
          %v823 = vmul.f32 %v819, 0.015625
          %v824 = vadd.f32 %v820, 1.0
          %v825 = vadd.f32 %v821, 1.0
          %v826 = vadd.f32 %v822, 1.0
          %v827 = vadd.f32 %v823, 1.0
          %v828 = vmul.f32 %v824, 0.04
          %v829 = vmul.f32 %v825, 0.04
          %v830 = vmul.f32 %v826, 0.04
          %v831 = vmul.f32 %v827, 0.04
          %833 = vset.pattern.permute.xlu0 0
          %834 = vperm.xlu0 %833, %v828
          %v835 = vpop.permute.xlu0 %834
          %838 = vset.pattern.permute.xlu0 0
          %839 = vperm.xlu0 %838, %v829
          %v840 = vpop.permute.xlu0 %839
          %843 = vset.pattern.permute.xlu0 0
          %844 = vperm.xlu0 %843, %v830
          %v845 = vpop.permute.xlu0 %844
          %848 = vset.pattern.permute.xlu0 0
          %849 = vperm.xlu0 %848, %v831
          %v850 = vpop.permute.xlu0 %849
          %vm852 = vcmp.lt.f32.partialorder %v616, %v835
          %vm853 = vcmp.lt.f32.partialorder %v617, %v840
          %vm854 = vcmp.lt.f32.partialorder %v618, %v845
          %vm855 = vcmp.lt.f32.partialorder %v619, %v850
          %v856 = vld [vmem:[#allocation6] sm:$0xf]
          %v857 = vld [vmem:[#allocation6 + $0x4] sm:$0xf]
          %v858 = vld [vmem:[#allocation6 + $0x8] sm:$0xf]
          %v859 = vld [vmem:[#allocation6 + $0xc] sm:$0xf]
          %v860 = vpack.c.bf16 %v799, %v797
          %v861 = vpack.c.bf16 %v804, %v802
          %v862 = vpack.c.bf16 %v809, %v807
          %v863 = vpack.c.bf16 %v814, %v812
          %v868 = vunpack.c.l.b16 %v856
          %v869 = vunpack.c.l.b16 %v857
          %v870 = vunpack.c.l.b16 %v858
          %v871 = vunpack.c.l.b16 %v859
          %v872 = vpack.c.b16 %v869, %v868
          %v873 = vpack.c.b16 %v871, %v870
          %v875 = vsel %vm774, %v872, 0
          %v878 = vsel %vm774, %v873, 0
          %v881 = vsel %vm774, %v860, 0
          %v884 = vsel %vm774, %v861, 0
          %v887 = vsel %vm774, %v862, 0
          %v890 = vsel %vm774, %v863, 0
          %892 = vmatpush.bf16.xpose.msra.mxu0 0
          %893 = vmatpush.bf16.xpose.msra.mxu0 0
          %894 = vmatpush.bf16.xpose.msra.mxu0 0
          %895 = vmatpush.bf16.xpose.msra.mxu0 0
          %896 = vmatpush.bf16.xpose.msra.mxu0 %v890
          %897 = vmatpush.bf16.xpose.msra.mxu0 %v887
          %898 = vmatpush.bf16.xpose.msra.mxu0 %v884
          %899 = vmatpush.bf16.xpose.msra.mxu0 %v881
          %900 = vmatmul.bf16.gmra.mxu0 %v875
          %v901 = vpop.f32.mrf.mxu0
          %v902 = vadd.f32 0.0, %v901
          %v903 = vpop.f32.mrf.mxu0
          %v904 = vadd.f32 0.0, %v903
          %905 = vmatmul.bf16.gmra.mxu0 %v878
          %v906 = vpop.f32.mrf.mxu0
          %v907 = vadd.f32 0.0, %v906
          %v908 = vpop.f32.mrf.mxu0
          %v909 = vadd.f32 0.0, %v908
          %910 = vdwg.mxu0
          %v911 = vsel %vm852, %v902, -1e+30
          %v912 = vsel %vm853, %v904, -1e+30
          %v913 = vsel %vm854, %v907, -1e+30
          %v914 = vsel %vm855, %v909, -1e+30
          %v915 = vld [vmem:[#allocation3] sm:$0xff]
          %v916 = vld [vmem:[#allocation3 + $0x8] sm:$0xff]
          %v917 = vld [vmem:[#allocation3 + $0x10] sm:$0xff]
          %v918 = vld [vmem:[#allocation3 + $0x18] sm:$0xff]
          %v919 = vsel %vm774, %v911, -inf
          %920 = vmax.xlane.f32.xlu0 %v919
          %v921 = vpop.xlane.xlu0 %920
          %v922 = vsel %vm774, %v912, -inf
          %923 = vmax.xlane.f32.xlu0 %v922
          %v924 = vpop.xlane.xlu0 %923
          %v925 = vsel %vm774, %v913, -inf
          %926 = vmax.xlane.f32.xlu0 %v925
          %v927 = vpop.xlane.xlu0 %926
          %v928 = vsel %vm774, %v914, -inf
          %929 = vmax.xlane.f32.xlu0 %v928
          %v930 = vpop.xlane.xlu0 %929
          %v931 = vmax.f32 %v915, %v921
          %v932 = vmax.f32 %v916, %v924
          %v933 = vmax.f32 %v917, %v927
          %v934 = vmax.f32 %v918, %v930
          %v935 = vsub.f32 %v915, %v931
          %v936 = vsub.f32 %v916, %v932
          %v937 = vsub.f32 %v917, %v933
          %v938 = vsub.f32 %v918, %v934
          %v939 = vmul.f32 %v935, 1.442695
          %v940 = vpow.pop %v939
          %v941 = vmul.f32 %v936, 1.442695
          %v942 = vpow.pop %v941
          %v943 = vmul.f32 %v937, 1.442695
          %v944 = vpow.pop %v943
          %v945 = vmul.f32 %v938, 1.442695
          %v946 = vpow.pop %v945
          %948 = vset.pattern.permute.xlu0 0
          %949 = vperm.xlu0 %948, %v931
          %v950 = vpop.permute.xlu0 %949
          %953 = vset.pattern.permute.xlu0 0
          %954 = vperm.xlu0 %953, %v932
          %v955 = vpop.permute.xlu0 %954
          %958 = vset.pattern.permute.xlu0 0
          %959 = vperm.xlu0 %958, %v933
          %v960 = vpop.permute.xlu0 %959
          %963 = vset.pattern.permute.xlu0 0
          %964 = vperm.xlu0 %963, %v934
          %v965 = vpop.permute.xlu0 %964
          %v967 = vsub.f32 %v911, %v950
          %v968 = vsub.f32 %v912, %v955
          %v969 = vsub.f32 %v913, %v960
          %v970 = vsub.f32 %v914, %v965
          %v971 = vmul.f32 %v967, 1.442695
          %v972 = vpow.pop %v971
          %v973 = vmul.f32 %v968, 1.442695
          %v974 = vpow.pop %v973
          %v975 = vmul.f32 %v969, 1.442695
          %v976 = vpow.pop %v975
          %v977 = vmul.f32 %v970, 1.442695
          %v978 = vpow.pop %v977
          %v979 = vld [vmem:[#allocation4] sm:$0xff]
          %v980 = vld [vmem:[#allocation4 + $0x8] sm:$0xff]
          %v981 = vld [vmem:[#allocation4 + $0x10] sm:$0xff]
          %v982 = vld [vmem:[#allocation4 + $0x18] sm:$0xff]
          %v983 = vmul.f32 %v940, %v979
          %v984 = vmul.f32 %v942, %v980
          %v985 = vmul.f32 %v944, %v981
          %v986 = vmul.f32 %v946, %v982
          %v987 = vsel %vm774, %v972, 0.0
          %988 = vadd.xlane.f32.xlu0 %v987
          %v989 = vpop.xlane.xlu0 %988
          %v990 = vsel %vm774, %v974, 0.0
          %991 = vadd.xlane.f32.xlu0 %v990
          %v992 = vpop.xlane.xlu0 %991
          %v993 = vsel %vm774, %v976, 0.0
          %994 = vadd.xlane.f32.xlu0 %v993
          %v995 = vpop.xlane.xlu0 %994
          %v996 = vsel %vm774, %v978, 0.0
          %997 = vadd.xlane.f32.xlu0 %v996
          %v998 = vpop.xlane.xlu0 %997
          %v999 = vadd.f32 %v983, %v989
          %v1000 = vadd.f32 %v984, %v992
          %v1001 = vadd.f32 %v985, %v995
          %v1002 = vadd.f32 %v986, %v998
          %vm1003 = vcmask 7168
          %1004 = vst.msk [vmem:[#allocation4] sm:$0xff] %vm1003, %v999
          %1005 = vst.msk [vmem:[#allocation4 + $0x8] sm:$0xff] %vm1003, %v1000
          %1006 = vst.msk [vmem:[#allocation4 + $0x10] sm:$0xff] %vm1003, %v1001
          %1007 = vst.msk [vmem:[#allocation4 + $0x18] sm:$0xff] %vm1003, %v1002
          %v1008 = vld [vmem:[#allocation5] sm:$0xff]
          %v1009 = vld [vmem:[#allocation5 + $0x8] sm:$0xff]
          %v1010 = vld [vmem:[#allocation5 + $0x10] sm:$0xff]
          %v1011 = vld [vmem:[#allocation5 + $0x18] sm:$0xff]
          %1013 = vset.pattern.permute.xlu0 0
          %1014 = vperm.xlu0 %1013, %v940
          %v1015 = vpop.permute.xlu0 %1014
          %1018 = vset.pattern.permute.xlu0 0
          %1019 = vperm.xlu0 %1018, %v942
          %v1020 = vpop.permute.xlu0 %1019
          %1023 = vset.pattern.permute.xlu0 0
          %1024 = vperm.xlu0 %1023, %v944
          %v1025 = vpop.permute.xlu0 %1024
          %1028 = vset.pattern.permute.xlu0 0
          %1029 = vperm.xlu0 %1028, %v946
          %v1030 = vpop.permute.xlu0 %1029
          %v1032 = vmul.f32 %v1015, %v1008
          %v1033 = vmul.f32 %v1020, %v1009
          %v1034 = vmul.f32 %v1025, %v1010
          %v1035 = vmul.f32 %v1030, %v1011
          %v1036 = vpack.c.bf16 %v974, %v972
          %v1037 = vpack.c.bf16 %v978, %v976
          %v1039 = vsel %vm774, %v1036, 0
          %v1042 = vsel %vm774, %v1037, 0
          %1044 = vmatpush.bf16.msra.mxu0 0
          %1045 = vmatpush.bf16.msra.mxu0 0
          %1046 = vmatpush.bf16.msra.mxu0 0
          %1047 = vmatpush.bf16.msra.mxu0 0
          %1048 = vmatpush.bf16.msra.mxu0 %v761
          %1049 = vmatpush.bf16.msra.mxu0 %v760
          %1050 = vmatpush.bf16.msra.mxu0 %v759
          %1051 = vmatpush.bf16.msra.mxu0 %v758
          %1052 = vmatmul.bf16.gmra.mxu0 %v1039
          %v1053 = vpop.f32.mrf.mxu0
          %v1054 = vadd.f32 0.0, %v1053
          %v1055 = vpop.f32.mrf.mxu0
          %v1056 = vadd.f32 0.0, %v1055
          %1057 = vmatmul.bf16.gmra.mxu0 %v1042
          %v1058 = vpop.f32.mrf.mxu0
          %v1059 = vadd.f32 0.0, %v1058
          %v1060 = vpop.f32.mrf.mxu0
          %v1061 = vadd.f32 0.0, %v1060
          %1062 = vdwg.mxu0
          %v1063 = vadd.f32 %v1032, %v1054
          %v1064 = vadd.f32 %v1033, %v1056
          %v1065 = vadd.f32 %v1034, %v1059
          %v1066 = vadd.f32 %v1035, %v1061
          %1067 = vst.msk [vmem:[#allocation5] sm:$0xff] %vm774, %v1063
          %1068 = vst.msk [vmem:[#allocation5 + $0x8] sm:$0xff] %vm774, %v1064
          %1069 = vst.msk [vmem:[#allocation5 + $0x10] sm:$0xff] %vm774, %v1065
          %1070 = vst.msk [vmem:[#allocation5 + $0x18] sm:$0xff] %vm774, %v1066
          %1071 = vst.msk [vmem:[#allocation3] sm:$0xff] %vm1003, %v931
          %1072 = vst.msk [vmem:[#allocation3 + $0x8] sm:$0xff] %vm1003, %v932
          %1073 = vst.msk [vmem:[#allocation3 + $0x10] sm:$0xff] %vm1003, %v933
          %1074 = vst.msk [vmem:[#allocation3 + $0x18] sm:$0xff] %vm1003, %v934
        $region84: #{model_forward.11} parent=59 // pred_fallthru
          _
        // Predicated region
        $region85: #{model_forward.11} parent=59 // pred_check
          _
        $region86: #{model_forward.11} parent=59 // pred_check_branch
          %1076 = sbr.rel (%p673) target = $region88
        $region87: #{model_forward.11} parent=59 // pred_region
          %v1077 = vld [vmem:[%s481] sm:$0xff]
          %v1078 = vld [vmem:[%s481 + $0x8] sm:$0xff]
          %v1079 = vld [vmem:[%s481 + $0x10] sm:$0xff]
          %v1080 = vld [vmem:[%s481 + $0x18] sm:$0xff]
          %v1081 = vld [vmem:[#allocation5] sm:$0xff]
          %v1082 = vld [vmem:[#allocation5 + $0x8] sm:$0xff]
          %v1083 = vld [vmem:[#allocation5 + $0x10] sm:$0xff]
          %v1084 = vld [vmem:[#allocation5 + $0x18] sm:$0xff]
          %v1085 = vld [vmem:[#allocation4] sm:$0xff]
          %v1086 = vld [vmem:[#allocation4 + $0x8] sm:$0xff]
          %v1087 = vld [vmem:[#allocation4 + $0x10] sm:$0xff]
          %v1088 = vld [vmem:[#allocation4 + $0x18] sm:$0xff]
          %v1089 = vrcp.pop %v1085
          %v1090 = vrcp.pop %v1086
          %v1091 = vrcp.pop %v1087
          %v1092 = vrcp.pop %v1088
          %1094 = vset.pattern.permute.xlu0 0
          %1095 = vperm.xlu0 %1094, %v1089
          %v1096 = vpop.permute.xlu0 %1095
          %1099 = vset.pattern.permute.xlu0 0
          %1100 = vperm.xlu0 %1099, %v1090
          %v1101 = vpop.permute.xlu0 %1100
          %1104 = vset.pattern.permute.xlu0 0
          %1105 = vperm.xlu0 %1104, %v1091
          %v1106 = vpop.permute.xlu0 %1105
          %1109 = vset.pattern.permute.xlu0 0
          %1110 = vperm.xlu0 %1109, %v1092
          %v1111 = vpop.permute.xlu0 %1110
          %v1113 = vmul.f32 %v1081, %v1096
          %v1114 = vmul.f32 %v1082, %v1101
          %v1115 = vmul.f32 %v1083, %v1106
          %v1116 = vmul.f32 %v1084, %v1111
          %v1117 = vsub.f32 %v1113, %v1077
          %v1118 = vsub.f32 %v1114, %v1078
          %v1119 = vsub.f32 %v1115, %v1079
          %v1120 = vsub.f32 %v1116, %v1080
          %v1121 = vpack.c.bf16 %v1118, %v1117
          %v1122 = vpack.c.bf16 %v1120, %v1119
          %v1123 = vld [vmem:[%s6] sm:$0xff]
          %v1124 = vld [vmem:[%s6 + $0x8] sm:$0xff]
          %v1125 = vld [vmem:[%s6 + $0x10] sm:$0xff]
          %v1126 = vld [vmem:[%s6 + $0x18] sm:$0xff]
          %v1127 = vld [vmem:[%s6 + $0x20] sm:$0xff]
          %v1128 = vld [vmem:[%s6 + $0x28] sm:$0xff]
          %v1129 = vld [vmem:[%s6 + $0x30] sm:$0xff]
          %v1130 = vld [vmem:[%s6 + $0x38] sm:$0xff]
          %v1131 = vpack.c.bf16 %v1124, %v1123
          %v1132 = vpack.c.bf16 %v1126, %v1125
          %v1133 = vpack.c.bf16 %v1128, %v1127
          %v1134 = vpack.c.bf16 %v1130, %v1129
          %v1135 = vpack.c.bf16 %v1078, %v1077
          %v1136 = vpack.c.bf16 %v1080, %v1079
          %v1137 = vld [vmem:[%s7] sm:$0xff]
          %v1138 = vld [vmem:[%s7 + $0x8] sm:$0xff]
          %v1139 = vld [vmem:[%s7 + $0x10] sm:$0xff]
          %v1140 = vld [vmem:[%s7 + $0x18] sm:$0xff]
          %v1141 = vld [vmem:[%s7 + $0x20] sm:$0xff]
          %v1142 = vld [vmem:[%s7 + $0x28] sm:$0xff]
          %v1143 = vld [vmem:[%s7 + $0x30] sm:$0xff]
          %v1144 = vld [vmem:[%s7 + $0x38] sm:$0xff]
          %v1145 = vpack.c.bf16 %v1138, %v1137
          %v1146 = vpack.c.bf16 %v1140, %v1139
          %v1147 = vpack.c.bf16 %v1142, %v1141
          %v1148 = vpack.c.bf16 %v1144, %v1143
          %vm1149 = vcmask 523264
          %v1151 = vsel %vm1149, %v1135, 0
          %v1154 = vsel %vm1149, %v1136, 0
          %1156 = vmatpush.bf16.msra.mxu0 0
          %1157 = vmatpush.bf16.msra.mxu0 0
          %1158 = vmatpush.bf16.msra.mxu0 0
          %1159 = vmatpush.bf16.msra.mxu0 0
          %1160 = vmatpush.bf16.msra.mxu0 %v1148
          %1161 = vmatpush.bf16.msra.mxu0 %v1147
          %1162 = vmatpush.bf16.msra.mxu0 %v1146
          %1163 = vmatpush.bf16.msra.mxu0 %v1145
          %1164 = vmatmul.bf16.gmra.mxu0 %v1151
          %v1165 = vpop.f32.mrf.mxu0
          %v1166 = vadd.f32 0.0, %v1165
          %v1167 = vpop.f32.mrf.mxu0
          %v1168 = vadd.f32 0.0, %v1167
          %1169 = vmatmul.bf16.gmra.mxu0 %v1154
          %v1170 = vpop.f32.mrf.mxu0
          %v1171 = vadd.f32 0.0, %v1170
          %v1172 = vpop.f32.mrf.mxu0
          %v1173 = vadd.f32 0.0, %v1172
          %1174 = vdwg.mxu0
          %v1176 = vsel %vm1149, %v1121, 0
          %v1179 = vsel %vm1149, %v1122, 0
          %1181 = vmatpush.bf16.msra.mxu0 0
          %1182 = vmatpush.bf16.msra.mxu0 0
          %1183 = vmatpush.bf16.msra.mxu0 0
          %1184 = vmatpush.bf16.msra.mxu0 0
          %1185 = vmatpush.bf16.msra.mxu0 %v1134
          %1186 = vmatpush.bf16.msra.mxu0 %v1133
          %1187 = vmatpush.bf16.msra.mxu0 %v1132
          %1188 = vmatpush.bf16.msra.mxu0 %v1131
          %1189 = vmatmul.bf16.gmra.mxu0 %v1176
          %v1190 = vpop.f32.mrf.mxu0
          %v1191 = vadd.f32 %v1166, %v1190
          %v1192 = vpop.f32.mrf.mxu0
          %v1193 = vadd.f32 %v1168, %v1192
          %1194 = vmatmul.bf16.gmra.mxu0 %v1179
          %v1195 = vpop.f32.mrf.mxu0
          %v1196 = vadd.f32 %v1171, %v1195
          %v1197 = vpop.f32.mrf.mxu0
          %v1198 = vadd.f32 %v1173, %v1197
          %1199 = vdwg.mxu0
          %v1200 = vld [vmem:[%s8] sm:$0x1]
          %v1202 = vperm.slane %v1200, 0
          %v1204 = vmul.f32 %v1191, %v1202
          %v1205 = vmul.f32 %v1193, %v1202
          %v1206 = vmul.f32 %v1196, %v1202
          %v1207 = vmul.f32 %v1198, %v1202
          %v1208 = vld [vmem:[%s9] sm:$0x1]
          %v1210 = vperm.slane %v1208, 0
          %v1212 = vadd.f32 %v1204, %v1210
          %v1213 = vadd.f32 %v1205, %v1210
          %v1214 = vadd.f32 %v1206, %v1210
          %v1215 = vadd.f32 %v1207, %v1210
          %v1216 = vmul.f32 %v1212, 0.5
          %v1217 = vmul.f32 %v1213, 0.5
          %v1218 = vmul.f32 %v1214, 0.5
          %v1219 = vmul.f32 %v1215, 0.5
          %v1220 = vmul.f32 %v1212, 0.044715
          %v1221 = vmul.f32 %v1213, 0.044715
          %v1222 = vmul.f32 %v1214, 0.044715
          %v1223 = vmul.f32 %v1215, 0.044715
          %v1224 = vmul.f32 %v1220, %v1212
          %v1225 = vmul.f32 %v1221, %v1213
          %v1226 = vmul.f32 %v1222, %v1214
          %v1227 = vmul.f32 %v1223, %v1215
          %v1228 = vmul.f32 %v1224, %v1212
          %v1229 = vmul.f32 %v1225, %v1213
          %v1230 = vmul.f32 %v1226, %v1214
          %v1231 = vmul.f32 %v1227, %v1215
          %v1232 = vadd.f32 %v1212, %v1228
          %v1233 = vadd.f32 %v1213, %v1229
          %v1234 = vadd.f32 %v1214, %v1230
          %v1235 = vadd.f32 %v1215, %v1231
          %v1236 = vmul.f32 %v1232, 0.7978846
          %v1237 = vmul.f32 %v1233, 0.7978846
          %v1238 = vmul.f32 %v1234, 0.7978846
          %v1239 = vmul.f32 %v1235, 0.7978846
          %v1240 = vtanh.pop %v1236
          %v1241 = vtanh.pop %v1237
          %v1242 = vtanh.pop %v1238
          %v1243 = vtanh.pop %v1239
          %v1244 = vadd.f32 %v1240, 1.0
          %v1245 = vadd.f32 %v1241, 1.0
          %v1246 = vadd.f32 %v1242, 1.0
          %v1247 = vadd.f32 %v1243, 1.0
          %v1248 = vmul.f32 %v1216, %v1244
          %v1249 = vmul.f32 %v1217, %v1245
          %v1250 = vmul.f32 %v1218, %v1246
          %v1251 = vmul.f32 %v1219, %v1247
          %1252 = vst [vmem:[%s496] sm:$0xff] %v1248
          %1253 = vst [vmem:[%s496 + $0x8] sm:$0xff] %v1249
          %1254 = vst [vmem:[%s496 + $0x10] sm:$0xff] %v1250
          %1255 = vst [vmem:[%s496 + $0x18] sm:$0xff] %v1251
        $region88: #{model_forward.11} parent=59 // pred_fallthru
          _
        %p1256 = scmp.lt.s32.totalorder %s28, 1
        %s1257 = scalar_select %p1256, %s28, 1
        %s1258 = smul.addr %s1257, 4
        %s1259 = smul.addr %s1258, 8
        %s1260 = scalar_lea.vmem %s10, %s1259
        // Predicated region
        $region89: #{model_forward.11} parent=59 // pred_check
          %p1261 = pneg %p294
        $region90: #{model_forward.11} parent=59 // pred_check_branch
          %1263 = sbr.rel (%p1261) target = $region92
        $region91: #{model_forward.11} parent=59 // pred_region
          _
        $region92: #{model_forward.11} parent=59 // pred_fallthru
          _
      $region60: #{model_forward.11} parent=5 // pred_fallthru
        _
      %p1264 = scmp.le.s32.totalorder 2, %s18
      // Predicated region
      $region93: #{model_forward.11} parent=5 // pred_check
        %p1265 = pneg %p1264
      $region94: #{model_forward.11} parent=5 // pred_check_branch
        %1267 = sbr.rel (%p1265) target = $region96
      $region95: #{model_forward.11} parent=5 // pred_region
        %s1268 = ssub.s32 %s18, 2
        // Predicated region
        $region97: #{model_forward.11} parent=95 // pred_check
          %p1269 = pneg %p300
        $region98: #{model_forward.11} parent=95 // pred_check_branch
          %1271 = sbr.rel (%p1269) target = $region100
        $region99: #{model_forward.11} parent=95 // pred_region
          %p1272 = scmp.lt.s32.totalorder %s31, 1
          %s1273 = scalar_select %p1272, %s31, 1
          %s1274 = smul.addr %s1273, 4
          %s1275 = smul.addr %s1274, 8
          %s1276 = scalar_lea.vmem %s10, %s1275
        $region100: #{model_forward.11} parent=95 // pred_fallthru
          _
      $region96: #{model_forward.11} parent=5 // pred_fallthru
        _
    $region6: #{model_forward.11} parent=1 // loop_footer
      %s22 = sadd.s32 1, %s18
    $region7: #{model_forward.11} parent=1 // loop_footer_branch
      %17 = sbr.rel target = $region3
    $region8: #{model_forward.11} parent=1 // loop_exit
      _
    %1277 = vsyncpa [#allocation8], 1
    %s1278 = scalar_lea.sflag [#allocation8], 1
    %1279 = vsyncpa %s1278, 1
    %1280 = vsyncpa [#allocation10], 1

// kernel: model_forward.10
$region0: #{model_forward.10}
  #allocation0 [shape = 'u32[]', space=smem, size = 0x4, offset = 0x4, fixed_abs, tag = 'smem constant byte address 0x4 - core index']
  #allocation1 [shape = 'u32[72,128]{1,0:T(1,128)}', space=vmem, size = 0x9000, scoped, tag = 'internal scratch']
  #allocation2 [shape = 'f32[64,1]{1,0:T(8,128)}', space=vmem, size = 0x8000, scoped, tag = 'scratch operand']
  #allocation3 [shape = 'f32[64,1]{1,0:T(8,128)}', space=vmem, size = 0x8000, scoped, tag = 'scratch operand']
  #allocation4 [shape = 'f32[64,1]{1,0:T(8,128)}', space=vmem, size = 0x8000, scoped, tag = 'scratch operand']
  #allocation5 [shape = 'f32[64,32]{1,0:T(8,128)}', space=vmem, size = 0x8000, scoped, tag = 'scratch operand']
  #allocation6 [shape = 'bf16[64,32]{1,0:T(8,128)(2,1)}', space=vmem, size = 0x4000, scoped, tag = 'scratch operand']
  %s0 = inlined_call_operand.vmem [shape: f32[2,64,3], index: 0, kind: input, shape index: {}]
  %s1 = inlined_call_operand.vmem [shape: f32[2,3,64], index: 1, kind: input, shape index: {}]
  %s2 = inlined_call_operand.vmem [shape: f32[2,64,32], index: 2, kind: input, shape index: {}, may-alias: {2,3}]
  %s3 = inlined_call_operand.vmem [shape: f32[2,64,32], index: 3, kind: input, shape index: {}, may-alias: {2,3}]
  %s4 = inlined_call_operand.hbm [shape: f32[32,32], index: 4, kind: input, shape index: {}]
  %s5 = inlined_call_operand.hbm [shape: f32[32,32], index: 5, kind: input, shape index: {}]
  %s6 = inlined_call_operand.vmem [shape: f32[32,64], index: 6, kind: input, shape index: {}]
  %s7 = inlined_call_operand.vmem [shape: f32[32,64], index: 7, kind: input, shape index: {}]
  %s8 = inlined_call_operand.vmem [shape: f32[1,64], index: 8, kind: input, shape index: {}]
  %s9 = inlined_call_operand.vmem [shape: f32[1,64], index: 9, kind: input, shape index: {}]
  %s10 = inlined_call_operand.vmem [shape: f32[2,64,64], index: 10, kind: output, shape index: {}]
  %s11 = sld [smem:[#allocation0]]
  $region101: #{model_forward.10} parent=0
    _
  %s13 = ssub.s32 1, %s11
  %s14 = scalar_select 0, %s13, %s11
  $region1: #{model_forward.10} parent=0
    #allocation7 [shape = 'u8[16384]{0}', space=vmem, size = 0x4000, scoped, tag = 'input window, operand 4, single buffered']
    #allocation8 [shape = 's32[2]{0}', space=sflag, size = 0x8, scoped, tag = 'scoped memory for model_forward.10']
    #allocation9 [shape = 'u8[16384]{0}', space=vmem, size = 0x4000, scoped, tag = 'input window, operand 5, single buffered']
    #allocation10 [shape = 's32[1]{0}', space=sflag, size = 0x4, scoped, tag = 'scoped memory for model_forward.10']
    %15 = vsyncpa [#allocation8], 0
    %16 = vsyncpa [#allocation10], 0
    loop: start=0, step=1, limit=6
    $region2: #{model_forward.10} parent=1 // loop_pre_header
      _
    $region3: #{model_forward.10} parent=1 // loop_header
      %s18 = sphi 0, %s22
      %p19 = scmp.ge.s32.totalorder %s18, 6
      %s25 = sphi 0, %s44
      %s26 = sphi 0, %s40
      %s27 = sphi 0, %s36
      %s28 = sphi 0, %s25
      %s29 = sphi 0, %s26
      %s30 = sphi 0, %s27
      %s31 = sphi 0, %s28
      %s32 = sphi 0, %s29
      %s33 = sphi 0, %s30
      %s47 = sphi 0, %s49
      %s50 = sphi 0, %s47
      %s51 = sphi 0, %s50
      %s67 = sphi 0, %s51
      %s75 = sphi 0, %s77
      %s78 = sphi 0, %s75
      %s79 = sphi 0, %s78
      %s95 = sphi 0, %s79
      %s101 = sphi 0, %s103
      %s104 = sphi 0, %s101
      %s105 = sphi 0, %s104
      %s121 = sphi 0, %s105
      %s129 = sphi 0, %s131
      %s132 = sphi 0, %s129
      %s133 = sphi 0, %s132
      %s149 = sphi 0, %s133
      %s153 = sphi 0, %s153
      %s155 = sphi 0, %s153
      %s156 = sphi 0, %s155
      %s170 = sphi 0, %s156
      %s174 = sphi 0, %s174
      %s176 = sphi 0, %s174
      %s177 = sphi 0, %s176
      %s191 = sphi 0, %s177
      %s195 = sphi 0, %s195
      %s197 = sphi 0, %s195
      %s198 = sphi 0, %s197
      %s212 = sphi 0, %s198
      %s216 = sphi 0, %s216
      %s218 = sphi 0, %s216
      %s219 = sphi 0, %s218
      %s233 = sphi 0, %s219
      %s237 = sphi 0, %s237
      %s239 = sphi 0, %s237
      %s240 = sphi 0, %s239
      %s254 = sphi 0, %s240
      %s258 = sphi 0, %s258
      %s260 = sphi 0, %s258
      %s261 = sphi 0, %s260
      %s275 = sphi 0, %s261
      %s281 = sphi 0, %s283
      %s284 = sphi 0, %s281
      %s285 = sphi 0, %s284
      %s301 = sphi 0, %s285
    $region4: #{model_forward.10} parent=1 // loop_header_branch
      %21 = sbr.rel (%p19) target = $region8
    $region5: #{model_forward.10} parent=1 // loop_body
      %s23 = ssub.s32 %s18, 1
      %s24 = ssub.s32 %s18, 2
      %s34 = sadd.s32 1, %s27
      %p35 = scmp.ge.s32.totalorder %s34, 1
      %s36 = scalar_select %p35, 0, %s34
      %s37 = sadd.s32 1, %s26
      %s38 = scalar_select %p35, %s37, %s26
      %p39 = scmp.ge.s32.totalorder %s38, 2
      %s40 = scalar_select %p39, 0, %s38
      %s41 = sadd.s32 1, %s25
      %s42 = scalar_select %p39, %s41, %s25
      %p43 = scmp.ge.s32.totalorder %s42, 2
      %s44 = scalar_select %p43, 0, %s42
      %s45 = ssub.s32 %s25, %s44
      %p46 = scmp.eq.s32.totalorder %s45, 0
      %s48 = sadd.s32 %s47, 1
      %s49 = scalar_select %p46, %s47, %s48
      %p52 = pneg %p46
      %p53 = scmp.eq.s32.totalorder %s18, 3
      %p54 = por %p52, %p53
      %p55 = scmp.ne.s32.totalorder %s47, %s50
      %p56 = scmp.eq.s32.totalorder %s18, 0
      %p57 = por %p55, %p56
      %p58 = scmp.ne.s32.totalorder %s47, %s50
      %p59 = scmp.eq.s32.totalorder %s23, 3
      %p60 = por %p58, %p59
      %p61 = scmp.ne.s32.totalorder %s50, %s51
      %p62 = scmp.eq.s32.totalorder %s23, 0
      %p63 = por %p61, %p62
      %p64 = scmp.ne.s32.totalorder %s50, %s51
      %p65 = scmp.eq.s32.totalorder %s24, 3
      %p66 = por %p64, %p65
      %p68 = scmp.ne.s32.totalorder %s51, %s67
      %p69 = scmp.eq.s32.totalorder %s24, 0
      %p70 = por %p68, %p69
      %s71 = ssub.s32 %s25, %s44
      %s72 = ssub.s32 %s27, %s36
      %s73 = sor.u32 %s71, %s72
      %p74 = scmp.eq.s32.totalorder %s73, 0
      %s76 = sadd.s32 %s75, 1
      %s77 = scalar_select %p74, %s75, %s76
      %p80 = pneg %p74
      %p81 = scmp.eq.s32.totalorder %s18, 3
      %p82 = por %p80, %p81
      %p83 = scmp.ne.s32.totalorder %s75, %s78
      %p84 = scmp.eq.s32.totalorder %s18, 0
      %p85 = por %p83, %p84
      %p86 = scmp.ne.s32.totalorder %s75, %s78
      %p87 = scmp.eq.s32.totalorder %s23, 3
      %p88 = por %p86, %p87
      %p89 = scmp.ne.s32.totalorder %s78, %s79
      %p90 = scmp.eq.s32.totalorder %s23, 0
      %p91 = por %p89, %p90
      %p92 = scmp.ne.s32.totalorder %s78, %s79
      %p93 = scmp.eq.s32.totalorder %s24, 3
      %p94 = por %p92, %p93
      %p96 = scmp.ne.s32.totalorder %s79, %s95
      %p97 = scmp.eq.s32.totalorder %s24, 0
      %p98 = por %p96, %p97
      %s99 = ssub.s32 %s25, %s44
      %p100 = scmp.eq.s32.totalorder %s99, 0
      %s102 = sadd.s32 %s101, 1
      %s103 = scalar_select %p100, %s101, %s102
      %p106 = pneg %p100
      %p107 = scmp.eq.s32.totalorder %s18, 3
      %p108 = por %p106, %p107
      %p109 = scmp.ne.s32.totalorder %s101, %s104
      %p110 = scmp.eq.s32.totalorder %s18, 0
      %p111 = por %p109, %p110
      %p112 = scmp.ne.s32.totalorder %s101, %s104
      %p113 = scmp.eq.s32.totalorder %s23, 3
      %p114 = por %p112, %p113
      %p115 = scmp.ne.s32.totalorder %s104, %s105
      %p116 = scmp.eq.s32.totalorder %s23, 0
      %p117 = por %p115, %p116
      %p118 = scmp.ne.s32.totalorder %s104, %s105
      %p119 = scmp.eq.s32.totalorder %s24, 3
      %p120 = por %p118, %p119
      %p122 = scmp.ne.s32.totalorder %s105, %s121
      %p123 = scmp.eq.s32.totalorder %s24, 0
      %p124 = por %p122, %p123
      %s125 = ssub.s32 %s25, %s44
      %s126 = ssub.s32 %s27, %s36
      %s127 = sor.u32 %s125, %s126
      %p128 = scmp.eq.s32.totalorder %s127, 0
      %s130 = sadd.s32 %s129, 1
      %s131 = scalar_select %p128, %s129, %s130
      %p134 = pneg %p128
      %p135 = scmp.eq.s32.totalorder %s18, 3
      %p136 = por %p134, %p135
      %p137 = scmp.ne.s32.totalorder %s129, %s132
      %p138 = scmp.eq.s32.totalorder %s18, 0
      %p139 = por %p137, %p138
      %p140 = scmp.ne.s32.totalorder %s129, %s132
      %p141 = scmp.eq.s32.totalorder %s23, 3
      %p142 = por %p140, %p141
      %p143 = scmp.ne.s32.totalorder %s132, %s133
      %p144 = scmp.eq.s32.totalorder %s23, 0
      %p145 = por %p143, %p144
      %p146 = scmp.ne.s32.totalorder %s132, %s133
      %p147 = scmp.eq.s32.totalorder %s24, 3
      %p148 = por %p146, %p147
      %p150 = scmp.ne.s32.totalorder %s133, %s149
      %p151 = scmp.eq.s32.totalorder %s24, 0
      %p152 = por %p150, %p151
      %s154 = sadd.s32 %s153, 1
      %p157 = scmp.eq.s32.totalorder %s18, 3
      %p158 = scmp.ne.s32.totalorder %s153, %s155
      %p159 = scmp.eq.s32.totalorder %s18, 0
      %p160 = por %p158, %p159
      %p161 = scmp.ne.s32.totalorder %s153, %s155
      %p162 = scmp.eq.s32.totalorder %s23, 3
      %p163 = por %p161, %p162
      %p164 = scmp.ne.s32.totalorder %s155, %s156
      %p165 = scmp.eq.s32.totalorder %s23, 0
      %p166 = por %p164, %p165
      %p167 = scmp.ne.s32.totalorder %s155, %s156
      %p168 = scmp.eq.s32.totalorder %s24, 3
      %p169 = por %p167, %p168
      %p171 = scmp.ne.s32.totalorder %s156, %s170
      %p172 = scmp.eq.s32.totalorder %s24, 0
      %p173 = por %p171, %p172
      %s175 = sadd.s32 %s174, 1
      %p178 = scmp.eq.s32.totalorder %s18, 3
      %p179 = scmp.ne.s32.totalorder %s174, %s176
      %p180 = scmp.eq.s32.totalorder %s18, 0
      %p181 = por %p179, %p180
      %p182 = scmp.ne.s32.totalorder %s174, %s176
      %p183 = scmp.eq.s32.totalorder %s23, 3
      %p184 = por %p182, %p183
      %p185 = scmp.ne.s32.totalorder %s176, %s177
      %p186 = scmp.eq.s32.totalorder %s23, 0
      %p187 = por %p185, %p186
      %p188 = scmp.ne.s32.totalorder %s176, %s177
      %p189 = scmp.eq.s32.totalorder %s24, 3
      %p190 = por %p188, %p189
      %p192 = scmp.ne.s32.totalorder %s177, %s191
      %p193 = scmp.eq.s32.totalorder %s24, 0
      %p194 = por %p192, %p193
      %s196 = sadd.s32 %s195, 1
      %p199 = scmp.eq.s32.totalorder %s18, 3
      %p200 = scmp.ne.s32.totalorder %s195, %s197
      %p201 = scmp.eq.s32.totalorder %s18, 0
      %p202 = por %p200, %p201
      %p203 = scmp.ne.s32.totalorder %s195, %s197
      %p204 = scmp.eq.s32.totalorder %s23, 3
      %p205 = por %p203, %p204
      %p206 = scmp.ne.s32.totalorder %s197, %s198
      %p207 = scmp.eq.s32.totalorder %s23, 0
      %p208 = por %p206, %p207
      %p209 = scmp.ne.s32.totalorder %s197, %s198
      %p210 = scmp.eq.s32.totalorder %s24, 3
      %p211 = por %p209, %p210
      %p213 = scmp.ne.s32.totalorder %s198, %s212
      %p214 = scmp.eq.s32.totalorder %s24, 0
      %p215 = por %p213, %p214
      %s217 = sadd.s32 %s216, 1
      %p220 = scmp.eq.s32.totalorder %s18, 3
      %p221 = scmp.ne.s32.totalorder %s216, %s218
      %p222 = scmp.eq.s32.totalorder %s18, 0
      %p223 = por %p221, %p222
      %p224 = scmp.ne.s32.totalorder %s216, %s218
      %p225 = scmp.eq.s32.totalorder %s23, 3
      %p226 = por %p224, %p225
      %p227 = scmp.ne.s32.totalorder %s218, %s219
      %p228 = scmp.eq.s32.totalorder %s23, 0
      %p229 = por %p227, %p228
      %p230 = scmp.ne.s32.totalorder %s218, %s219
      %p231 = scmp.eq.s32.totalorder %s24, 3
      %p232 = por %p230, %p231
      %p234 = scmp.ne.s32.totalorder %s219, %s233
      %p235 = scmp.eq.s32.totalorder %s24, 0
      %p236 = por %p234, %p235
      %s238 = sadd.s32 %s237, 1
      %p241 = scmp.eq.s32.totalorder %s18, 3
      %p242 = scmp.ne.s32.totalorder %s237, %s239
      %p243 = scmp.eq.s32.totalorder %s18, 0
      %p244 = por %p242, %p243
      %p245 = scmp.ne.s32.totalorder %s237, %s239
      %p246 = scmp.eq.s32.totalorder %s23, 3
      %p247 = por %p245, %p246
      %p248 = scmp.ne.s32.totalorder %s239, %s240
      %p249 = scmp.eq.s32.totalorder %s23, 0
      %p250 = por %p248, %p249
      %p251 = scmp.ne.s32.totalorder %s239, %s240
      %p252 = scmp.eq.s32.totalorder %s24, 3
      %p253 = por %p251, %p252
      %p255 = scmp.ne.s32.totalorder %s240, %s254
      %p256 = scmp.eq.s32.totalorder %s24, 0
      %p257 = por %p255, %p256
      %s259 = sadd.s32 %s258, 1
      %p262 = scmp.eq.s32.totalorder %s18, 3
      %p263 = scmp.ne.s32.totalorder %s258, %s260
      %p264 = scmp.eq.s32.totalorder %s18, 0
      %p265 = por %p263, %p264
      %p266 = scmp.ne.s32.totalorder %s258, %s260
      %p267 = scmp.eq.s32.totalorder %s23, 3
      %p268 = por %p266, %p267
      %p269 = scmp.ne.s32.totalorder %s260, %s261
      %p270 = scmp.eq.s32.totalorder %s23, 0
      %p271 = por %p269, %p270
      %p272 = scmp.ne.s32.totalorder %s260, %s261
      %p273 = scmp.eq.s32.totalorder %s24, 3
      %p274 = por %p272, %p273
      %p276 = scmp.ne.s32.totalorder %s261, %s275
      %p277 = scmp.eq.s32.totalorder %s24, 0
      %p278 = por %p276, %p277
      %s279 = ssub.s32 %s25, %s44
      %p280 = scmp.eq.s32.totalorder %s279, 0
      %s282 = sadd.s32 %s281, 1
      %s283 = scalar_select %p280, %s281, %s282
      %p286 = pneg %p280
      %p287 = scmp.eq.s32.totalorder %s18, 3
      %p288 = por %p286, %p287
      %p289 = scmp.ne.s32.totalorder %s281, %s284
      %p290 = scmp.eq.s32.totalorder %s18, 0
      %p291 = por %p289, %p290
      %p292 = scmp.ne.s32.totalorder %s281, %s284
      %p293 = scmp.eq.s32.totalorder %s23, 3
      %p294 = por %p292, %p293
      %p295 = scmp.ne.s32.totalorder %s284, %s285
      %p296 = scmp.eq.s32.totalorder %s23, 0
      %p297 = por %p295, %p296
      %p298 = scmp.ne.s32.totalorder %s284, %s285
      %p299 = scmp.eq.s32.totalorder %s24, 3
      %p300 = por %p298, %p299
      %p302 = scmp.ne.s32.totalorder %s285, %s301
      %p303 = scmp.eq.s32.totalorder %s24, 0
      %p304 = por %p302, %p303
      %p305 = scmp.le.s32.totalorder 1, %s18
      %p306 = scmp.lt.s32.totalorder %s18, 5
      %p307 = pnand %p305, %p306
      %p308 = pneg %p307
      // Predicated region
      $region9: #{model_forward.10} parent=5 // pred_check
        _
      $region10: #{model_forward.10} parent=5 // pred_check_branch
        %310 = sbr.rel (%p307) target = $region12
      $region11: #{model_forward.10} parent=5 // pred_region
        %s311 = ssub.s32 %s18, 1
        // Predicated region
        $region13: #{model_forward.10} parent=11 // pred_check
          %p312 = pneg %p166
        $region14: #{model_forward.10} parent=11 // pred_check_branch
          %314 = sbr.rel (%p312) target = $region16
        $region15: #{model_forward.10} parent=11 // pred_region
          %316 = vsyncadd [#allocation8], 0
          %s317 = sshll.u32 %s4, 4
          %s318 = int_to_ptr.hbm [resolvable:$true] %s317
          %s319 = sshll.u32 [#allocation7], 4
          %s320 = int_to_ptr.vmem [resolvable:$true] %s319
          %325 = dma.hbm_to_vmem [thread:$0]  %s318, 512, %s320, [#allocation8], 128, 128, 8
        $region16: #{model_forward.10} parent=11 // pred_fallthru
          _
        // Predicated region
        $region17: #{model_forward.10} parent=11 // pred_check
          %p326 = pneg %p187
        $region18: #{model_forward.10} parent=11 // pred_check_branch
          %328 = sbr.rel (%p326) target = $region20
        $region19: #{model_forward.10} parent=11 // pred_region
          %330 = vsyncadd [#allocation10], 0
          %s331 = sshll.u32 %s5, 4
          %s332 = int_to_ptr.hbm [resolvable:$true] %s331
          %s333 = sshll.u32 [#allocation9], 4
          %s334 = int_to_ptr.vmem [resolvable:$true] %s333
          %339 = dma.hbm_to_vmem [thread:$0]  %s332, 512, %s334, [#allocation10], 128, 128, 8
        $region20: #{model_forward.10} parent=11 // pred_fallthru
          _
        // Predicated region
        $region21: #{model_forward.10} parent=11 // pred_check
          %p340 = pneg %p208
        $region22: #{model_forward.10} parent=11 // pred_check_branch
          %342 = sbr.rel (%p340) target = $region24
        $region23: #{model_forward.10} parent=11 // pred_region
          _
        $region24: #{model_forward.10} parent=11 // pred_fallthru
          _
        // Predicated region
        $region25: #{model_forward.10} parent=11 // pred_check
          %p343 = pneg %p229
        $region26: #{model_forward.10} parent=11 // pred_check_branch
          %345 = sbr.rel (%p343) target = $region28
        $region27: #{model_forward.10} parent=11 // pred_region
          _
        $region28: #{model_forward.10} parent=11 // pred_fallthru
          _
        // Predicated region
        $region29: #{model_forward.10} parent=11 // pred_check
          %p346 = pneg %p250
        $region30: #{model_forward.10} parent=11 // pred_check_branch
          %348 = sbr.rel (%p346) target = $region32
        $region31: #{model_forward.10} parent=11 // pred_region
          _
        $region32: #{model_forward.10} parent=11 // pred_fallthru
          _
        // Predicated region
        $region33: #{model_forward.10} parent=11 // pred_check
          %p349 = pneg %p271
        $region34: #{model_forward.10} parent=11 // pred_check_branch
          %351 = sbr.rel (%p349) target = $region36
        $region35: #{model_forward.10} parent=11 // pred_region
          _
        $region36: #{model_forward.10} parent=11 // pred_fallthru
          _
      $region12: #{model_forward.10} parent=5 // pred_fallthru
        _
      %p352 = scmp.lt.s32.totalorder %s18, 4
      // Predicated region
      $region37: #{model_forward.10} parent=5 // pred_check
        %p353 = pneg %p352
      $region38: #{model_forward.10} parent=5 // pred_check_branch
        %355 = sbr.rel (%p353) target = $region40
      $region39: #{model_forward.10} parent=5 // pred_region
        // Predicated region
        $region41: #{model_forward.10} parent=39 // pred_check
          %p356 = pneg %p57
        $region42: #{model_forward.10} parent=39 // pred_check_branch
          %358 = sbr.rel (%p356) target = $region44
        $region43: #{model_forward.10} parent=39 // pred_region
          %p359 = scmp.lt.s32.totalorder %s25, 1
          %s360 = scalar_select %p359, %s25, 1
          %s361 = smul.addr %s360, 8
          %s362 = smul.addr %s361, 8
          %s363 = scalar_lea.vmem %s0, %s362
        $region44: #{model_forward.10} parent=39 // pred_fallthru
          _
        // Predicated region
        $region45: #{model_forward.10} parent=39 // pred_check
          %p364 = pneg %p85
        $region46: #{model_forward.10} parent=39 // pred_check_branch
          %366 = sbr.rel (%p364) target = $region48
        $region47: #{model_forward.10} parent=39 // pred_region
          %p367 = scmp.lt.s32.totalorder %s25, 1
          %s368 = scalar_select %p367, %s25, 1
          %p369 = scmp.lt.s32.totalorder %s27, 0
          %s370 = scalar_select %p369, %s27, 0
          %s371 = sadd.s32 %s370, %s368
          %s372 = smul.addr %s371, 4
          %s373 = scalar_lea.vmem %s1, %s372
        $region48: #{model_forward.10} parent=39 // pred_fallthru
          _
        // Predicated region
        $region49: #{model_forward.10} parent=39 // pred_check
          %p374 = pneg %p111
        $region50: #{model_forward.10} parent=39 // pred_check_branch
          %376 = sbr.rel (%p374) target = $region52
        $region51: #{model_forward.10} parent=39 // pred_region
          %p377 = scmp.lt.s32.totalorder %s25, 1
          %s378 = scalar_select %p377, %s25, 1
          %s379 = smul.addr %s378, 8
          %s380 = smul.addr %s379, 8
          %s381 = scalar_lea.vmem %s2, %s380
        $region52: #{model_forward.10} parent=39 // pred_fallthru
          _
        // Predicated region
        $region53: #{model_forward.10} parent=39 // pred_check
          %p382 = pneg %p139
        $region54: #{model_forward.10} parent=39 // pred_check_branch
          %384 = sbr.rel (%p382) target = $region56
        $region55: #{model_forward.10} parent=39 // pred_region
          %s385 = smul.u32 8, %s27
          %p386 = scmp.lt.s32.totalorder %s25, 1
          %s387 = scalar_select %p386, %s25, 1
          %p388 = scmp.lt.s32.totalorder %s385, 7
          %s389 = scalar_select %p388, %s385, 7
          %s390 = smul.addr %s387, 8
          %s391 = sadd.s32 %s389, %s390
          %s392 = smul.addr %s391, 8
          %s393 = scalar_lea.vmem %s3, %s392
          %s394 = smul.u32 8, %s27
        $region56: #{model_forward.10} parent=39 // pred_fallthru
          _
      $region40: #{model_forward.10} parent=5 // pred_fallthru
        _
      %p395 = scmp.le.s32.totalorder 1, %s18
      %p396 = scmp.lt.s32.totalorder %s18, 5
      %p397 = pnand %p395, %p396
      %p398 = pneg %p397
      // Predicated region
      $region57: #{model_forward.10} parent=5 // pred_check
        _
      $region58: #{model_forward.10} parent=5 // pred_check_branch
        %400 = sbr.rel (%p397) target = $region60
      $region59: #{model_forward.10} parent=5 // pred_region
        %s401 = ssub.s32 %s18, 1
        // Predicated region
        $region61: #{model_forward.10} parent=59 // pred_check
          %p402 = pneg %p166
        $region62: #{model_forward.10} parent=59 // pred_check_branch
          %404 = sbr.rel (%p402) target = $region64
        $region63: #{model_forward.10} parent=59 // pred_region
          %406 = dma.done [#allocation8], 512
        $region64: #{model_forward.10} parent=59 // pred_fallthru
          _
        // Predicated region
        $region65: #{model_forward.10} parent=59 // pred_check
          %p407 = pneg %p187
        $region66: #{model_forward.10} parent=59 // pred_check_branch
          %409 = sbr.rel (%p407) target = $region68
        $region67: #{model_forward.10} parent=59 // pred_region
          %411 = dma.done [#allocation10], 512
        $region68: #{model_forward.10} parent=59 // pred_fallthru
          _
        %p412 = scmp.lt.s32.totalorder %s28, 1
        %s413 = scalar_select %p412, %s28, 1
        %s414 = smul.addr %s413, 8
        %s415 = smul.addr %s414, 8
        %s416 = scalar_lea.vmem %s0, %s415
        %p417 = pneg %p63
        %p418 = pneg %p60
        %p419 = scmp.lt.s32.totalorder %s28, 1
        %s420 = scalar_select %p419, %s28, 1
        %p421 = scmp.lt.s32.totalorder %s30, 0
        %s422 = scalar_select %p421, %s30, 0
        %s423 = sadd.s32 %s422, %s420
        %s424 = smul.addr %s423, 4
        %s425 = scalar_lea.vmem %s1, %s424
        %p426 = pneg %p91
        %p427 = pneg %p88
        %p428 = scmp.lt.s32.totalorder %s28, 1
        %s429 = scalar_select %p428, %s28, 1
        %s430 = smul.addr %s429, 8
        %s431 = smul.addr %s430, 8
        %s432 = scalar_lea.vmem %s2, %s431
        %p433 = pneg %p117
        %p434 = pneg %p114
        %s435 = smul.u32 8, %s30
        %p436 = scmp.lt.s32.totalorder %s28, 1
        %s437 = scalar_select %p436, %s28, 1
        %p438 = scmp.lt.s32.totalorder %s435, 7
        %s439 = scalar_select %p438, %s435, 7
        %s440 = smul.addr %s437, 8
        %s441 = sadd.s32 %s439, %s440
        %s442 = smul.addr %s441, 8
        %s443 = scalar_lea.vmem %s3, %s442
        %p444 = pneg %p145
        %p445 = pneg %p142
        %p446 = pneg %p166
        %p447 = pneg %p163
        %p448 = pneg %p187
        %p449 = pneg %p184
        %p450 = pneg %p208
        %p451 = pneg %p205
        %p452 = pneg %p229
        %p453 = pneg %p226
        %p454 = pneg %p250
        %p455 = pneg %p247
        %p456 = pneg %p271
        %p457 = pneg %p268
        %p458 = pneg %p297
        %p459 = pneg %p294
        %p460 = scmp.lt.s32.totalorder %s28, 1
        %s461 = scalar_select %p460, %s28, 1
        %s462 = smul.addr %s461, 8
        %s463 = smul.addr %s462, 8
        %s464 = scalar_lea.vmem %s10, %s463
        %p465 = scmp.lt.s32.totalorder %s28, 1
        %s466 = scalar_select %p465, %s28, 1
        %s467 = smul.addr %s466, 8
        %s468 = smul.addr %s467, 8
        %s469 = scalar_lea.vmem %s0, %s468
        %p470 = scmp.lt.s32.totalorder %s28, 1
        %s471 = scalar_select %p470, %s28, 1
        %p472 = scmp.lt.s32.totalorder %s30, 0
        %s473 = scalar_select %p472, %s30, 0
        %s474 = sadd.s32 %s473, %s471
        %s475 = smul.addr %s474, 4
        %s476 = scalar_lea.vmem %s1, %s475
        %p477 = scmp.lt.s32.totalorder %s28, 1
        %s478 = scalar_select %p477, %s28, 1
        %s479 = smul.addr %s478, 8
        %s480 = smul.addr %s479, 8
        %s481 = scalar_lea.vmem %s2, %s480
        %s482 = smul.u32 8, %s30
        %p483 = scmp.lt.s32.totalorder %s28, 1
        %s484 = scalar_select %p483, %s28, 1
        %p485 = scmp.lt.s32.totalorder %s482, 7
        %s486 = scalar_select %p485, %s482, 7
        %s487 = smul.addr %s484, 8
        %s488 = sadd.s32 %s486, %s487
        %s489 = smul.addr %s488, 8
        %s490 = scalar_lea.vmem %s3, %s489
        %s491 = smul.u32 8, %s30
        %p492 = scmp.lt.s32.totalorder %s28, 1
        %s493 = scalar_select %p492, %s28, 1
        %s494 = smul.addr %s493, 8
        %s495 = smul.addr %s494, 8
        %s496 = scalar_lea.vmem %s10, %s495
        %v498 = vld [vmem:[%s469] sm:$0xff]
        %v499 = vld [vmem:[%s469 + $0x8] sm:$0xff]
        %v500 = vld [vmem:[%s469 + $0x10] sm:$0xff]
        %v501 = vld [vmem:[%s469 + $0x18] sm:$0xff]
        %v502 = vld [vmem:[%s469 + $0x20] sm:$0xff]
        %v503 = vld [vmem:[%s469 + $0x28] sm:$0xff]
        %v504 = vld [vmem:[%s469 + $0x30] sm:$0xff]
        %v505 = vld [vmem:[%s469 + $0x38] sm:$0xff]
        %v506 = vld [vmem:[%s476] sm:$0x7]
        %v507 = vmul.f32 %v498, %v498
        %v508 = vmul.f32 %v499, %v499
        %v509 = vmul.f32 %v500, %v500
        %v510 = vmul.f32 %v501, %v501
        %v511 = vmul.f32 %v502, %v502
        %v512 = vmul.f32 %v503, %v503
        %v513 = vmul.f32 %v504, %v504
        %v514 = vmul.f32 %v505, %v505
        %vm515 = vcmask 23552
        %v516 = vsel %vm515, %v507, 0.0
        %517 = vadd.xlane.f32.xlu0 %v516
        %v518 = vpop.xlane.xlu0 %517
        %v519 = vsel %vm515, %v508, 0.0
        %520 = vadd.xlane.f32.xlu0 %v519
        %v521 = vpop.xlane.xlu0 %520
        %v522 = vsel %vm515, %v509, 0.0
        %523 = vadd.xlane.f32.xlu0 %v522
        %v524 = vpop.xlane.xlu0 %523
        %v525 = vsel %vm515, %v510, 0.0
        %526 = vadd.xlane.f32.xlu0 %v525
        %v527 = vpop.xlane.xlu0 %526
        %v528 = vsel %vm515, %v511, 0.0
        %529 = vadd.xlane.f32.xlu0 %v528
        %v530 = vpop.xlane.xlu0 %529
        %v531 = vsel %vm515, %v512, 0.0
        %532 = vadd.xlane.f32.xlu0 %v531
        %v533 = vpop.xlane.xlu0 %532
        %v534 = vsel %vm515, %v513, 0.0
        %535 = vadd.xlane.f32.xlu0 %v534
        %v536 = vpop.xlane.xlu0 %535
        %v537 = vsel %vm515, %v514, 0.0
        %538 = vadd.xlane.f32.xlu0 %v537
        %v539 = vpop.xlane.xlu0 %538
        %v540 = vmul.f32 %v506, %v506
        %vm541 = vcmask 518144
        %v542 = vsel %vm541, %v540, 0.0
        %v543 = vrot.slane %v542, 4
        %v544 = vadd.f32 %v542, %v543
        %v545 = vrot.slane %v544, 2
        %v546 = vadd.f32 %v544, %v545
        %v547 = vrot.slane %v546, 1
        %v548 = vadd.f32 %v546, %v547
        %550 = vset.pattern.permute.xlu0 0
        %551 = vperm.xlu0 %550, %v498
        %v552 = vpop.permute.xlu0 %551
        %555 = vset.pattern.permute.xlu0 0
        %556 = vperm.xlu0 %555, %v499
        %v557 = vpop.permute.xlu0 %556
        %560 = vset.pattern.permute.xlu0 0
        %561 = vperm.xlu0 %560, %v500
        %v562 = vpop.permute.xlu0 %561
        %565 = vset.pattern.permute.xlu0 0
        %566 = vperm.xlu0 %565, %v501
        %v567 = vpop.permute.xlu0 %566
        %570 = vset.pattern.permute.xlu0 0
        %571 = vperm.xlu0 %570, %v502
        %v572 = vpop.permute.xlu0 %571
        %575 = vset.pattern.permute.xlu0 0
        %576 = vperm.xlu0 %575, %v503
        %v577 = vpop.permute.xlu0 %576
        %580 = vset.pattern.permute.xlu0 0
        %581 = vperm.xlu0 %580, %v504
        %v582 = vpop.permute.xlu0 %581
        %585 = vset.pattern.permute.xlu0 0
        %586 = vperm.xlu0 %585, %v505
        %v587 = vpop.permute.xlu0 %586
        %v589 = vperm.slane %v506, 0
        %v590 = vmul.f32 %v552, %v589
        %v591 = vmul.f32 %v557, %v589
        %v592 = vmul.f32 %v562, %v589
        %v593 = vmul.f32 %v567, %v589
        %v594 = vmul.f32 %v572, %v589
        %v595 = vmul.f32 %v577, %v589
        %v596 = vmul.f32 %v582, %v589
        %v597 = vmul.f32 %v587, %v589
        %598 = vset.pattern.permute.xlu0 1
        %599 = vperm.xlu0 %598, %v498
        %v600 = vpop.permute.xlu0 %599
        %602 = vset.pattern.permute.xlu0 1
        %603 = vperm.xlu0 %602, %v499
        %v604 = vpop.permute.xlu0 %603
        %606 = vset.pattern.permute.xlu0 1
        %607 = vperm.xlu0 %606, %v500
        %v608 = vpop.permute.xlu0 %607
        %610 = vset.pattern.permute.xlu0 1
        %611 = vperm.xlu0 %610, %v501
        %v612 = vpop.permute.xlu0 %611
        %614 = vset.pattern.permute.xlu0 1
        %615 = vperm.xlu0 %614, %v502
        %v616 = vpop.permute.xlu0 %615
        %618 = vset.pattern.permute.xlu0 1
        %619 = vperm.xlu0 %618, %v503
        %v620 = vpop.permute.xlu0 %619
        %622 = vset.pattern.permute.xlu0 1
        %623 = vperm.xlu0 %622, %v504
        %v624 = vpop.permute.xlu0 %623
        %626 = vset.pattern.permute.xlu0 1
        %627 = vperm.xlu0 %626, %v505
        %v628 = vpop.permute.xlu0 %627
        %v630 = vperm.slane %v506, 1
        %v631 = vmul.f32 %v600, %v630
        %v632 = vmul.f32 %v604, %v630
        %v633 = vmul.f32 %v608, %v630
        %v634 = vmul.f32 %v612, %v630
        %v635 = vmul.f32 %v616, %v630
        %v636 = vmul.f32 %v620, %v630
        %v637 = vmul.f32 %v624, %v630
        %v638 = vmul.f32 %v628, %v630
        %v639 = vadd.f32 %v590, %v631
        %v640 = vadd.f32 %v591, %v632
        %v641 = vadd.f32 %v592, %v633
        %v642 = vadd.f32 %v593, %v634
        %v643 = vadd.f32 %v594, %v635
        %v644 = vadd.f32 %v595, %v636
        %v645 = vadd.f32 %v596, %v637
        %v646 = vadd.f32 %v597, %v638
        %647 = vset.pattern.permute.xlu0 2
        %648 = vperm.xlu0 %647, %v498
        %v649 = vpop.permute.xlu0 %648
        %651 = vset.pattern.permute.xlu0 2
        %652 = vperm.xlu0 %651, %v499
        %v653 = vpop.permute.xlu0 %652
        %655 = vset.pattern.permute.xlu0 2
        %656 = vperm.xlu0 %655, %v500
        %v657 = vpop.permute.xlu0 %656
        %659 = vset.pattern.permute.xlu0 2
        %660 = vperm.xlu0 %659, %v501
        %v661 = vpop.permute.xlu0 %660
        %663 = vset.pattern.permute.xlu0 2
        %664 = vperm.xlu0 %663, %v502
        %v665 = vpop.permute.xlu0 %664
        %667 = vset.pattern.permute.xlu0 2
        %668 = vperm.xlu0 %667, %v503
        %v669 = vpop.permute.xlu0 %668
        %671 = vset.pattern.permute.xlu0 2
        %672 = vperm.xlu0 %671, %v504
        %v673 = vpop.permute.xlu0 %672
        %675 = vset.pattern.permute.xlu0 2
        %676 = vperm.xlu0 %675, %v505
        %v677 = vpop.permute.xlu0 %676
        %v679 = vperm.slane %v506, 2
        %v680 = vmul.f32 %v649, %v679
        %v681 = vmul.f32 %v653, %v679
        %v682 = vmul.f32 %v657, %v679
        %v683 = vmul.f32 %v661, %v679
        %v684 = vmul.f32 %v665, %v679
        %v685 = vmul.f32 %v669, %v679
        %v686 = vmul.f32 %v673, %v679
        %v687 = vmul.f32 %v677, %v679
        %v688 = vadd.f32 %v639, %v680
        %v689 = vadd.f32 %v640, %v681
        %v690 = vadd.f32 %v641, %v682
        %v691 = vadd.f32 %v642, %v683
        %v692 = vadd.f32 %v643, %v684
        %v693 = vadd.f32 %v644, %v685
        %v694 = vadd.f32 %v645, %v686
        %v695 = vadd.f32 %v646, %v687
        %v696 = vadd.f32 %v518, %v548
        %v697 = vadd.f32 %v521, %v548
        %v698 = vadd.f32 %v524, %v548
        %v699 = vadd.f32 %v527, %v548
        %v700 = vadd.f32 %v530, %v548
        %v701 = vadd.f32 %v533, %v548
        %v702 = vadd.f32 %v536, %v548
        %v703 = vadd.f32 %v539, %v548
        %v704 = vmul.f32 %v688, 2.0
        %v705 = vmul.f32 %v689, 2.0
        %v706 = vmul.f32 %v690, 2.0
        %v707 = vmul.f32 %v691, 2.0
        %v708 = vmul.f32 %v692, 2.0
        %v709 = vmul.f32 %v693, 2.0
        %v710 = vmul.f32 %v694, 2.0
        %v711 = vmul.f32 %v695, 2.0
        %v712 = vsub.f32 %v696, %v704
        %v713 = vsub.f32 %v697, %v705
        %v714 = vsub.f32 %v698, %v706
        %v715 = vsub.f32 %v699, %v707
        %v716 = vsub.f32 %v700, %v708
        %v717 = vsub.f32 %v701, %v709
        %v718 = vsub.f32 %v702, %v710
        %v719 = vsub.f32 %v703, %v711
        %v720 = vmax.f32 %v712, 0.0
        %v721 = vmax.f32 %v713, 0.0
        %v722 = vmax.f32 %v714, 0.0
        %v723 = vmax.f32 %v715, 0.0
        %v724 = vmax.f32 %v716, 0.0
        %v725 = vmax.f32 %v717, 0.0
        %v726 = vmax.f32 %v718, 0.0
        %v727 = vmax.f32 %v719, 0.0
        %p728 = scmp.eq.s32.totalorder %s29, 0
        %p729 = scmp.eq.s32.totalorder %s30, 0
        %p730 = pnand %p728, %p729
        %p731 = pneg %p730
        // Predicated region
        $region69: #{model_forward.10} parent=59 // pred_check
          _
        $region70: #{model_forward.10} parent=59 // pred_check_branch
          %733 = sbr.rel (%p730) target = $region72
        $region71: #{model_forward.10} parent=59 // pred_region
          %vm734 = vcmask 7168
          %735 = vst.msk [vmem:[#allocation2] sm:$0xff] %vm734, 0.0
          %736 = vst.msk [vmem:[#allocation2 + $0x8] sm:$0xff] %vm734, 0.0
          %737 = vst.msk [vmem:[#allocation2 + $0x10] sm:$0xff] %vm734, 0.0
          %738 = vst.msk [vmem:[#allocation2 + $0x18] sm:$0xff] %vm734, 0.0
          %739 = vst.msk [vmem:[#allocation2 + $0x20] sm:$0xff] %vm734, 0.0
          %740 = vst.msk [vmem:[#allocation2 + $0x28] sm:$0xff] %vm734, 0.0
          %741 = vst.msk [vmem:[#allocation2 + $0x30] sm:$0xff] %vm734, 0.0
          %742 = vst.msk [vmem:[#allocation2 + $0x38] sm:$0xff] %vm734, 0.0
        $region72: #{model_forward.10} parent=59 // pred_fallthru
          _
        // Predicated region
        $region73: #{model_forward.10} parent=59 // pred_check
          %p743 = pneg %p728
        $region74: #{model_forward.10} parent=59 // pred_check_branch
          %745 = sbr.rel (%p743) target = $region76
        $region75: #{model_forward.10} parent=59 // pred_region
          %v746 = vld [vmem:[#allocation2] sm:$0xff]
          %v747 = vld [vmem:[#allocation2 + $0x8] sm:$0xff]
          %v748 = vld [vmem:[#allocation2 + $0x10] sm:$0xff]
          %v749 = vld [vmem:[#allocation2 + $0x18] sm:$0xff]
          %v750 = vld [vmem:[#allocation2 + $0x20] sm:$0xff]
          %v751 = vld [vmem:[#allocation2 + $0x28] sm:$0xff]
          %v752 = vld [vmem:[#allocation2 + $0x30] sm:$0xff]
          %v753 = vld [vmem:[#allocation2 + $0x38] sm:$0xff]
          %vm754 = vcmp.lt.f32.partialorder %v720, 0.01
          %vm755 = vcmp.lt.f32.partialorder %v721, 0.01
          %vm756 = vcmp.lt.f32.partialorder %v722, 0.01
          %vm757 = vcmp.lt.f32.partialorder %v723, 0.01
          %vm758 = vcmp.lt.f32.partialorder %v724, 0.01
          %vm759 = vcmp.lt.f32.partialorder %v725, 0.01
          %vm760 = vcmp.lt.f32.partialorder %v726, 0.01
          %vm761 = vcmp.lt.f32.partialorder %v727, 0.01
          %v762 = vsel %vm754, 1, 0
          %v763 = vsel %vm755, 1, 0
          %v764 = vsel %vm756, 1, 0
          %v765 = vsel %vm757, 1, 0
          %v766 = vsel %vm758, 1, 0
          %v767 = vsel %vm759, 1, 0
          %v768 = vsel %vm760, 1, 0
          %v769 = vsel %vm761, 1, 0
          %v770 = vcvt.s32.f32 %v762
          %v771 = vcvt.s32.f32 %v763
          %v772 = vcvt.s32.f32 %v764
          %v773 = vcvt.s32.f32 %v765
          %v774 = vcvt.s32.f32 %v766
          %v775 = vcvt.s32.f32 %v767
          %v776 = vcvt.s32.f32 %v768
          %v777 = vcvt.s32.f32 %v769
          %vm778 = vcmask 523264
          %v779 = vsel %vm778, %v770, 0.0
          %780 = vadd.xlane.f32.xlu0 %v779
          %v781 = vpop.xlane.xlu0 %780
          %v782 = vsel %vm778, %v771, 0.0
          %783 = vadd.xlane.f32.xlu0 %v782
          %v784 = vpop.xlane.xlu0 %783
          %v785 = vsel %vm778, %v772, 0.0
          %786 = vadd.xlane.f32.xlu0 %v785
          %v787 = vpop.xlane.xlu0 %786
          %v788 = vsel %vm778, %v773, 0.0
          %789 = vadd.xlane.f32.xlu0 %v788
          %v790 = vpop.xlane.xlu0 %789
          %v791 = vsel %vm778, %v774, 0.0
          %792 = vadd.xlane.f32.xlu0 %v791
          %v793 = vpop.xlane.xlu0 %792
          %v794 = vsel %vm778, %v775, 0.0
          %795 = vadd.xlane.f32.xlu0 %v794
          %v796 = vpop.xlane.xlu0 %795
          %v797 = vsel %vm778, %v776, 0.0
          %798 = vadd.xlane.f32.xlu0 %v797
          %v799 = vpop.xlane.xlu0 %798
          %v800 = vsel %vm778, %v777, 0.0
          %801 = vadd.xlane.f32.xlu0 %v800
          %v802 = vpop.xlane.xlu0 %801
          %v803 = vadd.f32 %v746, %v781
          %v804 = vadd.f32 %v747, %v784
          %v805 = vadd.f32 %v748, %v787
          %v806 = vadd.f32 %v749, %v790
          %v807 = vadd.f32 %v750, %v793
          %v808 = vadd.f32 %v751, %v796
          %v809 = vadd.f32 %v752, %v799
          %v810 = vadd.f32 %v753, %v802
          %vm811 = vcmask 7168
          %812 = vst.msk [vmem:[#allocation2] sm:$0xff] %vm811, %v803
          %813 = vst.msk [vmem:[#allocation2 + $0x8] sm:$0xff] %vm811, %v804
          %814 = vst.msk [vmem:[#allocation2 + $0x10] sm:$0xff] %vm811, %v805
          %815 = vst.msk [vmem:[#allocation2 + $0x18] sm:$0xff] %vm811, %v806
          %816 = vst.msk [vmem:[#allocation2 + $0x20] sm:$0xff] %vm811, %v807
          %817 = vst.msk [vmem:[#allocation2 + $0x28] sm:$0xff] %vm811, %v808
          %818 = vst.msk [vmem:[#allocation2 + $0x30] sm:$0xff] %vm811, %v809
          %819 = vst.msk [vmem:[#allocation2 + $0x38] sm:$0xff] %vm811, %v810
        $region76: #{model_forward.10} parent=59 // pred_fallthru
          _
        %p820 = scmp.eq.s32.totalorder %s29, 1
        %p821 = pnand %p820, %p729
        %p822 = pneg %p821
        // Predicated region
        $region77: #{model_forward.10} parent=59 // pred_check
          _
        $region78: #{model_forward.10} parent=59 // pred_check_branch
          %824 = sbr.rel (%p821) target = $region80
        $region79: #{model_forward.10} parent=59 // pred_region
          %vm825 = vcmask 7168
          %826 = vst.msk [vmem:[#allocation3] sm:$0xff] %vm825, -1e+30
          %827 = vst.msk [vmem:[#allocation3 + $0x8] sm:$0xff] %vm825, -1e+30
          %828 = vst.msk [vmem:[#allocation3 + $0x10] sm:$0xff] %vm825, -1e+30
          %829 = vst.msk [vmem:[#allocation3 + $0x18] sm:$0xff] %vm825, -1e+30
          %830 = vst.msk [vmem:[#allocation3 + $0x20] sm:$0xff] %vm825, -1e+30
          %831 = vst.msk [vmem:[#allocation3 + $0x28] sm:$0xff] %vm825, -1e+30
          %832 = vst.msk [vmem:[#allocation3 + $0x30] sm:$0xff] %vm825, -1e+30
          %833 = vst.msk [vmem:[#allocation3 + $0x38] sm:$0xff] %vm825, -1e+30
          %834 = vst.msk [vmem:[#allocation4] sm:$0xff] %vm825, 0.0
          %835 = vst.msk [vmem:[#allocation4 + $0x8] sm:$0xff] %vm825, 0.0
          %836 = vst.msk [vmem:[#allocation4 + $0x10] sm:$0xff] %vm825, 0.0
          %837 = vst.msk [vmem:[#allocation4 + $0x18] sm:$0xff] %vm825, 0.0
          %838 = vst.msk [vmem:[#allocation4 + $0x20] sm:$0xff] %vm825, 0.0
          %839 = vst.msk [vmem:[#allocation4 + $0x28] sm:$0xff] %vm825, 0.0
          %840 = vst.msk [vmem:[#allocation4 + $0x30] sm:$0xff] %vm825, 0.0
          %841 = vst.msk [vmem:[#allocation4 + $0x38] sm:$0xff] %vm825, 0.0
          %vm842 = vcmask 261120
          %843 = vst.msk [vmem:[#allocation5] sm:$0xff] %vm842, 0.0
          %844 = vst.msk [vmem:[#allocation5 + $0x8] sm:$0xff] %vm842, 0.0
          %845 = vst.msk [vmem:[#allocation5 + $0x10] sm:$0xff] %vm842, 0.0
          %846 = vst.msk [vmem:[#allocation5 + $0x18] sm:$0xff] %vm842, 0.0
          %847 = vst.msk [vmem:[#allocation5 + $0x20] sm:$0xff] %vm842, 0.0
          %848 = vst.msk [vmem:[#allocation5 + $0x28] sm:$0xff] %vm842, 0.0
          %849 = vst.msk [vmem:[#allocation5 + $0x30] sm:$0xff] %vm842, 0.0
          %850 = vst.msk [vmem:[#allocation5 + $0x38] sm:$0xff] %vm842, 0.0
          %v851 = vld [vmem:[%s481] sm:$0xff]
          %v852 = vld [vmem:[%s481 + $0x8] sm:$0xff]
          %v853 = vld [vmem:[%s481 + $0x10] sm:$0xff]
          %v854 = vld [vmem:[%s481 + $0x18] sm:$0xff]
          %v855 = vld [vmem:[%s481 + $0x20] sm:$0xff]
          %v856 = vld [vmem:[%s481 + $0x28] sm:$0xff]
          %v857 = vld [vmem:[%s481 + $0x30] sm:$0xff]
          %v858 = vld [vmem:[%s481 + $0x38] sm:$0xff]
          %v859 = vpack.c.bf16 %v852, %v851
          %v860 = vpack.c.bf16 %v854, %v853
          %v861 = vpack.c.bf16 %v856, %v855
          %v862 = vpack.c.bf16 %v858, %v857
          %v863 = vld [vmem:[#allocation7] sm:$0xff]
          %v864 = vld [vmem:[#allocation7 + $0x8] sm:$0xff]
          %v865 = vld [vmem:[#allocation7 + $0x10] sm:$0xff]
          %v866 = vld [vmem:[#allocation7 + $0x18] sm:$0xff]
          %v867 = vpack.c.bf16 %v864, %v863
          %v868 = vpack.c.bf16 %v866, %v865
          %v870 = vsel %vm842, %v859, 0
          %v873 = vsel %vm842, %v860, 0
          %v876 = vsel %vm842, %v861, 0
          %v879 = vsel %vm842, %v862, 0
          %881 = vmatpush.bf16.msra.mxu0 0
          %882 = vmatpush.bf16.msra.mxu0 0
          %883 = vmatpush.bf16.msra.mxu0 0
          %884 = vmatpush.bf16.msra.mxu0 0
          %885 = vmatpush.bf16.msra.mxu0 0
          %886 = vmatpush.bf16.msra.mxu0 0
          %887 = vmatpush.bf16.msra.mxu0 %v868
          %888 = vmatpush.bf16.msra.mxu0 %v867
          %889 = vmatmul.bf16.gmra.mxu0 %v870
          %v890 = vpop.f32.mrf.mxu0
          %v891 = vadd.f32 0.0, %v890
          %v892 = vpop.f32.mrf.mxu0
          %v893 = vadd.f32 0.0, %v892
          %894 = vmatmul.bf16.gmra.mxu0 %v873
          %v895 = vpop.f32.mrf.mxu0
          %v896 = vadd.f32 0.0, %v895
          %v897 = vpop.f32.mrf.mxu0
          %v898 = vadd.f32 0.0, %v897
          %899 = vmatmul.bf16.gmra.mxu0 %v876
          %v900 = vpop.f32.mrf.mxu0
          %v901 = vadd.f32 0.0, %v900
          %v902 = vpop.f32.mrf.mxu0
          %v903 = vadd.f32 0.0, %v902
          %904 = vmatmul.bf16.gmra.mxu0 %v879
          %v905 = vpop.f32.mrf.mxu0
          %v906 = vadd.f32 0.0, %v905
          %v907 = vpop.f32.mrf.mxu0
          %v908 = vadd.f32 0.0, %v907
          %909 = vdwg.mxu0
          %v910 = vmul.f32 %v891, 0.17677669
          %v911 = vmul.f32 %v893, 0.17677669
          %v912 = vmul.f32 %v896, 0.17677669
          %v913 = vmul.f32 %v898, 0.17677669
          %v914 = vmul.f32 %v901, 0.17677669
          %v915 = vmul.f32 %v903, 0.17677669
          %v916 = vmul.f32 %v906, 0.17677669
          %v917 = vmul.f32 %v908, 0.17677669
          %v918 = vpack.c.bf16 %v910, %v910
          %v919 = vpack.c.bf16 %v911, %v911
          %v920 = vpack.c.bf16 %v912, %v912
          %v921 = vpack.c.bf16 %v913, %v913
          %v922 = vpack.c.bf16 %v914, %v914
          %v923 = vpack.c.bf16 %v915, %v915
          %v924 = vpack.c.bf16 %v916, %v916
          %v925 = vpack.c.bf16 %v917, %v917
          %vm926 = vcmask 257024
          %927 = vst.msk [vmem:[#allocation6] sm:$0xf] %vm926, %v918
          %928 = vst.msk [vmem:[#allocation6 + $0x4] sm:$0xf] %vm926, %v919
          %929 = vst.msk [vmem:[#allocation6 + $0x8] sm:$0xf] %vm926, %v920
          %930 = vst.msk [vmem:[#allocation6 + $0xc] sm:$0xf] %vm926, %v921
          %931 = vst.msk [vmem:[#allocation6 + $0x10] sm:$0xf] %vm926, %v922
          %932 = vst.msk [vmem:[#allocation6 + $0x14] sm:$0xf] %vm926, %v923
          %933 = vst.msk [vmem:[#allocation6 + $0x18] sm:$0xf] %vm926, %v924
          %934 = vst.msk [vmem:[#allocation6 + $0x1c] sm:$0xf] %vm926, %v925
        $region80: #{model_forward.10} parent=59 // pred_fallthru
          _
        // Predicated region
        $region81: #{model_forward.10} parent=59 // pred_check
          %p935 = pneg %p820
        $region82: #{model_forward.10} parent=59 // pred_check_branch
          %937 = sbr.rel (%p935) target = $region84
        $region83: #{model_forward.10} parent=59 // pred_region
          %v938 = vld [vmem:[%s490] sm:$0xff]
          %v939 = vld [vmem:[%s490 + $0x8] sm:$0xff]
          %v940 = vld [vmem:[%s490 + $0x10] sm:$0xff]
          %v941 = vld [vmem:[%s490 + $0x18] sm:$0xff]
          %v942 = vld [vmem:[%s490 + $0x20] sm:$0xff]
          %v943 = vld [vmem:[%s490 + $0x28] sm:$0xff]
          %v944 = vld [vmem:[%s490 + $0x30] sm:$0xff]
          %v945 = vld [vmem:[%s490 + $0x38] sm:$0xff]
          %v946 = vpack.c.bf16 %v939, %v938
          %v947 = vpack.c.bf16 %v941, %v940
          %v948 = vpack.c.bf16 %v943, %v942
          %v949 = vpack.c.bf16 %v945, %v944
          %v950 = vld [vmem:[#allocation9] sm:$0xff]
          %v951 = vld [vmem:[#allocation9 + $0x8] sm:$0xff]
          %v952 = vld [vmem:[#allocation9 + $0x10] sm:$0xff]
          %v953 = vld [vmem:[#allocation9 + $0x18] sm:$0xff]
          %v954 = vpack.c.bf16 %v951, %v950
          %v955 = vpack.c.bf16 %v953, %v952
          %vm956 = vcmask 261120
          %v958 = vsel %vm956, %v946, 0
          %v961 = vsel %vm956, %v947, 0
          %v964 = vsel %vm956, %v948, 0
          %v967 = vsel %vm956, %v949, 0
          %969 = vmatpush.bf16.msra.mxu0 0
          %970 = vmatpush.bf16.msra.mxu0 0
          %971 = vmatpush.bf16.msra.mxu0 0
          %972 = vmatpush.bf16.msra.mxu0 0
          %973 = vmatpush.bf16.msra.mxu0 0
          %974 = vmatpush.bf16.msra.mxu0 0
          %975 = vmatpush.bf16.msra.mxu0 %v955
          %976 = vmatpush.bf16.msra.mxu0 %v954
          %977 = vmatmul.bf16.gmra.mxu0 %v958
          %v978 = vpop.f32.mrf.mxu0
          %v979 = vadd.f32 0.0, %v978
          %v980 = vpop.f32.mrf.mxu0
          %v981 = vadd.f32 0.0, %v980
          %982 = vmatmul.bf16.gmra.mxu0 %v961
          %v983 = vpop.f32.mrf.mxu0
          %v984 = vadd.f32 0.0, %v983
          %v985 = vpop.f32.mrf.mxu0
          %v986 = vadd.f32 0.0, %v985
          %987 = vmatmul.bf16.gmra.mxu0 %v964
          %v988 = vpop.f32.mrf.mxu0
          %v989 = vadd.f32 0.0, %v988
          %v990 = vpop.f32.mrf.mxu0
          %v991 = vadd.f32 0.0, %v990
          %992 = vmatmul.bf16.gmra.mxu0 %v967
          %v993 = vpop.f32.mrf.mxu0
          %v994 = vadd.f32 0.0, %v993
          %v995 = vpop.f32.mrf.mxu0
          %v996 = vadd.f32 0.0, %v995
          %997 = vdwg.mxu0
          %v998 = vld [vmem:[#allocation2] sm:$0xff]
          %v999 = vld [vmem:[#allocation2 + $0x8] sm:$0xff]
          %v1000 = vld [vmem:[#allocation2 + $0x10] sm:$0xff]
          %v1001 = vld [vmem:[#allocation2 + $0x18] sm:$0xff]
          %v1002 = vld [vmem:[#allocation2 + $0x20] sm:$0xff]
          %v1003 = vld [vmem:[#allocation2 + $0x28] sm:$0xff]
          %v1004 = vld [vmem:[#allocation2 + $0x30] sm:$0xff]
          %v1005 = vld [vmem:[#allocation2 + $0x38] sm:$0xff]
          %v1006 = vmul.f32 %v998, 0.015625
          %v1007 = vmul.f32 %v999, 0.015625
          %v1008 = vmul.f32 %v1000, 0.015625
          %v1009 = vmul.f32 %v1001, 0.015625
          %v1010 = vmul.f32 %v1002, 0.015625
          %v1011 = vmul.f32 %v1003, 0.015625
          %v1012 = vmul.f32 %v1004, 0.015625
          %v1013 = vmul.f32 %v1005, 0.015625
          %v1014 = vadd.f32 %v1006, 1.0
          %v1015 = vadd.f32 %v1007, 1.0
          %v1016 = vadd.f32 %v1008, 1.0
          %v1017 = vadd.f32 %v1009, 1.0
          %v1018 = vadd.f32 %v1010, 1.0
          %v1019 = vadd.f32 %v1011, 1.0
          %v1020 = vadd.f32 %v1012, 1.0
          %v1021 = vadd.f32 %v1013, 1.0
          %v1022 = vmul.f32 %v1014, 0.01
          %v1023 = vmul.f32 %v1015, 0.01
          %v1024 = vmul.f32 %v1016, 0.01
          %v1025 = vmul.f32 %v1017, 0.01
          %v1026 = vmul.f32 %v1018, 0.01
          %v1027 = vmul.f32 %v1019, 0.01
          %v1028 = vmul.f32 %v1020, 0.01
          %v1029 = vmul.f32 %v1021, 0.01
          %1031 = vset.pattern.permute.xlu0 0
          %1032 = vperm.xlu0 %1031, %v1022
          %v1033 = vpop.permute.xlu0 %1032
          %1036 = vset.pattern.permute.xlu0 0
          %1037 = vperm.xlu0 %1036, %v1023
          %v1038 = vpop.permute.xlu0 %1037
          %1041 = vset.pattern.permute.xlu0 0
          %1042 = vperm.xlu0 %1041, %v1024
          %v1043 = vpop.permute.xlu0 %1042
          %1046 = vset.pattern.permute.xlu0 0
          %1047 = vperm.xlu0 %1046, %v1025
          %v1048 = vpop.permute.xlu0 %1047
          %1051 = vset.pattern.permute.xlu0 0
          %1052 = vperm.xlu0 %1051, %v1026
          %v1053 = vpop.permute.xlu0 %1052
          %1056 = vset.pattern.permute.xlu0 0
          %1057 = vperm.xlu0 %1056, %v1027
          %v1058 = vpop.permute.xlu0 %1057
          %1061 = vset.pattern.permute.xlu0 0
          %1062 = vperm.xlu0 %1061, %v1028
          %v1063 = vpop.permute.xlu0 %1062
          %1066 = vset.pattern.permute.xlu0 0
          %1067 = vperm.xlu0 %1066, %v1029
          %v1068 = vpop.permute.xlu0 %1067
          %vm1070 = vcmp.lt.f32.partialorder %v720, %v1033
          %vm1071 = vcmp.lt.f32.partialorder %v721, %v1038
          %vm1072 = vcmp.lt.f32.partialorder %v722, %v1043
          %vm1073 = vcmp.lt.f32.partialorder %v723, %v1048
          %vm1074 = vcmp.lt.f32.partialorder %v724, %v1053
          %vm1075 = vcmp.lt.f32.partialorder %v725, %v1058
          %vm1076 = vcmp.lt.f32.partialorder %v726, %v1063
          %vm1077 = vcmp.lt.f32.partialorder %v727, %v1068
          %v1078 = vld [vmem:[#allocation6] sm:$0xf]
          %v1079 = vld [vmem:[#allocation6 + $0x4] sm:$0xf]
          %v1080 = vld [vmem:[#allocation6 + $0x8] sm:$0xf]
          %v1081 = vld [vmem:[#allocation6 + $0xc] sm:$0xf]
          %v1082 = vld [vmem:[#allocation6 + $0x10] sm:$0xf]
          %v1083 = vld [vmem:[#allocation6 + $0x14] sm:$0xf]
          %v1084 = vld [vmem:[#allocation6 + $0x18] sm:$0xf]
          %v1085 = vld [vmem:[#allocation6 + $0x1c] sm:$0xf]
          %v1086 = vpack.c.bf16 %v981, %v979
          %v1087 = vpack.c.bf16 %v986, %v984
          %v1088 = vpack.c.bf16 %v991, %v989
          %v1089 = vpack.c.bf16 %v996, %v994
          %v1098 = vunpack.c.l.b16 %v1078
          %v1099 = vunpack.c.l.b16 %v1079
          %v1100 = vunpack.c.l.b16 %v1080
          %v1101 = vunpack.c.l.b16 %v1081
          %v1102 = vunpack.c.l.b16 %v1082
          %v1103 = vunpack.c.l.b16 %v1083
          %v1104 = vunpack.c.l.b16 %v1084
          %v1105 = vunpack.c.l.b16 %v1085
          %v1106 = vpack.c.b16 %v1099, %v1098
          %v1107 = vpack.c.b16 %v1101, %v1100
          %v1108 = vpack.c.b16 %v1103, %v1102
          %v1109 = vpack.c.b16 %v1105, %v1104
          %v1111 = vsel %vm956, %v1106, 0
          %v1114 = vsel %vm956, %v1107, 0
          %v1117 = vsel %vm956, %v1108, 0
          %v1120 = vsel %vm956, %v1109, 0
          %v1123 = vsel %vm956, %v1086, 0
          %v1126 = vsel %vm956, %v1087, 0
          %v1129 = vsel %vm956, %v1088, 0
          %v1132 = vsel %vm956, %v1089, 0
          %1134 = vmatpush.bf16.xpose.msra.mxu0 0
          %1135 = vmatpush.bf16.xpose.msra.mxu0 0
          %1136 = vmatpush.bf16.xpose.msra.mxu0 0
          %1137 = vmatpush.bf16.xpose.msra.mxu0 0
          %1138 = vmatpush.bf16.xpose.msra.mxu0 %v1132
          %1139 = vmatpush.bf16.xpose.msra.mxu0 %v1129
          %1140 = vmatpush.bf16.xpose.msra.mxu0 %v1126
          %1141 = vmatpush.bf16.xpose.msra.mxu0 %v1123
          %1142 = vmatmul.bf16.gmra.mxu0 %v1111
          %v1143 = vpop.f32.mrf.mxu0
          %v1144 = vadd.f32 0.0, %v1143
          %v1145 = vpop.f32.mrf.mxu0
          %v1146 = vadd.f32 0.0, %v1145
          %1147 = vmatmul.bf16.gmra.mxu0 %v1114
          %v1148 = vpop.f32.mrf.mxu0
          %v1149 = vadd.f32 0.0, %v1148
          %v1150 = vpop.f32.mrf.mxu0
          %v1151 = vadd.f32 0.0, %v1150
          %1152 = vmatmul.bf16.gmra.mxu0 %v1117
          %v1153 = vpop.f32.mrf.mxu0
          %v1154 = vadd.f32 0.0, %v1153
          %v1155 = vpop.f32.mrf.mxu0
          %v1156 = vadd.f32 0.0, %v1155
          %1157 = vmatmul.bf16.gmra.mxu0 %v1120
          %v1158 = vpop.f32.mrf.mxu0
          %v1159 = vadd.f32 0.0, %v1158
          %v1160 = vpop.f32.mrf.mxu0
          %v1161 = vadd.f32 0.0, %v1160
          %1162 = vdwg.mxu0
          %v1163 = vsel %vm1070, %v1144, -1e+30
          %v1164 = vsel %vm1071, %v1146, -1e+30
          %v1165 = vsel %vm1072, %v1149, -1e+30
          %v1166 = vsel %vm1073, %v1151, -1e+30
          %v1167 = vsel %vm1074, %v1154, -1e+30
          %v1168 = vsel %vm1075, %v1156, -1e+30
          %v1169 = vsel %vm1076, %v1159, -1e+30
          %v1170 = vsel %vm1077, %v1161, -1e+30
          %v1171 = vld [vmem:[#allocation3] sm:$0xff]
          %v1172 = vld [vmem:[#allocation3 + $0x8] sm:$0xff]
          %v1173 = vld [vmem:[#allocation3 + $0x10] sm:$0xff]
          %v1174 = vld [vmem:[#allocation3 + $0x18] sm:$0xff]
          %v1175 = vld [vmem:[#allocation3 + $0x20] sm:$0xff]
          %v1176 = vld [vmem:[#allocation3 + $0x28] sm:$0xff]
          %v1177 = vld [vmem:[#allocation3 + $0x30] sm:$0xff]
          %v1178 = vld [vmem:[#allocation3 + $0x38] sm:$0xff]
          %vm1179 = vcmask 523264
          %v1180 = vsel %vm1179, %v1163, -inf
          %1181 = vmax.xlane.f32.xlu0 %v1180
          %v1182 = vpop.xlane.xlu0 %1181
          %v1183 = vsel %vm1179, %v1164, -inf
          %1184 = vmax.xlane.f32.xlu0 %v1183
          %v1185 = vpop.xlane.xlu0 %1184
          %v1186 = vsel %vm1179, %v1165, -inf
          %1187 = vmax.xlane.f32.xlu0 %v1186
          %v1188 = vpop.xlane.xlu0 %1187
          %v1189 = vsel %vm1179, %v1166, -inf
          %1190 = vmax.xlane.f32.xlu0 %v1189
          %v1191 = vpop.xlane.xlu0 %1190
          %v1192 = vsel %vm1179, %v1167, -inf
          %1193 = vmax.xlane.f32.xlu0 %v1192
          %v1194 = vpop.xlane.xlu0 %1193
          %v1195 = vsel %vm1179, %v1168, -inf
          %1196 = vmax.xlane.f32.xlu0 %v1195
          %v1197 = vpop.xlane.xlu0 %1196
          %v1198 = vsel %vm1179, %v1169, -inf
          %1199 = vmax.xlane.f32.xlu0 %v1198
          %v1200 = vpop.xlane.xlu0 %1199
          %v1201 = vsel %vm1179, %v1170, -inf
          %1202 = vmax.xlane.f32.xlu0 %v1201
          %v1203 = vpop.xlane.xlu0 %1202
          %v1204 = vmax.f32 %v1171, %v1182
          %v1205 = vmax.f32 %v1172, %v1185
          %v1206 = vmax.f32 %v1173, %v1188
          %v1207 = vmax.f32 %v1174, %v1191
          %v1208 = vmax.f32 %v1175, %v1194
          %v1209 = vmax.f32 %v1176, %v1197
          %v1210 = vmax.f32 %v1177, %v1200
          %v1211 = vmax.f32 %v1178, %v1203
          %v1212 = vsub.f32 %v1171, %v1204
          %v1213 = vsub.f32 %v1172, %v1205
          %v1214 = vsub.f32 %v1173, %v1206
          %v1215 = vsub.f32 %v1174, %v1207
          %v1216 = vsub.f32 %v1175, %v1208
          %v1217 = vsub.f32 %v1176, %v1209
          %v1218 = vsub.f32 %v1177, %v1210
          %v1219 = vsub.f32 %v1178, %v1211
          %v1220 = vmul.f32 %v1212, 1.442695
          %v1221 = vpow.pop %v1220
          %v1222 = vmul.f32 %v1213, 1.442695
          %v1223 = vpow.pop %v1222
          %v1224 = vmul.f32 %v1214, 1.442695
          %v1225 = vpow.pop %v1224
          %v1226 = vmul.f32 %v1215, 1.442695
          %v1227 = vpow.pop %v1226
          %v1228 = vmul.f32 %v1216, 1.442695
          %v1229 = vpow.pop %v1228
          %v1230 = vmul.f32 %v1217, 1.442695
          %v1231 = vpow.pop %v1230
          %v1232 = vmul.f32 %v1218, 1.442695
          %v1233 = vpow.pop %v1232
          %v1234 = vmul.f32 %v1219, 1.442695
          %v1235 = vpow.pop %v1234
          %1237 = vset.pattern.permute.xlu0 0
          %1238 = vperm.xlu0 %1237, %v1204
          %v1239 = vpop.permute.xlu0 %1238
          %1242 = vset.pattern.permute.xlu0 0
          %1243 = vperm.xlu0 %1242, %v1205
          %v1244 = vpop.permute.xlu0 %1243
          %1247 = vset.pattern.permute.xlu0 0
          %1248 = vperm.xlu0 %1247, %v1206
          %v1249 = vpop.permute.xlu0 %1248
          %1252 = vset.pattern.permute.xlu0 0
          %1253 = vperm.xlu0 %1252, %v1207
          %v1254 = vpop.permute.xlu0 %1253
          %1257 = vset.pattern.permute.xlu0 0
          %1258 = vperm.xlu0 %1257, %v1208
          %v1259 = vpop.permute.xlu0 %1258
          %1262 = vset.pattern.permute.xlu0 0
          %1263 = vperm.xlu0 %1262, %v1209
          %v1264 = vpop.permute.xlu0 %1263
          %1267 = vset.pattern.permute.xlu0 0
          %1268 = vperm.xlu0 %1267, %v1210
          %v1269 = vpop.permute.xlu0 %1268
          %1272 = vset.pattern.permute.xlu0 0
          %1273 = vperm.xlu0 %1272, %v1211
          %v1274 = vpop.permute.xlu0 %1273
          %v1276 = vsub.f32 %v1163, %v1239
          %v1277 = vsub.f32 %v1164, %v1244
          %v1278 = vsub.f32 %v1165, %v1249
          %v1279 = vsub.f32 %v1166, %v1254
          %v1280 = vsub.f32 %v1167, %v1259
          %v1281 = vsub.f32 %v1168, %v1264
          %v1282 = vsub.f32 %v1169, %v1269
          %v1283 = vsub.f32 %v1170, %v1274
          %v1284 = vmul.f32 %v1276, 1.442695
          %v1285 = vpow.pop %v1284
          %v1286 = vmul.f32 %v1277, 1.442695
          %v1287 = vpow.pop %v1286
          %v1288 = vmul.f32 %v1278, 1.442695
          %v1289 = vpow.pop %v1288
          %v1290 = vmul.f32 %v1279, 1.442695
          %v1291 = vpow.pop %v1290
          %v1292 = vmul.f32 %v1280, 1.442695
          %v1293 = vpow.pop %v1292
          %v1294 = vmul.f32 %v1281, 1.442695
          %v1295 = vpow.pop %v1294
          %v1296 = vmul.f32 %v1282, 1.442695
          %v1297 = vpow.pop %v1296
          %v1298 = vmul.f32 %v1283, 1.442695
          %v1299 = vpow.pop %v1298
          %v1300 = vld [vmem:[#allocation4] sm:$0xff]
          %v1301 = vld [vmem:[#allocation4 + $0x8] sm:$0xff]
          %v1302 = vld [vmem:[#allocation4 + $0x10] sm:$0xff]
          %v1303 = vld [vmem:[#allocation4 + $0x18] sm:$0xff]
          %v1304 = vld [vmem:[#allocation4 + $0x20] sm:$0xff]
          %v1305 = vld [vmem:[#allocation4 + $0x28] sm:$0xff]
          %v1306 = vld [vmem:[#allocation4 + $0x30] sm:$0xff]
          %v1307 = vld [vmem:[#allocation4 + $0x38] sm:$0xff]
          %v1308 = vmul.f32 %v1221, %v1300
          %v1309 = vmul.f32 %v1223, %v1301
          %v1310 = vmul.f32 %v1225, %v1302
          %v1311 = vmul.f32 %v1227, %v1303
          %v1312 = vmul.f32 %v1229, %v1304
          %v1313 = vmul.f32 %v1231, %v1305
          %v1314 = vmul.f32 %v1233, %v1306
          %v1315 = vmul.f32 %v1235, %v1307
          %v1316 = vsel %vm1179, %v1285, 0.0
          %1317 = vadd.xlane.f32.xlu0 %v1316
          %v1318 = vpop.xlane.xlu0 %1317
          %v1319 = vsel %vm1179, %v1287, 0.0
          %1320 = vadd.xlane.f32.xlu0 %v1319
          %v1321 = vpop.xlane.xlu0 %1320
          %v1322 = vsel %vm1179, %v1289, 0.0
          %1323 = vadd.xlane.f32.xlu0 %v1322
          %v1324 = vpop.xlane.xlu0 %1323
          %v1325 = vsel %vm1179, %v1291, 0.0
          %1326 = vadd.xlane.f32.xlu0 %v1325
          %v1327 = vpop.xlane.xlu0 %1326
          %v1328 = vsel %vm1179, %v1293, 0.0
          %1329 = vadd.xlane.f32.xlu0 %v1328
          %v1330 = vpop.xlane.xlu0 %1329
          %v1331 = vsel %vm1179, %v1295, 0.0
          %1332 = vadd.xlane.f32.xlu0 %v1331
          %v1333 = vpop.xlane.xlu0 %1332
          %v1334 = vsel %vm1179, %v1297, 0.0
          %1335 = vadd.xlane.f32.xlu0 %v1334
          %v1336 = vpop.xlane.xlu0 %1335
          %v1337 = vsel %vm1179, %v1299, 0.0
          %1338 = vadd.xlane.f32.xlu0 %v1337
          %v1339 = vpop.xlane.xlu0 %1338
          %v1340 = vadd.f32 %v1308, %v1318
          %v1341 = vadd.f32 %v1309, %v1321
          %v1342 = vadd.f32 %v1310, %v1324
          %v1343 = vadd.f32 %v1311, %v1327
          %v1344 = vadd.f32 %v1312, %v1330
          %v1345 = vadd.f32 %v1313, %v1333
          %v1346 = vadd.f32 %v1314, %v1336
          %v1347 = vadd.f32 %v1315, %v1339
          %vm1348 = vcmask 7168
          %1349 = vst.msk [vmem:[#allocation4] sm:$0xff] %vm1348, %v1340
          %1350 = vst.msk [vmem:[#allocation4 + $0x8] sm:$0xff] %vm1348, %v1341
          %1351 = vst.msk [vmem:[#allocation4 + $0x10] sm:$0xff] %vm1348, %v1342
          %1352 = vst.msk [vmem:[#allocation4 + $0x18] sm:$0xff] %vm1348, %v1343
          %1353 = vst.msk [vmem:[#allocation4 + $0x20] sm:$0xff] %vm1348, %v1344
          %1354 = vst.msk [vmem:[#allocation4 + $0x28] sm:$0xff] %vm1348, %v1345
          %1355 = vst.msk [vmem:[#allocation4 + $0x30] sm:$0xff] %vm1348, %v1346
          %1356 = vst.msk [vmem:[#allocation4 + $0x38] sm:$0xff] %vm1348, %v1347
          %v1357 = vld [vmem:[#allocation5] sm:$0xff]
          %v1358 = vld [vmem:[#allocation5 + $0x8] sm:$0xff]
          %v1359 = vld [vmem:[#allocation5 + $0x10] sm:$0xff]
          %v1360 = vld [vmem:[#allocation5 + $0x18] sm:$0xff]
          %v1361 = vld [vmem:[#allocation5 + $0x20] sm:$0xff]
          %v1362 = vld [vmem:[#allocation5 + $0x28] sm:$0xff]
          %v1363 = vld [vmem:[#allocation5 + $0x30] sm:$0xff]
          %v1364 = vld [vmem:[#allocation5 + $0x38] sm:$0xff]
          %1366 = vset.pattern.permute.xlu0 0
          %1367 = vperm.xlu0 %1366, %v1221
          %v1368 = vpop.permute.xlu0 %1367
          %1371 = vset.pattern.permute.xlu0 0
          %1372 = vperm.xlu0 %1371, %v1223
          %v1373 = vpop.permute.xlu0 %1372
          %1376 = vset.pattern.permute.xlu0 0
          %1377 = vperm.xlu0 %1376, %v1225
          %v1378 = vpop.permute.xlu0 %1377
          %1381 = vset.pattern.permute.xlu0 0
          %1382 = vperm.xlu0 %1381, %v1227
          %v1383 = vpop.permute.xlu0 %1382
          %1386 = vset.pattern.permute.xlu0 0
          %1387 = vperm.xlu0 %1386, %v1229
          %v1388 = vpop.permute.xlu0 %1387
          %1391 = vset.pattern.permute.xlu0 0
          %1392 = vperm.xlu0 %1391, %v1231
          %v1393 = vpop.permute.xlu0 %1392
          %1396 = vset.pattern.permute.xlu0 0
          %1397 = vperm.xlu0 %1396, %v1233
          %v1398 = vpop.permute.xlu0 %1397
          %1401 = vset.pattern.permute.xlu0 0
          %1402 = vperm.xlu0 %1401, %v1235
          %v1403 = vpop.permute.xlu0 %1402
          %v1405 = vmul.f32 %v1368, %v1357
          %v1406 = vmul.f32 %v1373, %v1358
          %v1407 = vmul.f32 %v1378, %v1359
          %v1408 = vmul.f32 %v1383, %v1360
          %v1409 = vmul.f32 %v1388, %v1361
          %v1410 = vmul.f32 %v1393, %v1362
          %v1411 = vmul.f32 %v1398, %v1363
          %v1412 = vmul.f32 %v1403, %v1364
          %v1413 = vpack.c.bf16 %v1287, %v1285
          %v1414 = vpack.c.bf16 %v1291, %v1289
          %v1415 = vpack.c.bf16 %v1295, %v1293
          %v1416 = vpack.c.bf16 %v1299, %v1297
          %v1418 = vsel %vm1179, %v1413, 0
          %v1421 = vsel %vm1179, %v1414, 0
          %v1424 = vsel %vm1179, %v1415, 0
          %v1427 = vsel %vm1179, %v1416, 0
          %1429 = vmatpush.bf16.msra.mxu0 0
          %1430 = vmatpush.bf16.msra.mxu0 0
          %1431 = vmatpush.bf16.msra.mxu0 0
          %1432 = vmatpush.bf16.msra.mxu0 0
          %1433 = vmatpush.bf16.msra.mxu0 %v949
          %1434 = vmatpush.bf16.msra.mxu0 %v948
          %1435 = vmatpush.bf16.msra.mxu0 %v947
          %1436 = vmatpush.bf16.msra.mxu0 %v946
          %1437 = vmatmul.bf16.gmra.mxu0 %v1418
          %v1438 = vpop.f32.mrf.mxu0
          %v1439 = vadd.f32 0.0, %v1438
          %v1440 = vpop.f32.mrf.mxu0
          %v1441 = vadd.f32 0.0, %v1440
          %1442 = vmatmul.bf16.gmra.mxu0 %v1421
          %v1443 = vpop.f32.mrf.mxu0
          %v1444 = vadd.f32 0.0, %v1443
          %v1445 = vpop.f32.mrf.mxu0
          %v1446 = vadd.f32 0.0, %v1445
          %1447 = vmatmul.bf16.gmra.mxu0 %v1424
          %v1448 = vpop.f32.mrf.mxu0
          %v1449 = vadd.f32 0.0, %v1448
          %v1450 = vpop.f32.mrf.mxu0
          %v1451 = vadd.f32 0.0, %v1450
          %1452 = vmatmul.bf16.gmra.mxu0 %v1427
          %v1453 = vpop.f32.mrf.mxu0
          %v1454 = vadd.f32 0.0, %v1453
          %v1455 = vpop.f32.mrf.mxu0
          %v1456 = vadd.f32 0.0, %v1455
          %1457 = vdwg.mxu0
          %v1458 = vadd.f32 %v1405, %v1439
          %v1459 = vadd.f32 %v1406, %v1441
          %v1460 = vadd.f32 %v1407, %v1444
          %v1461 = vadd.f32 %v1408, %v1446
          %v1462 = vadd.f32 %v1409, %v1449
          %v1463 = vadd.f32 %v1410, %v1451
          %v1464 = vadd.f32 %v1411, %v1454
          %v1465 = vadd.f32 %v1412, %v1456
          %1466 = vst.msk [vmem:[#allocation5] sm:$0xff] %vm956, %v1458
          %1467 = vst.msk [vmem:[#allocation5 + $0x8] sm:$0xff] %vm956, %v1459
          %1468 = vst.msk [vmem:[#allocation5 + $0x10] sm:$0xff] %vm956, %v1460
          %1469 = vst.msk [vmem:[#allocation5 + $0x18] sm:$0xff] %vm956, %v1461
          %1470 = vst.msk [vmem:[#allocation5 + $0x20] sm:$0xff] %vm956, %v1462
          %1471 = vst.msk [vmem:[#allocation5 + $0x28] sm:$0xff] %vm956, %v1463
          %1472 = vst.msk [vmem:[#allocation5 + $0x30] sm:$0xff] %vm956, %v1464
          %1473 = vst.msk [vmem:[#allocation5 + $0x38] sm:$0xff] %vm956, %v1465
          %1474 = vst.msk [vmem:[#allocation3] sm:$0xff] %vm1348, %v1204
          %1475 = vst.msk [vmem:[#allocation3 + $0x8] sm:$0xff] %vm1348, %v1205
          %1476 = vst.msk [vmem:[#allocation3 + $0x10] sm:$0xff] %vm1348, %v1206
          %1477 = vst.msk [vmem:[#allocation3 + $0x18] sm:$0xff] %vm1348, %v1207
          %1478 = vst.msk [vmem:[#allocation3 + $0x20] sm:$0xff] %vm1348, %v1208
          %1479 = vst.msk [vmem:[#allocation3 + $0x28] sm:$0xff] %vm1348, %v1209
          %1480 = vst.msk [vmem:[#allocation3 + $0x30] sm:$0xff] %vm1348, %v1210
          %1481 = vst.msk [vmem:[#allocation3 + $0x38] sm:$0xff] %vm1348, %v1211
        $region84: #{model_forward.10} parent=59 // pred_fallthru
          _
        // Predicated region
        $region85: #{model_forward.10} parent=59 // pred_check
          _
        $region86: #{model_forward.10} parent=59 // pred_check_branch
          %1483 = sbr.rel (%p821) target = $region88
        $region87: #{model_forward.10} parent=59 // pred_region
          %v1484 = vld [vmem:[%s481] sm:$0xff]
          %v1485 = vld [vmem:[%s481 + $0x8] sm:$0xff]
          %v1486 = vld [vmem:[%s481 + $0x10] sm:$0xff]
          %v1487 = vld [vmem:[%s481 + $0x18] sm:$0xff]
          %v1488 = vld [vmem:[%s481 + $0x20] sm:$0xff]
          %v1489 = vld [vmem:[%s481 + $0x28] sm:$0xff]
          %v1490 = vld [vmem:[%s481 + $0x30] sm:$0xff]
          %v1491 = vld [vmem:[%s481 + $0x38] sm:$0xff]
          %v1492 = vld [vmem:[#allocation5] sm:$0xff]
          %v1493 = vld [vmem:[#allocation5 + $0x8] sm:$0xff]
          %v1494 = vld [vmem:[#allocation5 + $0x10] sm:$0xff]
          %v1495 = vld [vmem:[#allocation5 + $0x18] sm:$0xff]
          %v1496 = vld [vmem:[#allocation5 + $0x20] sm:$0xff]
          %v1497 = vld [vmem:[#allocation5 + $0x28] sm:$0xff]
          %v1498 = vld [vmem:[#allocation5 + $0x30] sm:$0xff]
          %v1499 = vld [vmem:[#allocation5 + $0x38] sm:$0xff]
          %v1500 = vld [vmem:[#allocation4] sm:$0xff]
          %v1501 = vld [vmem:[#allocation4 + $0x8] sm:$0xff]
          %v1502 = vld [vmem:[#allocation4 + $0x10] sm:$0xff]
          %v1503 = vld [vmem:[#allocation4 + $0x18] sm:$0xff]
          %v1504 = vld [vmem:[#allocation4 + $0x20] sm:$0xff]
          %v1505 = vld [vmem:[#allocation4 + $0x28] sm:$0xff]
          %v1506 = vld [vmem:[#allocation4 + $0x30] sm:$0xff]
          %v1507 = vld [vmem:[#allocation4 + $0x38] sm:$0xff]
          %v1508 = vrcp.pop %v1500
          %v1509 = vrcp.pop %v1501
          %v1510 = vrcp.pop %v1502
          %v1511 = vrcp.pop %v1503
          %v1512 = vrcp.pop %v1504
          %v1513 = vrcp.pop %v1505
          %v1514 = vrcp.pop %v1506
          %v1515 = vrcp.pop %v1507
          %1517 = vset.pattern.permute.xlu0 0
          %1518 = vperm.xlu0 %1517, %v1508
          %v1519 = vpop.permute.xlu0 %1518
          %1522 = vset.pattern.permute.xlu0 0
          %1523 = vperm.xlu0 %1522, %v1509
          %v1524 = vpop.permute.xlu0 %1523
          %1527 = vset.pattern.permute.xlu0 0
          %1528 = vperm.xlu0 %1527, %v1510
          %v1529 = vpop.permute.xlu0 %1528
          %1532 = vset.pattern.permute.xlu0 0
          %1533 = vperm.xlu0 %1532, %v1511
          %v1534 = vpop.permute.xlu0 %1533
          %1537 = vset.pattern.permute.xlu0 0
          %1538 = vperm.xlu0 %1537, %v1512
          %v1539 = vpop.permute.xlu0 %1538
          %1542 = vset.pattern.permute.xlu0 0
          %1543 = vperm.xlu0 %1542, %v1513
          %v1544 = vpop.permute.xlu0 %1543
          %1547 = vset.pattern.permute.xlu0 0
          %1548 = vperm.xlu0 %1547, %v1514
          %v1549 = vpop.permute.xlu0 %1548
          %1552 = vset.pattern.permute.xlu0 0
          %1553 = vperm.xlu0 %1552, %v1515
          %v1554 = vpop.permute.xlu0 %1553
          %v1556 = vmul.f32 %v1492, %v1519
          %v1557 = vmul.f32 %v1493, %v1524
          %v1558 = vmul.f32 %v1494, %v1529
          %v1559 = vmul.f32 %v1495, %v1534
          %v1560 = vmul.f32 %v1496, %v1539
          %v1561 = vmul.f32 %v1497, %v1544
          %v1562 = vmul.f32 %v1498, %v1549
          %v1563 = vmul.f32 %v1499, %v1554
          %v1564 = vsub.f32 %v1556, %v1484
          %v1565 = vsub.f32 %v1557, %v1485
          %v1566 = vsub.f32 %v1558, %v1486
          %v1567 = vsub.f32 %v1559, %v1487
          %v1568 = vsub.f32 %v1560, %v1488
          %v1569 = vsub.f32 %v1561, %v1489
          %v1570 = vsub.f32 %v1562, %v1490
          %v1571 = vsub.f32 %v1563, %v1491
          %v1572 = vpack.c.bf16 %v1565, %v1564
          %v1573 = vpack.c.bf16 %v1567, %v1566
          %v1574 = vpack.c.bf16 %v1569, %v1568
          %v1575 = vpack.c.bf16 %v1571, %v1570
          %v1576 = vld [vmem:[%s6] sm:$0xff]
          %v1577 = vld [vmem:[%s6 + $0x8] sm:$0xff]
          %v1578 = vld [vmem:[%s6 + $0x10] sm:$0xff]
          %v1579 = vld [vmem:[%s6 + $0x18] sm:$0xff]
          %v1580 = vpack.c.bf16 %v1577, %v1576
          %v1581 = vpack.c.bf16 %v1579, %v1578
          %v1582 = vpack.c.bf16 %v1485, %v1484
          %v1583 = vpack.c.bf16 %v1487, %v1486
          %v1584 = vpack.c.bf16 %v1489, %v1488
          %v1585 = vpack.c.bf16 %v1491, %v1490
          %v1586 = vld [vmem:[%s7] sm:$0xff]
          %v1587 = vld [vmem:[%s7 + $0x8] sm:$0xff]
          %v1588 = vld [vmem:[%s7 + $0x10] sm:$0xff]
          %v1589 = vld [vmem:[%s7 + $0x18] sm:$0xff]
          %v1590 = vpack.c.bf16 %v1587, %v1586
          %v1591 = vpack.c.bf16 %v1589, %v1588
          %vm1592 = vcmask 261120
          %v1594 = vsel %vm1592, %v1582, 0
          %v1597 = vsel %vm1592, %v1583, 0
          %v1600 = vsel %vm1592, %v1584, 0
          %v1603 = vsel %vm1592, %v1585, 0
          %1605 = vmatpush.bf16.msra.mxu0 0
          %1606 = vmatpush.bf16.msra.mxu0 0
          %1607 = vmatpush.bf16.msra.mxu0 0
          %1608 = vmatpush.bf16.msra.mxu0 0
          %1609 = vmatpush.bf16.msra.mxu0 0
          %1610 = vmatpush.bf16.msra.mxu0 0
          %1611 = vmatpush.bf16.msra.mxu0 %v1591
          %1612 = vmatpush.bf16.msra.mxu0 %v1590
          %1613 = vmatmul.bf16.gmra.mxu0 %v1594
          %v1614 = vpop.f32.mrf.mxu0
          %v1615 = vadd.f32 0.0, %v1614
          %v1616 = vpop.f32.mrf.mxu0
          %v1617 = vadd.f32 0.0, %v1616
          %1618 = vmatmul.bf16.gmra.mxu0 %v1597
          %v1619 = vpop.f32.mrf.mxu0
          %v1620 = vadd.f32 0.0, %v1619
          %v1621 = vpop.f32.mrf.mxu0
          %v1622 = vadd.f32 0.0, %v1621
          %1623 = vmatmul.bf16.gmra.mxu0 %v1600
          %v1624 = vpop.f32.mrf.mxu0
          %v1625 = vadd.f32 0.0, %v1624
          %v1626 = vpop.f32.mrf.mxu0
          %v1627 = vadd.f32 0.0, %v1626
          %1628 = vmatmul.bf16.gmra.mxu0 %v1603
          %v1629 = vpop.f32.mrf.mxu0
          %v1630 = vadd.f32 0.0, %v1629
          %v1631 = vpop.f32.mrf.mxu0
          %v1632 = vadd.f32 0.0, %v1631
          %1633 = vdwg.mxu0
          %v1635 = vsel %vm1592, %v1572, 0
          %v1638 = vsel %vm1592, %v1573, 0
          %v1641 = vsel %vm1592, %v1574, 0
          %v1644 = vsel %vm1592, %v1575, 0
          %1646 = vmatpush.bf16.msra.mxu0 0
          %1647 = vmatpush.bf16.msra.mxu0 0
          %1648 = vmatpush.bf16.msra.mxu0 0
          %1649 = vmatpush.bf16.msra.mxu0 0
          %1650 = vmatpush.bf16.msra.mxu0 0
          %1651 = vmatpush.bf16.msra.mxu0 0
          %1652 = vmatpush.bf16.msra.mxu0 %v1581
          %1653 = vmatpush.bf16.msra.mxu0 %v1580
          %1654 = vmatmul.bf16.gmra.mxu0 %v1635
          %v1655 = vpop.f32.mrf.mxu0
          %v1656 = vadd.f32 %v1615, %v1655
          %v1657 = vpop.f32.mrf.mxu0
          %v1658 = vadd.f32 %v1617, %v1657
          %1659 = vmatmul.bf16.gmra.mxu0 %v1638
          %v1660 = vpop.f32.mrf.mxu0
          %v1661 = vadd.f32 %v1620, %v1660
          %v1662 = vpop.f32.mrf.mxu0
          %v1663 = vadd.f32 %v1622, %v1662
          %1664 = vmatmul.bf16.gmra.mxu0 %v1641
          %v1665 = vpop.f32.mrf.mxu0
          %v1666 = vadd.f32 %v1625, %v1665
          %v1667 = vpop.f32.mrf.mxu0
          %v1668 = vadd.f32 %v1627, %v1667
          %1669 = vmatmul.bf16.gmra.mxu0 %v1644
          %v1670 = vpop.f32.mrf.mxu0
          %v1671 = vadd.f32 %v1630, %v1670
          %v1672 = vpop.f32.mrf.mxu0
          %v1673 = vadd.f32 %v1632, %v1672
          %1674 = vdwg.mxu0
          %v1675 = vld [vmem:[%s8] sm:$0x1]
          %v1677 = vperm.slane %v1675, 0
          %v1679 = vmul.f32 %v1656, %v1677
          %v1680 = vmul.f32 %v1658, %v1677
          %v1681 = vmul.f32 %v1661, %v1677
          %v1682 = vmul.f32 %v1663, %v1677
          %v1683 = vmul.f32 %v1666, %v1677
          %v1684 = vmul.f32 %v1668, %v1677
          %v1685 = vmul.f32 %v1671, %v1677
          %v1686 = vmul.f32 %v1673, %v1677
          %v1687 = vld [vmem:[%s9] sm:$0x1]
          %v1689 = vperm.slane %v1687, 0
          %v1691 = vadd.f32 %v1679, %v1689
          %v1692 = vadd.f32 %v1680, %v1689
          %v1693 = vadd.f32 %v1681, %v1689
          %v1694 = vadd.f32 %v1682, %v1689
          %v1695 = vadd.f32 %v1683, %v1689
          %v1696 = vadd.f32 %v1684, %v1689
          %v1697 = vadd.f32 %v1685, %v1689
          %v1698 = vadd.f32 %v1686, %v1689
          %v1699 = vmul.f32 %v1691, 0.5
          %v1700 = vmul.f32 %v1692, 0.5
          %v1701 = vmul.f32 %v1693, 0.5
          %v1702 = vmul.f32 %v1694, 0.5
          %v1703 = vmul.f32 %v1695, 0.5
          %v1704 = vmul.f32 %v1696, 0.5
          %v1705 = vmul.f32 %v1697, 0.5
          %v1706 = vmul.f32 %v1698, 0.5
          %v1707 = vmul.f32 %v1691, 0.044715
          %v1708 = vmul.f32 %v1692, 0.044715
          %v1709 = vmul.f32 %v1693, 0.044715
          %v1710 = vmul.f32 %v1694, 0.044715
          %v1711 = vmul.f32 %v1695, 0.044715
          %v1712 = vmul.f32 %v1696, 0.044715
          %v1713 = vmul.f32 %v1697, 0.044715
          %v1714 = vmul.f32 %v1698, 0.044715
          %v1715 = vmul.f32 %v1707, %v1691
          %v1716 = vmul.f32 %v1708, %v1692
          %v1717 = vmul.f32 %v1709, %v1693
          %v1718 = vmul.f32 %v1710, %v1694
          %v1719 = vmul.f32 %v1711, %v1695
          %v1720 = vmul.f32 %v1712, %v1696
          %v1721 = vmul.f32 %v1713, %v1697
          %v1722 = vmul.f32 %v1714, %v1698
          %v1723 = vmul.f32 %v1715, %v1691
          %v1724 = vmul.f32 %v1716, %v1692
          %v1725 = vmul.f32 %v1717, %v1693
          %v1726 = vmul.f32 %v1718, %v1694
          %v1727 = vmul.f32 %v1719, %v1695
          %v1728 = vmul.f32 %v1720, %v1696
          %v1729 = vmul.f32 %v1721, %v1697
          %v1730 = vmul.f32 %v1722, %v1698
          %v1731 = vadd.f32 %v1691, %v1723
          %v1732 = vadd.f32 %v1692, %v1724
          %v1733 = vadd.f32 %v1693, %v1725
          %v1734 = vadd.f32 %v1694, %v1726
          %v1735 = vadd.f32 %v1695, %v1727
          %v1736 = vadd.f32 %v1696, %v1728
          %v1737 = vadd.f32 %v1697, %v1729
          %v1738 = vadd.f32 %v1698, %v1730
          %v1739 = vmul.f32 %v1731, 0.7978846
          %v1740 = vmul.f32 %v1732, 0.7978846
          %v1741 = vmul.f32 %v1733, 0.7978846
          %v1742 = vmul.f32 %v1734, 0.7978846
          %v1743 = vmul.f32 %v1735, 0.7978846
          %v1744 = vmul.f32 %v1736, 0.7978846
          %v1745 = vmul.f32 %v1737, 0.7978846
          %v1746 = vmul.f32 %v1738, 0.7978846
          %v1747 = vtanh.pop %v1739
          %v1748 = vtanh.pop %v1740
          %v1749 = vtanh.pop %v1741
          %v1750 = vtanh.pop %v1742
          %v1751 = vtanh.pop %v1743
          %v1752 = vtanh.pop %v1744
          %v1753 = vtanh.pop %v1745
          %v1754 = vtanh.pop %v1746
          %v1755 = vadd.f32 %v1747, 1.0
          %v1756 = vadd.f32 %v1748, 1.0
          %v1757 = vadd.f32 %v1749, 1.0
          %v1758 = vadd.f32 %v1750, 1.0
          %v1759 = vadd.f32 %v1751, 1.0
          %v1760 = vadd.f32 %v1752, 1.0
          %v1761 = vadd.f32 %v1753, 1.0
          %v1762 = vadd.f32 %v1754, 1.0
          %v1763 = vmul.f32 %v1699, %v1755
          %v1764 = vmul.f32 %v1700, %v1756
          %v1765 = vmul.f32 %v1701, %v1757
          %v1766 = vmul.f32 %v1702, %v1758
          %v1767 = vmul.f32 %v1703, %v1759
          %v1768 = vmul.f32 %v1704, %v1760
          %v1769 = vmul.f32 %v1705, %v1761
          %v1770 = vmul.f32 %v1706, %v1762
          %vm1771 = vcmask 523264
          %1772 = vst.msk [vmem:[%s496] sm:$0xff] %vm1771, %v1763
          %1773 = vst.msk [vmem:[%s496 + $0x8] sm:$0xff] %vm1771, %v1764
          %1774 = vst.msk [vmem:[%s496 + $0x10] sm:$0xff] %vm1771, %v1765
          %1775 = vst.msk [vmem:[%s496 + $0x18] sm:$0xff] %vm1771, %v1766
          %1776 = vst.msk [vmem:[%s496 + $0x20] sm:$0xff] %vm1771, %v1767
          %1777 = vst.msk [vmem:[%s496 + $0x28] sm:$0xff] %vm1771, %v1768
          %1778 = vst.msk [vmem:[%s496 + $0x30] sm:$0xff] %vm1771, %v1769
          %1779 = vst.msk [vmem:[%s496 + $0x38] sm:$0xff] %vm1771, %v1770
        $region88: #{model_forward.10} parent=59 // pred_fallthru
          _
        %p1780 = scmp.lt.s32.totalorder %s28, 1
        %s1781 = scalar_select %p1780, %s28, 1
        %s1782 = smul.addr %s1781, 8
        %s1783 = smul.addr %s1782, 8
        %s1784 = scalar_lea.vmem %s10, %s1783
        // Predicated region
        $region89: #{model_forward.10} parent=59 // pred_check
          %p1785 = pneg %p294
        $region90: #{model_forward.10} parent=59 // pred_check_branch
          %1787 = sbr.rel (%p1785) target = $region92
        $region91: #{model_forward.10} parent=59 // pred_region
          _
        $region92: #{model_forward.10} parent=59 // pred_fallthru
          _
      $region60: #{model_forward.10} parent=5 // pred_fallthru
        _
      %p1788 = scmp.le.s32.totalorder 2, %s18
      // Predicated region
      $region93: #{model_forward.10} parent=5 // pred_check
        %p1789 = pneg %p1788
      $region94: #{model_forward.10} parent=5 // pred_check_branch
        %1791 = sbr.rel (%p1789) target = $region96
      $region95: #{model_forward.10} parent=5 // pred_region
        %s1792 = ssub.s32 %s18, 2
        // Predicated region
        $region97: #{model_forward.10} parent=95 // pred_check
          %p1793 = pneg %p300
        $region98: #{model_forward.10} parent=95 // pred_check_branch
          %1795 = sbr.rel (%p1793) target = $region100
        $region99: #{model_forward.10} parent=95 // pred_region
          %p1796 = scmp.lt.s32.totalorder %s31, 1
          %s1797 = scalar_select %p1796, %s31, 1
          %s1798 = smul.addr %s1797, 8
          %s1799 = smul.addr %s1798, 8
          %s1800 = scalar_lea.vmem %s10, %s1799
        $region100: #{model_forward.10} parent=95 // pred_fallthru
          _
      $region96: #{model_forward.10} parent=5 // pred_fallthru
        _
    $region6: #{model_forward.10} parent=1 // loop_footer
      %s22 = sadd.s32 1, %s18
    $region7: #{model_forward.10} parent=1 // loop_footer_branch
      %17 = sbr.rel target = $region3
    $region8: #{model_forward.10} parent=1 // loop_exit
      _
    %1801 = vsyncpa [#allocation8], 1
    %s1802 = scalar_lea.sflag [#allocation8], 1
    %1803 = vsyncpa %s1802, 1
    %1804 = vsyncpa [#allocation10], 1

// kernel: model_forward.12
$region0: #{model_forward.12}
  #allocation0 [shape = 'u32[]', space=smem, size = 0x4, offset = 0x4, fixed_abs, tag = 'smem constant byte address 0x4 - core index']
  #allocation1 [shape = 'u32[72,128]{1,0:T(1,128)}', space=vmem, size = 0x9000, scoped, tag = 'internal scratch']
  #allocation2 [shape = 'f32[16,1]{1,0:T(8,128)}', space=vmem, size = 0x2000, scoped, tag = 'scratch operand']
  #allocation3 [shape = 'f32[16,1]{1,0:T(8,128)}', space=vmem, size = 0x2000, scoped, tag = 'scratch operand']
  #allocation4 [shape = 'f32[16,1]{1,0:T(8,128)}', space=vmem, size = 0x2000, scoped, tag = 'scratch operand']
  #allocation5 [shape = 'f32[16,128]{1,0:T(8,128)}', space=vmem, size = 0x2000, scoped, tag = 'scratch operand']
  #allocation6 [shape = 'bf16[16,128]{1,0:T(8,128)(2,1)}', space=vmem, size = 0x1000, scoped, tag = 'scratch operand']
  %s0 = inlined_call_operand.vmem [shape: f32[2,16,3], index: 0, kind: input, shape index: {}]
  %s1 = inlined_call_operand.vmem [shape: f32[2,3,32], index: 1, kind: input, shape index: {}]
  %s2 = inlined_call_operand.vmem [shape: f32[2,16,128], index: 2, kind: input, shape index: {}]
  %s3 = inlined_call_operand.vmem [shape: f32[2,32,128], index: 3, kind: input, shape index: {}]
  %s4 = inlined_call_operand.vmem [shape: f32[128,128], index: 4, kind: input, shape index: {}]
  %s5 = inlined_call_operand.vmem [shape: f32[128,128], index: 5, kind: input, shape index: {}]
  %s6 = inlined_call_operand.vmem [shape: f32[128,256], index: 6, kind: input, shape index: {}]
  %s7 = inlined_call_operand.vmem [shape: f32[128,256], index: 7, kind: input, shape index: {}]
  %s8 = inlined_call_operand.vmem [shape: f32[1,256], index: 8, kind: input, shape index: {}]
  %s9 = inlined_call_operand.vmem [shape: f32[1,256], index: 9, kind: input, shape index: {}]
  %s10 = inlined_call_operand.vmem [shape: f32[2,16,256], index: 10, kind: output, shape index: {}]
  %s11 = sld [smem:[#allocation0]]
  $region93: #{model_forward.12} parent=0
    _
  %s13 = ssub.s32 1, %s11
  %s14 = scalar_select 0, %s13, %s11
  loop: start=0, step=1, limit=6
  $region2: #{model_forward.12} parent=0 // loop_pre_header
    _
  $region3: #{model_forward.12} parent=0 // loop_header
    %s16 = sphi 0, %s20
    %p17 = scmp.ge.s32.totalorder %s16, 6
    %s23 = sphi 0, %s42
    %s24 = sphi 0, %s38
    %s25 = sphi 0, %s34
    %s26 = sphi 0, %s23
    %s27 = sphi 0, %s24
    %s28 = sphi 0, %s25
    %s29 = sphi 0, %s26
    %s30 = sphi 0, %s27
    %s31 = sphi 0, %s28
    %s45 = sphi 0, %s47
    %s48 = sphi 0, %s45
    %s49 = sphi 0, %s48
    %s65 = sphi 0, %s49
    %s73 = sphi 0, %s75
    %s76 = sphi 0, %s73
    %s77 = sphi 0, %s76
    %s93 = sphi 0, %s77
    %s99 = sphi 0, %s101
    %s102 = sphi 0, %s99
    %s103 = sphi 0, %s102
    %s119 = sphi 0, %s103
    %s127 = sphi 0, %s129
    %s130 = sphi 0, %s127
    %s131 = sphi 0, %s130
    %s147 = sphi 0, %s131
    %s151 = sphi 0, %s151
    %s153 = sphi 0, %s151
    %s154 = sphi 0, %s153
    %s168 = sphi 0, %s154
    %s172 = sphi 0, %s172
    %s174 = sphi 0, %s172
    %s175 = sphi 0, %s174
    %s189 = sphi 0, %s175
    %s193 = sphi 0, %s193
    %s195 = sphi 0, %s193
    %s196 = sphi 0, %s195
    %s210 = sphi 0, %s196
    %s214 = sphi 0, %s214
    %s216 = sphi 0, %s214
    %s217 = sphi 0, %s216
    %s231 = sphi 0, %s217
    %s235 = sphi 0, %s235
    %s237 = sphi 0, %s235
    %s238 = sphi 0, %s237
    %s252 = sphi 0, %s238
    %s256 = sphi 0, %s256
    %s258 = sphi 0, %s256
    %s259 = sphi 0, %s258
    %s273 = sphi 0, %s259
    %s279 = sphi 0, %s281
    %s282 = sphi 0, %s279
    %s283 = sphi 0, %s282
    %s299 = sphi 0, %s283
  $region4: #{model_forward.12} parent=0 // loop_header_branch
    %19 = sbr.rel (%p17) target = $region8
  $region5: #{model_forward.12} parent=0 // loop_body
    %s21 = ssub.s32 %s16, 1
    %s22 = ssub.s32 %s16, 2
    %s32 = sadd.s32 1, %s25
    %p33 = scmp.ge.s32.totalorder %s32, 1
    %s34 = scalar_select %p33, 0, %s32
    %s35 = sadd.s32 1, %s24
    %s36 = scalar_select %p33, %s35, %s24
    %p37 = scmp.ge.s32.totalorder %s36, 2
    %s38 = scalar_select %p37, 0, %s36
    %s39 = sadd.s32 1, %s23
    %s40 = scalar_select %p37, %s39, %s23
    %p41 = scmp.ge.s32.totalorder %s40, 2
    %s42 = scalar_select %p41, 0, %s40
    %s43 = ssub.s32 %s23, %s42
    %p44 = scmp.eq.s32.totalorder %s43, 0
    %s46 = sadd.s32 %s45, 1
    %s47 = scalar_select %p44, %s45, %s46
    %p50 = pneg %p44
    %p51 = scmp.eq.s32.totalorder %s16, 3
    %p52 = por %p50, %p51
    %p53 = scmp.ne.s32.totalorder %s45, %s48
    %p54 = scmp.eq.s32.totalorder %s16, 0
    %p55 = por %p53, %p54
    %p56 = scmp.ne.s32.totalorder %s45, %s48
    %p57 = scmp.eq.s32.totalorder %s21, 3
    %p58 = por %p56, %p57
    %p59 = scmp.ne.s32.totalorder %s48, %s49
    %p60 = scmp.eq.s32.totalorder %s21, 0
    %p61 = por %p59, %p60
    %p62 = scmp.ne.s32.totalorder %s48, %s49
    %p63 = scmp.eq.s32.totalorder %s22, 3
    %p64 = por %p62, %p63
    %p66 = scmp.ne.s32.totalorder %s49, %s65
    %p67 = scmp.eq.s32.totalorder %s22, 0
    %p68 = por %p66, %p67
    %s69 = ssub.s32 %s23, %s42
    %s70 = ssub.s32 %s25, %s34
    %s71 = sor.u32 %s69, %s70
    %p72 = scmp.eq.s32.totalorder %s71, 0
    %s74 = sadd.s32 %s73, 1
    %s75 = scalar_select %p72, %s73, %s74
    %p78 = pneg %p72
    %p79 = scmp.eq.s32.totalorder %s16, 3
    %p80 = por %p78, %p79
    %p81 = scmp.ne.s32.totalorder %s73, %s76
    %p82 = scmp.eq.s32.totalorder %s16, 0
    %p83 = por %p81, %p82
    %p84 = scmp.ne.s32.totalorder %s73, %s76
    %p85 = scmp.eq.s32.totalorder %s21, 3
    %p86 = por %p84, %p85
    %p87 = scmp.ne.s32.totalorder %s76, %s77
    %p88 = scmp.eq.s32.totalorder %s21, 0
    %p89 = por %p87, %p88
    %p90 = scmp.ne.s32.totalorder %s76, %s77
    %p91 = scmp.eq.s32.totalorder %s22, 3
    %p92 = por %p90, %p91
    %p94 = scmp.ne.s32.totalorder %s77, %s93
    %p95 = scmp.eq.s32.totalorder %s22, 0
    %p96 = por %p94, %p95
    %s97 = ssub.s32 %s23, %s42
    %p98 = scmp.eq.s32.totalorder %s97, 0
    %s100 = sadd.s32 %s99, 1
    %s101 = scalar_select %p98, %s99, %s100
    %p104 = pneg %p98
    %p105 = scmp.eq.s32.totalorder %s16, 3
    %p106 = por %p104, %p105
    %p107 = scmp.ne.s32.totalorder %s99, %s102
    %p108 = scmp.eq.s32.totalorder %s16, 0
    %p109 = por %p107, %p108
    %p110 = scmp.ne.s32.totalorder %s99, %s102
    %p111 = scmp.eq.s32.totalorder %s21, 3
    %p112 = por %p110, %p111
    %p113 = scmp.ne.s32.totalorder %s102, %s103
    %p114 = scmp.eq.s32.totalorder %s21, 0
    %p115 = por %p113, %p114
    %p116 = scmp.ne.s32.totalorder %s102, %s103
    %p117 = scmp.eq.s32.totalorder %s22, 3
    %p118 = por %p116, %p117
    %p120 = scmp.ne.s32.totalorder %s103, %s119
    %p121 = scmp.eq.s32.totalorder %s22, 0
    %p122 = por %p120, %p121
    %s123 = ssub.s32 %s23, %s42
    %s124 = ssub.s32 %s25, %s34
    %s125 = sor.u32 %s123, %s124
    %p126 = scmp.eq.s32.totalorder %s125, 0
    %s128 = sadd.s32 %s127, 1
    %s129 = scalar_select %p126, %s127, %s128
    %p132 = pneg %p126
    %p133 = scmp.eq.s32.totalorder %s16, 3
    %p134 = por %p132, %p133
    %p135 = scmp.ne.s32.totalorder %s127, %s130
    %p136 = scmp.eq.s32.totalorder %s16, 0
    %p137 = por %p135, %p136
    %p138 = scmp.ne.s32.totalorder %s127, %s130
    %p139 = scmp.eq.s32.totalorder %s21, 3
    %p140 = por %p138, %p139
    %p141 = scmp.ne.s32.totalorder %s130, %s131
    %p142 = scmp.eq.s32.totalorder %s21, 0
    %p143 = por %p141, %p142
    %p144 = scmp.ne.s32.totalorder %s130, %s131
    %p145 = scmp.eq.s32.totalorder %s22, 3
    %p146 = por %p144, %p145
    %p148 = scmp.ne.s32.totalorder %s131, %s147
    %p149 = scmp.eq.s32.totalorder %s22, 0
    %p150 = por %p148, %p149
    %s152 = sadd.s32 %s151, 1
    %p155 = scmp.eq.s32.totalorder %s16, 3
    %p156 = scmp.ne.s32.totalorder %s151, %s153
    %p157 = scmp.eq.s32.totalorder %s16, 0
    %p158 = por %p156, %p157
    %p159 = scmp.ne.s32.totalorder %s151, %s153
    %p160 = scmp.eq.s32.totalorder %s21, 3
    %p161 = por %p159, %p160
    %p162 = scmp.ne.s32.totalorder %s153, %s154
    %p163 = scmp.eq.s32.totalorder %s21, 0
    %p164 = por %p162, %p163
    %p165 = scmp.ne.s32.totalorder %s153, %s154
    %p166 = scmp.eq.s32.totalorder %s22, 3
    %p167 = por %p165, %p166
    %p169 = scmp.ne.s32.totalorder %s154, %s168
    %p170 = scmp.eq.s32.totalorder %s22, 0
    %p171 = por %p169, %p170
    %s173 = sadd.s32 %s172, 1
    %p176 = scmp.eq.s32.totalorder %s16, 3
    %p177 = scmp.ne.s32.totalorder %s172, %s174
    %p178 = scmp.eq.s32.totalorder %s16, 0
    %p179 = por %p177, %p178
    %p180 = scmp.ne.s32.totalorder %s172, %s174
    %p181 = scmp.eq.s32.totalorder %s21, 3
    %p182 = por %p180, %p181
    %p183 = scmp.ne.s32.totalorder %s174, %s175
    %p184 = scmp.eq.s32.totalorder %s21, 0
    %p185 = por %p183, %p184
    %p186 = scmp.ne.s32.totalorder %s174, %s175
    %p187 = scmp.eq.s32.totalorder %s22, 3
    %p188 = por %p186, %p187
    %p190 = scmp.ne.s32.totalorder %s175, %s189
    %p191 = scmp.eq.s32.totalorder %s22, 0
    %p192 = por %p190, %p191
    %s194 = sadd.s32 %s193, 1
    %p197 = scmp.eq.s32.totalorder %s16, 3
    %p198 = scmp.ne.s32.totalorder %s193, %s195
    %p199 = scmp.eq.s32.totalorder %s16, 0
    %p200 = por %p198, %p199
    %p201 = scmp.ne.s32.totalorder %s193, %s195
    %p202 = scmp.eq.s32.totalorder %s21, 3
    %p203 = por %p201, %p202
    %p204 = scmp.ne.s32.totalorder %s195, %s196
    %p205 = scmp.eq.s32.totalorder %s21, 0
    %p206 = por %p204, %p205
    %p207 = scmp.ne.s32.totalorder %s195, %s196
    %p208 = scmp.eq.s32.totalorder %s22, 3
    %p209 = por %p207, %p208
    %p211 = scmp.ne.s32.totalorder %s196, %s210
    %p212 = scmp.eq.s32.totalorder %s22, 0
    %p213 = por %p211, %p212
    %s215 = sadd.s32 %s214, 1
    %p218 = scmp.eq.s32.totalorder %s16, 3
    %p219 = scmp.ne.s32.totalorder %s214, %s216
    %p220 = scmp.eq.s32.totalorder %s16, 0
    %p221 = por %p219, %p220
    %p222 = scmp.ne.s32.totalorder %s214, %s216
    %p223 = scmp.eq.s32.totalorder %s21, 3
    %p224 = por %p222, %p223
    %p225 = scmp.ne.s32.totalorder %s216, %s217
    %p226 = scmp.eq.s32.totalorder %s21, 0
    %p227 = por %p225, %p226
    %p228 = scmp.ne.s32.totalorder %s216, %s217
    %p229 = scmp.eq.s32.totalorder %s22, 3
    %p230 = por %p228, %p229
    %p232 = scmp.ne.s32.totalorder %s217, %s231
    %p233 = scmp.eq.s32.totalorder %s22, 0
    %p234 = por %p232, %p233
    %s236 = sadd.s32 %s235, 1
    %p239 = scmp.eq.s32.totalorder %s16, 3
    %p240 = scmp.ne.s32.totalorder %s235, %s237
    %p241 = scmp.eq.s32.totalorder %s16, 0
    %p242 = por %p240, %p241
    %p243 = scmp.ne.s32.totalorder %s235, %s237
    %p244 = scmp.eq.s32.totalorder %s21, 3
    %p245 = por %p243, %p244
    %p246 = scmp.ne.s32.totalorder %s237, %s238
    %p247 = scmp.eq.s32.totalorder %s21, 0
    %p248 = por %p246, %p247
    %p249 = scmp.ne.s32.totalorder %s237, %s238
    %p250 = scmp.eq.s32.totalorder %s22, 3
    %p251 = por %p249, %p250
    %p253 = scmp.ne.s32.totalorder %s238, %s252
    %p254 = scmp.eq.s32.totalorder %s22, 0
    %p255 = por %p253, %p254
    %s257 = sadd.s32 %s256, 1
    %p260 = scmp.eq.s32.totalorder %s16, 3
    %p261 = scmp.ne.s32.totalorder %s256, %s258
    %p262 = scmp.eq.s32.totalorder %s16, 0
    %p263 = por %p261, %p262
    %p264 = scmp.ne.s32.totalorder %s256, %s258
    %p265 = scmp.eq.s32.totalorder %s21, 3
    %p266 = por %p264, %p265
    %p267 = scmp.ne.s32.totalorder %s258, %s259
    %p268 = scmp.eq.s32.totalorder %s21, 0
    %p269 = por %p267, %p268
    %p270 = scmp.ne.s32.totalorder %s258, %s259
    %p271 = scmp.eq.s32.totalorder %s22, 3
    %p272 = por %p270, %p271
    %p274 = scmp.ne.s32.totalorder %s259, %s273
    %p275 = scmp.eq.s32.totalorder %s22, 0
    %p276 = por %p274, %p275
    %s277 = ssub.s32 %s23, %s42
    %p278 = scmp.eq.s32.totalorder %s277, 0
    %s280 = sadd.s32 %s279, 1
    %s281 = scalar_select %p278, %s279, %s280
    %p284 = pneg %p278
    %p285 = scmp.eq.s32.totalorder %s16, 3
    %p286 = por %p284, %p285
    %p287 = scmp.ne.s32.totalorder %s279, %s282
    %p288 = scmp.eq.s32.totalorder %s16, 0
    %p289 = por %p287, %p288
    %p290 = scmp.ne.s32.totalorder %s279, %s282
    %p291 = scmp.eq.s32.totalorder %s21, 3
    %p292 = por %p290, %p291
    %p293 = scmp.ne.s32.totalorder %s282, %s283
    %p294 = scmp.eq.s32.totalorder %s21, 0
    %p295 = por %p293, %p294
    %p296 = scmp.ne.s32.totalorder %s282, %s283
    %p297 = scmp.eq.s32.totalorder %s22, 3
    %p298 = por %p296, %p297
    %p300 = scmp.ne.s32.totalorder %s283, %s299
    %p301 = scmp.eq.s32.totalorder %s22, 0
    %p302 = por %p300, %p301
    %p303 = scmp.le.s32.totalorder 1, %s16
    %p304 = scmp.lt.s32.totalorder %s16, 5
    %p305 = pnand %p303, %p304
    %p306 = pneg %p305
    // Predicated region
    $region9: #{model_forward.12} parent=5 // pred_check
      _
    $region10: #{model_forward.12} parent=5 // pred_check_branch
      %308 = sbr.rel (%p305) target = $region12
    $region11: #{model_forward.12} parent=5 // pred_region
      %s309 = ssub.s32 %s16, 1
      // Predicated region
      $region13: #{model_forward.12} parent=11 // pred_check
        %p310 = pneg %p164
      $region14: #{model_forward.12} parent=11 // pred_check_branch
        %312 = sbr.rel (%p310) target = $region16
      $region15: #{model_forward.12} parent=11 // pred_region
        _
      $region16: #{model_forward.12} parent=11 // pred_fallthru
        _
      // Predicated region
      $region17: #{model_forward.12} parent=11 // pred_check
        %p313 = pneg %p185
      $region18: #{model_forward.12} parent=11 // pred_check_branch
        %315 = sbr.rel (%p313) target = $region20
      $region19: #{model_forward.12} parent=11 // pred_region
        _
      $region20: #{model_forward.12} parent=11 // pred_fallthru
        _
      // Predicated region
      $region21: #{model_forward.12} parent=11 // pred_check
        %p316 = pneg %p206
      $region22: #{model_forward.12} parent=11 // pred_check_branch
        %318 = sbr.rel (%p316) target = $region24
      $region23: #{model_forward.12} parent=11 // pred_region
        _
      $region24: #{model_forward.12} parent=11 // pred_fallthru
        _
      // Predicated region
      $region25: #{model_forward.12} parent=11 // pred_check
        %p319 = pneg %p227
      $region26: #{model_forward.12} parent=11 // pred_check_branch
        %321 = sbr.rel (%p319) target = $region28
      $region27: #{model_forward.12} parent=11 // pred_region
        _
      $region28: #{model_forward.12} parent=11 // pred_fallthru
        _
      // Predicated region
      $region29: #{model_forward.12} parent=11 // pred_check
        %p322 = pneg %p248
      $region30: #{model_forward.12} parent=11 // pred_check_branch
        %324 = sbr.rel (%p322) target = $region32
      $region31: #{model_forward.12} parent=11 // pred_region
        _
      $region32: #{model_forward.12} parent=11 // pred_fallthru
        _
      // Predicated region
      $region33: #{model_forward.12} parent=11 // pred_check
        %p325 = pneg %p269
      $region34: #{model_forward.12} parent=11 // pred_check_branch
        %327 = sbr.rel (%p325) target = $region36
      $region35: #{model_forward.12} parent=11 // pred_region
        _
      $region36: #{model_forward.12} parent=11 // pred_fallthru
        _
    $region12: #{model_forward.12} parent=5 // pred_fallthru
      _
    %p328 = scmp.lt.s32.totalorder %s16, 4
    // Predicated region
    $region37: #{model_forward.12} parent=5 // pred_check
      %p329 = pneg %p328
    $region38: #{model_forward.12} parent=5 // pred_check_branch
      %331 = sbr.rel (%p329) target = $region40
    $region39: #{model_forward.12} parent=5 // pred_region
      // Predicated region
      $region41: #{model_forward.12} parent=39 // pred_check
        %p332 = pneg %p55
      $region42: #{model_forward.12} parent=39 // pred_check_branch
        %334 = sbr.rel (%p332) target = $region44
      $region43: #{model_forward.12} parent=39 // pred_region
        %p335 = scmp.lt.s32.totalorder %s23, 1
        %s336 = scalar_select %p335, %s23, 1
        %s337 = smul.addr %s336, 2
        %s338 = smul.addr %s337, 8
        %s339 = scalar_lea.vmem %s0, %s338
      $region44: #{model_forward.12} parent=39 // pred_fallthru
        _
      // Predicated region
      $region45: #{model_forward.12} parent=39 // pred_check
        %p340 = pneg %p83
      $region46: #{model_forward.12} parent=39 // pred_check_branch
        %342 = sbr.rel (%p340) target = $region48
      $region47: #{model_forward.12} parent=39 // pred_region
        %p343 = scmp.lt.s32.totalorder %s23, 1
        %s344 = scalar_select %p343, %s23, 1
        %p345 = scmp.lt.s32.totalorder %s25, 0
        %s346 = scalar_select %p345, %s25, 0
        %s347 = sadd.s32 %s346, %s344
        %s348 = smul.addr %s347, 4
        %s349 = scalar_lea.vmem %s1, %s348
      $region48: #{model_forward.12} parent=39 // pred_fallthru
        _
      // Predicated region
      $region49: #{model_forward.12} parent=39 // pred_check
        %p350 = pneg %p109
      $region50: #{model_forward.12} parent=39 // pred_check_branch
        %352 = sbr.rel (%p350) target = $region52
      $region51: #{model_forward.12} parent=39 // pred_region
        %p353 = scmp.lt.s32.totalorder %s23, 1
        %s354 = scalar_select %p353, %s23, 1
        %s355 = smul.addr %s354, 2
        %s356 = smul.addr %s355, 8
        %s357 = scalar_lea.vmem %s2, %s356
      $region52: #{model_forward.12} parent=39 // pred_fallthru
        _
      // Predicated region
      $region53: #{model_forward.12} parent=39 // pred_check
        %p358 = pneg %p137
      $region54: #{model_forward.12} parent=39 // pred_check_branch
        %360 = sbr.rel (%p358) target = $region56
      $region55: #{model_forward.12} parent=39 // pred_region
        %s361 = smul.u32 4, %s25
        %p362 = scmp.lt.s32.totalorder %s23, 1
        %s363 = scalar_select %p362, %s23, 1
        %p364 = scmp.lt.s32.totalorder %s361, 3
        %s365 = scalar_select %p364, %s361, 3
        %s366 = smul.addr %s363, 4
        %s367 = sadd.s32 %s365, %s366
        %s368 = smul.addr %s367, 8
        %s369 = scalar_lea.vmem %s3, %s368
        %s370 = smul.u32 4, %s25
      $region56: #{model_forward.12} parent=39 // pred_fallthru
        _
    $region40: #{model_forward.12} parent=5 // pred_fallthru
      _
    %p371 = scmp.le.s32.totalorder 1, %s16
    %p372 = scmp.lt.s32.totalorder %s16, 5
    %p373 = pnand %p371, %p372
    %p374 = pneg %p373
    // Predicated region
    $region57: #{model_forward.12} parent=5 // pred_check
      _
    $region58: #{model_forward.12} parent=5 // pred_check_branch
      %376 = sbr.rel (%p373) target = $region60
    $region59: #{model_forward.12} parent=5 // pred_region
      %s377 = ssub.s32 %s16, 1
      %p378 = scmp.lt.s32.totalorder %s26, 1
      %s379 = scalar_select %p378, %s26, 1
      %s380 = smul.addr %s379, 2
      %s381 = smul.addr %s380, 8
      %s382 = scalar_lea.vmem %s0, %s381
      %p383 = pneg %p61
      %p384 = pneg %p58
      %p385 = scmp.lt.s32.totalorder %s26, 1
      %s386 = scalar_select %p385, %s26, 1
      %p387 = scmp.lt.s32.totalorder %s28, 0
      %s388 = scalar_select %p387, %s28, 0
      %s389 = sadd.s32 %s388, %s386
      %s390 = smul.addr %s389, 4
      %s391 = scalar_lea.vmem %s1, %s390
      %p392 = pneg %p89
      %p393 = pneg %p86
      %p394 = scmp.lt.s32.totalorder %s26, 1
      %s395 = scalar_select %p394, %s26, 1
      %s396 = smul.addr %s395, 2
      %s397 = smul.addr %s396, 8
      %s398 = scalar_lea.vmem %s2, %s397
      %p399 = pneg %p115
      %p400 = pneg %p112
      %s401 = smul.u32 4, %s28
      %p402 = scmp.lt.s32.totalorder %s26, 1
      %s403 = scalar_select %p402, %s26, 1
      %p404 = scmp.lt.s32.totalorder %s401, 3
      %s405 = scalar_select %p404, %s401, 3
      %s406 = smul.addr %s403, 4
      %s407 = sadd.s32 %s405, %s406
      %s408 = smul.addr %s407, 8
      %s409 = scalar_lea.vmem %s3, %s408
      %p410 = pneg %p143
      %p411 = pneg %p140
      %p412 = pneg %p164
      %p413 = pneg %p161
      %p414 = pneg %p185
      %p415 = pneg %p182
      %p416 = pneg %p206
      %p417 = pneg %p203
      %p418 = pneg %p227
      %p419 = pneg %p224
      %p420 = pneg %p248
      %p421 = pneg %p245
      %p422 = pneg %p269
      %p423 = pneg %p266
      %p424 = pneg %p295
      %p425 = pneg %p292
      %p426 = scmp.lt.s32.totalorder %s26, 1
      %s427 = scalar_select %p426, %s26, 1
      %s428 = smul.addr %s427, 4
      %s429 = smul.addr %s428, 8
      %s430 = scalar_lea.vmem %s10, %s429
      %p431 = scmp.lt.s32.totalorder %s26, 1
      %s432 = scalar_select %p431, %s26, 1
      %s433 = smul.addr %s432, 2
      %s434 = smul.addr %s433, 8
      %s435 = scalar_lea.vmem %s0, %s434
      %p436 = scmp.lt.s32.totalorder %s26, 1
      %s437 = scalar_select %p436, %s26, 1
      %p438 = scmp.lt.s32.totalorder %s28, 0
      %s439 = scalar_select %p438, %s28, 0
      %s440 = sadd.s32 %s439, %s437
      %s441 = smul.addr %s440, 4
      %s442 = scalar_lea.vmem %s1, %s441
      %p443 = scmp.lt.s32.totalorder %s26, 1
      %s444 = scalar_select %p443, %s26, 1
      %s445 = smul.addr %s444, 2
      %s446 = smul.addr %s445, 8
      %s447 = scalar_lea.vmem %s2, %s446
      %s448 = smul.u32 4, %s28
      %p449 = scmp.lt.s32.totalorder %s26, 1
      %s450 = scalar_select %p449, %s26, 1
      %p451 = scmp.lt.s32.totalorder %s448, 3
      %s452 = scalar_select %p451, %s448, 3
      %s453 = smul.addr %s450, 4
      %s454 = sadd.s32 %s452, %s453
      %s455 = smul.addr %s454, 8
      %s456 = scalar_lea.vmem %s3, %s455
      %s457 = smul.u32 4, %s28
      %p458 = scmp.lt.s32.totalorder %s26, 1
      %s459 = scalar_select %p458, %s26, 1
      %s460 = smul.addr %s459, 4
      %s461 = smul.addr %s460, 8
      %s462 = scalar_lea.vmem %s10, %s461
      %v464 = vld [vmem:[%s435] sm:$0xff]
      %v465 = vld [vmem:[%s435 + $0x8] sm:$0xff]
      %v466 = vld [vmem:[%s442] sm:$0x7]
      %v467 = vmul.f32 %v464, %v464
      %v468 = vmul.f32 %v465, %v465
      %vm469 = vcmask 23552
      %v470 = vsel %vm469, %v467, 0.0
      %471 = vadd.xlane.f32.xlu0 %v470
      %v472 = vpop.xlane.xlu0 %471
      %v473 = vsel %vm469, %v468, 0.0
      %474 = vadd.xlane.f32.xlu0 %v473
      %v475 = vpop.xlane.xlu0 %474
      %v476 = vmul.f32 %v466, %v466
      %vm477 = vcmask 256000
      %v478 = vsel %vm477, %v476, 0.0
      %v479 = vrot.slane %v478, 4
      %v480 = vadd.f32 %v478, %v479
      %v481 = vrot.slane %v480, 2
      %v482 = vadd.f32 %v480, %v481
      %v483 = vrot.slane %v482, 1
      %v484 = vadd.f32 %v482, %v483
      %486 = vset.pattern.permute.xlu0 0
      %487 = vperm.xlu0 %486, %v464
      %v488 = vpop.permute.xlu0 %487
      %491 = vset.pattern.permute.xlu0 0
      %492 = vperm.xlu0 %491, %v465
      %v493 = vpop.permute.xlu0 %492
      %v495 = vperm.slane %v466, 0
      %v496 = vmul.f32 %v488, %v495
      %v497 = vmul.f32 %v493, %v495
      %498 = vset.pattern.permute.xlu0 1
      %499 = vperm.xlu0 %498, %v464
      %v500 = vpop.permute.xlu0 %499
      %502 = vset.pattern.permute.xlu0 1
      %503 = vperm.xlu0 %502, %v465
      %v504 = vpop.permute.xlu0 %503
      %v506 = vperm.slane %v466, 1
      %v507 = vmul.f32 %v500, %v506
      %v508 = vmul.f32 %v504, %v506
      %v509 = vadd.f32 %v496, %v507
      %v510 = vadd.f32 %v497, %v508
      %511 = vset.pattern.permute.xlu0 2
      %512 = vperm.xlu0 %511, %v464
      %v513 = vpop.permute.xlu0 %512
      %515 = vset.pattern.permute.xlu0 2
      %516 = vperm.xlu0 %515, %v465
      %v517 = vpop.permute.xlu0 %516
      %v519 = vperm.slane %v466, 2
      %v520 = vmul.f32 %v513, %v519
      %v521 = vmul.f32 %v517, %v519
      %v522 = vadd.f32 %v509, %v520
      %v523 = vadd.f32 %v510, %v521
      %v524 = vadd.f32 %v472, %v484
      %v525 = vadd.f32 %v475, %v484
      %v526 = vmul.f32 %v522, 2.0
      %v527 = vmul.f32 %v523, 2.0
      %v528 = vsub.f32 %v524, %v526
      %v529 = vsub.f32 %v525, %v527
      %v530 = vmax.f32 %v528, 0.0
      %v531 = vmax.f32 %v529, 0.0
      %p532 = scmp.eq.s32.totalorder %s27, 0
      %p533 = scmp.eq.s32.totalorder %s28, 0
      %p534 = pnand %p532, %p533
      %p535 = pneg %p534
      // Predicated region
      $region61: #{model_forward.12} parent=59 // pred_check
        _
      $region62: #{model_forward.12} parent=59 // pred_check_branch
        %537 = sbr.rel (%p534) target = $region64
      $region63: #{model_forward.12} parent=59 // pred_region
        %vm538 = vcmask 7168
        %539 = vst.msk [vmem:[#allocation2] sm:$0xff] %vm538, 0.0
        %540 = vst.msk [vmem:[#allocation2 + $0x8] sm:$0xff] %vm538, 0.0
      $region64: #{model_forward.12} parent=59 // pred_fallthru
        _
      // Predicated region
      $region65: #{model_forward.12} parent=59 // pred_check
        %p541 = pneg %p532
      $region66: #{model_forward.12} parent=59 // pred_check_branch
        %543 = sbr.rel (%p541) target = $region68
      $region67: #{model_forward.12} parent=59 // pred_region
        %v544 = vld [vmem:[#allocation2] sm:$0xff]
        %v545 = vld [vmem:[#allocation2 + $0x8] sm:$0xff]
        %vm546 = vcmp.lt.f32.partialorder %v530, 0.16
        %vm547 = vcmp.lt.f32.partialorder %v531, 0.16
        %v548 = vsel %vm546, 1, 0
        %v549 = vsel %vm547, 1, 0
        %v550 = vcvt.s32.f32 %v548
        %v551 = vcvt.s32.f32 %v549
        %vm552 = vcmask 261120
        %v553 = vsel %vm552, %v550, 0.0
        %554 = vadd.xlane.f32.xlu0 %v553
        %v555 = vpop.xlane.xlu0 %554
        %v556 = vsel %vm552, %v551, 0.0
        %557 = vadd.xlane.f32.xlu0 %v556
        %v558 = vpop.xlane.xlu0 %557
        %v559 = vadd.f32 %v544, %v555
        %v560 = vadd.f32 %v545, %v558
        %vm561 = vcmask 7168
        %562 = vst.msk [vmem:[#allocation2] sm:$0xff] %vm561, %v559
        %563 = vst.msk [vmem:[#allocation2 + $0x8] sm:$0xff] %vm561, %v560
      $region68: #{model_forward.12} parent=59 // pred_fallthru
        _
      %p564 = scmp.eq.s32.totalorder %s27, 1
      %p565 = pnand %p564, %p533
      %p566 = pneg %p565
      // Predicated region
      $region69: #{model_forward.12} parent=59 // pred_check
        _
      $region70: #{model_forward.12} parent=59 // pred_check_branch
        %568 = sbr.rel (%p565) target = $region72
      $region71: #{model_forward.12} parent=59 // pred_region
        %vm569 = vcmask 7168
        %570 = vst.msk [vmem:[#allocation3] sm:$0xff] %vm569, -1e+30
        %571 = vst.msk [vmem:[#allocation3 + $0x8] sm:$0xff] %vm569, -1e+30
        %572 = vst.msk [vmem:[#allocation4] sm:$0xff] %vm569, 0.0
        %573 = vst.msk [vmem:[#allocation4 + $0x8] sm:$0xff] %vm569, 0.0
        %574 = vst [vmem:[#allocation5] sm:$0xff] 0.0
        %575 = vst [vmem:[#allocation5 + $0x8] sm:$0xff] 0.0
        %v576 = vld [vmem:[%s447] sm:$0xff]
        %v577 = vld [vmem:[%s447 + $0x8] sm:$0xff]
        %v578 = vpack.c.bf16 %v577, %v576
        %v579 = vld [vmem:[%s4] sm:$0xff]
        %v580 = vld [vmem:[%s4 + $0x8] sm:$0xff]
        %v581 = vld [vmem:[%s4 + $0x10] sm:$0xff]
        %v582 = vld [vmem:[%s4 + $0x18] sm:$0xff]
        %v583 = vld [vmem:[%s4 + $0x20] sm:$0xff]
        %v584 = vld [vmem:[%s4 + $0x28] sm:$0xff]
        %v585 = vld [vmem:[%s4 + $0x30] sm:$0xff]
        %v586 = vld [vmem:[%s4 + $0x38] sm:$0xff]
        %v587 = vld [vmem:[%s4 + $0x40] sm:$0xff]
        %v588 = vld [vmem:[%s4 + $0x48] sm:$0xff]
        %v589 = vld [vmem:[%s4 + $0x50] sm:$0xff]
        %v590 = vld [vmem:[%s4 + $0x58] sm:$0xff]
        %v591 = vld [vmem:[%s4 + $0x60] sm:$0xff]
        %v592 = vld [vmem:[%s4 + $0x68] sm:$0xff]
        %v593 = vld [vmem:[%s4 + $0x70] sm:$0xff]
        %v594 = vld [vmem:[%s4 + $0x78] sm:$0xff]
        %v595 = vpack.c.bf16 %v580, %v579
        %v596 = vpack.c.bf16 %v582, %v581
        %v597 = vpack.c.bf16 %v584, %v583
        %v598 = vpack.c.bf16 %v586, %v585
        %v599 = vpack.c.bf16 %v588, %v587
        %v600 = vpack.c.bf16 %v590, %v589
        %v601 = vpack.c.bf16 %v592, %v591
        %v602 = vpack.c.bf16 %v594, %v593
        %603 = vmatpush.bf16.msra.mxu0 %v602
        %604 = vmatpush.bf16.msra.mxu0 %v601
        %605 = vmatpush.bf16.msra.mxu0 %v600
        %606 = vmatpush.bf16.msra.mxu0 %v599
        %607 = vmatpush.bf16.msra.mxu0 %v598
        %608 = vmatpush.bf16.msra.mxu0 %v597
        %609 = vmatpush.bf16.msra.mxu0 %v596
        %610 = vmatpush.bf16.msra.mxu0 %v595
        %611 = vmatmul.bf16.gmra.mxu0 %v578
        %v612 = vpop.f32.mrf.mxu0
        %v613 = vadd.f32 0.0, %v612
        %v614 = vpop.f32.mrf.mxu0
        %v615 = vadd.f32 0.0, %v614
        %616 = vdwg.mxu0
        %v617 = vmul.f32 %v613, 0.088388346
        %v618 = vmul.f32 %v615, 0.088388346
        %v619 = vpack.c.bf16 %v617, %v617
        %v620 = vpack.c.bf16 %v618, %v618
        %621 = vst [vmem:[#allocation6] sm:$0xf] %v619
        %622 = vst [vmem:[#allocation6 + $0x4] sm:$0xf] %v620
      $region72: #{model_forward.12} parent=59 // pred_fallthru
        _
      // Predicated region
      $region73: #{model_forward.12} parent=59 // pred_check
        %p623 = pneg %p564
      $region74: #{model_forward.12} parent=59 // pred_check_branch
        %625 = sbr.rel (%p623) target = $region76
      $region75: #{model_forward.12} parent=59 // pred_region
        %v626 = vld [vmem:[%s456] sm:$0xff]
        %v627 = vld [vmem:[%s456 + $0x8] sm:$0xff]
        %v628 = vld [vmem:[%s456 + $0x10] sm:$0xff]
        %v629 = vld [vmem:[%s456 + $0x18] sm:$0xff]
        %v630 = vpack.c.bf16 %v627, %v626
        %v631 = vpack.c.bf16 %v629, %v628
        %v632 = vld [vmem:[%s5] sm:$0xff]
        %v633 = vld [vmem:[%s5 + $0x8] sm:$0xff]
        %v634 = vld [vmem:[%s5 + $0x10] sm:$0xff]
        %v635 = vld [vmem:[%s5 + $0x18] sm:$0xff]
        %v636 = vld [vmem:[%s5 + $0x20] sm:$0xff]
        %v637 = vld [vmem:[%s5 + $0x28] sm:$0xff]
        %v638 = vld [vmem:[%s5 + $0x30] sm:$0xff]
        %v639 = vld [vmem:[%s5 + $0x38] sm:$0xff]
        %v640 = vld [vmem:[%s5 + $0x40] sm:$0xff]
        %v641 = vld [vmem:[%s5 + $0x48] sm:$0xff]
        %v642 = vld [vmem:[%s5 + $0x50] sm:$0xff]
        %v643 = vld [vmem:[%s5 + $0x58] sm:$0xff]
        %v644 = vld [vmem:[%s5 + $0x60] sm:$0xff]
        %v645 = vld [vmem:[%s5 + $0x68] sm:$0xff]
        %v646 = vld [vmem:[%s5 + $0x70] sm:$0xff]
        %v647 = vld [vmem:[%s5 + $0x78] sm:$0xff]
        %v648 = vpack.c.bf16 %v633, %v632
        %v649 = vpack.c.bf16 %v635, %v634
        %v650 = vpack.c.bf16 %v637, %v636
        %v651 = vpack.c.bf16 %v639, %v638
        %v652 = vpack.c.bf16 %v641, %v640
        %v653 = vpack.c.bf16 %v643, %v642
        %v654 = vpack.c.bf16 %v645, %v644
        %v655 = vpack.c.bf16 %v647, %v646
        %656 = vmatpush.bf16.msra.mxu0 %v655
        %657 = vmatpush.bf16.msra.mxu0 %v654
        %658 = vmatpush.bf16.msra.mxu0 %v653
        %659 = vmatpush.bf16.msra.mxu0 %v652
        %660 = vmatpush.bf16.msra.mxu0 %v651
        %661 = vmatpush.bf16.msra.mxu0 %v650
        %662 = vmatpush.bf16.msra.mxu0 %v649
        %663 = vmatpush.bf16.msra.mxu0 %v648
        %664 = vmatmul.bf16.gmra.mxu0 %v630
        %v665 = vpop.f32.mrf.mxu0
        %v666 = vadd.f32 0.0, %v665
        %v667 = vpop.f32.mrf.mxu0
        %v668 = vadd.f32 0.0, %v667
        %669 = vmatmul.bf16.gmra.mxu0 %v631
        %v670 = vpop.f32.mrf.mxu0
        %v671 = vadd.f32 0.0, %v670
        %v672 = vpop.f32.mrf.mxu0
        %v673 = vadd.f32 0.0, %v672
        %674 = vdwg.mxu0
        %v675 = vld [vmem:[#allocation2] sm:$0xff]
        %v676 = vld [vmem:[#allocation2 + $0x8] sm:$0xff]
        %v677 = vmul.f32 %v675, 0.03125
        %v678 = vmul.f32 %v676, 0.03125
        %v679 = vadd.f32 %v677, 1.0
        %v680 = vadd.f32 %v678, 1.0
        %v681 = vmul.f32 %v679, 0.16
        %v682 = vmul.f32 %v680, 0.16
        %684 = vset.pattern.permute.xlu0 0
        %685 = vperm.xlu0 %684, %v681
        %v686 = vpop.permute.xlu0 %685
        %689 = vset.pattern.permute.xlu0 0
        %690 = vperm.xlu0 %689, %v682
        %v691 = vpop.permute.xlu0 %690
        %vm693 = vcmp.lt.f32.partialorder %v530, %v686
        %vm694 = vcmp.lt.f32.partialorder %v531, %v691
        %v695 = vld [vmem:[#allocation6] sm:$0xf]
        %v696 = vld [vmem:[#allocation6 + $0x4] sm:$0xf]
        %v697 = vpack.c.bf16 %v668, %v666
        %v698 = vpack.c.bf16 %v673, %v671
        %v701 = vunpack.c.l.b16 %v695
        %v702 = vunpack.c.l.b16 %v696
        %v703 = vpack.c.b16 %v702, %v701
        %705 = vmatpush.bf16.xpose.msra.mxu0 0
        %706 = vmatpush.bf16.xpose.msra.mxu0 0
        %707 = vmatpush.bf16.xpose.msra.mxu0 0
        %708 = vmatpush.bf16.xpose.msra.mxu0 0
        %709 = vmatpush.bf16.xpose.msra.mxu0 0
        %710 = vmatpush.bf16.xpose.msra.mxu0 0
        %711 = vmatpush.bf16.xpose.msra.mxu0 %v698
        %712 = vmatpush.bf16.xpose.msra.mxu0 %v697
        %713 = vmatmul.bf16.gmra.mxu0 %v703
        %v714 = vpop.f32.mrf.mxu0
        %v715 = vadd.f32 0.0, %v714
        %v716 = vpop.f32.mrf.mxu0
        %v717 = vadd.f32 0.0, %v716
        %718 = vdwg.mxu0
        %v719 = vsel %vm693, %v715, -1e+30
        %v720 = vsel %vm694, %v717, -1e+30
        %v721 = vld [vmem:[#allocation3] sm:$0xff]
        %v722 = vld [vmem:[#allocation3 + $0x8] sm:$0xff]
        %vm723 = vcmask 261120
        %v724 = vsel %vm723, %v719, -inf
        %725 = vmax.xlane.f32.xlu0 %v724
        %v726 = vpop.xlane.xlu0 %725
        %v727 = vsel %vm723, %v720, -inf
        %728 = vmax.xlane.f32.xlu0 %v727
        %v729 = vpop.xlane.xlu0 %728
        %v730 = vmax.f32 %v721, %v726
        %v731 = vmax.f32 %v722, %v729
        %v732 = vsub.f32 %v721, %v730
        %v733 = vsub.f32 %v722, %v731
        %v734 = vmul.f32 %v732, 1.442695
        %v735 = vpow.pop %v734
        %v736 = vmul.f32 %v733, 1.442695
        %v737 = vpow.pop %v736
        %739 = vset.pattern.permute.xlu0 0
        %740 = vperm.xlu0 %739, %v730
        %v741 = vpop.permute.xlu0 %740
        %744 = vset.pattern.permute.xlu0 0
        %745 = vperm.xlu0 %744, %v731
        %v746 = vpop.permute.xlu0 %745
        %v748 = vsub.f32 %v719, %v741
        %v749 = vsub.f32 %v720, %v746
        %v750 = vmul.f32 %v748, 1.442695
        %v751 = vpow.pop %v750
        %v752 = vmul.f32 %v749, 1.442695
        %v753 = vpow.pop %v752
        %v754 = vld [vmem:[#allocation4] sm:$0xff]
        %v755 = vld [vmem:[#allocation4 + $0x8] sm:$0xff]
        %v756 = vmul.f32 %v735, %v754
        %v757 = vmul.f32 %v737, %v755
        %v758 = vsel %vm723, %v751, 0.0
        %759 = vadd.xlane.f32.xlu0 %v758
        %v760 = vpop.xlane.xlu0 %759
        %v761 = vsel %vm723, %v753, 0.0
        %762 = vadd.xlane.f32.xlu0 %v761
        %v763 = vpop.xlane.xlu0 %762
        %v764 = vadd.f32 %v756, %v760
        %v765 = vadd.f32 %v757, %v763
        %vm766 = vcmask 7168
        %767 = vst.msk [vmem:[#allocation4] sm:$0xff] %vm766, %v764
        %768 = vst.msk [vmem:[#allocation4 + $0x8] sm:$0xff] %vm766, %v765
        %v769 = vld [vmem:[#allocation5] sm:$0xff]
        %v770 = vld [vmem:[#allocation5 + $0x8] sm:$0xff]
        %772 = vset.pattern.permute.xlu0 0
        %773 = vperm.xlu0 %772, %v735
        %v774 = vpop.permute.xlu0 %773
        %777 = vset.pattern.permute.xlu0 0
        %778 = vperm.xlu0 %777, %v737
        %v779 = vpop.permute.xlu0 %778
        %v781 = vmul.f32 %v774, %v769
        %v782 = vmul.f32 %v779, %v770
        %v783 = vpack.c.bf16 %v753, %v751
        %v785 = vsel %vm723, %v783, 0
        %787 = vmatpush.bf16.msra.mxu0 0
        %788 = vmatpush.bf16.msra.mxu0 0
        %789 = vmatpush.bf16.msra.mxu0 0
        %790 = vmatpush.bf16.msra.mxu0 0
        %791 = vmatpush.bf16.msra.mxu0 0
        %792 = vmatpush.bf16.msra.mxu0 0
        %793 = vmatpush.bf16.msra.mxu0 %v631
        %794 = vmatpush.bf16.msra.mxu0 %v630
        %795 = vmatmul.bf16.gmra.mxu0 %v785
        %v796 = vpop.f32.mrf.mxu0
        %v797 = vadd.f32 0.0, %v796
        %v798 = vpop.f32.mrf.mxu0
        %v799 = vadd.f32 0.0, %v798
        %800 = vdwg.mxu0
        %v801 = vadd.f32 %v781, %v797
        %v802 = vadd.f32 %v782, %v799
        %803 = vst [vmem:[#allocation5] sm:$0xff] %v801
        %804 = vst [vmem:[#allocation5 + $0x8] sm:$0xff] %v802
        %805 = vst.msk [vmem:[#allocation3] sm:$0xff] %vm766, %v730
        %806 = vst.msk [vmem:[#allocation3 + $0x8] sm:$0xff] %vm766, %v731
      $region76: #{model_forward.12} parent=59 // pred_fallthru
        _
      // Predicated region
      $region77: #{model_forward.12} parent=59 // pred_check
        _
      $region78: #{model_forward.12} parent=59 // pred_check_branch
        %808 = sbr.rel (%p565) target = $region80
      $region79: #{model_forward.12} parent=59 // pred_region
        %v809 = vld [vmem:[%s447] sm:$0xff]
        %v810 = vld [vmem:[%s447 + $0x8] sm:$0xff]
        %v811 = vld [vmem:[#allocation5] sm:$0xff]
        %v812 = vld [vmem:[#allocation5 + $0x8] sm:$0xff]
        %v813 = vld [vmem:[#allocation4] sm:$0xff]
        %v814 = vld [vmem:[#allocation4 + $0x8] sm:$0xff]
        %v815 = vrcp.pop %v813
        %v816 = vrcp.pop %v814
        %818 = vset.pattern.permute.xlu0 0
        %819 = vperm.xlu0 %818, %v815
        %v820 = vpop.permute.xlu0 %819
        %823 = vset.pattern.permute.xlu0 0
        %824 = vperm.xlu0 %823, %v816
        %v825 = vpop.permute.xlu0 %824
        %v827 = vmul.f32 %v811, %v820
        %v828 = vmul.f32 %v812, %v825
        %v829 = vsub.f32 %v827, %v809
        %v830 = vsub.f32 %v828, %v810
        %v831 = vpack.c.bf16 %v830, %v829
        %v832 = vld [vmem:[%s6] sm:$0xff]
        %v833 = vld [vmem:[%s6 + $0x8] sm:$0xff]
        %v834 = vld [vmem:[%s6 + $0x10] sm:$0xff]
        %v835 = vld [vmem:[%s6 + $0x18] sm:$0xff]
        %v836 = vld [vmem:[%s6 + $0x20] sm:$0xff]
        %v837 = vld [vmem:[%s6 + $0x28] sm:$0xff]
        %v838 = vld [vmem:[%s6 + $0x30] sm:$0xff]
        %v839 = vld [vmem:[%s6 + $0x38] sm:$0xff]
        %v840 = vld [vmem:[%s6 + $0x40] sm:$0xff]
        %v841 = vld [vmem:[%s6 + $0x48] sm:$0xff]
        %v842 = vld [vmem:[%s6 + $0x50] sm:$0xff]
        %v843 = vld [vmem:[%s6 + $0x58] sm:$0xff]
        %v844 = vld [vmem:[%s6 + $0x60] sm:$0xff]
        %v845 = vld [vmem:[%s6 + $0x68] sm:$0xff]
        %v846 = vld [vmem:[%s6 + $0x70] sm:$0xff]
        %v847 = vld [vmem:[%s6 + $0x78] sm:$0xff]
        %v848 = vld [vmem:[%s6 + $0x80] sm:$0xff]
        %v849 = vld [vmem:[%s6 + $0x88] sm:$0xff]
        %v850 = vld [vmem:[%s6 + $0x90] sm:$0xff]
        %v851 = vld [vmem:[%s6 + $0x98] sm:$0xff]
        %v852 = vld [vmem:[%s6 + $0xa0] sm:$0xff]
        %v853 = vld [vmem:[%s6 + $0xa8] sm:$0xff]
        %v854 = vld [vmem:[%s6 + $0xb0] sm:$0xff]
        %v855 = vld [vmem:[%s6 + $0xb8] sm:$0xff]
        %v856 = vld [vmem:[%s6 + $0xc0] sm:$0xff]
        %v857 = vld [vmem:[%s6 + $0xc8] sm:$0xff]
        %v858 = vld [vmem:[%s6 + $0xd0] sm:$0xff]
        %v859 = vld [vmem:[%s6 + $0xd8] sm:$0xff]
        %v860 = vld [vmem:[%s6 + $0xe0] sm:$0xff]
        %v861 = vld [vmem:[%s6 + $0xe8] sm:$0xff]
        %v862 = vld [vmem:[%s6 + $0xf0] sm:$0xff]
        %v863 = vld [vmem:[%s6 + $0xf8] sm:$0xff]
        %v864 = vpack.c.bf16 %v834, %v832
        %v865 = vpack.c.bf16 %v835, %v833
        %v866 = vpack.c.bf16 %v838, %v836
        %v867 = vpack.c.bf16 %v839, %v837
        %v868 = vpack.c.bf16 %v842, %v840
        %v869 = vpack.c.bf16 %v843, %v841
        %v870 = vpack.c.bf16 %v846, %v844
        %v871 = vpack.c.bf16 %v847, %v845
        %v872 = vpack.c.bf16 %v850, %v848
        %v873 = vpack.c.bf16 %v851, %v849
        %v874 = vpack.c.bf16 %v854, %v852
        %v875 = vpack.c.bf16 %v855, %v853
        %v876 = vpack.c.bf16 %v858, %v856
        %v877 = vpack.c.bf16 %v859, %v857
        %v878 = vpack.c.bf16 %v862, %v860
        %v879 = vpack.c.bf16 %v863, %v861
        %v880 = vpack.c.bf16 %v810, %v809
        %v881 = vld [vmem:[%s7] sm:$0xff]
        %v882 = vld [vmem:[%s7 + $0x8] sm:$0xff]
        %v883 = vld [vmem:[%s7 + $0x10] sm:$0xff]
        %v884 = vld [vmem:[%s7 + $0x18] sm:$0xff]
        %v885 = vld [vmem:[%s7 + $0x20] sm:$0xff]
        %v886 = vld [vmem:[%s7 + $0x28] sm:$0xff]
        %v887 = vld [vmem:[%s7 + $0x30] sm:$0xff]
        %v888 = vld [vmem:[%s7 + $0x38] sm:$0xff]
        %v889 = vld [vmem:[%s7 + $0x40] sm:$0xff]
        %v890 = vld [vmem:[%s7 + $0x48] sm:$0xff]
        %v891 = vld [vmem:[%s7 + $0x50] sm:$0xff]
        %v892 = vld [vmem:[%s7 + $0x58] sm:$0xff]
        %v893 = vld [vmem:[%s7 + $0x60] sm:$0xff]
        %v894 = vld [vmem:[%s7 + $0x68] sm:$0xff]
        %v895 = vld [vmem:[%s7 + $0x70] sm:$0xff]
        %v896 = vld [vmem:[%s7 + $0x78] sm:$0xff]
        %v897 = vld [vmem:[%s7 + $0x80] sm:$0xff]
        %v898 = vld [vmem:[%s7 + $0x88] sm:$0xff]
        %v899 = vld [vmem:[%s7 + $0x90] sm:$0xff]
        %v900 = vld [vmem:[%s7 + $0x98] sm:$0xff]
        %v901 = vld [vmem:[%s7 + $0xa0] sm:$0xff]
        %v902 = vld [vmem:[%s7 + $0xa8] sm:$0xff]
        %v903 = vld [vmem:[%s7 + $0xb0] sm:$0xff]
        %v904 = vld [vmem:[%s7 + $0xb8] sm:$0xff]
        %v905 = vld [vmem:[%s7 + $0xc0] sm:$0xff]
        %v906 = vld [vmem:[%s7 + $0xc8] sm:$0xff]
        %v907 = vld [vmem:[%s7 + $0xd0] sm:$0xff]
        %v908 = vld [vmem:[%s7 + $0xd8] sm:$0xff]
        %v909 = vld [vmem:[%s7 + $0xe0] sm:$0xff]
        %v910 = vld [vmem:[%s7 + $0xe8] sm:$0xff]
        %v911 = vld [vmem:[%s7 + $0xf0] sm:$0xff]
        %v912 = vld [vmem:[%s7 + $0xf8] sm:$0xff]
        %v913 = vpack.c.bf16 %v883, %v881
        %v914 = vpack.c.bf16 %v884, %v882
        %v915 = vpack.c.bf16 %v887, %v885
        %v916 = vpack.c.bf16 %v888, %v886
        %v917 = vpack.c.bf16 %v891, %v889
        %v918 = vpack.c.bf16 %v892, %v890
        %v919 = vpack.c.bf16 %v895, %v893
        %v920 = vpack.c.bf16 %v896, %v894
        %v921 = vpack.c.bf16 %v899, %v897
        %v922 = vpack.c.bf16 %v900, %v898
        %v923 = vpack.c.bf16 %v903, %v901
        %v924 = vpack.c.bf16 %v904, %v902
        %v925 = vpack.c.bf16 %v907, %v905
        %v926 = vpack.c.bf16 %v908, %v906
        %v927 = vpack.c.bf16 %v911, %v909
        %v928 = vpack.c.bf16 %v912, %v910
        %929 = vmatpush.bf16.msra.mxu0 %v927
        %930 = vmatpush.bf16.msra.mxu0 %v925
        %931 = vmatpush.bf16.msra.mxu0 %v923
        %932 = vmatpush.bf16.msra.mxu0 %v921
        %933 = vmatpush.bf16.msra.mxu0 %v919
        %934 = vmatpush.bf16.msra.mxu0 %v917
        %935 = vmatpush.bf16.msra.mxu0 %v915
        %936 = vmatpush.bf16.msra.mxu0 %v913
        %937 = vmatmul.bf16.gmra.mxu0 %v880
        %v938 = vpop.f32.mrf.mxu0
        %v939 = vadd.f32 0.0, %v938
        %v940 = vpop.f32.mrf.mxu0
        %v941 = vadd.f32 0.0, %v940
        %942 = vdwg.mxu0
        %943 = vmatpush.bf16.msra.mxu0 %v928
        %944 = vmatpush.bf16.msra.mxu0 %v926
        %945 = vmatpush.bf16.msra.mxu0 %v924
        %946 = vmatpush.bf16.msra.mxu0 %v922
        %947 = vmatpush.bf16.msra.mxu0 %v920
        %948 = vmatpush.bf16.msra.mxu0 %v918
        %949 = vmatpush.bf16.msra.mxu0 %v916
        %950 = vmatpush.bf16.msra.mxu0 %v914
        %951 = vmatmul.bf16.gmra.mxu0 %v880
        %v952 = vpop.f32.mrf.mxu0
        %v953 = vadd.f32 0.0, %v952
        %v954 = vpop.f32.mrf.mxu0
        %v955 = vadd.f32 0.0, %v954
        %956 = vdwg.mxu0
        %957 = vmatpush.bf16.msra.mxu0 %v878
        %958 = vmatpush.bf16.msra.mxu0 %v876
        %959 = vmatpush.bf16.msra.mxu0 %v874
        %960 = vmatpush.bf16.msra.mxu0 %v872
        %961 = vmatpush.bf16.msra.mxu0 %v870
        %962 = vmatpush.bf16.msra.mxu0 %v868
        %963 = vmatpush.bf16.msra.mxu0 %v866
        %964 = vmatpush.bf16.msra.mxu0 %v864
        %965 = vmatmul.bf16.gmra.mxu0 %v831
        %v966 = vpop.f32.mrf.mxu0
        %v967 = vadd.f32 %v939, %v966
        %v968 = vpop.f32.mrf.mxu0
        %v969 = vadd.f32 %v941, %v968
        %970 = vdwg.mxu0
        %971 = vmatpush.bf16.msra.mxu0 %v879
        %972 = vmatpush.bf16.msra.mxu0 %v877
        %973 = vmatpush.bf16.msra.mxu0 %v875
        %974 = vmatpush.bf16.msra.mxu0 %v873
        %975 = vmatpush.bf16.msra.mxu0 %v871
        %976 = vmatpush.bf16.msra.mxu0 %v869
        %977 = vmatpush.bf16.msra.mxu0 %v867
        %978 = vmatpush.bf16.msra.mxu0 %v865
        %979 = vmatmul.bf16.gmra.mxu0 %v831
        %v980 = vpop.f32.mrf.mxu0
        %v981 = vadd.f32 %v953, %v980
        %v982 = vpop.f32.mrf.mxu0
        %v983 = vadd.f32 %v955, %v982
        %984 = vdwg.mxu0
        %v985 = vld [vmem:[%s8] sm:$0x3]
        %v987 = vperm.slane %v985, 0
        %v988 = vperm.slane %v985, 1
        %v991 = vmul.f32 %v967, %v987
        %v992 = vmul.f32 %v981, %v988
        %v993 = vmul.f32 %v969, %v987
        %v994 = vmul.f32 %v983, %v988
        %v995 = vld [vmem:[%s9] sm:$0x3]
        %v997 = vperm.slane %v995, 0
        %v998 = vperm.slane %v995, 1
        %v1001 = vadd.f32 %v991, %v997
        %v1002 = vadd.f32 %v992, %v998
        %v1003 = vadd.f32 %v993, %v997
        %v1004 = vadd.f32 %v994, %v998
        %v1005 = vmul.f32 %v1001, 0.5
        %v1006 = vmul.f32 %v1002, 0.5
        %v1007 = vmul.f32 %v1003, 0.5
        %v1008 = vmul.f32 %v1004, 0.5
        %v1009 = vmul.f32 %v1001, 0.044715
        %v1010 = vmul.f32 %v1002, 0.044715
        %v1011 = vmul.f32 %v1003, 0.044715
        %v1012 = vmul.f32 %v1004, 0.044715
        %v1013 = vmul.f32 %v1009, %v1001
        %v1014 = vmul.f32 %v1010, %v1002
        %v1015 = vmul.f32 %v1011, %v1003
        %v1016 = vmul.f32 %v1012, %v1004
        %v1017 = vmul.f32 %v1013, %v1001
        %v1018 = vmul.f32 %v1014, %v1002
        %v1019 = vmul.f32 %v1015, %v1003
        %v1020 = vmul.f32 %v1016, %v1004
        %v1021 = vadd.f32 %v1001, %v1017
        %v1022 = vadd.f32 %v1002, %v1018
        %v1023 = vadd.f32 %v1003, %v1019
        %v1024 = vadd.f32 %v1004, %v1020
        %v1025 = vmul.f32 %v1021, 0.7978846
        %v1026 = vmul.f32 %v1022, 0.7978846
        %v1027 = vmul.f32 %v1023, 0.7978846
        %v1028 = vmul.f32 %v1024, 0.7978846
        %v1029 = vtanh.pop %v1025
        %v1030 = vtanh.pop %v1026
        %v1031 = vtanh.pop %v1027
        %v1032 = vtanh.pop %v1028
        %v1033 = vadd.f32 %v1029, 1.0
        %v1034 = vadd.f32 %v1030, 1.0
        %v1035 = vadd.f32 %v1031, 1.0
        %v1036 = vadd.f32 %v1032, 1.0
        %v1037 = vmul.f32 %v1005, %v1033
        %v1038 = vmul.f32 %v1006, %v1034
        %v1039 = vmul.f32 %v1007, %v1035
        %v1040 = vmul.f32 %v1008, %v1036
        %1041 = vst [vmem:[%s462] sm:$0xff] %v1037
        %1042 = vst [vmem:[%s462 + $0x8] sm:$0xff] %v1038
        %1043 = vst [vmem:[%s462 + $0x10] sm:$0xff] %v1039
        %1044 = vst [vmem:[%s462 + $0x18] sm:$0xff] %v1040
      $region80: #{model_forward.12} parent=59 // pred_fallthru
        _
      %p1045 = scmp.lt.s32.totalorder %s26, 1
      %s1046 = scalar_select %p1045, %s26, 1
      %s1047 = smul.addr %s1046, 4
      %s1048 = smul.addr %s1047, 8
      %s1049 = scalar_lea.vmem %s10, %s1048
      // Predicated region
      $region81: #{model_forward.12} parent=59 // pred_check
        %p1050 = pneg %p292
      $region82: #{model_forward.12} parent=59 // pred_check_branch
        %1052 = sbr.rel (%p1050) target = $region84
      $region83: #{model_forward.12} parent=59 // pred_region
        _
      $region84: #{model_forward.12} parent=59 // pred_fallthru
        _
    $region60: #{model_forward.12} parent=5 // pred_fallthru
      _
    %p1053 = scmp.le.s32.totalorder 2, %s16
    // Predicated region
    $region85: #{model_forward.12} parent=5 // pred_check
      %p1054 = pneg %p1053
    $region86: #{model_forward.12} parent=5 // pred_check_branch
      %1056 = sbr.rel (%p1054) target = $region88
    $region87: #{model_forward.12} parent=5 // pred_region
      %s1057 = ssub.s32 %s16, 2
      // Predicated region
      $region89: #{model_forward.12} parent=87 // pred_check
        %p1058 = pneg %p298
      $region90: #{model_forward.12} parent=87 // pred_check_branch
        %1060 = sbr.rel (%p1058) target = $region92
      $region91: #{model_forward.12} parent=87 // pred_region
        %p1061 = scmp.lt.s32.totalorder %s29, 1
        %s1062 = scalar_select %p1061, %s29, 1
        %s1063 = smul.addr %s1062, 4
        %s1064 = smul.addr %s1063, 8
        %s1065 = scalar_lea.vmem %s10, %s1064
      $region92: #{model_forward.12} parent=87 // pred_fallthru
        _
    $region88: #{model_forward.12} parent=5 // pred_fallthru
      _
  $region6: #{model_forward.12} parent=0 // loop_footer
    %s20 = sadd.s32 1, %s16
  $region7: #{model_forward.12} parent=0 // loop_footer_branch
    %15 = sbr.rel target = $region3
  $region8: #{model_forward.12} parent=0 // loop_exit
    _

// kernel: model_forward.15
$region0: #{model_forward.15}
  #allocation0 [shape = 'u32[]', space=smem, size = 0x4, offset = 0x4, fixed_abs, tag = 'smem constant byte address 0x4 - core index']
  #allocation1 [shape = 'u32[72,128]{1,0:T(1,128)}', space=vmem, size = 0x9000, scoped, tag = 'internal scratch']
  %s0 = inlined_call_operand.vmem [shape: f32[2,8,128], index: 0, kind: input, shape index: {}]
  %s1 = inlined_call_operand.vmem [shape: f32[2,1,128], index: 1, kind: output, shape index: {0}]
  %s2 = inlined_call_operand.vmem [shape: f32[2,1,128], index: 2, kind: output, shape index: {1}]
  %3 = xla_tuple %s1, %s2
  %s4 = sld [smem:[#allocation0]]
  $region45: #{model_forward.15} parent=0
    _
  %s6 = ssub.s32 1, %s4
  %s7 = scalar_select 0, %s6, %s4
  loop: start=0, step=1, limit=4
  $region2: #{model_forward.15} parent=0 // loop_pre_header
    _
  $region3: #{model_forward.15} parent=0 // loop_header
    %s9 = sphi 0, %s13
    %p10 = scmp.ge.s32.totalorder %s9, 4
    %s19 = sphi 0, %s21
    %s22 = sphi 0, %s19
    %s23 = sphi 0, %s22
    %s39 = sphi 0, %s23
    %s45 = sphi 0, %s47
    %s48 = sphi 0, %s45
    %s49 = sphi 0, %s48
    %s65 = sphi 0, %s49
    %s71 = sphi 0, %s73
    %s74 = sphi 0, %s71
    %s75 = sphi 0, %s74
    %s91 = sphi 0, %s75
  $region4: #{model_forward.15} parent=0 // loop_header_branch
    %12 = sbr.rel (%p10) target = $region8
  $region5: #{model_forward.15} parent=0 // loop_body
    %s14 = ssub.s32 %s9, 1
    %s15 = ssub.s32 %s9, 2
    %s16 = sadd.s32 %s9, 1
    %s17 = ssub.s32 %s9, %s16
    %p18 = scmp.eq.s32.totalorder %s17, 0
    %s20 = sadd.s32 %s19, 1
    %s21 = scalar_select %p18, %s19, %s20
    %p24 = pneg %p18
    %p25 = scmp.eq.s32.totalorder %s9, 1
    %p26 = por %p24, %p25
    %p27 = scmp.ne.s32.totalorder %s19, %s22
    %p28 = scmp.eq.s32.totalorder %s9, 0
    %p29 = por %p27, %p28
    %p30 = scmp.ne.s32.totalorder %s19, %s22
    %p31 = scmp.eq.s32.totalorder %s14, 1
    %p32 = por %p30, %p31
    %p33 = scmp.ne.s32.totalorder %s22, %s23
    %p34 = scmp.eq.s32.totalorder %s14, 0
    %p35 = por %p33, %p34
    %p36 = scmp.ne.s32.totalorder %s22, %s23
    %p37 = scmp.eq.s32.totalorder %s15, 1
    %p38 = por %p36, %p37
    %p40 = scmp.ne.s32.totalorder %s23, %s39
    %p41 = scmp.eq.s32.totalorder %s15, 0
    %p42 = por %p40, %p41
    %s43 = ssub.s32 %s9, %s16
    %p44 = scmp.eq.s32.totalorder %s43, 0
    %s46 = sadd.s32 %s45, 1
    %s47 = scalar_select %p44, %s45, %s46
    %p50 = pneg %p44
    %p51 = scmp.eq.s32.totalorder %s9, 1
    %p52 = por %p50, %p51
    %p53 = scmp.ne.s32.totalorder %s45, %s48
    %p54 = scmp.eq.s32.totalorder %s9, 0
    %p55 = por %p53, %p54
    %p56 = scmp.ne.s32.totalorder %s45, %s48
    %p57 = scmp.eq.s32.totalorder %s14, 1
    %p58 = por %p56, %p57
    %p59 = scmp.ne.s32.totalorder %s48, %s49
    %p60 = scmp.eq.s32.totalorder %s14, 0
    %p61 = por %p59, %p60
    %p62 = scmp.ne.s32.totalorder %s48, %s49
    %p63 = scmp.eq.s32.totalorder %s15, 1
    %p64 = por %p62, %p63
    %p66 = scmp.ne.s32.totalorder %s49, %s65
    %p67 = scmp.eq.s32.totalorder %s15, 0
    %p68 = por %p66, %p67
    %s69 = ssub.s32 %s9, %s16
    %p70 = scmp.eq.s32.totalorder %s69, 0
    %s72 = sadd.s32 %s71, 1
    %s73 = scalar_select %p70, %s71, %s72
    %p76 = pneg %p70
    %p77 = scmp.eq.s32.totalorder %s9, 1
    %p78 = por %p76, %p77
    %p79 = scmp.ne.s32.totalorder %s71, %s74
    %p80 = scmp.eq.s32.totalorder %s9, 0
    %p81 = por %p79, %p80
    %p82 = scmp.ne.s32.totalorder %s71, %s74
    %p83 = scmp.eq.s32.totalorder %s14, 1
    %p84 = por %p82, %p83
    %p85 = scmp.ne.s32.totalorder %s74, %s75
    %p86 = scmp.eq.s32.totalorder %s14, 0
    %p87 = por %p85, %p86
    %p88 = scmp.ne.s32.totalorder %s74, %s75
    %p89 = scmp.eq.s32.totalorder %s15, 1
    %p90 = por %p88, %p89
    %p92 = scmp.ne.s32.totalorder %s75, %s91
    %p93 = scmp.eq.s32.totalorder %s15, 0
    %p94 = por %p92, %p93
    %p95 = scmp.le.s32.totalorder 1, %s9
    %p96 = scmp.lt.s32.totalorder %s9, 3
    %p97 = pnand %p95, %p96
    %p98 = pneg %p97
    // Predicated region
    $region9: #{model_forward.15} parent=5 // pred_check
      _
    $region10: #{model_forward.15} parent=5 // pred_check_branch
      %100 = sbr.rel (%p97) target = $region12
    $region11: #{model_forward.15} parent=5 // pred_region
      %s101 = ssub.s32 %s9, 1
    $region12: #{model_forward.15} parent=5 // pred_fallthru
      _
    %p102 = scmp.lt.s32.totalorder %s9, 2
    // Predicated region
    $region13: #{model_forward.15} parent=5 // pred_check
      %p103 = pneg %p102
    $region14: #{model_forward.15} parent=5 // pred_check_branch
      %105 = sbr.rel (%p103) target = $region16
    $region15: #{model_forward.15} parent=5 // pred_region
      // Predicated region
      $region17: #{model_forward.15} parent=15 // pred_check
        %p106 = pneg %p29
      $region18: #{model_forward.15} parent=15 // pred_check_branch
        %108 = sbr.rel (%p106) target = $region20
      $region19: #{model_forward.15} parent=15 // pred_region
        %p109 = scmp.lt.s32.totalorder %s9, 1
        %s110 = scalar_select %p109, %s9, 1
        %s111 = smul.addr %s110, 8
        %s112 = scalar_lea.vmem %s0, %s111
      $region20: #{model_forward.15} parent=15 // pred_fallthru
        _
    $region16: #{model_forward.15} parent=5 // pred_fallthru
      _
    %p113 = scmp.le.s32.totalorder 1, %s9
    %p114 = scmp.lt.s32.totalorder %s9, 3
    %p115 = pnand %p113, %p114
    %p116 = pneg %p115
    // Predicated region
    $region21: #{model_forward.15} parent=5 // pred_check
      _
    $region22: #{model_forward.15} parent=5 // pred_check_branch
      %118 = sbr.rel (%p115) target = $region24
    $region23: #{model_forward.15} parent=5 // pred_region
      %s119 = ssub.s32 %s9, 1
      %p120 = scmp.lt.s32.totalorder %s14, 1
      %s121 = scalar_select %p120, %s14, 1
      %s122 = smul.addr %s121, 8
      %s123 = scalar_lea.vmem %s0, %s122
      %p124 = pneg %p35
      %p125 = pneg %p32
      %p126 = pneg %p61
      %p127 = pneg %p58
      %p128 = scmp.lt.s32.totalorder %s14, 1
      %s129 = scalar_select %p128, %s14, 1
      %s130 = scalar_lea.vmem %s1, %s129
      %p131 = pneg %p87
      %p132 = pneg %p84
      %p133 = scmp.lt.s32.totalorder %s14, 1
      %s134 = scalar_select %p133, %s14, 1
      %s135 = scalar_lea.vmem %s2, %s134
      %p136 = scmp.lt.s32.totalorder %s14, 1
      %s137 = scalar_select %p136, %s14, 1
      %s138 = smul.addr %s137, 8
      %s139 = scalar_lea.vmem %s0, %s138
      %p140 = scmp.lt.s32.totalorder %s14, 1
      %s141 = scalar_select %p140, %s14, 1
      %s142 = scalar_lea.vmem %s1, %s141
      %p143 = scmp.lt.s32.totalorder %s14, 1
      %s144 = scalar_select %p143, %s14, 1
      %s145 = scalar_lea.vmem %s2, %s144
      %v146 = vld [vmem:[%s139] sm:$0xff]
      %v147 = vrot.slane %v146, 4
      %v148 = vmax.f32 %v146, %v147
      %v149 = vrot.slane %v148, 2
      %v150 = vmax.f32 %v148, %v149
      %v151 = vrot.slane %v150, 1
      %v152 = vmax.f32 %v150, %v151
      %153 = vst [vmem:[%s142] sm:$0x1] %v152
      %v154 = vrot.slane %v146, 4
      %v155 = vadd.f32 %v146, %v154
      %v156 = vrot.slane %v155, 2
      %v157 = vadd.f32 %v155, %v156
      %v158 = vrot.slane %v157, 1
      %v159 = vadd.f32 %v157, %v158
      %v160 = vrcp.pop 8.0
      %v161 = vmul.f32 8.0, %v160
      %v162 = vsub.f32 1.0, %v161
      %v163 = vmul.f32 %v160, %v162
      %v164 = vadd.f32 %v160, %v163
      %vm165 = vweird.f32 %v160
      %v166 = vsel %vm165, %v160, %v164
      %v167 = vmul.f32 %v159, %v166
      %168 = vst [vmem:[%s145] sm:$0x1] %v167
      %p169 = scmp.lt.s32.totalorder %s14, 1
      %s170 = scalar_select %p169, %s14, 1
      %s171 = scalar_lea.vmem %s1, %s170
      %p172 = scmp.lt.s32.totalorder %s14, 1
      %s173 = scalar_select %p172, %s14, 1
      %s174 = scalar_lea.vmem %s2, %s173
      // Predicated region
      $region25: #{model_forward.15} parent=23 // pred_check
        %p175 = pneg %p58
      $region26: #{model_forward.15} parent=23 // pred_check_branch
        %177 = sbr.rel (%p175) target = $region28
      $region27: #{model_forward.15} parent=23 // pred_region
        _
      $region28: #{model_forward.15} parent=23 // pred_fallthru
        _
      // Predicated region
      $region29: #{model_forward.15} parent=23 // pred_check
        %p178 = pneg %p84
      $region30: #{model_forward.15} parent=23 // pred_check_branch
        %180 = sbr.rel (%p178) target = $region32
      $region31: #{model_forward.15} parent=23 // pred_region
        _
      $region32: #{model_forward.15} parent=23 // pred_fallthru
        _
    $region24: #{model_forward.15} parent=5 // pred_fallthru
      _
    %p181 = scmp.le.s32.totalorder 2, %s9
    // Predicated region
    $region33: #{model_forward.15} parent=5 // pred_check
      %p182 = pneg %p181
    $region34: #{model_forward.15} parent=5 // pred_check_branch
      %184 = sbr.rel (%p182) target = $region36
    $region35: #{model_forward.15} parent=5 // pred_region
      %s185 = ssub.s32 %s9, 2
      // Predicated region
      $region37: #{model_forward.15} parent=35 // pred_check
        %p186 = pneg %p64
      $region38: #{model_forward.15} parent=35 // pred_check_branch
        %188 = sbr.rel (%p186) target = $region40
      $region39: #{model_forward.15} parent=35 // pred_region
        %p189 = scmp.lt.s32.totalorder %s15, 1
        %s190 = scalar_select %p189, %s15, 1
        %s191 = scalar_lea.vmem %s1, %s190
      $region40: #{model_forward.15} parent=35 // pred_fallthru
        _
      // Predicated region
      $region41: #{model_forward.15} parent=35 // pred_check
        %p192 = pneg %p90
      $region42: #{model_forward.15} parent=35 // pred_check_branch
        %194 = sbr.rel (%p192) target = $region44
      $region43: #{model_forward.15} parent=35 // pred_region
        %p195 = scmp.lt.s32.totalorder %s15, 1
        %s196 = scalar_select %p195, %s15, 1
        %s197 = scalar_lea.vmem %s2, %s196
      $region44: #{model_forward.15} parent=35 // pred_fallthru
        _
    $region36: #{model_forward.15} parent=5 // pred_fallthru
      _
  $region6: #{model_forward.15} parent=0 // loop_footer
    %s13 = sadd.s32 1, %s9
  $region7: #{model_forward.15} parent=0 // loop_footer_branch
    %8 = sbr.rel target = $region3
  $region8: #{model_forward.15} parent=0 // loop_exit
    _

// kernel: model_forward.14
$region0: #{model_forward.14}
  #allocation0 [shape = 'u32[]', space=smem, size = 0x4, offset = 0x4, fixed_abs, tag = 'smem constant byte address 0x4 - core index']
  #allocation1 [shape = 'u32[72,128]{1,0:T(1,128)}', space=vmem, size = 0x9000, scoped, tag = 'internal scratch']
  %s0 = inlined_call_operand.vmem [shape: f32[16,512], index: 0, kind: input, shape index: {}]
  %s1 = inlined_call_operand.vmem [shape: f32[512,128], index: 1, kind: input, shape index: {}]
  %s2 = inlined_call_operand.vmem [shape: f32[1,128], index: 2, kind: input, shape index: {}]
  %s3 = inlined_call_operand.vmem [shape: f32[1,128], index: 3, kind: input, shape index: {}]
  %s4 = inlined_call_operand.vmem [shape: f32[16,128], index: 4, kind: output, shape index: {}]
  %s5 = sld [smem:[#allocation0]]
  $region26: #{model_forward.14} parent=0
    _
  %s7 = ssub.s32 1, %s5
  %s8 = scalar_select 0, %s7, %s5
  // Predicated region
  $region2: #{model_forward.14} parent=0 // pred_check
    _
  $region3: #{model_forward.14} parent=0 // pred_check_branch
    %10 = sbr.rel (0) target = $region5
  $region4: #{model_forward.14} parent=0 // pred_region
    _
  $region5: #{model_forward.14} parent=0 // pred_fallthru
    _
  // Predicated region
  $region6: #{model_forward.14} parent=0 // pred_check
    _
  $region7: #{model_forward.14} parent=0 // pred_check_branch
    %12 = sbr.rel (0) target = $region9
  $region8: #{model_forward.14} parent=0 // pred_region
    _
  $region9: #{model_forward.14} parent=0 // pred_fallthru
    _
  // Predicated region
  $region10: #{model_forward.14} parent=0 // pred_check
    _
  $region11: #{model_forward.14} parent=0 // pred_check_branch
    %14 = sbr.rel (0) target = $region13
  $region12: #{model_forward.14} parent=0 // pred_region
    _
  $region13: #{model_forward.14} parent=0 // pred_fallthru
    _
  // Predicated region
  $region14: #{model_forward.14} parent=0 // pred_check
    _
  $region15: #{model_forward.14} parent=0 // pred_check_branch
    %16 = sbr.rel (0) target = $region17
  $region16: #{model_forward.14} parent=0 // pred_region
    _
  $region17: #{model_forward.14} parent=0 // pred_fallthru
    _
  %v17 = vld [vmem:[%s0] sm:$0xff]
  %v18 = vld [vmem:[%s0 + $0x8] sm:$0xff]
  %v19 = vld [vmem:[%s0 + $0x10] sm:$0xff]
  %v20 = vld [vmem:[%s0 + $0x18] sm:$0xff]
  %v21 = vld [vmem:[%s0 + $0x20] sm:$0xff]
  %v22 = vld [vmem:[%s0 + $0x28] sm:$0xff]
  %v23 = vld [vmem:[%s0 + $0x30] sm:$0xff]
  %v24 = vld [vmem:[%s0 + $0x38] sm:$0xff]
  %v25 = vpack.c.bf16 %v21, %v17
  %v26 = vpack.c.bf16 %v22, %v18
  %v27 = vpack.c.bf16 %v23, %v19
  %v28 = vpack.c.bf16 %v24, %v20
  %v29 = vld [vmem:[%s1] sm:$0xff]
  %v30 = vld [vmem:[%s1 + $0x8] sm:$0xff]
  %v31 = vld [vmem:[%s1 + $0x10] sm:$0xff]
  %v32 = vld [vmem:[%s1 + $0x18] sm:$0xff]
  %v33 = vld [vmem:[%s1 + $0x20] sm:$0xff]
  %v34 = vld [vmem:[%s1 + $0x28] sm:$0xff]
  %v35 = vld [vmem:[%s1 + $0x30] sm:$0xff]
  %v36 = vld [vmem:[%s1 + $0x38] sm:$0xff]
  %v37 = vld [vmem:[%s1 + $0x40] sm:$0xff]
  %v38 = vld [vmem:[%s1 + $0x48] sm:$0xff]
  %v39 = vld [vmem:[%s1 + $0x50] sm:$0xff]
  %v40 = vld [vmem:[%s1 + $0x58] sm:$0xff]
  %v41 = vld [vmem:[%s1 + $0x60] sm:$0xff]
  %v42 = vld [vmem:[%s1 + $0x68] sm:$0xff]
  %v43 = vld [vmem:[%s1 + $0x70] sm:$0xff]
  %v44 = vld [vmem:[%s1 + $0x78] sm:$0xff]
  %v45 = vld [vmem:[%s1 + $0x80] sm:$0xff]
  %v46 = vld [vmem:[%s1 + $0x88] sm:$0xff]
  %v47 = vld [vmem:[%s1 + $0x90] sm:$0xff]
  %v48 = vld [vmem:[%s1 + $0x98] sm:$0xff]
  %v49 = vld [vmem:[%s1 + $0xa0] sm:$0xff]
  %v50 = vld [vmem:[%s1 + $0xa8] sm:$0xff]
  %v51 = vld [vmem:[%s1 + $0xb0] sm:$0xff]
  %v52 = vld [vmem:[%s1 + $0xb8] sm:$0xff]
  %v53 = vld [vmem:[%s1 + $0xc0] sm:$0xff]
  %v54 = vld [vmem:[%s1 + $0xc8] sm:$0xff]
  %v55 = vld [vmem:[%s1 + $0xd0] sm:$0xff]
  %v56 = vld [vmem:[%s1 + $0xd8] sm:$0xff]
  %v57 = vld [vmem:[%s1 + $0xe0] sm:$0xff]
  %v58 = vld [vmem:[%s1 + $0xe8] sm:$0xff]
  %v59 = vld [vmem:[%s1 + $0xf0] sm:$0xff]
  %v60 = vld [vmem:[%s1 + $0xf8] sm:$0xff]
  %v61 = vld [vmem:[%s1 + $0x100] sm:$0xff]
  %v62 = vld [vmem:[%s1 + $0x108] sm:$0xff]
  %v63 = vld [vmem:[%s1 + $0x110] sm:$0xff]
  %v64 = vld [vmem:[%s1 + $0x118] sm:$0xff]
  %v65 = vld [vmem:[%s1 + $0x120] sm:$0xff]
  %v66 = vld [vmem:[%s1 + $0x128] sm:$0xff]
  %v67 = vld [vmem:[%s1 + $0x130] sm:$0xff]
  %v68 = vld [vmem:[%s1 + $0x138] sm:$0xff]
  %v69 = vld [vmem:[%s1 + $0x140] sm:$0xff]
  %v70 = vld [vmem:[%s1 + $0x148] sm:$0xff]
  %v71 = vld [vmem:[%s1 + $0x150] sm:$0xff]
  %v72 = vld [vmem:[%s1 + $0x158] sm:$0xff]
  %v73 = vld [vmem:[%s1 + $0x160] sm:$0xff]
  %v74 = vld [vmem:[%s1 + $0x168] sm:$0xff]
  %v75 = vld [vmem:[%s1 + $0x170] sm:$0xff]
  %v76 = vld [vmem:[%s1 + $0x178] sm:$0xff]
  %v77 = vld [vmem:[%s1 + $0x180] sm:$0xff]
  %v78 = vld [vmem:[%s1 + $0x188] sm:$0xff]
  %v79 = vld [vmem:[%s1 + $0x190] sm:$0xff]
  %v80 = vld [vmem:[%s1 + $0x198] sm:$0xff]
  %v81 = vld [vmem:[%s1 + $0x1a0] sm:$0xff]
  %v82 = vld [vmem:[%s1 + $0x1a8] sm:$0xff]
  %v83 = vld [vmem:[%s1 + $0x1b0] sm:$0xff]
  %v84 = vld [vmem:[%s1 + $0x1b8] sm:$0xff]
  %v85 = vld [vmem:[%s1 + $0x1c0] sm:$0xff]
  %v86 = vld [vmem:[%s1 + $0x1c8] sm:$0xff]
  %v87 = vld [vmem:[%s1 + $0x1d0] sm:$0xff]
  %v88 = vld [vmem:[%s1 + $0x1d8] sm:$0xff]
  %v89 = vld [vmem:[%s1 + $0x1e0] sm:$0xff]
  %v90 = vld [vmem:[%s1 + $0x1e8] sm:$0xff]
  %v91 = vld [vmem:[%s1 + $0x1f0] sm:$0xff]
  %v92 = vld [vmem:[%s1 + $0x1f8] sm:$0xff]
  %v93 = vpack.c.bf16 %v30, %v29
  %v94 = vpack.c.bf16 %v32, %v31
  %v95 = vpack.c.bf16 %v34, %v33
  %v96 = vpack.c.bf16 %v36, %v35
  %v97 = vpack.c.bf16 %v38, %v37
  %v98 = vpack.c.bf16 %v40, %v39
  %v99 = vpack.c.bf16 %v42, %v41
  %v100 = vpack.c.bf16 %v44, %v43
  %v101 = vpack.c.bf16 %v46, %v45
  %v102 = vpack.c.bf16 %v48, %v47
  %v103 = vpack.c.bf16 %v50, %v49
  %v104 = vpack.c.bf16 %v52, %v51
  %v105 = vpack.c.bf16 %v54, %v53
  %v106 = vpack.c.bf16 %v56, %v55
  %v107 = vpack.c.bf16 %v58, %v57
  %v108 = vpack.c.bf16 %v60, %v59
  %v109 = vpack.c.bf16 %v62, %v61
  %v110 = vpack.c.bf16 %v64, %v63
  %v111 = vpack.c.bf16 %v66, %v65
  %v112 = vpack.c.bf16 %v68, %v67
  %v113 = vpack.c.bf16 %v70, %v69
  %v114 = vpack.c.bf16 %v72, %v71
  %v115 = vpack.c.bf16 %v74, %v73
  %v116 = vpack.c.bf16 %v76, %v75
  %v117 = vpack.c.bf16 %v78, %v77
  %v118 = vpack.c.bf16 %v80, %v79
  %v119 = vpack.c.bf16 %v82, %v81
  %v120 = vpack.c.bf16 %v84, %v83
  %v121 = vpack.c.bf16 %v86, %v85
  %v122 = vpack.c.bf16 %v88, %v87
  %v123 = vpack.c.bf16 %v90, %v89
  %v124 = vpack.c.bf16 %v92, %v91
  %125 = vmatpush.bf16.msra.mxu0 %v100
  %126 = vmatpush.bf16.msra.mxu0 %v99
  %127 = vmatpush.bf16.msra.mxu0 %v98
  %128 = vmatpush.bf16.msra.mxu0 %v97
  %129 = vmatpush.bf16.msra.mxu0 %v96
  %130 = vmatpush.bf16.msra.mxu0 %v95
  %131 = vmatpush.bf16.msra.mxu0 %v94
  %132 = vmatpush.bf16.msra.mxu0 %v93
  %133 = vmatmul.bf16.gmra.mxu0 %v25
  %v134 = vpop.f32.mrf.mxu0
  %v135 = vadd.f32 0.0, %v134
  %v136 = vpop.f32.mrf.mxu0
  %v137 = vadd.f32 0.0, %v136
  %138 = vdwg.mxu0
  %139 = vmatpush.bf16.msra.mxu0 %v108
  %140 = vmatpush.bf16.msra.mxu0 %v107
  %141 = vmatpush.bf16.msra.mxu0 %v106
  %142 = vmatpush.bf16.msra.mxu0 %v105
  %143 = vmatpush.bf16.msra.mxu0 %v104
  %144 = vmatpush.bf16.msra.mxu0 %v103
  %145 = vmatpush.bf16.msra.mxu0 %v102
  %146 = vmatpush.bf16.msra.mxu0 %v101
  %147 = vmatmul.bf16.gmra.mxu0 %v26
  %v148 = vpop.f32.mrf.mxu0
  %v149 = vadd.f32 %v135, %v148
  %v150 = vpop.f32.mrf.mxu0
  %v151 = vadd.f32 %v137, %v150
  %152 = vdwg.mxu0
  %153 = vmatpush.bf16.msra.mxu0 %v116
  %154 = vmatpush.bf16.msra.mxu0 %v115
  %155 = vmatpush.bf16.msra.mxu0 %v114
  %156 = vmatpush.bf16.msra.mxu0 %v113
  %157 = vmatpush.bf16.msra.mxu0 %v112
  %158 = vmatpush.bf16.msra.mxu0 %v111
  %159 = vmatpush.bf16.msra.mxu0 %v110
  %160 = vmatpush.bf16.msra.mxu0 %v109
  %161 = vmatmul.bf16.gmra.mxu0 %v27
  %v162 = vpop.f32.mrf.mxu0
  %v163 = vadd.f32 %v149, %v162
  %v164 = vpop.f32.mrf.mxu0
  %v165 = vadd.f32 %v151, %v164
  %166 = vdwg.mxu0
  %167 = vmatpush.bf16.msra.mxu0 %v124
  %168 = vmatpush.bf16.msra.mxu0 %v123
  %169 = vmatpush.bf16.msra.mxu0 %v122
  %170 = vmatpush.bf16.msra.mxu0 %v121
  %171 = vmatpush.bf16.msra.mxu0 %v120
  %172 = vmatpush.bf16.msra.mxu0 %v119
  %173 = vmatpush.bf16.msra.mxu0 %v118
  %174 = vmatpush.bf16.msra.mxu0 %v117
  %175 = vmatmul.bf16.gmra.mxu0 %v28
  %v176 = vpop.f32.mrf.mxu0
  %v177 = vadd.f32 %v163, %v176
  %v178 = vpop.f32.mrf.mxu0
  %v179 = vadd.f32 %v165, %v178
  %180 = vdwg.mxu0
  %v181 = vld [vmem:[%s2] sm:$0x1]
  %v183 = vperm.slane %v181, 0
  %v185 = vmul.f32 %v177, %v183
  %v186 = vmul.f32 %v179, %v183
  %v187 = vld [vmem:[%s3] sm:$0x1]
  %v189 = vperm.slane %v187, 0
  %v191 = vadd.f32 %v185, %v189
  %v192 = vadd.f32 %v186, %v189
  %v193 = vmul.f32 %v191, 0.5
  %v194 = vmul.f32 %v192, 0.5
  %v195 = vmul.f32 %v191, 0.044715
  %v196 = vmul.f32 %v192, 0.044715
  %v197 = vmul.f32 %v195, %v191
  %v198 = vmul.f32 %v196, %v192
  %v199 = vmul.f32 %v197, %v191
  %v200 = vmul.f32 %v198, %v192
  %v201 = vadd.f32 %v191, %v199
  %v202 = vadd.f32 %v192, %v200
  %v203 = vmul.f32 %v201, 0.7978846
  %v204 = vmul.f32 %v202, 0.7978846
  %v205 = vtanh.pop %v203
  %v206 = vtanh.pop %v204
  %v207 = vadd.f32 %v205, 1.0
  %v208 = vadd.f32 %v206, 1.0
  %v209 = vmul.f32 %v193, %v207
  %v210 = vmul.f32 %v194, %v208
  %211 = vst [vmem:[%s4] sm:$0xff] %v209
  %212 = vst [vmem:[%s4 + $0x8] sm:$0xff] %v210
  // Predicated region
  $region18: #{model_forward.14} parent=0 // pred_check
    _
  $region19: #{model_forward.14} parent=0 // pred_check_branch
    %214 = sbr.rel (0) target = $region21
  $region20: #{model_forward.14} parent=0 // pred_region
    _
  $region21: #{model_forward.14} parent=0 // pred_fallthru
    _
  // Predicated region
  $region22: #{model_forward.14} parent=0 // pred_check
    _
  $region23: #{model_forward.14} parent=0 // pred_check_branch
    %216 = sbr.rel (0) target = $region25
  $region24: #{model_forward.14} parent=0 // pred_region
    _
  $region25: #{model_forward.14} parent=0 // pred_fallthru
    _

// kernel: model_forward.16
$region0: #{model_forward.16}
  #allocation0 [shape = 'u32[]', space=smem, size = 0x4, offset = 0x4, fixed_abs, tag = 'smem constant byte address 0x4 - core index']
  #allocation1 [shape = 'u32[72,128]{1,0:T(1,128)}', space=vmem, size = 0x9000, scoped, tag = 'internal scratch']
  %s0 = inlined_call_operand.vmem [shape: f32[2,256], index: 0, kind: input, shape index: {}]
  %s1 = inlined_call_operand.vmem [shape: f32[256,512], index: 1, kind: input, shape index: {}]
  %s2 = inlined_call_operand.vmem [shape: f32[1,512], index: 2, kind: input, shape index: {}]
  %s3 = inlined_call_operand.vmem [shape: f32[1,512], index: 3, kind: input, shape index: {}]
  %s4 = inlined_call_operand.vmem [shape: f32[2,512], index: 4, kind: output, shape index: {}]
  %s5 = sld [smem:[#allocation0]]
  $region26: #{model_forward.16} parent=0
    _
  %s7 = ssub.s32 1, %s5
  %s8 = scalar_select 0, %s7, %s5
  // Predicated region
  $region2: #{model_forward.16} parent=0 // pred_check
    _
  $region3: #{model_forward.16} parent=0 // pred_check_branch
    %10 = sbr.rel (0) target = $region5
  $region4: #{model_forward.16} parent=0 // pred_region
    _
  $region5: #{model_forward.16} parent=0 // pred_fallthru
    _
  // Predicated region
  $region6: #{model_forward.16} parent=0 // pred_check
    _
  $region7: #{model_forward.16} parent=0 // pred_check_branch
    %12 = sbr.rel (0) target = $region9
  $region8: #{model_forward.16} parent=0 // pred_region
    _
  $region9: #{model_forward.16} parent=0 // pred_fallthru
    _
  // Predicated region
  $region10: #{model_forward.16} parent=0 // pred_check
    _
  $region11: #{model_forward.16} parent=0 // pred_check_branch
    %14 = sbr.rel (0) target = $region13
  $region12: #{model_forward.16} parent=0 // pred_region
    _
  $region13: #{model_forward.16} parent=0 // pred_fallthru
    _
  // Predicated region
  $region14: #{model_forward.16} parent=0 // pred_check
    _
  $region15: #{model_forward.16} parent=0 // pred_check_branch
    %16 = sbr.rel (0) target = $region17
  $region16: #{model_forward.16} parent=0 // pred_region
    _
  $region17: #{model_forward.16} parent=0 // pred_fallthru
    _
  %v17 = vld [vmem:[%s0] sm:$0xf]
  %19 = vst [vmem:[#allocation1] ss:$4 sm:$0xff] %v17
  %v20 = vld.sshfl [vmem:[#allocation1] sm:$0xff pattern:$0x73625140]
  %v21 = vld.sshfl [vmem:[#allocation1 + $0x8] sm:$0xff pattern:$0x73625140]
  %v24 = vpack.c.bf16 %v20, %v20
  %v25 = vpack.c.bf16 %v21, %v21
  %v26 = vld [vmem:[%s1] sm:$0xff]
  %v27 = vld [vmem:[%s1 + $0x8] sm:$0xff]
  %v28 = vld [vmem:[%s1 + $0x10] sm:$0xff]
  %v29 = vld [vmem:[%s1 + $0x18] sm:$0xff]
  %v30 = vld [vmem:[%s1 + $0x20] sm:$0xff]
  %v31 = vld [vmem:[%s1 + $0x28] sm:$0xff]
  %v32 = vld [vmem:[%s1 + $0x30] sm:$0xff]
  %v33 = vld [vmem:[%s1 + $0x38] sm:$0xff]
  %v34 = vld [vmem:[%s1 + $0x40] sm:$0xff]
  %v35 = vld [vmem:[%s1 + $0x48] sm:$0xff]
  %v36 = vld [vmem:[%s1 + $0x50] sm:$0xff]
  %v37 = vld [vmem:[%s1 + $0x58] sm:$0xff]
  %v38 = vld [vmem:[%s1 + $0x60] sm:$0xff]
  %v39 = vld [vmem:[%s1 + $0x68] sm:$0xff]
  %v40 = vld [vmem:[%s1 + $0x70] sm:$0xff]
  %v41 = vld [vmem:[%s1 + $0x78] sm:$0xff]
  %v42 = vld [vmem:[%s1 + $0x80] sm:$0xff]
  %v43 = vld [vmem:[%s1 + $0x88] sm:$0xff]
  %v44 = vld [vmem:[%s1 + $0x90] sm:$0xff]
  %v45 = vld [vmem:[%s1 + $0x98] sm:$0xff]
  %v46 = vld [vmem:[%s1 + $0xa0] sm:$0xff]
  %v47 = vld [vmem:[%s1 + $0xa8] sm:$0xff]
  %v48 = vld [vmem:[%s1 + $0xb0] sm:$0xff]
  %v49 = vld [vmem:[%s1 + $0xb8] sm:$0xff]
  %v50 = vld [vmem:[%s1 + $0xc0] sm:$0xff]
  %v51 = vld [vmem:[%s1 + $0xc8] sm:$0xff]
  %v52 = vld [vmem:[%s1 + $0xd0] sm:$0xff]
  %v53 = vld [vmem:[%s1 + $0xd8] sm:$0xff]
  %v54 = vld [vmem:[%s1 + $0xe0] sm:$0xff]
  %v55 = vld [vmem:[%s1 + $0xe8] sm:$0xff]
  %v56 = vld [vmem:[%s1 + $0xf0] sm:$0xff]
  %v57 = vld [vmem:[%s1 + $0xf8] sm:$0xff]
  %v58 = vld [vmem:[%s1 + $0x100] sm:$0xff]
  %v59 = vld [vmem:[%s1 + $0x108] sm:$0xff]
  %v60 = vld [vmem:[%s1 + $0x110] sm:$0xff]
  %v61 = vld [vmem:[%s1 + $0x118] sm:$0xff]
  %v62 = vld [vmem:[%s1 + $0x120] sm:$0xff]
  %v63 = vld [vmem:[%s1 + $0x128] sm:$0xff]
  %v64 = vld [vmem:[%s1 + $0x130] sm:$0xff]
  %v65 = vld [vmem:[%s1 + $0x138] sm:$0xff]
  %v66 = vld [vmem:[%s1 + $0x140] sm:$0xff]
  %v67 = vld [vmem:[%s1 + $0x148] sm:$0xff]
  %v68 = vld [vmem:[%s1 + $0x150] sm:$0xff]
  %v69 = vld [vmem:[%s1 + $0x158] sm:$0xff]
  %v70 = vld [vmem:[%s1 + $0x160] sm:$0xff]
  %v71 = vld [vmem:[%s1 + $0x168] sm:$0xff]
  %v72 = vld [vmem:[%s1 + $0x170] sm:$0xff]
  %v73 = vld [vmem:[%s1 + $0x178] sm:$0xff]
  %v74 = vld [vmem:[%s1 + $0x180] sm:$0xff]
  %v75 = vld [vmem:[%s1 + $0x188] sm:$0xff]
  %v76 = vld [vmem:[%s1 + $0x190] sm:$0xff]
  %v77 = vld [vmem:[%s1 + $0x198] sm:$0xff]
  %v78 = vld [vmem:[%s1 + $0x1a0] sm:$0xff]
  %v79 = vld [vmem:[%s1 + $0x1a8] sm:$0xff]
  %v80 = vld [vmem:[%s1 + $0x1b0] sm:$0xff]
  %v81 = vld [vmem:[%s1 + $0x1b8] sm:$0xff]
  %v82 = vld [vmem:[%s1 + $0x1c0] sm:$0xff]
  %v83 = vld [vmem:[%s1 + $0x1c8] sm:$0xff]
  %v84 = vld [vmem:[%s1 + $0x1d0] sm:$0xff]
  %v85 = vld [vmem:[%s1 + $0x1d8] sm:$0xff]
  %v86 = vld [vmem:[%s1 + $0x1e0] sm:$0xff]
  %v87 = vld [vmem:[%s1 + $0x1e8] sm:$0xff]
  %v88 = vld [vmem:[%s1 + $0x1f0] sm:$0xff]
  %v89 = vld [vmem:[%s1 + $0x1f8] sm:$0xff]
  %v90 = vld [vmem:[%s1 + $0x200] sm:$0xff]
  %v91 = vld [vmem:[%s1 + $0x208] sm:$0xff]
  %v92 = vld [vmem:[%s1 + $0x210] sm:$0xff]
  %v93 = vld [vmem:[%s1 + $0x218] sm:$0xff]
  %v94 = vld [vmem:[%s1 + $0x220] sm:$0xff]
  %v95 = vld [vmem:[%s1 + $0x228] sm:$0xff]
  %v96 = vld [vmem:[%s1 + $0x230] sm:$0xff]
  %v97 = vld [vmem:[%s1 + $0x238] sm:$0xff]
  %v98 = vld [vmem:[%s1 + $0x240] sm:$0xff]
  %v99 = vld [vmem:[%s1 + $0x248] sm:$0xff]
  %v100 = vld [vmem:[%s1 + $0x250] sm:$0xff]
  %v101 = vld [vmem:[%s1 + $0x258] sm:$0xff]
  %v102 = vld [vmem:[%s1 + $0x260] sm:$0xff]
  %v103 = vld [vmem:[%s1 + $0x268] sm:$0xff]
  %v104 = vld [vmem:[%s1 + $0x270] sm:$0xff]
  %v105 = vld [vmem:[%s1 + $0x278] sm:$0xff]
  %v106 = vld [vmem:[%s1 + $0x280] sm:$0xff]
  %v107 = vld [vmem:[%s1 + $0x288] sm:$0xff]
  %v108 = vld [vmem:[%s1 + $0x290] sm:$0xff]
  %v109 = vld [vmem:[%s1 + $0x298] sm:$0xff]
  %v110 = vld [vmem:[%s1 + $0x2a0] sm:$0xff]
  %v111 = vld [vmem:[%s1 + $0x2a8] sm:$0xff]
  %v112 = vld [vmem:[%s1 + $0x2b0] sm:$0xff]
  %v113 = vld [vmem:[%s1 + $0x2b8] sm:$0xff]
  %v114 = vld [vmem:[%s1 + $0x2c0] sm:$0xff]
  %v115 = vld [vmem:[%s1 + $0x2c8] sm:$0xff]
  %v116 = vld [vmem:[%s1 + $0x2d0] sm:$0xff]
  %v117 = vld [vmem:[%s1 + $0x2d8] sm:$0xff]
  %v118 = vld [vmem:[%s1 + $0x2e0] sm:$0xff]
  %v119 = vld [vmem:[%s1 + $0x2e8] sm:$0xff]
  %v120 = vld [vmem:[%s1 + $0x2f0] sm:$0xff]
  %v121 = vld [vmem:[%s1 + $0x2f8] sm:$0xff]
  %v122 = vld [vmem:[%s1 + $0x300] sm:$0xff]
  %v123 = vld [vmem:[%s1 + $0x308] sm:$0xff]
  %v124 = vld [vmem:[%s1 + $0x310] sm:$0xff]
  %v125 = vld [vmem:[%s1 + $0x318] sm:$0xff]
  %v126 = vld [vmem:[%s1 + $0x320] sm:$0xff]
  %v127 = vld [vmem:[%s1 + $0x328] sm:$0xff]
  %v128 = vld [vmem:[%s1 + $0x330] sm:$0xff]
  %v129 = vld [vmem:[%s1 + $0x338] sm:$0xff]
  %v130 = vld [vmem:[%s1 + $0x340] sm:$0xff]
  %v131 = vld [vmem:[%s1 + $0x348] sm:$0xff]
  %v132 = vld [vmem:[%s1 + $0x350] sm:$0xff]
  %v133 = vld [vmem:[%s1 + $0x358] sm:$0xff]
  %v134 = vld [vmem:[%s1 + $0x360] sm:$0xff]
  %v135 = vld [vmem:[%s1 + $0x368] sm:$0xff]
  %v136 = vld [vmem:[%s1 + $0x370] sm:$0xff]
  %v137 = vld [vmem:[%s1 + $0x378] sm:$0xff]
  %v138 = vld [vmem:[%s1 + $0x380] sm:$0xff]
  %v139 = vld [vmem:[%s1 + $0x388] sm:$0xff]
  %v140 = vld [vmem:[%s1 + $0x390] sm:$0xff]
  %v141 = vld [vmem:[%s1 + $0x398] sm:$0xff]
  %v142 = vld [vmem:[%s1 + $0x3a0] sm:$0xff]
  %v143 = vld [vmem:[%s1 + $0x3a8] sm:$0xff]
  %v144 = vld [vmem:[%s1 + $0x3b0] sm:$0xff]
  %v145 = vld [vmem:[%s1 + $0x3b8] sm:$0xff]
  %v146 = vld [vmem:[%s1 + $0x3c0] sm:$0xff]
  %v147 = vld [vmem:[%s1 + $0x3c8] sm:$0xff]
  %v148 = vld [vmem:[%s1 + $0x3d0] sm:$0xff]
  %v149 = vld [vmem:[%s1 + $0x3d8] sm:$0xff]
  %v150 = vld [vmem:[%s1 + $0x3e0] sm:$0xff]
  %v151 = vld [vmem:[%s1 + $0x3e8] sm:$0xff]
  %v152 = vld [vmem:[%s1 + $0x3f0] sm:$0xff]
  %v153 = vld [vmem:[%s1 + $0x3f8] sm:$0xff]
  %v154 = vpack.c.bf16 %v30, %v26
  %v155 = vpack.c.bf16 %v31, %v27
  %v156 = vpack.c.bf16 %v32, %v28
  %v157 = vpack.c.bf16 %v33, %v29
  %v158 = vpack.c.bf16 %v38, %v34
  %v159 = vpack.c.bf16 %v39, %v35
  %v160 = vpack.c.bf16 %v40, %v36
  %v161 = vpack.c.bf16 %v41, %v37
  %v162 = vpack.c.bf16 %v46, %v42
  %v163 = vpack.c.bf16 %v47, %v43
  %v164 = vpack.c.bf16 %v48, %v44
  %v165 = vpack.c.bf16 %v49, %v45
  %v166 = vpack.c.bf16 %v54, %v50
  %v167 = vpack.c.bf16 %v55, %v51
  %v168 = vpack.c.bf16 %v56, %v52
  %v169 = vpack.c.bf16 %v57, %v53
  %v170 = vpack.c.bf16 %v62, %v58
  %v171 = vpack.c.bf16 %v63, %v59
  %v172 = vpack.c.bf16 %v64, %v60
  %v173 = vpack.c.bf16 %v65, %v61
  %v174 = vpack.c.bf16 %v70, %v66
  %v175 = vpack.c.bf16 %v71, %v67
  %v176 = vpack.c.bf16 %v72, %v68
  %v177 = vpack.c.bf16 %v73, %v69
  %v178 = vpack.c.bf16 %v78, %v74
  %v179 = vpack.c.bf16 %v79, %v75
  %v180 = vpack.c.bf16 %v80, %v76
  %v181 = vpack.c.bf16 %v81, %v77
  %v182 = vpack.c.bf16 %v86, %v82
  %v183 = vpack.c.bf16 %v87, %v83
  %v184 = vpack.c.bf16 %v88, %v84
  %v185 = vpack.c.bf16 %v89, %v85
  %v186 = vpack.c.bf16 %v94, %v90
  %v187 = vpack.c.bf16 %v95, %v91
  %v188 = vpack.c.bf16 %v96, %v92
  %v189 = vpack.c.bf16 %v97, %v93
  %v190 = vpack.c.bf16 %v102, %v98
  %v191 = vpack.c.bf16 %v103, %v99
  %v192 = vpack.c.bf16 %v104, %v100
  %v193 = vpack.c.bf16 %v105, %v101
  %v194 = vpack.c.bf16 %v110, %v106
  %v195 = vpack.c.bf16 %v111, %v107
  %v196 = vpack.c.bf16 %v112, %v108
  %v197 = vpack.c.bf16 %v113, %v109
  %v198 = vpack.c.bf16 %v118, %v114
  %v199 = vpack.c.bf16 %v119, %v115
  %v200 = vpack.c.bf16 %v120, %v116
  %v201 = vpack.c.bf16 %v121, %v117
  %v202 = vpack.c.bf16 %v126, %v122
  %v203 = vpack.c.bf16 %v127, %v123
  %v204 = vpack.c.bf16 %v128, %v124
  %v205 = vpack.c.bf16 %v129, %v125
  %v206 = vpack.c.bf16 %v134, %v130
  %v207 = vpack.c.bf16 %v135, %v131
  %v208 = vpack.c.bf16 %v136, %v132
  %v209 = vpack.c.bf16 %v137, %v133
  %v210 = vpack.c.bf16 %v142, %v138
  %v211 = vpack.c.bf16 %v143, %v139
  %v212 = vpack.c.bf16 %v144, %v140
  %v213 = vpack.c.bf16 %v145, %v141
  %v214 = vpack.c.bf16 %v150, %v146
  %v215 = vpack.c.bf16 %v151, %v147
  %v216 = vpack.c.bf16 %v152, %v148
  %v217 = vpack.c.bf16 %v153, %v149
  %218 = vmatpush.bf16.msra.mxu0 %v182
  %219 = vmatpush.bf16.msra.mxu0 %v178
  %220 = vmatpush.bf16.msra.mxu0 %v174
  %221 = vmatpush.bf16.msra.mxu0 %v170
  %222 = vmatpush.bf16.msra.mxu0 %v166
  %223 = vmatpush.bf16.msra.mxu0 %v162
  %224 = vmatpush.bf16.msra.mxu0 %v158
  %225 = vmatpush.bf16.msra.mxu0 %v154
  %226 = vmatmul.bf16.gmra.mxu0 %v24
  %v227 = vpop.f32.mrf.mxu0
  %v228 = vadd.f32 0.0, %v227
  %v229 = vpop.f32.mrf.mxu0
  %230 = vdwg.mxu0
  %231 = vmatpush.bf16.msra.mxu0 %v214
  %232 = vmatpush.bf16.msra.mxu0 %v210
  %233 = vmatpush.bf16.msra.mxu0 %v206
  %234 = vmatpush.bf16.msra.mxu0 %v202
  %235 = vmatpush.bf16.msra.mxu0 %v198
  %236 = vmatpush.bf16.msra.mxu0 %v194
  %237 = vmatpush.bf16.msra.mxu0 %v190
  %238 = vmatpush.bf16.msra.mxu0 %v186
  %239 = vmatmul.bf16.gmra.mxu0 %v25
  %v240 = vpop.f32.mrf.mxu0
  %v241 = vadd.f32 %v228, %v240
  %v242 = vpop.f32.mrf.mxu0
  %243 = vdwg.mxu0
  %244 = vmatpush.bf16.msra.mxu0 %v183
  %245 = vmatpush.bf16.msra.mxu0 %v179
  %246 = vmatpush.bf16.msra.mxu0 %v175
  %247 = vmatpush.bf16.msra.mxu0 %v171
  %248 = vmatpush.bf16.msra.mxu0 %v167
  %249 = vmatpush.bf16.msra.mxu0 %v163
  %250 = vmatpush.bf16.msra.mxu0 %v159
  %251 = vmatpush.bf16.msra.mxu0 %v155
  %252 = vmatmul.bf16.gmra.mxu0 %v24
  %v253 = vpop.f32.mrf.mxu0
  %v254 = vadd.f32 0.0, %v253
  %v255 = vpop.f32.mrf.mxu0
  %256 = vdwg.mxu0
  %257 = vmatpush.bf16.msra.mxu0 %v215
  %258 = vmatpush.bf16.msra.mxu0 %v211
  %259 = vmatpush.bf16.msra.mxu0 %v207
  %260 = vmatpush.bf16.msra.mxu0 %v203
  %261 = vmatpush.bf16.msra.mxu0 %v199
  %262 = vmatpush.bf16.msra.mxu0 %v195
  %263 = vmatpush.bf16.msra.mxu0 %v191
  %264 = vmatpush.bf16.msra.mxu0 %v187
  %265 = vmatmul.bf16.gmra.mxu0 %v25
  %v266 = vpop.f32.mrf.mxu0
  %v267 = vadd.f32 %v254, %v266
  %v268 = vpop.f32.mrf.mxu0
  %269 = vdwg.mxu0
  %270 = vmatpush.bf16.msra.mxu0 %v184
  %271 = vmatpush.bf16.msra.mxu0 %v180
  %272 = vmatpush.bf16.msra.mxu0 %v176
  %273 = vmatpush.bf16.msra.mxu0 %v172
  %274 = vmatpush.bf16.msra.mxu0 %v168
  %275 = vmatpush.bf16.msra.mxu0 %v164
  %276 = vmatpush.bf16.msra.mxu0 %v160
  %277 = vmatpush.bf16.msra.mxu0 %v156
  %278 = vmatmul.bf16.gmra.mxu0 %v24
  %v279 = vpop.f32.mrf.mxu0
  %v280 = vadd.f32 0.0, %v279
  %v281 = vpop.f32.mrf.mxu0
  %282 = vdwg.mxu0
  %283 = vmatpush.bf16.msra.mxu0 %v216
  %284 = vmatpush.bf16.msra.mxu0 %v212
  %285 = vmatpush.bf16.msra.mxu0 %v208
  %286 = vmatpush.bf16.msra.mxu0 %v204
  %287 = vmatpush.bf16.msra.mxu0 %v200
  %288 = vmatpush.bf16.msra.mxu0 %v196
  %289 = vmatpush.bf16.msra.mxu0 %v192
  %290 = vmatpush.bf16.msra.mxu0 %v188
  %291 = vmatmul.bf16.gmra.mxu0 %v25
  %v292 = vpop.f32.mrf.mxu0
  %v293 = vadd.f32 %v280, %v292
  %v294 = vpop.f32.mrf.mxu0
  %295 = vdwg.mxu0
  %296 = vmatpush.bf16.msra.mxu0 %v185
  %297 = vmatpush.bf16.msra.mxu0 %v181
  %298 = vmatpush.bf16.msra.mxu0 %v177
  %299 = vmatpush.bf16.msra.mxu0 %v173
  %300 = vmatpush.bf16.msra.mxu0 %v169
  %301 = vmatpush.bf16.msra.mxu0 %v165
  %302 = vmatpush.bf16.msra.mxu0 %v161
  %303 = vmatpush.bf16.msra.mxu0 %v157
  %304 = vmatmul.bf16.gmra.mxu0 %v24
  %v305 = vpop.f32.mrf.mxu0
  %v306 = vadd.f32 0.0, %v305
  %v307 = vpop.f32.mrf.mxu0
  %308 = vdwg.mxu0
  %309 = vmatpush.bf16.msra.mxu0 %v217
  %310 = vmatpush.bf16.msra.mxu0 %v213
  %311 = vmatpush.bf16.msra.mxu0 %v209
  %312 = vmatpush.bf16.msra.mxu0 %v205
  %313 = vmatpush.bf16.msra.mxu0 %v201
  %314 = vmatpush.bf16.msra.mxu0 %v197
  %315 = vmatpush.bf16.msra.mxu0 %v193
  %316 = vmatpush.bf16.msra.mxu0 %v189
  %317 = vmatmul.bf16.gmra.mxu0 %v25
  %v318 = vpop.f32.mrf.mxu0
  %v319 = vadd.f32 %v306, %v318
  %v320 = vpop.f32.mrf.mxu0
  %321 = vdwg.mxu0
  %v322 = vld [vmem:[%s2] sm:$0xf]
  %v324 = vperm.slane %v322, 0
  %v325 = vperm.slane %v322, 1
  %v326 = vperm.slane %v322, 2
  %v327 = vperm.slane %v322, 3
  %v332 = vmul.f32 %v241, %v324
  %v333 = vmul.f32 %v267, %v325
  %v334 = vmul.f32 %v293, %v326
  %v335 = vmul.f32 %v319, %v327
  %v336 = vld [vmem:[%s3] sm:$0xf]
  %v338 = vperm.slane %v336, 0
  %v339 = vperm.slane %v336, 1
  %v340 = vperm.slane %v336, 2
  %v341 = vperm.slane %v336, 3
  %v346 = vadd.f32 %v332, %v338
  %v347 = vadd.f32 %v333, %v339
  %v348 = vadd.f32 %v334, %v340
  %v349 = vadd.f32 %v335, %v341
  %v350 = vmul.f32 %v346, 0.5
  %v351 = vmul.f32 %v347, 0.5
  %v352 = vmul.f32 %v348, 0.5
  %v353 = vmul.f32 %v349, 0.5
  %v354 = vmul.f32 %v346, 0.044715
  %v355 = vmul.f32 %v347, 0.044715
  %v356 = vmul.f32 %v348, 0.044715
  %v357 = vmul.f32 %v349, 0.044715
  %v358 = vmul.f32 %v354, %v346
  %v359 = vmul.f32 %v355, %v347
  %v360 = vmul.f32 %v356, %v348
  %v361 = vmul.f32 %v357, %v349
  %v362 = vmul.f32 %v358, %v346
  %v363 = vmul.f32 %v359, %v347
  %v364 = vmul.f32 %v360, %v348
  %v365 = vmul.f32 %v361, %v349
  %v366 = vadd.f32 %v346, %v362
  %v367 = vadd.f32 %v347, %v363
  %v368 = vadd.f32 %v348, %v364
  %v369 = vadd.f32 %v349, %v365
  %v370 = vmul.f32 %v366, 0.7978846
  %v371 = vmul.f32 %v367, 0.7978846
  %v372 = vmul.f32 %v368, 0.7978846
  %v373 = vmul.f32 %v369, 0.7978846
  %v374 = vtanh.pop %v370
  %v375 = vtanh.pop %v371
  %v376 = vtanh.pop %v372
  %v377 = vtanh.pop %v373
  %v378 = vadd.f32 %v374, 1.0
  %v379 = vadd.f32 %v375, 1.0
  %v380 = vadd.f32 %v376, 1.0
  %v381 = vadd.f32 %v377, 1.0
  %v382 = vmul.f32 %v350, %v378
  %v383 = vmul.f32 %v351, %v379
  %v384 = vmul.f32 %v352, %v380
  %v385 = vmul.f32 %v353, %v381
  %v390 = vrot.slane %v383, 6
  %v391 = vrot.slane %v384, 4
  %v392 = vrot.slane %v385, 2
  %vm393 = vcmask 1041408
  %v394 = vsel %vm393, %v382, %v390
  %vm395 = vcmask 1045508
  %v396 = vsel %vm395, %v391, %v392
  %vm397 = vcmask 1043456
  %v398 = vsel %vm397, %v394, %v396
  %400 = vst [vmem:[%s4] sm:$0xff] %v398
  // Predicated region
  $region18: #{model_forward.16} parent=0 // pred_check
    _
  $region19: #{model_forward.16} parent=0 // pred_check_branch
    %402 = sbr.rel (0) target = $region21
  $region20: #{model_forward.16} parent=0 // pred_region
    _
  $region21: #{model_forward.16} parent=0 // pred_fallthru
    _
  // Predicated region
  $region22: #{model_forward.16} parent=0 // pred_check
    _
  $region23: #{model_forward.16} parent=0 // pred_check_branch
    %404 = sbr.rel (0) target = $region25
  $region24: #{model_forward.16} parent=0 // pred_region
    _
  $region25: #{model_forward.16} parent=0 // pred_fallthru
    _

// kernel: model_forward.17
$region0: #{model_forward.17}
  #allocation0 [shape = 'u32[]', space=smem, size = 0x4, offset = 0x4, fixed_abs, tag = 'smem constant byte address 0x4 - core index']
  #allocation1 [shape = 'u32[72,128]{1,0:T(1,128)}', space=vmem, size = 0x9000, scoped, tag = 'internal scratch']
  %s0 = inlined_call_operand.vmem [shape: f32[2,512], index: 0, kind: input, shape index: {}]
  %s1 = inlined_call_operand.vmem [shape: f32[512,40], index: 1, kind: input, shape index: {}]
  %s2 = inlined_call_operand.vmem [shape: f32[1,40], index: 2, kind: input, shape index: {}]
  %s3 = inlined_call_operand.vmem [shape: f32[1,40], index: 3, kind: input, shape index: {}]
  %s4 = inlined_call_operand.hbm [shape: f32[2,40], index: 4, kind: output, shape index: {}]
  %s5 = sld [smem:[#allocation0]]
  $region26: #{model_forward.17} parent=0
    _
  %s7 = ssub.s32 1, %s5
  %s8 = scalar_select 0, %s7, %s5
  $region1: #{model_forward.17} parent=0
    #allocation2 [shape = 'u8[1024]{0}', space=vmem, size = 0x400, scoped, tag = 'output window, operand 0, single buffered']
    #allocation3 [shape = 's32[1]{0}', space=sflag, size = 0x4, scoped, tag = 'scoped memory for model_forward.17']
    %9 = vsyncpa [#allocation3], 0
    // Predicated region
    $region2: #{model_forward.17} parent=1 // pred_check
      _
    $region3: #{model_forward.17} parent=1 // pred_check_branch
      %11 = sbr.rel (0) target = $region5
    $region4: #{model_forward.17} parent=1 // pred_region
      _
    $region5: #{model_forward.17} parent=1 // pred_fallthru
      _
    // Predicated region
    $region6: #{model_forward.17} parent=1 // pred_check
      _
    $region7: #{model_forward.17} parent=1 // pred_check_branch
      %13 = sbr.rel (0) target = $region9
    $region8: #{model_forward.17} parent=1 // pred_region
      _
    $region9: #{model_forward.17} parent=1 // pred_fallthru
      _
    // Predicated region
    $region10: #{model_forward.17} parent=1 // pred_check
      _
    $region11: #{model_forward.17} parent=1 // pred_check_branch
      %15 = sbr.rel (0) target = $region13
    $region12: #{model_forward.17} parent=1 // pred_region
      _
    $region13: #{model_forward.17} parent=1 // pred_fallthru
      _
    // Predicated region
    $region14: #{model_forward.17} parent=1 // pred_check
      _
    $region15: #{model_forward.17} parent=1 // pred_check_branch
      %17 = sbr.rel (0) target = $region17
    $region16: #{model_forward.17} parent=1 // pred_region
      _
    $region17: #{model_forward.17} parent=1 // pred_fallthru
      _
    %v18 = vld [vmem:[%s0] sm:$0xff]
    %20 = vst [vmem:[#allocation1] ss:$4 sm:$0xff] %v18
    %v21 = vld.sshfl [vmem:[#allocation1] sm:$0xff pattern:$0x73625140]
    %v22 = vld.sshfl [vmem:[#allocation1 + $0x8] sm:$0xff pattern:$0x73625140]
    %v23 = vld.sshfl [vmem:[#allocation1 + $0x10] sm:$0xff pattern:$0x73625140]
    %v24 = vld.sshfl [vmem:[#allocation1 + $0x18] sm:$0xff pattern:$0x73625140]
    %v29 = vpack.c.bf16 %v21, %v21
    %v30 = vpack.c.bf16 %v22, %v22
    %v31 = vpack.c.bf16 %v23, %v23
    %v32 = vpack.c.bf16 %v24, %v24
    %v33 = vld [vmem:[%s1] sm:$0xff]
    %v34 = vld [vmem:[%s1 + $0x8] sm:$0xff]
    %v35 = vld [vmem:[%s1 + $0x10] sm:$0xff]
    %v36 = vld [vmem:[%s1 + $0x18] sm:$0xff]
    %v37 = vld [vmem:[%s1 + $0x20] sm:$0xff]
    %v38 = vld [vmem:[%s1 + $0x28] sm:$0xff]
    %v39 = vld [vmem:[%s1 + $0x30] sm:$0xff]
    %v40 = vld [vmem:[%s1 + $0x38] sm:$0xff]
    %v41 = vld [vmem:[%s1 + $0x40] sm:$0xff]
    %v42 = vld [vmem:[%s1 + $0x48] sm:$0xff]
    %v43 = vld [vmem:[%s1 + $0x50] sm:$0xff]
    %v44 = vld [vmem:[%s1 + $0x58] sm:$0xff]
    %v45 = vld [vmem:[%s1 + $0x60] sm:$0xff]
    %v46 = vld [vmem:[%s1 + $0x68] sm:$0xff]
    %v47 = vld [vmem:[%s1 + $0x70] sm:$0xff]
    %v48 = vld [vmem:[%s1 + $0x78] sm:$0xff]
    %v49 = vld [vmem:[%s1 + $0x80] sm:$0xff]
    %v50 = vld [vmem:[%s1 + $0x88] sm:$0xff]
    %v51 = vld [vmem:[%s1 + $0x90] sm:$0xff]
    %v52 = vld [vmem:[%s1 + $0x98] sm:$0xff]
    %v53 = vld [vmem:[%s1 + $0xa0] sm:$0xff]
    %v54 = vld [vmem:[%s1 + $0xa8] sm:$0xff]
    %v55 = vld [vmem:[%s1 + $0xb0] sm:$0xff]
    %v56 = vld [vmem:[%s1 + $0xb8] sm:$0xff]
    %v57 = vld [vmem:[%s1 + $0xc0] sm:$0xff]
    %v58 = vld [vmem:[%s1 + $0xc8] sm:$0xff]
    %v59 = vld [vmem:[%s1 + $0xd0] sm:$0xff]
    %v60 = vld [vmem:[%s1 + $0xd8] sm:$0xff]
    %v61 = vld [vmem:[%s1 + $0xe0] sm:$0xff]
    %v62 = vld [vmem:[%s1 + $0xe8] sm:$0xff]
    %v63 = vld [vmem:[%s1 + $0xf0] sm:$0xff]
    %v64 = vld [vmem:[%s1 + $0xf8] sm:$0xff]
    %v65 = vld [vmem:[%s1 + $0x100] sm:$0xff]
    %v66 = vld [vmem:[%s1 + $0x108] sm:$0xff]
    %v67 = vld [vmem:[%s1 + $0x110] sm:$0xff]
    %v68 = vld [vmem:[%s1 + $0x118] sm:$0xff]
    %v69 = vld [vmem:[%s1 + $0x120] sm:$0xff]
    %v70 = vld [vmem:[%s1 + $0x128] sm:$0xff]
    %v71 = vld [vmem:[%s1 + $0x130] sm:$0xff]
    %v72 = vld [vmem:[%s1 + $0x138] sm:$0xff]
    %v73 = vld [vmem:[%s1 + $0x140] sm:$0xff]
    %v74 = vld [vmem:[%s1 + $0x148] sm:$0xff]
    %v75 = vld [vmem:[%s1 + $0x150] sm:$0xff]
    %v76 = vld [vmem:[%s1 + $0x158] sm:$0xff]
    %v77 = vld [vmem:[%s1 + $0x160] sm:$0xff]
    %v78 = vld [vmem:[%s1 + $0x168] sm:$0xff]
    %v79 = vld [vmem:[%s1 + $0x170] sm:$0xff]
    %v80 = vld [vmem:[%s1 + $0x178] sm:$0xff]
    %v81 = vld [vmem:[%s1 + $0x180] sm:$0xff]
    %v82 = vld [vmem:[%s1 + $0x188] sm:$0xff]
    %v83 = vld [vmem:[%s1 + $0x190] sm:$0xff]
    %v84 = vld [vmem:[%s1 + $0x198] sm:$0xff]
    %v85 = vld [vmem:[%s1 + $0x1a0] sm:$0xff]
    %v86 = vld [vmem:[%s1 + $0x1a8] sm:$0xff]
    %v87 = vld [vmem:[%s1 + $0x1b0] sm:$0xff]
    %v88 = vld [vmem:[%s1 + $0x1b8] sm:$0xff]
    %v89 = vld [vmem:[%s1 + $0x1c0] sm:$0xff]
    %v90 = vld [vmem:[%s1 + $0x1c8] sm:$0xff]
    %v91 = vld [vmem:[%s1 + $0x1d0] sm:$0xff]
    %v92 = vld [vmem:[%s1 + $0x1d8] sm:$0xff]
    %v93 = vld [vmem:[%s1 + $0x1e0] sm:$0xff]
    %v94 = vld [vmem:[%s1 + $0x1e8] sm:$0xff]
    %v95 = vld [vmem:[%s1 + $0x1f0] sm:$0xff]
    %v96 = vld [vmem:[%s1 + $0x1f8] sm:$0xff]
    %v97 = vpack.c.bf16 %v34, %v33
    %v98 = vpack.c.bf16 %v36, %v35
    %v99 = vpack.c.bf16 %v38, %v37
    %v100 = vpack.c.bf16 %v40, %v39
    %v101 = vpack.c.bf16 %v42, %v41
    %v102 = vpack.c.bf16 %v44, %v43
    %v103 = vpack.c.bf16 %v46, %v45
    %v104 = vpack.c.bf16 %v48, %v47
    %v105 = vpack.c.bf16 %v50, %v49
    %v106 = vpack.c.bf16 %v52, %v51
    %v107 = vpack.c.bf16 %v54, %v53
    %v108 = vpack.c.bf16 %v56, %v55
    %v109 = vpack.c.bf16 %v58, %v57
    %v110 = vpack.c.bf16 %v60, %v59
    %v111 = vpack.c.bf16 %v62, %v61
    %v112 = vpack.c.bf16 %v64, %v63
    %v113 = vpack.c.bf16 %v66, %v65
    %v114 = vpack.c.bf16 %v68, %v67
    %v115 = vpack.c.bf16 %v70, %v69
    %v116 = vpack.c.bf16 %v72, %v71
    %v117 = vpack.c.bf16 %v74, %v73
    %v118 = vpack.c.bf16 %v76, %v75
    %v119 = vpack.c.bf16 %v78, %v77
    %v120 = vpack.c.bf16 %v80, %v79
    %v121 = vpack.c.bf16 %v82, %v81
    %v122 = vpack.c.bf16 %v84, %v83
    %v123 = vpack.c.bf16 %v86, %v85
    %v124 = vpack.c.bf16 %v88, %v87
    %v125 = vpack.c.bf16 %v90, %v89
    %v126 = vpack.c.bf16 %v92, %v91
    %v127 = vpack.c.bf16 %v94, %v93
    %v128 = vpack.c.bf16 %v96, %v95
    %129 = vmatpush.bf16.msra.mxu0 %v104
    %130 = vmatpush.bf16.msra.mxu0 %v103
    %131 = vmatpush.bf16.msra.mxu0 %v102
    %132 = vmatpush.bf16.msra.mxu0 %v101
    %133 = vmatpush.bf16.msra.mxu0 %v100
    %134 = vmatpush.bf16.msra.mxu0 %v99
    %135 = vmatpush.bf16.msra.mxu0 %v98
    %136 = vmatpush.bf16.msra.mxu0 %v97
    %137 = vmatmul.bf16.gmra.mxu0 %v29
    %v138 = vpop.f32.mrf.mxu0
    %v139 = vadd.f32 0.0, %v138
    %v140 = vpop.f32.mrf.mxu0
    %141 = vdwg.mxu0
    %142 = vmatpush.bf16.msra.mxu0 %v112
    %143 = vmatpush.bf16.msra.mxu0 %v111
    %144 = vmatpush.bf16.msra.mxu0 %v110
    %145 = vmatpush.bf16.msra.mxu0 %v109
    %146 = vmatpush.bf16.msra.mxu0 %v108
    %147 = vmatpush.bf16.msra.mxu0 %v107
    %148 = vmatpush.bf16.msra.mxu0 %v106
    %149 = vmatpush.bf16.msra.mxu0 %v105
    %150 = vmatmul.bf16.gmra.mxu0 %v30
    %v151 = vpop.f32.mrf.mxu0
    %v152 = vadd.f32 %v139, %v151
    %v153 = vpop.f32.mrf.mxu0
    %154 = vdwg.mxu0
    %155 = vmatpush.bf16.msra.mxu0 %v120
    %156 = vmatpush.bf16.msra.mxu0 %v119
    %157 = vmatpush.bf16.msra.mxu0 %v118
    %158 = vmatpush.bf16.msra.mxu0 %v117
    %159 = vmatpush.bf16.msra.mxu0 %v116
    %160 = vmatpush.bf16.msra.mxu0 %v115
    %161 = vmatpush.bf16.msra.mxu0 %v114
    %162 = vmatpush.bf16.msra.mxu0 %v113
    %163 = vmatmul.bf16.gmra.mxu0 %v31
    %v164 = vpop.f32.mrf.mxu0
    %v165 = vadd.f32 %v152, %v164
    %v166 = vpop.f32.mrf.mxu0
    %167 = vdwg.mxu0
    %168 = vmatpush.bf16.msra.mxu0 %v128
    %169 = vmatpush.bf16.msra.mxu0 %v127
    %170 = vmatpush.bf16.msra.mxu0 %v126
    %171 = vmatpush.bf16.msra.mxu0 %v125
    %172 = vmatpush.bf16.msra.mxu0 %v124
    %173 = vmatpush.bf16.msra.mxu0 %v123
    %174 = vmatpush.bf16.msra.mxu0 %v122
    %175 = vmatpush.bf16.msra.mxu0 %v121
    %176 = vmatmul.bf16.gmra.mxu0 %v32
    %v177 = vpop.f32.mrf.mxu0
    %v178 = vadd.f32 %v165, %v177
    %v179 = vpop.f32.mrf.mxu0
    %180 = vdwg.mxu0
    %v181 = vld [vmem:[%s2] sm:$0x1]
    %v183 = vperm.slane %v181, 0
    %v185 = vmul.f32 %v178, %v183
    %v186 = vld [vmem:[%s3] sm:$0x1]
    %v188 = vperm.slane %v186, 0
    %v190 = vadd.f32 %v185, %v188
    %vm191 = vcmask 320512
    %192 = vst.msk [vmem:[#allocation2] sm:$0x3] %vm191, %v190
    // Predicated region
    $region18: #{model_forward.17} parent=1 // pred_check
      _
    $region19: #{model_forward.17} parent=1 // pred_check_branch
      %194 = sbr.rel (0) target = $region21
    $region20: #{model_forward.17} parent=1 // pred_region
      %196 = vsyncadd [#allocation3], 0
      %s198 = sshll.u32 [#allocation2], 4
      %s199 = int_to_ptr.vmem [resolvable:$true] %s198
      %s200 = sshll.u32 %s4, 4
      %s201 = int_to_ptr.hbm [resolvable:$true] %s200
      %203 = dma.vmem_to_hbm [thread:$0]  %s199, 32, %s201, [#allocation3]
    $region21: #{model_forward.17} parent=1 // pred_fallthru
      _
    // Predicated region
    $region22: #{model_forward.17} parent=1 // pred_check
      _
    $region23: #{model_forward.17} parent=1 // pred_check_branch
      %205 = sbr.rel (0) target = $region25
    $region24: #{model_forward.17} parent=1 // pred_region
      %207 = dma.done [#allocation3], 32
    $region25: #{model_forward.17} parent=1 // pred_fallthru
      _
    %208 = vsyncpa [#allocation3], 1

// kernel: model_forward.13
$region0: #{model_forward.13}
  #allocation0 [shape = 'u32[]', space=smem, size = 0x4, offset = 0x4, fixed_abs, tag = 'smem constant byte address 0x4 - core index']
  #allocation1 [shape = 'u32[72,128]{1,0:T(1,128)}', space=vmem, size = 0x9000, scoped, tag = 'internal scratch']
  #allocation2 [shape = 'f32[8,1]{1,0:T(8,128)}', space=vmem, size = 0x1000, scoped, tag = 'scratch operand']
  #allocation3 [shape = 'f32[8,1]{1,0:T(8,128)}', space=vmem, size = 0x1000, scoped, tag = 'scratch operand']
  #allocation4 [shape = 'f32[8,1]{1,0:T(8,128)}', space=vmem, size = 0x1000, scoped, tag = 'scratch operand']
  #allocation5 [shape = 'f32[8,256]{1,0:T(8,128)}', space=vmem, size = 0x2000, scoped, tag = 'scratch operand']
  #allocation6 [shape = 'bf16[8,256]{1,0:T(8,128)(2,1)}', space=vmem, size = 0x1000, scoped, tag = 'scratch operand']
  %s0 = inlined_call_operand.vmem [shape: f32[2,8,3], index: 0, kind: input, shape index: {}]
  %s1 = inlined_call_operand.vmem [shape: f32[2,3,16], index: 1, kind: input, shape index: {}]
  %s2 = inlined_call_operand.vmem [shape: f32[2,8,256], index: 2, kind: input, shape index: {}]
  %s3 = inlined_call_operand.vmem [shape: f32[2,16,256], index: 3, kind: input, shape index: {}]
  %s4 = inlined_call_operand.vmem [shape: f32[256,256], index: 4, kind: input, shape index: {}]
  %s5 = inlined_call_operand.vmem [shape: f32[256,256], index: 5, kind: input, shape index: {}]
  %s6 = inlined_call_operand.vmem [shape: f32[256,512], index: 6, kind: input, shape index: {}]
  %s7 = inlined_call_operand.vmem [shape: f32[256,512], index: 7, kind: input, shape index: {}]
  %s8 = inlined_call_operand.vmem [shape: f32[1,512], index: 8, kind: input, shape index: {}]
  %s9 = inlined_call_operand.vmem [shape: f32[1,512], index: 9, kind: input, shape index: {}]
  %s10 = inlined_call_operand.vmem [shape: f32[2,8,512], index: 10, kind: output, shape index: {}]
  %s11 = sld [smem:[#allocation0]]
  $region93: #{model_forward.13} parent=0
    _
  %s13 = ssub.s32 1, %s11
  %s14 = scalar_select 0, %s13, %s11
  loop: start=0, step=1, limit=6
  $region2: #{model_forward.13} parent=0 // loop_pre_header
    _
  $region3: #{model_forward.13} parent=0 // loop_header
    %s16 = sphi 0, %s20
    %p17 = scmp.ge.s32.totalorder %s16, 6
    %s23 = sphi 0, %s42
    %s24 = sphi 0, %s38
    %s25 = sphi 0, %s34
    %s26 = sphi 0, %s23
    %s27 = sphi 0, %s24
    %s28 = sphi 0, %s25
    %s29 = sphi 0, %s26
    %s30 = sphi 0, %s27
    %s31 = sphi 0, %s28
    %s45 = sphi 0, %s47
    %s48 = sphi 0, %s45
    %s49 = sphi 0, %s48
    %s65 = sphi 0, %s49
    %s73 = sphi 0, %s75
    %s76 = sphi 0, %s73
    %s77 = sphi 0, %s76
    %s93 = sphi 0, %s77
    %s99 = sphi 0, %s101
    %s102 = sphi 0, %s99
    %s103 = sphi 0, %s102
    %s119 = sphi 0, %s103
    %s127 = sphi 0, %s129
    %s130 = sphi 0, %s127
    %s131 = sphi 0, %s130
    %s147 = sphi 0, %s131
    %s151 = sphi 0, %s151
    %s153 = sphi 0, %s151
    %s154 = sphi 0, %s153
    %s168 = sphi 0, %s154
    %s172 = sphi 0, %s172
    %s174 = sphi 0, %s172
    %s175 = sphi 0, %s174
    %s189 = sphi 0, %s175
    %s193 = sphi 0, %s193
    %s195 = sphi 0, %s193
    %s196 = sphi 0, %s195
    %s210 = sphi 0, %s196
    %s214 = sphi 0, %s214
    %s216 = sphi 0, %s214
    %s217 = sphi 0, %s216
    %s231 = sphi 0, %s217
    %s235 = sphi 0, %s235
    %s237 = sphi 0, %s235
    %s238 = sphi 0, %s237
    %s252 = sphi 0, %s238
    %s256 = sphi 0, %s256
    %s258 = sphi 0, %s256
    %s259 = sphi 0, %s258
    %s273 = sphi 0, %s259
    %s279 = sphi 0, %s281
    %s282 = sphi 0, %s279
    %s283 = sphi 0, %s282
    %s299 = sphi 0, %s283
  $region4: #{model_forward.13} parent=0 // loop_header_branch
    %19 = sbr.rel (%p17) target = $region8
  $region5: #{model_forward.13} parent=0 // loop_body
    %s21 = ssub.s32 %s16, 1
    %s22 = ssub.s32 %s16, 2
    %s32 = sadd.s32 1, %s25
    %p33 = scmp.ge.s32.totalorder %s32, 1
    %s34 = scalar_select %p33, 0, %s32
    %s35 = sadd.s32 1, %s24
    %s36 = scalar_select %p33, %s35, %s24
    %p37 = scmp.ge.s32.totalorder %s36, 2
    %s38 = scalar_select %p37, 0, %s36
    %s39 = sadd.s32 1, %s23
    %s40 = scalar_select %p37, %s39, %s23
    %p41 = scmp.ge.s32.totalorder %s40, 2
    %s42 = scalar_select %p41, 0, %s40
    %s43 = ssub.s32 %s23, %s42
    %p44 = scmp.eq.s32.totalorder %s43, 0
    %s46 = sadd.s32 %s45, 1
    %s47 = scalar_select %p44, %s45, %s46
    %p50 = pneg %p44
    %p51 = scmp.eq.s32.totalorder %s16, 3
    %p52 = por %p50, %p51
    %p53 = scmp.ne.s32.totalorder %s45, %s48
    %p54 = scmp.eq.s32.totalorder %s16, 0
    %p55 = por %p53, %p54
    %p56 = scmp.ne.s32.totalorder %s45, %s48
    %p57 = scmp.eq.s32.totalorder %s21, 3
    %p58 = por %p56, %p57
    %p59 = scmp.ne.s32.totalorder %s48, %s49
    %p60 = scmp.eq.s32.totalorder %s21, 0
    %p61 = por %p59, %p60
    %p62 = scmp.ne.s32.totalorder %s48, %s49
    %p63 = scmp.eq.s32.totalorder %s22, 3
    %p64 = por %p62, %p63
    %p66 = scmp.ne.s32.totalorder %s49, %s65
    %p67 = scmp.eq.s32.totalorder %s22, 0
    %p68 = por %p66, %p67
    %s69 = ssub.s32 %s23, %s42
    %s70 = ssub.s32 %s25, %s34
    %s71 = sor.u32 %s69, %s70
    %p72 = scmp.eq.s32.totalorder %s71, 0
    %s74 = sadd.s32 %s73, 1
    %s75 = scalar_select %p72, %s73, %s74
    %p78 = pneg %p72
    %p79 = scmp.eq.s32.totalorder %s16, 3
    %p80 = por %p78, %p79
    %p81 = scmp.ne.s32.totalorder %s73, %s76
    %p82 = scmp.eq.s32.totalorder %s16, 0
    %p83 = por %p81, %p82
    %p84 = scmp.ne.s32.totalorder %s73, %s76
    %p85 = scmp.eq.s32.totalorder %s21, 3
    %p86 = por %p84, %p85
    %p87 = scmp.ne.s32.totalorder %s76, %s77
    %p88 = scmp.eq.s32.totalorder %s21, 0
    %p89 = por %p87, %p88
    %p90 = scmp.ne.s32.totalorder %s76, %s77
    %p91 = scmp.eq.s32.totalorder %s22, 3
    %p92 = por %p90, %p91
    %p94 = scmp.ne.s32.totalorder %s77, %s93
    %p95 = scmp.eq.s32.totalorder %s22, 0
    %p96 = por %p94, %p95
    %s97 = ssub.s32 %s23, %s42
    %p98 = scmp.eq.s32.totalorder %s97, 0
    %s100 = sadd.s32 %s99, 1
    %s101 = scalar_select %p98, %s99, %s100
    %p104 = pneg %p98
    %p105 = scmp.eq.s32.totalorder %s16, 3
    %p106 = por %p104, %p105
    %p107 = scmp.ne.s32.totalorder %s99, %s102
    %p108 = scmp.eq.s32.totalorder %s16, 0
    %p109 = por %p107, %p108
    %p110 = scmp.ne.s32.totalorder %s99, %s102
    %p111 = scmp.eq.s32.totalorder %s21, 3
    %p112 = por %p110, %p111
    %p113 = scmp.ne.s32.totalorder %s102, %s103
    %p114 = scmp.eq.s32.totalorder %s21, 0
    %p115 = por %p113, %p114
    %p116 = scmp.ne.s32.totalorder %s102, %s103
    %p117 = scmp.eq.s32.totalorder %s22, 3
    %p118 = por %p116, %p117
    %p120 = scmp.ne.s32.totalorder %s103, %s119
    %p121 = scmp.eq.s32.totalorder %s22, 0
    %p122 = por %p120, %p121
    %s123 = ssub.s32 %s23, %s42
    %s124 = ssub.s32 %s25, %s34
    %s125 = sor.u32 %s123, %s124
    %p126 = scmp.eq.s32.totalorder %s125, 0
    %s128 = sadd.s32 %s127, 1
    %s129 = scalar_select %p126, %s127, %s128
    %p132 = pneg %p126
    %p133 = scmp.eq.s32.totalorder %s16, 3
    %p134 = por %p132, %p133
    %p135 = scmp.ne.s32.totalorder %s127, %s130
    %p136 = scmp.eq.s32.totalorder %s16, 0
    %p137 = por %p135, %p136
    %p138 = scmp.ne.s32.totalorder %s127, %s130
    %p139 = scmp.eq.s32.totalorder %s21, 3
    %p140 = por %p138, %p139
    %p141 = scmp.ne.s32.totalorder %s130, %s131
    %p142 = scmp.eq.s32.totalorder %s21, 0
    %p143 = por %p141, %p142
    %p144 = scmp.ne.s32.totalorder %s130, %s131
    %p145 = scmp.eq.s32.totalorder %s22, 3
    %p146 = por %p144, %p145
    %p148 = scmp.ne.s32.totalorder %s131, %s147
    %p149 = scmp.eq.s32.totalorder %s22, 0
    %p150 = por %p148, %p149
    %s152 = sadd.s32 %s151, 1
    %p155 = scmp.eq.s32.totalorder %s16, 3
    %p156 = scmp.ne.s32.totalorder %s151, %s153
    %p157 = scmp.eq.s32.totalorder %s16, 0
    %p158 = por %p156, %p157
    %p159 = scmp.ne.s32.totalorder %s151, %s153
    %p160 = scmp.eq.s32.totalorder %s21, 3
    %p161 = por %p159, %p160
    %p162 = scmp.ne.s32.totalorder %s153, %s154
    %p163 = scmp.eq.s32.totalorder %s21, 0
    %p164 = por %p162, %p163
    %p165 = scmp.ne.s32.totalorder %s153, %s154
    %p166 = scmp.eq.s32.totalorder %s22, 3
    %p167 = por %p165, %p166
    %p169 = scmp.ne.s32.totalorder %s154, %s168
    %p170 = scmp.eq.s32.totalorder %s22, 0
    %p171 = por %p169, %p170
    %s173 = sadd.s32 %s172, 1
    %p176 = scmp.eq.s32.totalorder %s16, 3
    %p177 = scmp.ne.s32.totalorder %s172, %s174
    %p178 = scmp.eq.s32.totalorder %s16, 0
    %p179 = por %p177, %p178
    %p180 = scmp.ne.s32.totalorder %s172, %s174
    %p181 = scmp.eq.s32.totalorder %s21, 3
    %p182 = por %p180, %p181
    %p183 = scmp.ne.s32.totalorder %s174, %s175
    %p184 = scmp.eq.s32.totalorder %s21, 0
    %p185 = por %p183, %p184
    %p186 = scmp.ne.s32.totalorder %s174, %s175
    %p187 = scmp.eq.s32.totalorder %s22, 3
    %p188 = por %p186, %p187
    %p190 = scmp.ne.s32.totalorder %s175, %s189
    %p191 = scmp.eq.s32.totalorder %s22, 0
    %p192 = por %p190, %p191
    %s194 = sadd.s32 %s193, 1
    %p197 = scmp.eq.s32.totalorder %s16, 3
    %p198 = scmp.ne.s32.totalorder %s193, %s195
    %p199 = scmp.eq.s32.totalorder %s16, 0
    %p200 = por %p198, %p199
    %p201 = scmp.ne.s32.totalorder %s193, %s195
    %p202 = scmp.eq.s32.totalorder %s21, 3
    %p203 = por %p201, %p202
    %p204 = scmp.ne.s32.totalorder %s195, %s196
    %p205 = scmp.eq.s32.totalorder %s21, 0
    %p206 = por %p204, %p205
    %p207 = scmp.ne.s32.totalorder %s195, %s196
    %p208 = scmp.eq.s32.totalorder %s22, 3
    %p209 = por %p207, %p208
    %p211 = scmp.ne.s32.totalorder %s196, %s210
    %p212 = scmp.eq.s32.totalorder %s22, 0
    %p213 = por %p211, %p212
    %s215 = sadd.s32 %s214, 1
    %p218 = scmp.eq.s32.totalorder %s16, 3
    %p219 = scmp.ne.s32.totalorder %s214, %s216
    %p220 = scmp.eq.s32.totalorder %s16, 0
    %p221 = por %p219, %p220
    %p222 = scmp.ne.s32.totalorder %s214, %s216
    %p223 = scmp.eq.s32.totalorder %s21, 3
    %p224 = por %p222, %p223
    %p225 = scmp.ne.s32.totalorder %s216, %s217
    %p226 = scmp.eq.s32.totalorder %s21, 0
    %p227 = por %p225, %p226
    %p228 = scmp.ne.s32.totalorder %s216, %s217
    %p229 = scmp.eq.s32.totalorder %s22, 3
    %p230 = por %p228, %p229
    %p232 = scmp.ne.s32.totalorder %s217, %s231
    %p233 = scmp.eq.s32.totalorder %s22, 0
    %p234 = por %p232, %p233
    %s236 = sadd.s32 %s235, 1
    %p239 = scmp.eq.s32.totalorder %s16, 3
    %p240 = scmp.ne.s32.totalorder %s235, %s237
    %p241 = scmp.eq.s32.totalorder %s16, 0
    %p242 = por %p240, %p241
    %p243 = scmp.ne.s32.totalorder %s235, %s237
    %p244 = scmp.eq.s32.totalorder %s21, 3
    %p245 = por %p243, %p244
    %p246 = scmp.ne.s32.totalorder %s237, %s238
    %p247 = scmp.eq.s32.totalorder %s21, 0
    %p248 = por %p246, %p247
    %p249 = scmp.ne.s32.totalorder %s237, %s238
    %p250 = scmp.eq.s32.totalorder %s22, 3
    %p251 = por %p249, %p250
    %p253 = scmp.ne.s32.totalorder %s238, %s252
    %p254 = scmp.eq.s32.totalorder %s22, 0
    %p255 = por %p253, %p254
    %s257 = sadd.s32 %s256, 1
    %p260 = scmp.eq.s32.totalorder %s16, 3
    %p261 = scmp.ne.s32.totalorder %s256, %s258
    %p262 = scmp.eq.s32.totalorder %s16, 0
    %p263 = por %p261, %p262
    %p264 = scmp.ne.s32.totalorder %s256, %s258
    %p265 = scmp.eq.s32.totalorder %s21, 3
    %p266 = por %p264, %p265
    %p267 = scmp.ne.s32.totalorder %s258, %s259
    %p268 = scmp.eq.s32.totalorder %s21, 0
    %p269 = por %p267, %p268
    %p270 = scmp.ne.s32.totalorder %s258, %s259
    %p271 = scmp.eq.s32.totalorder %s22, 3
    %p272 = por %p270, %p271
    %p274 = scmp.ne.s32.totalorder %s259, %s273
    %p275 = scmp.eq.s32.totalorder %s22, 0
    %p276 = por %p274, %p275
    %s277 = ssub.s32 %s23, %s42
    %p278 = scmp.eq.s32.totalorder %s277, 0
    %s280 = sadd.s32 %s279, 1
    %s281 = scalar_select %p278, %s279, %s280
    %p284 = pneg %p278
    %p285 = scmp.eq.s32.totalorder %s16, 3
    %p286 = por %p284, %p285
    %p287 = scmp.ne.s32.totalorder %s279, %s282
    %p288 = scmp.eq.s32.totalorder %s16, 0
    %p289 = por %p287, %p288
    %p290 = scmp.ne.s32.totalorder %s279, %s282
    %p291 = scmp.eq.s32.totalorder %s21, 3
    %p292 = por %p290, %p291
    %p293 = scmp.ne.s32.totalorder %s282, %s283
    %p294 = scmp.eq.s32.totalorder %s21, 0
    %p295 = por %p293, %p294
    %p296 = scmp.ne.s32.totalorder %s282, %s283
    %p297 = scmp.eq.s32.totalorder %s22, 3
    %p298 = por %p296, %p297
    %p300 = scmp.ne.s32.totalorder %s283, %s299
    %p301 = scmp.eq.s32.totalorder %s22, 0
    %p302 = por %p300, %p301
    %p303 = scmp.le.s32.totalorder 1, %s16
    %p304 = scmp.lt.s32.totalorder %s16, 5
    %p305 = pnand %p303, %p304
    %p306 = pneg %p305
    // Predicated region
    $region9: #{model_forward.13} parent=5 // pred_check
      _
    $region10: #{model_forward.13} parent=5 // pred_check_branch
      %308 = sbr.rel (%p305) target = $region12
    $region11: #{model_forward.13} parent=5 // pred_region
      %s309 = ssub.s32 %s16, 1
      // Predicated region
      $region13: #{model_forward.13} parent=11 // pred_check
        %p310 = pneg %p164
      $region14: #{model_forward.13} parent=11 // pred_check_branch
        %312 = sbr.rel (%p310) target = $region16
      $region15: #{model_forward.13} parent=11 // pred_region
        _
      $region16: #{model_forward.13} parent=11 // pred_fallthru
        _
      // Predicated region
      $region17: #{model_forward.13} parent=11 // pred_check
        %p313 = pneg %p185
      $region18: #{model_forward.13} parent=11 // pred_check_branch
        %315 = sbr.rel (%p313) target = $region20
      $region19: #{model_forward.13} parent=11 // pred_region
        _
      $region20: #{model_forward.13} parent=11 // pred_fallthru
        _
      // Predicated region
      $region21: #{model_forward.13} parent=11 // pred_check
        %p316 = pneg %p206
      $region22: #{model_forward.13} parent=11 // pred_check_branch
        %318 = sbr.rel (%p316) target = $region24
      $region23: #{model_forward.13} parent=11 // pred_region
        _
      $region24: #{model_forward.13} parent=11 // pred_fallthru
        _
      // Predicated region
      $region25: #{model_forward.13} parent=11 // pred_check
        %p319 = pneg %p227
      $region26: #{model_forward.13} parent=11 // pred_check_branch
        %321 = sbr.rel (%p319) target = $region28
      $region27: #{model_forward.13} parent=11 // pred_region
        _
      $region28: #{model_forward.13} parent=11 // pred_fallthru
        _
      // Predicated region
      $region29: #{model_forward.13} parent=11 // pred_check
        %p322 = pneg %p248
      $region30: #{model_forward.13} parent=11 // pred_check_branch
        %324 = sbr.rel (%p322) target = $region32
      $region31: #{model_forward.13} parent=11 // pred_region
        _
      $region32: #{model_forward.13} parent=11 // pred_fallthru
        _
      // Predicated region
      $region33: #{model_forward.13} parent=11 // pred_check
        %p325 = pneg %p269
      $region34: #{model_forward.13} parent=11 // pred_check_branch
        %327 = sbr.rel (%p325) target = $region36
      $region35: #{model_forward.13} parent=11 // pred_region
        _
      $region36: #{model_forward.13} parent=11 // pred_fallthru
        _
    $region12: #{model_forward.13} parent=5 // pred_fallthru
      _
    %p328 = scmp.lt.s32.totalorder %s16, 4
    // Predicated region
    $region37: #{model_forward.13} parent=5 // pred_check
      %p329 = pneg %p328
    $region38: #{model_forward.13} parent=5 // pred_check_branch
      %331 = sbr.rel (%p329) target = $region40
    $region39: #{model_forward.13} parent=5 // pred_region
      // Predicated region
      $region41: #{model_forward.13} parent=39 // pred_check
        %p332 = pneg %p55
      $region42: #{model_forward.13} parent=39 // pred_check_branch
        %334 = sbr.rel (%p332) target = $region44
      $region43: #{model_forward.13} parent=39 // pred_region
        %p335 = scmp.lt.s32.totalorder %s23, 1
        %s336 = scalar_select %p335, %s23, 1
        %s337 = smul.addr %s336, 8
        %s338 = scalar_lea.vmem %s0, %s337
      $region44: #{model_forward.13} parent=39 // pred_fallthru
        _
      // Predicated region
      $region45: #{model_forward.13} parent=39 // pred_check
        %p339 = pneg %p83
      $region46: #{model_forward.13} parent=39 // pred_check_branch
        %341 = sbr.rel (%p339) target = $region48
      $region47: #{model_forward.13} parent=39 // pred_region
        %p342 = scmp.lt.s32.totalorder %s23, 1
        %s343 = scalar_select %p342, %s23, 1
        %p344 = scmp.lt.s32.totalorder %s25, 0
        %s345 = scalar_select %p344, %s25, 0
        %s346 = sadd.s32 %s345, %s343
        %s347 = smul.addr %s346, 4
        %s348 = scalar_lea.vmem %s1, %s347
      $region48: #{model_forward.13} parent=39 // pred_fallthru
        _
      // Predicated region
      $region49: #{model_forward.13} parent=39 // pred_check
        %p349 = pneg %p109
      $region50: #{model_forward.13} parent=39 // pred_check_branch
        %351 = sbr.rel (%p349) target = $region52
      $region51: #{model_forward.13} parent=39 // pred_region
        %p352 = scmp.lt.s32.totalorder %s23, 1
        %s353 = scalar_select %p352, %s23, 1
        %s354 = smul.addr %s353, 2
        %s355 = smul.addr %s354, 8
        %s356 = scalar_lea.vmem %s2, %s355
      $region52: #{model_forward.13} parent=39 // pred_fallthru
        _
      // Predicated region
      $region53: #{model_forward.13} parent=39 // pred_check
        %p357 = pneg %p137
      $region54: #{model_forward.13} parent=39 // pred_check_branch
        %359 = sbr.rel (%p357) target = $region56
      $region55: #{model_forward.13} parent=39 // pred_region
        %s360 = smul.u32 2, %s25
        %p361 = scmp.lt.s32.totalorder %s23, 1
        %s362 = scalar_select %p361, %s23, 1
        %p363 = scmp.lt.s32.totalorder %s360, 1
        %s364 = scalar_select %p363, %s360, 1
        %s365 = smul.addr %s364, 2
        %s366 = smul.addr %s362, 4
        %s367 = sadd.s32 %s365, %s366
        %s368 = smul.addr %s367, 8
        %s369 = scalar_lea.vmem %s3, %s368
        %s370 = smul.u32 2, %s25
      $region56: #{model_forward.13} parent=39 // pred_fallthru
        _
    $region40: #{model_forward.13} parent=5 // pred_fallthru
      _
    %p371 = scmp.le.s32.totalorder 1, %s16
    %p372 = scmp.lt.s32.totalorder %s16, 5
    %p373 = pnand %p371, %p372
    %p374 = pneg %p373
    // Predicated region
    $region57: #{model_forward.13} parent=5 // pred_check
      _
    $region58: #{model_forward.13} parent=5 // pred_check_branch
      %376 = sbr.rel (%p373) target = $region60
    $region59: #{model_forward.13} parent=5 // pred_region
      %s377 = ssub.s32 %s16, 1
      %p378 = scmp.lt.s32.totalorder %s26, 1
      %s379 = scalar_select %p378, %s26, 1
      %s380 = smul.addr %s379, 8
      %s381 = scalar_lea.vmem %s0, %s380
      %p382 = pneg %p61
      %p383 = pneg %p58
      %p384 = scmp.lt.s32.totalorder %s26, 1
      %s385 = scalar_select %p384, %s26, 1
      %p386 = scmp.lt.s32.totalorder %s28, 0
      %s387 = scalar_select %p386, %s28, 0
      %s388 = sadd.s32 %s387, %s385
      %s389 = smul.addr %s388, 4
      %s390 = scalar_lea.vmem %s1, %s389
      %p391 = pneg %p89
      %p392 = pneg %p86
      %p393 = scmp.lt.s32.totalorder %s26, 1
      %s394 = scalar_select %p393, %s26, 1
      %s395 = smul.addr %s394, 2
      %s396 = smul.addr %s395, 8
      %s397 = scalar_lea.vmem %s2, %s396
      %p398 = pneg %p115
      %p399 = pneg %p112
      %s400 = smul.u32 2, %s28
      %p401 = scmp.lt.s32.totalorder %s26, 1
      %s402 = scalar_select %p401, %s26, 1
      %p403 = scmp.lt.s32.totalorder %s400, 1
      %s404 = scalar_select %p403, %s400, 1
      %s405 = smul.addr %s404, 2
      %s406 = smul.addr %s402, 4
      %s407 = sadd.s32 %s405, %s406
      %s408 = smul.addr %s407, 8
      %s409 = scalar_lea.vmem %s3, %s408
      %p410 = pneg %p143
      %p411 = pneg %p140
      %p412 = pneg %p164
      %p413 = pneg %p161
      %p414 = pneg %p185
      %p415 = pneg %p182
      %p416 = pneg %p206
      %p417 = pneg %p203
      %p418 = pneg %p227
      %p419 = pneg %p224
      %p420 = pneg %p248
      %p421 = pneg %p245
      %p422 = pneg %p269
      %p423 = pneg %p266
      %p424 = pneg %p295
      %p425 = pneg %p292
      %p426 = scmp.lt.s32.totalorder %s26, 1
      %s427 = scalar_select %p426, %s26, 1
      %s428 = smul.addr %s427, 4
      %s429 = smul.addr %s428, 8
      %s430 = scalar_lea.vmem %s10, %s429
      %p431 = scmp.lt.s32.totalorder %s26, 1
      %s432 = scalar_select %p431, %s26, 1
      %s433 = smul.addr %s432, 8
      %s434 = scalar_lea.vmem %s0, %s433
      %p435 = scmp.lt.s32.totalorder %s26, 1
      %s436 = scalar_select %p435, %s26, 1
      %p437 = scmp.lt.s32.totalorder %s28, 0
      %s438 = scalar_select %p437, %s28, 0
      %s439 = sadd.s32 %s438, %s436
      %s440 = smul.addr %s439, 4
      %s441 = scalar_lea.vmem %s1, %s440
      %p442 = scmp.lt.s32.totalorder %s26, 1
      %s443 = scalar_select %p442, %s26, 1
      %s444 = smul.addr %s443, 2
      %s445 = smul.addr %s444, 8
      %s446 = scalar_lea.vmem %s2, %s445
      %s447 = smul.u32 2, %s28
      %p448 = scmp.lt.s32.totalorder %s26, 1
      %s449 = scalar_select %p448, %s26, 1
      %p450 = scmp.lt.s32.totalorder %s447, 1
      %s451 = scalar_select %p450, %s447, 1
      %s452 = smul.addr %s451, 2
      %s453 = smul.addr %s449, 4
      %s454 = sadd.s32 %s452, %s453
      %s455 = smul.addr %s454, 8
      %s456 = scalar_lea.vmem %s3, %s455
      %s457 = smul.u32 2, %s28
      %p458 = scmp.lt.s32.totalorder %s26, 1
      %s459 = scalar_select %p458, %s26, 1
      %s460 = smul.addr %s459, 4
      %s461 = smul.addr %s460, 8
      %s462 = scalar_lea.vmem %s10, %s461
      %v464 = vld [vmem:[%s434] sm:$0xff]
      %v465 = vld [vmem:[%s441] sm:$0x7]
      %v466 = vmul.f32 %v464, %v464
      %vm467 = vcmask 23552
      %v468 = vsel %vm467, %v466, 0.0
      %469 = vadd.xlane.f32.xlu0 %v468
      %v470 = vpop.xlane.xlu0 %469
      %v471 = vmul.f32 %v465, %v465
      %vm472 = vcmask 124928
      %v473 = vsel %vm472, %v471, 0.0
      %v474 = vrot.slane %v473, 4
      %v475 = vadd.f32 %v473, %v474
      %v476 = vrot.slane %v475, 2
      %v477 = vadd.f32 %v475, %v476
      %v478 = vrot.slane %v477, 1
      %v479 = vadd.f32 %v477, %v478
      %481 = vset.pattern.permute.xlu0 0
      %482 = vperm.xlu0 %481, %v464
      %v483 = vpop.permute.xlu0 %482
      %v485 = vperm.slane %v465, 0
      %v486 = vmul.f32 %v483, %v485
      %487 = vset.pattern.permute.xlu0 1
      %488 = vperm.xlu0 %487, %v464
      %v489 = vpop.permute.xlu0 %488
      %v491 = vperm.slane %v465, 1
      %v492 = vmul.f32 %v489, %v491
      %v493 = vadd.f32 %v486, %v492
      %494 = vset.pattern.permute.xlu0 2
      %495 = vperm.xlu0 %494, %v464
      %v496 = vpop.permute.xlu0 %495
      %v498 = vperm.slane %v465, 2
      %v499 = vmul.f32 %v496, %v498
      %v500 = vadd.f32 %v493, %v499
      %v501 = vadd.f32 %v470, %v479
      %v502 = vmul.f32 %v500, 2.0
      %v503 = vsub.f32 %v501, %v502
      %v504 = vmax.f32 %v503, 0.0
      %p505 = scmp.eq.s32.totalorder %s27, 0
      %p506 = scmp.eq.s32.totalorder %s28, 0
      %p507 = pnand %p505, %p506
      %p508 = pneg %p507
      // Predicated region
      $region61: #{model_forward.13} parent=59 // pred_check
        _
      $region62: #{model_forward.13} parent=59 // pred_check_branch
        %510 = sbr.rel (%p507) target = $region64
      $region63: #{model_forward.13} parent=59 // pred_region
        %vm511 = vcmask 7168
        %512 = vst.msk [vmem:[#allocation2] sm:$0xff] %vm511, 0.0
      $region64: #{model_forward.13} parent=59 // pred_fallthru
        _
      // Predicated region
      $region65: #{model_forward.13} parent=59 // pred_check
        %p513 = pneg %p505
      $region66: #{model_forward.13} parent=59 // pred_check_branch
        %515 = sbr.rel (%p513) target = $region68
      $region67: #{model_forward.13} parent=59 // pred_region
        %v516 = vld [vmem:[#allocation2] sm:$0xff]
        %vm517 = vcmp.lt.f32.partialorder %v504, 0.64
        %v518 = vsel %vm517, 1, 0
        %v519 = vcvt.s32.f32 %v518
        %vm520 = vcmask 130048
        %v521 = vsel %vm520, %v519, 0.0
        %522 = vadd.xlane.f32.xlu0 %v521
        %v523 = vpop.xlane.xlu0 %522
        %v524 = vadd.f32 %v516, %v523
        %vm525 = vcmask 7168
        %526 = vst.msk [vmem:[#allocation2] sm:$0xff] %vm525, %v524
      $region68: #{model_forward.13} parent=59 // pred_fallthru
        _
      %p527 = scmp.eq.s32.totalorder %s27, 1
      %p528 = pnand %p527, %p506
      %p529 = pneg %p528
      // Predicated region
      $region69: #{model_forward.13} parent=59 // pred_check
        _
      $region70: #{model_forward.13} parent=59 // pred_check_branch
        %531 = sbr.rel (%p528) target = $region72
      $region71: #{model_forward.13} parent=59 // pred_region
        %vm532 = vcmask 7168
        %533 = vst.msk [vmem:[#allocation3] sm:$0xff] %vm532, -1e+30
        %534 = vst.msk [vmem:[#allocation4] sm:$0xff] %vm532, 0.0
        %535 = vst [vmem:[#allocation5] sm:$0xff] 0.0
        %536 = vst [vmem:[#allocation5 + $0x8] sm:$0xff] 0.0
        %v537 = vld [vmem:[%s446] sm:$0xff]
        %v538 = vld [vmem:[%s446 + $0x8] sm:$0xff]
        %v539 = vpack.c.bf16 %v537, %v537
        %v540 = vpack.c.bf16 %v538, %v538
        %v541 = vld [vmem:[%s4] sm:$0xff]
        %v542 = vld [vmem:[%s4 + $0x8] sm:$0xff]
        %v543 = vld [vmem:[%s4 + $0x10] sm:$0xff]
        %v544 = vld [vmem:[%s4 + $0x18] sm:$0xff]
        %v545 = vld [vmem:[%s4 + $0x20] sm:$0xff]
        %v546 = vld [vmem:[%s4 + $0x28] sm:$0xff]
        %v547 = vld [vmem:[%s4 + $0x30] sm:$0xff]
        %v548 = vld [vmem:[%s4 + $0x38] sm:$0xff]
        %v549 = vld [vmem:[%s4 + $0x40] sm:$0xff]
        %v550 = vld [vmem:[%s4 + $0x48] sm:$0xff]
        %v551 = vld [vmem:[%s4 + $0x50] sm:$0xff]
        %v552 = vld [vmem:[%s4 + $0x58] sm:$0xff]
        %v553 = vld [vmem:[%s4 + $0x60] sm:$0xff]
        %v554 = vld [vmem:[%s4 + $0x68] sm:$0xff]
        %v555 = vld [vmem:[%s4 + $0x70] sm:$0xff]
        %v556 = vld [vmem:[%s4 + $0x78] sm:$0xff]
        %v557 = vld [vmem:[%s4 + $0x80] sm:$0xff]
        %v558 = vld [vmem:[%s4 + $0x88] sm:$0xff]
        %v559 = vld [vmem:[%s4 + $0x90] sm:$0xff]
        %v560 = vld [vmem:[%s4 + $0x98] sm:$0xff]
        %v561 = vld [vmem:[%s4 + $0xa0] sm:$0xff]
        %v562 = vld [vmem:[%s4 + $0xa8] sm:$0xff]
        %v563 = vld [vmem:[%s4 + $0xb0] sm:$0xff]
        %v564 = vld [vmem:[%s4 + $0xb8] sm:$0xff]
        %v565 = vld [vmem:[%s4 + $0xc0] sm:$0xff]
        %v566 = vld [vmem:[%s4 + $0xc8] sm:$0xff]
        %v567 = vld [vmem:[%s4 + $0xd0] sm:$0xff]
        %v568 = vld [vmem:[%s4 + $0xd8] sm:$0xff]
        %v569 = vld [vmem:[%s4 + $0xe0] sm:$0xff]
        %v570 = vld [vmem:[%s4 + $0xe8] sm:$0xff]
        %v571 = vld [vmem:[%s4 + $0xf0] sm:$0xff]
        %v572 = vld [vmem:[%s4 + $0xf8] sm:$0xff]
        %v573 = vld [vmem:[%s4 + $0x100] sm:$0xff]
        %v574 = vld [vmem:[%s4 + $0x108] sm:$0xff]
        %v575 = vld [vmem:[%s4 + $0x110] sm:$0xff]
        %v576 = vld [vmem:[%s4 + $0x118] sm:$0xff]
        %v577 = vld [vmem:[%s4 + $0x120] sm:$0xff]
        %v578 = vld [vmem:[%s4 + $0x128] sm:$0xff]
        %v579 = vld [vmem:[%s4 + $0x130] sm:$0xff]
        %v580 = vld [vmem:[%s4 + $0x138] sm:$0xff]
        %v581 = vld [vmem:[%s4 + $0x140] sm:$0xff]
        %v582 = vld [vmem:[%s4 + $0x148] sm:$0xff]
        %v583 = vld [vmem:[%s4 + $0x150] sm:$0xff]
        %v584 = vld [vmem:[%s4 + $0x158] sm:$0xff]
        %v585 = vld [vmem:[%s4 + $0x160] sm:$0xff]
        %v586 = vld [vmem:[%s4 + $0x168] sm:$0xff]
        %v587 = vld [vmem:[%s4 + $0x170] sm:$0xff]
        %v588 = vld [vmem:[%s4 + $0x178] sm:$0xff]
        %v589 = vld [vmem:[%s4 + $0x180] sm:$0xff]
        %v590 = vld [vmem:[%s4 + $0x188] sm:$0xff]
        %v591 = vld [vmem:[%s4 + $0x190] sm:$0xff]
        %v592 = vld [vmem:[%s4 + $0x198] sm:$0xff]
        %v593 = vld [vmem:[%s4 + $0x1a0] sm:$0xff]
        %v594 = vld [vmem:[%s4 + $0x1a8] sm:$0xff]
        %v595 = vld [vmem:[%s4 + $0x1b0] sm:$0xff]
        %v596 = vld [vmem:[%s4 + $0x1b8] sm:$0xff]
        %v597 = vld [vmem:[%s4 + $0x1c0] sm:$0xff]
        %v598 = vld [vmem:[%s4 + $0x1c8] sm:$0xff]
        %v599 = vld [vmem:[%s4 + $0x1d0] sm:$0xff]
        %v600 = vld [vmem:[%s4 + $0x1d8] sm:$0xff]
        %v601 = vld [vmem:[%s4 + $0x1e0] sm:$0xff]
        %v602 = vld [vmem:[%s4 + $0x1e8] sm:$0xff]
        %v603 = vld [vmem:[%s4 + $0x1f0] sm:$0xff]
        %v604 = vld [vmem:[%s4 + $0x1f8] sm:$0xff]
        %v605 = vpack.c.bf16 %v543, %v541
        %v606 = vpack.c.bf16 %v544, %v542
        %v607 = vpack.c.bf16 %v547, %v545
        %v608 = vpack.c.bf16 %v548, %v546
        %v609 = vpack.c.bf16 %v551, %v549
        %v610 = vpack.c.bf16 %v552, %v550
        %v611 = vpack.c.bf16 %v555, %v553
        %v612 = vpack.c.bf16 %v556, %v554
        %v613 = vpack.c.bf16 %v559, %v557
        %v614 = vpack.c.bf16 %v560, %v558
        %v615 = vpack.c.bf16 %v563, %v561
        %v616 = vpack.c.bf16 %v564, %v562
        %v617 = vpack.c.bf16 %v567, %v565
        %v618 = vpack.c.bf16 %v568, %v566
        %v619 = vpack.c.bf16 %v571, %v569
        %v620 = vpack.c.bf16 %v572, %v570
        %v621 = vpack.c.bf16 %v575, %v573
        %v622 = vpack.c.bf16 %v576, %v574
        %v623 = vpack.c.bf16 %v579, %v577
        %v624 = vpack.c.bf16 %v580, %v578
        %v625 = vpack.c.bf16 %v583, %v581
        %v626 = vpack.c.bf16 %v584, %v582
        %v627 = vpack.c.bf16 %v587, %v585
        %v628 = vpack.c.bf16 %v588, %v586
        %v629 = vpack.c.bf16 %v591, %v589
        %v630 = vpack.c.bf16 %v592, %v590
        %v631 = vpack.c.bf16 %v595, %v593
        %v632 = vpack.c.bf16 %v596, %v594
        %v633 = vpack.c.bf16 %v599, %v597
        %v634 = vpack.c.bf16 %v600, %v598
        %v635 = vpack.c.bf16 %v603, %v601
        %v636 = vpack.c.bf16 %v604, %v602
        %637 = vmatpush.bf16.msra.mxu0 %v619
        %638 = vmatpush.bf16.msra.mxu0 %v617
        %639 = vmatpush.bf16.msra.mxu0 %v615
        %640 = vmatpush.bf16.msra.mxu0 %v613
        %641 = vmatpush.bf16.msra.mxu0 %v611
        %642 = vmatpush.bf16.msra.mxu0 %v609
        %643 = vmatpush.bf16.msra.mxu0 %v607
        %644 = vmatpush.bf16.msra.mxu0 %v605
        %645 = vmatmul.bf16.gmra.mxu0 %v539
        %v646 = vpop.f32.mrf.mxu0
        %v647 = vadd.f32 0.0, %v646
        %v648 = vpop.f32.mrf.mxu0
        %649 = vdwg.mxu0
        %650 = vmatpush.bf16.msra.mxu0 %v635
        %651 = vmatpush.bf16.msra.mxu0 %v633
        %652 = vmatpush.bf16.msra.mxu0 %v631
        %653 = vmatpush.bf16.msra.mxu0 %v629
        %654 = vmatpush.bf16.msra.mxu0 %v627
        %655 = vmatpush.bf16.msra.mxu0 %v625
        %656 = vmatpush.bf16.msra.mxu0 %v623
        %657 = vmatpush.bf16.msra.mxu0 %v621
        %658 = vmatmul.bf16.gmra.mxu0 %v540
        %v659 = vpop.f32.mrf.mxu0
        %v660 = vadd.f32 %v647, %v659
        %v661 = vpop.f32.mrf.mxu0
        %662 = vdwg.mxu0
        %663 = vmatpush.bf16.msra.mxu0 %v620
        %664 = vmatpush.bf16.msra.mxu0 %v618
        %665 = vmatpush.bf16.msra.mxu0 %v616
        %666 = vmatpush.bf16.msra.mxu0 %v614
        %667 = vmatpush.bf16.msra.mxu0 %v612
        %668 = vmatpush.bf16.msra.mxu0 %v610
        %669 = vmatpush.bf16.msra.mxu0 %v608
        %670 = vmatpush.bf16.msra.mxu0 %v606
        %671 = vmatmul.bf16.gmra.mxu0 %v539
        %v672 = vpop.f32.mrf.mxu0
        %v673 = vadd.f32 0.0, %v672
        %v674 = vpop.f32.mrf.mxu0
        %675 = vdwg.mxu0
        %676 = vmatpush.bf16.msra.mxu0 %v636
        %677 = vmatpush.bf16.msra.mxu0 %v634
        %678 = vmatpush.bf16.msra.mxu0 %v632
        %679 = vmatpush.bf16.msra.mxu0 %v630
        %680 = vmatpush.bf16.msra.mxu0 %v628
        %681 = vmatpush.bf16.msra.mxu0 %v626
        %682 = vmatpush.bf16.msra.mxu0 %v624
        %683 = vmatpush.bf16.msra.mxu0 %v622
        %684 = vmatmul.bf16.gmra.mxu0 %v540
        %v685 = vpop.f32.mrf.mxu0
        %v686 = vadd.f32 %v673, %v685
        %v687 = vpop.f32.mrf.mxu0
        %688 = vdwg.mxu0
        %v689 = vmul.f32 %v660, 0.0625
        %v690 = vmul.f32 %v686, 0.0625
        %v691 = vpack.c.bf16 %v690, %v689
        %692 = vst [vmem:[#allocation6] sm:$0xff] %v691
      $region72: #{model_forward.13} parent=59 // pred_fallthru
        _
      // Predicated region
      $region73: #{model_forward.13} parent=59 // pred_check
        %p693 = pneg %p527
      $region74: #{model_forward.13} parent=59 // pred_check_branch
        %695 = sbr.rel (%p693) target = $region76
      $region75: #{model_forward.13} parent=59 // pred_region
        %v696 = vld [vmem:[%s456] sm:$0xff]
        %v697 = vld [vmem:[%s456 + $0x8] sm:$0xff]
        %v698 = vld [vmem:[%s456 + $0x10] sm:$0xff]
        %v699 = vld [vmem:[%s456 + $0x18] sm:$0xff]
        %v700 = vpack.c.bf16 %v698, %v696
        %v701 = vpack.c.bf16 %v699, %v697
        %v702 = vld [vmem:[%s5] sm:$0xff]
        %v703 = vld [vmem:[%s5 + $0x8] sm:$0xff]
        %v704 = vld [vmem:[%s5 + $0x10] sm:$0xff]
        %v705 = vld [vmem:[%s5 + $0x18] sm:$0xff]
        %v706 = vld [vmem:[%s5 + $0x20] sm:$0xff]
        %v707 = vld [vmem:[%s5 + $0x28] sm:$0xff]
        %v708 = vld [vmem:[%s5 + $0x30] sm:$0xff]
        %v709 = vld [vmem:[%s5 + $0x38] sm:$0xff]
        %v710 = vld [vmem:[%s5 + $0x40] sm:$0xff]
        %v711 = vld [vmem:[%s5 + $0x48] sm:$0xff]
        %v712 = vld [vmem:[%s5 + $0x50] sm:$0xff]
        %v713 = vld [vmem:[%s5 + $0x58] sm:$0xff]
        %v714 = vld [vmem:[%s5 + $0x60] sm:$0xff]
        %v715 = vld [vmem:[%s5 + $0x68] sm:$0xff]
        %v716 = vld [vmem:[%s5 + $0x70] sm:$0xff]
        %v717 = vld [vmem:[%s5 + $0x78] sm:$0xff]
        %v718 = vld [vmem:[%s5 + $0x80] sm:$0xff]
        %v719 = vld [vmem:[%s5 + $0x88] sm:$0xff]
        %v720 = vld [vmem:[%s5 + $0x90] sm:$0xff]
        %v721 = vld [vmem:[%s5 + $0x98] sm:$0xff]
        %v722 = vld [vmem:[%s5 + $0xa0] sm:$0xff]
        %v723 = vld [vmem:[%s5 + $0xa8] sm:$0xff]
        %v724 = vld [vmem:[%s5 + $0xb0] sm:$0xff]
        %v725 = vld [vmem:[%s5 + $0xb8] sm:$0xff]
        %v726 = vld [vmem:[%s5 + $0xc0] sm:$0xff]
        %v727 = vld [vmem:[%s5 + $0xc8] sm:$0xff]
        %v728 = vld [vmem:[%s5 + $0xd0] sm:$0xff]
        %v729 = vld [vmem:[%s5 + $0xd8] sm:$0xff]
        %v730 = vld [vmem:[%s5 + $0xe0] sm:$0xff]
        %v731 = vld [vmem:[%s5 + $0xe8] sm:$0xff]
        %v732 = vld [vmem:[%s5 + $0xf0] sm:$0xff]
        %v733 = vld [vmem:[%s5 + $0xf8] sm:$0xff]
        %v734 = vld [vmem:[%s5 + $0x100] sm:$0xff]
        %v735 = vld [vmem:[%s5 + $0x108] sm:$0xff]
        %v736 = vld [vmem:[%s5 + $0x110] sm:$0xff]
        %v737 = vld [vmem:[%s5 + $0x118] sm:$0xff]
        %v738 = vld [vmem:[%s5 + $0x120] sm:$0xff]
        %v739 = vld [vmem:[%s5 + $0x128] sm:$0xff]
        %v740 = vld [vmem:[%s5 + $0x130] sm:$0xff]
        %v741 = vld [vmem:[%s5 + $0x138] sm:$0xff]
        %v742 = vld [vmem:[%s5 + $0x140] sm:$0xff]
        %v743 = vld [vmem:[%s5 + $0x148] sm:$0xff]
        %v744 = vld [vmem:[%s5 + $0x150] sm:$0xff]
        %v745 = vld [vmem:[%s5 + $0x158] sm:$0xff]
        %v746 = vld [vmem:[%s5 + $0x160] sm:$0xff]
        %v747 = vld [vmem:[%s5 + $0x168] sm:$0xff]
        %v748 = vld [vmem:[%s5 + $0x170] sm:$0xff]
        %v749 = vld [vmem:[%s5 + $0x178] sm:$0xff]
        %v750 = vld [vmem:[%s5 + $0x180] sm:$0xff]
        %v751 = vld [vmem:[%s5 + $0x188] sm:$0xff]
        %v752 = vld [vmem:[%s5 + $0x190] sm:$0xff]
        %v753 = vld [vmem:[%s5 + $0x198] sm:$0xff]
        %v754 = vld [vmem:[%s5 + $0x1a0] sm:$0xff]
        %v755 = vld [vmem:[%s5 + $0x1a8] sm:$0xff]
        %v756 = vld [vmem:[%s5 + $0x1b0] sm:$0xff]
        %v757 = vld [vmem:[%s5 + $0x1b8] sm:$0xff]
        %v758 = vld [vmem:[%s5 + $0x1c0] sm:$0xff]
        %v759 = vld [vmem:[%s5 + $0x1c8] sm:$0xff]
        %v760 = vld [vmem:[%s5 + $0x1d0] sm:$0xff]
        %v761 = vld [vmem:[%s5 + $0x1d8] sm:$0xff]
        %v762 = vld [vmem:[%s5 + $0x1e0] sm:$0xff]
        %v763 = vld [vmem:[%s5 + $0x1e8] sm:$0xff]
        %v764 = vld [vmem:[%s5 + $0x1f0] sm:$0xff]
        %v765 = vld [vmem:[%s5 + $0x1f8] sm:$0xff]
        %v766 = vpack.c.bf16 %v704, %v702
        %v767 = vpack.c.bf16 %v705, %v703
        %v768 = vpack.c.bf16 %v708, %v706
        %v769 = vpack.c.bf16 %v709, %v707
        %v770 = vpack.c.bf16 %v712, %v710
        %v771 = vpack.c.bf16 %v713, %v711
        %v772 = vpack.c.bf16 %v716, %v714
        %v773 = vpack.c.bf16 %v717, %v715
        %v774 = vpack.c.bf16 %v720, %v718
        %v775 = vpack.c.bf16 %v721, %v719
        %v776 = vpack.c.bf16 %v724, %v722
        %v777 = vpack.c.bf16 %v725, %v723
        %v778 = vpack.c.bf16 %v728, %v726
        %v779 = vpack.c.bf16 %v729, %v727
        %v780 = vpack.c.bf16 %v732, %v730
        %v781 = vpack.c.bf16 %v733, %v731
        %v782 = vpack.c.bf16 %v736, %v734
        %v783 = vpack.c.bf16 %v737, %v735
        %v784 = vpack.c.bf16 %v740, %v738
        %v785 = vpack.c.bf16 %v741, %v739
        %v786 = vpack.c.bf16 %v744, %v742
        %v787 = vpack.c.bf16 %v745, %v743
        %v788 = vpack.c.bf16 %v748, %v746
        %v789 = vpack.c.bf16 %v749, %v747
        %v790 = vpack.c.bf16 %v752, %v750
        %v791 = vpack.c.bf16 %v753, %v751
        %v792 = vpack.c.bf16 %v756, %v754
        %v793 = vpack.c.bf16 %v757, %v755
        %v794 = vpack.c.bf16 %v760, %v758
        %v795 = vpack.c.bf16 %v761, %v759
        %v796 = vpack.c.bf16 %v764, %v762
        %v797 = vpack.c.bf16 %v765, %v763
        %798 = vmatpush.bf16.msra.mxu0 %v780
        %799 = vmatpush.bf16.msra.mxu0 %v778
        %800 = vmatpush.bf16.msra.mxu0 %v776
        %801 = vmatpush.bf16.msra.mxu0 %v774
        %802 = vmatpush.bf16.msra.mxu0 %v772
        %803 = vmatpush.bf16.msra.mxu0 %v770
        %804 = vmatpush.bf16.msra.mxu0 %v768
        %805 = vmatpush.bf16.msra.mxu0 %v766
        %806 = vmatmul.bf16.gmra.mxu0 %v700
        %v807 = vpop.f32.mrf.mxu0
        %v808 = vadd.f32 0.0, %v807
        %v809 = vpop.f32.mrf.mxu0
        %v810 = vadd.f32 0.0, %v809
        %811 = vdwg.mxu0
        %812 = vmatpush.bf16.msra.mxu0 %v796
        %813 = vmatpush.bf16.msra.mxu0 %v794
        %814 = vmatpush.bf16.msra.mxu0 %v792
        %815 = vmatpush.bf16.msra.mxu0 %v790
        %816 = vmatpush.bf16.msra.mxu0 %v788
        %817 = vmatpush.bf16.msra.mxu0 %v786
        %818 = vmatpush.bf16.msra.mxu0 %v784
        %819 = vmatpush.bf16.msra.mxu0 %v782
        %820 = vmatmul.bf16.gmra.mxu0 %v701
        %v821 = vpop.f32.mrf.mxu0
        %v822 = vadd.f32 %v808, %v821
        %v823 = vpop.f32.mrf.mxu0
        %v824 = vadd.f32 %v810, %v823
        %825 = vdwg.mxu0
        %826 = vmatpush.bf16.msra.mxu0 %v781
        %827 = vmatpush.bf16.msra.mxu0 %v779
        %828 = vmatpush.bf16.msra.mxu0 %v777
        %829 = vmatpush.bf16.msra.mxu0 %v775
        %830 = vmatpush.bf16.msra.mxu0 %v773
        %831 = vmatpush.bf16.msra.mxu0 %v771
        %832 = vmatpush.bf16.msra.mxu0 %v769
        %833 = vmatpush.bf16.msra.mxu0 %v767
        %834 = vmatmul.bf16.gmra.mxu0 %v700
        %v835 = vpop.f32.mrf.mxu0
        %v836 = vadd.f32 0.0, %v835
        %v837 = vpop.f32.mrf.mxu0
        %v838 = vadd.f32 0.0, %v837
        %839 = vdwg.mxu0
        %840 = vmatpush.bf16.msra.mxu0 %v797
        %841 = vmatpush.bf16.msra.mxu0 %v795
        %842 = vmatpush.bf16.msra.mxu0 %v793
        %843 = vmatpush.bf16.msra.mxu0 %v791
        %844 = vmatpush.bf16.msra.mxu0 %v789
        %845 = vmatpush.bf16.msra.mxu0 %v787
        %846 = vmatpush.bf16.msra.mxu0 %v785
        %847 = vmatpush.bf16.msra.mxu0 %v783
        %848 = vmatmul.bf16.gmra.mxu0 %v701
        %v849 = vpop.f32.mrf.mxu0
        %v850 = vadd.f32 %v836, %v849
        %v851 = vpop.f32.mrf.mxu0
        %v852 = vadd.f32 %v838, %v851
        %853 = vdwg.mxu0
        %v854 = vld [vmem:[#allocation2] sm:$0xff]
        %v855 = vmul.f32 %v854, 0.0625
        %v856 = vadd.f32 %v855, 1.0
        %v857 = vmul.f32 %v856, 0.64
        %859 = vset.pattern.permute.xlu0 0
        %860 = vperm.xlu0 %859, %v857
        %v861 = vpop.permute.xlu0 %860
        %vm863 = vcmp.lt.f32.partialorder %v504, %v861
        %v864 = vld [vmem:[#allocation6] sm:$0xff]
        %v865 = vpack.c.bf16 %v824, %v822
        %v866 = vpack.c.bf16 %v852, %v850
        %v868 = vunpack.c.l.b16 %v864
        %v869 = vunpack.c.h.b16 %v864
        %v870 = vpack.c.b16 %v868, %v868
        %v871 = vpack.c.b16 %v869, %v869
        %874 = vmatpush.bf16.xpose.msra.mxu0 0
        %875 = vmatpush.bf16.xpose.msra.mxu0 0
        %876 = vmatpush.bf16.xpose.msra.mxu0 0
        %877 = vmatpush.bf16.xpose.msra.mxu0 0
        %878 = vmatpush.bf16.xpose.msra.mxu0 0
        %879 = vmatpush.bf16.xpose.msra.mxu0 0
        %880 = vmatpush.bf16.xpose.msra.mxu0 0
        %881 = vmatpush.bf16.xpose.msra.mxu0 %v865
        %882 = vmatmul.bf16.gmra.mxu0 %v870
        %v883 = vpop.f32.mrf.mxu0
        %v884 = vadd.f32 0.0, %v883
        %v885 = vpop.f32.mrf.mxu0
        %886 = vdwg.mxu0
        %887 = vmatpush.bf16.xpose.msra.mxu0 0
        %888 = vmatpush.bf16.xpose.msra.mxu0 0
        %889 = vmatpush.bf16.xpose.msra.mxu0 0
        %890 = vmatpush.bf16.xpose.msra.mxu0 0
        %891 = vmatpush.bf16.xpose.msra.mxu0 0
        %892 = vmatpush.bf16.xpose.msra.mxu0 0
        %893 = vmatpush.bf16.xpose.msra.mxu0 0
        %894 = vmatpush.bf16.xpose.msra.mxu0 %v866
        %895 = vmatmul.bf16.gmra.mxu0 %v871
        %v896 = vpop.f32.mrf.mxu0
        %v897 = vadd.f32 %v884, %v896
        %v898 = vpop.f32.mrf.mxu0
        %899 = vdwg.mxu0
        %v900 = vsel %vm863, %v897, -1e+30
        %v901 = vld [vmem:[#allocation3] sm:$0xff]
        %vm902 = vcmask 130048
        %v903 = vsel %vm902, %v900, -inf
        %904 = vmax.xlane.f32.xlu0 %v903
        %v905 = vpop.xlane.xlu0 %904
        %v906 = vmax.f32 %v901, %v905
        %v907 = vsub.f32 %v901, %v906
        %v908 = vmul.f32 %v907, 1.442695
        %v909 = vpow.pop %v908
        %911 = vset.pattern.permute.xlu0 0
        %912 = vperm.xlu0 %911, %v906
        %v913 = vpop.permute.xlu0 %912
        %v915 = vsub.f32 %v900, %v913
        %v916 = vmul.f32 %v915, 1.442695
        %v917 = vpow.pop %v916
        %v918 = vld [vmem:[#allocation4] sm:$0xff]
        %v919 = vmul.f32 %v909, %v918
        %v920 = vsel %vm902, %v917, 0.0
        %921 = vadd.xlane.f32.xlu0 %v920
        %v922 = vpop.xlane.xlu0 %921
        %v923 = vadd.f32 %v919, %v922
        %vm924 = vcmask 7168
        %925 = vst.msk [vmem:[#allocation4] sm:$0xff] %vm924, %v923
        %v926 = vld [vmem:[#allocation5] sm:$0xff]
        %v927 = vld [vmem:[#allocation5 + $0x8] sm:$0xff]
        %929 = vset.pattern.permute.xlu0 0
        %930 = vperm.xlu0 %929, %v909
        %v931 = vpop.permute.xlu0 %930
        %v933 = vmul.f32 %v931, %v926
        %v934 = vmul.f32 %v931, %v927
        %v935 = vpack.c.bf16 %v917, %v917
        %v937 = vsel %vm902, %v935, 0
        %939 = vmatpush.bf16.msra.mxu0 0
        %940 = vmatpush.bf16.msra.mxu0 0
        %941 = vmatpush.bf16.msra.mxu0 0
        %942 = vmatpush.bf16.msra.mxu0 0
        %943 = vmatpush.bf16.msra.mxu0 0
        %944 = vmatpush.bf16.msra.mxu0 0
        %945 = vmatpush.bf16.msra.mxu0 0
        %946 = vmatpush.bf16.msra.mxu0 %v700
        %947 = vmatmul.bf16.gmra.mxu0 %v937
        %v948 = vpop.f32.mrf.mxu0
        %v949 = vadd.f32 0.0, %v948
        %v950 = vpop.f32.mrf.mxu0
        %951 = vdwg.mxu0
        %952 = vmatpush.bf16.msra.mxu0 0
        %953 = vmatpush.bf16.msra.mxu0 0
        %954 = vmatpush.bf16.msra.mxu0 0
        %955 = vmatpush.bf16.msra.mxu0 0
        %956 = vmatpush.bf16.msra.mxu0 0
        %957 = vmatpush.bf16.msra.mxu0 0
        %958 = vmatpush.bf16.msra.mxu0 0
        %959 = vmatpush.bf16.msra.mxu0 %v701
        %960 = vmatmul.bf16.gmra.mxu0 %v937
        %v961 = vpop.f32.mrf.mxu0
        %v962 = vadd.f32 0.0, %v961
        %v963 = vpop.f32.mrf.mxu0
        %964 = vdwg.mxu0
        %v965 = vadd.f32 %v933, %v949
        %v966 = vadd.f32 %v934, %v962
        %967 = vst [vmem:[#allocation5] sm:$0xff] %v965
        %968 = vst [vmem:[#allocation5 + $0x8] sm:$0xff] %v966
        %969 = vst.msk [vmem:[#allocation3] sm:$0xff] %vm924, %v906
      $region76: #{model_forward.13} parent=59 // pred_fallthru
        _
      // Predicated region
      $region77: #{model_forward.13} parent=59 // pred_check
        _
      $region78: #{model_forward.13} parent=59 // pred_check_branch
        %971 = sbr.rel (%p528) target = $region80
      $region79: #{model_forward.13} parent=59 // pred_region
        %v972 = vld [vmem:[%s446] sm:$0xff]
        %v973 = vld [vmem:[%s446 + $0x8] sm:$0xff]
        %v974 = vld [vmem:[#allocation5] sm:$0xff]
        %v975 = vld [vmem:[#allocation5 + $0x8] sm:$0xff]
        %v976 = vld [vmem:[#allocation4] sm:$0xff]
        %v977 = vrcp.pop %v976
        %979 = vset.pattern.permute.xlu0 0
        %980 = vperm.xlu0 %979, %v977
        %v981 = vpop.permute.xlu0 %980
        %v983 = vmul.f32 %v974, %v981
        %v984 = vmul.f32 %v975, %v981
        %v985 = vsub.f32 %v983, %v972
        %v986 = vsub.f32 %v984, %v973
        %v987 = vpack.c.bf16 %v985, %v985
        %v988 = vpack.c.bf16 %v986, %v986
        %v989 = vld [vmem:[%s6] sm:$0xff]
        %v990 = vld [vmem:[%s6 + $0x8] sm:$0xff]
        %v991 = vld [vmem:[%s6 + $0x10] sm:$0xff]
        %v992 = vld [vmem:[%s6 + $0x18] sm:$0xff]
        %v993 = vld [vmem:[%s6 + $0x20] sm:$0xff]
        %v994 = vld [vmem:[%s6 + $0x28] sm:$0xff]
        %v995 = vld [vmem:[%s6 + $0x30] sm:$0xff]
        %v996 = vld [vmem:[%s6 + $0x38] sm:$0xff]
        %v997 = vld [vmem:[%s6 + $0x40] sm:$0xff]
        %v998 = vld [vmem:[%s6 + $0x48] sm:$0xff]
        %v999 = vld [vmem:[%s6 + $0x50] sm:$0xff]
        %v1000 = vld [vmem:[%s6 + $0x58] sm:$0xff]
        %v1001 = vld [vmem:[%s6 + $0x60] sm:$0xff]
        %v1002 = vld [vmem:[%s6 + $0x68] sm:$0xff]
        %v1003 = vld [vmem:[%s6 + $0x70] sm:$0xff]
        %v1004 = vld [vmem:[%s6 + $0x78] sm:$0xff]
        %v1005 = vld [vmem:[%s6 + $0x80] sm:$0xff]
        %v1006 = vld [vmem:[%s6 + $0x88] sm:$0xff]
        %v1007 = vld [vmem:[%s6 + $0x90] sm:$0xff]
        %v1008 = vld [vmem:[%s6 + $0x98] sm:$0xff]
        %v1009 = vld [vmem:[%s6 + $0xa0] sm:$0xff]
        %v1010 = vld [vmem:[%s6 + $0xa8] sm:$0xff]
        %v1011 = vld [vmem:[%s6 + $0xb0] sm:$0xff]
        %v1012 = vld [vmem:[%s6 + $0xb8] sm:$0xff]
        %v1013 = vld [vmem:[%s6 + $0xc0] sm:$0xff]
        %v1014 = vld [vmem:[%s6 + $0xc8] sm:$0xff]
        %v1015 = vld [vmem:[%s6 + $0xd0] sm:$0xff]
        %v1016 = vld [vmem:[%s6 + $0xd8] sm:$0xff]
        %v1017 = vld [vmem:[%s6 + $0xe0] sm:$0xff]
        %v1018 = vld [vmem:[%s6 + $0xe8] sm:$0xff]
        %v1019 = vld [vmem:[%s6 + $0xf0] sm:$0xff]
        %v1020 = vld [vmem:[%s6 + $0xf8] sm:$0xff]
        %v1021 = vld [vmem:[%s6 + $0x100] sm:$0xff]
        %v1022 = vld [vmem:[%s6 + $0x108] sm:$0xff]
        %v1023 = vld [vmem:[%s6 + $0x110] sm:$0xff]
        %v1024 = vld [vmem:[%s6 + $0x118] sm:$0xff]
        %v1025 = vld [vmem:[%s6 + $0x120] sm:$0xff]
        %v1026 = vld [vmem:[%s6 + $0x128] sm:$0xff]
        %v1027 = vld [vmem:[%s6 + $0x130] sm:$0xff]
        %v1028 = vld [vmem:[%s6 + $0x138] sm:$0xff]
        %v1029 = vld [vmem:[%s6 + $0x140] sm:$0xff]
        %v1030 = vld [vmem:[%s6 + $0x148] sm:$0xff]
        %v1031 = vld [vmem:[%s6 + $0x150] sm:$0xff]
        %v1032 = vld [vmem:[%s6 + $0x158] sm:$0xff]
        %v1033 = vld [vmem:[%s6 + $0x160] sm:$0xff]
        %v1034 = vld [vmem:[%s6 + $0x168] sm:$0xff]
        %v1035 = vld [vmem:[%s6 + $0x170] sm:$0xff]
        %v1036 = vld [vmem:[%s6 + $0x178] sm:$0xff]
        %v1037 = vld [vmem:[%s6 + $0x180] sm:$0xff]
        %v1038 = vld [vmem:[%s6 + $0x188] sm:$0xff]
        %v1039 = vld [vmem:[%s6 + $0x190] sm:$0xff]
        %v1040 = vld [vmem:[%s6 + $0x198] sm:$0xff]
        %v1041 = vld [vmem:[%s6 + $0x1a0] sm:$0xff]
        %v1042 = vld [vmem:[%s6 + $0x1a8] sm:$0xff]
        %v1043 = vld [vmem:[%s6 + $0x1b0] sm:$0xff]
        %v1044 = vld [vmem:[%s6 + $0x1b8] sm:$0xff]
        %v1045 = vld [vmem:[%s6 + $0x1c0] sm:$0xff]
        %v1046 = vld [vmem:[%s6 + $0x1c8] sm:$0xff]
        %v1047 = vld [vmem:[%s6 + $0x1d0] sm:$0xff]
        %v1048 = vld [vmem:[%s6 + $0x1d8] sm:$0xff]
        %v1049 = vld [vmem:[%s6 + $0x1e0] sm:$0xff]
        %v1050 = vld [vmem:[%s6 + $0x1e8] sm:$0xff]
        %v1051 = vld [vmem:[%s6 + $0x1f0] sm:$0xff]
        %v1052 = vld [vmem:[%s6 + $0x1f8] sm:$0xff]
        %v1053 = vld [vmem:[%s6 + $0x200] sm:$0xff]
        %v1054 = vld [vmem:[%s6 + $0x208] sm:$0xff]
        %v1055 = vld [vmem:[%s6 + $0x210] sm:$0xff]
        %v1056 = vld [vmem:[%s6 + $0x218] sm:$0xff]
        %v1057 = vld [vmem:[%s6 + $0x220] sm:$0xff]
        %v1058 = vld [vmem:[%s6 + $0x228] sm:$0xff]
        %v1059 = vld [vmem:[%s6 + $0x230] sm:$0xff]
        %v1060 = vld [vmem:[%s6 + $0x238] sm:$0xff]
        %v1061 = vld [vmem:[%s6 + $0x240] sm:$0xff]
        %v1062 = vld [vmem:[%s6 + $0x248] sm:$0xff]
        %v1063 = vld [vmem:[%s6 + $0x250] sm:$0xff]
        %v1064 = vld [vmem:[%s6 + $0x258] sm:$0xff]
        %v1065 = vld [vmem:[%s6 + $0x260] sm:$0xff]
        %v1066 = vld [vmem:[%s6 + $0x268] sm:$0xff]
        %v1067 = vld [vmem:[%s6 + $0x270] sm:$0xff]
        %v1068 = vld [vmem:[%s6 + $0x278] sm:$0xff]
        %v1069 = vld [vmem:[%s6 + $0x280] sm:$0xff]
        %v1070 = vld [vmem:[%s6 + $0x288] sm:$0xff]
        %v1071 = vld [vmem:[%s6 + $0x290] sm:$0xff]
        %v1072 = vld [vmem:[%s6 + $0x298] sm:$0xff]
        %v1073 = vld [vmem:[%s6 + $0x2a0] sm:$0xff]
        %v1074 = vld [vmem:[%s6 + $0x2a8] sm:$0xff]
        %v1075 = vld [vmem:[%s6 + $0x2b0] sm:$0xff]
        %v1076 = vld [vmem:[%s6 + $0x2b8] sm:$0xff]
        %v1077 = vld [vmem:[%s6 + $0x2c0] sm:$0xff]
        %v1078 = vld [vmem:[%s6 + $0x2c8] sm:$0xff]
        %v1079 = vld [vmem:[%s6 + $0x2d0] sm:$0xff]
        %v1080 = vld [vmem:[%s6 + $0x2d8] sm:$0xff]
        %v1081 = vld [vmem:[%s6 + $0x2e0] sm:$0xff]
        %v1082 = vld [vmem:[%s6 + $0x2e8] sm:$0xff]
        %v1083 = vld [vmem:[%s6 + $0x2f0] sm:$0xff]
        %v1084 = vld [vmem:[%s6 + $0x2f8] sm:$0xff]
        %v1085 = vld [vmem:[%s6 + $0x300] sm:$0xff]
        %v1086 = vld [vmem:[%s6 + $0x308] sm:$0xff]
        %v1087 = vld [vmem:[%s6 + $0x310] sm:$0xff]
        %v1088 = vld [vmem:[%s6 + $0x318] sm:$0xff]
        %v1089 = vld [vmem:[%s6 + $0x320] sm:$0xff]
        %v1090 = vld [vmem:[%s6 + $0x328] sm:$0xff]
        %v1091 = vld [vmem:[%s6 + $0x330] sm:$0xff]
        %v1092 = vld [vmem:[%s6 + $0x338] sm:$0xff]
        %v1093 = vld [vmem:[%s6 + $0x340] sm:$0xff]
        %v1094 = vld [vmem:[%s6 + $0x348] sm:$0xff]
        %v1095 = vld [vmem:[%s6 + $0x350] sm:$0xff]
        %v1096 = vld [vmem:[%s6 + $0x358] sm:$0xff]
        %v1097 = vld [vmem:[%s6 + $0x360] sm:$0xff]
        %v1098 = vld [vmem:[%s6 + $0x368] sm:$0xff]
        %v1099 = vld [vmem:[%s6 + $0x370] sm:$0xff]
        %v1100 = vld [vmem:[%s6 + $0x378] sm:$0xff]
        %v1101 = vld [vmem:[%s6 + $0x380] sm:$0xff]
        %v1102 = vld [vmem:[%s6 + $0x388] sm:$0xff]
        %v1103 = vld [vmem:[%s6 + $0x390] sm:$0xff]
        %v1104 = vld [vmem:[%s6 + $0x398] sm:$0xff]
        %v1105 = vld [vmem:[%s6 + $0x3a0] sm:$0xff]
        %v1106 = vld [vmem:[%s6 + $0x3a8] sm:$0xff]
        %v1107 = vld [vmem:[%s6 + $0x3b0] sm:$0xff]
        %v1108 = vld [vmem:[%s6 + $0x3b8] sm:$0xff]
        %v1109 = vld [vmem:[%s6 + $0x3c0] sm:$0xff]
        %v1110 = vld [vmem:[%s6 + $0x3c8] sm:$0xff]
        %v1111 = vld [vmem:[%s6 + $0x3d0] sm:$0xff]
        %v1112 = vld [vmem:[%s6 + $0x3d8] sm:$0xff]
        %v1113 = vld [vmem:[%s6 + $0x3e0] sm:$0xff]
        %v1114 = vld [vmem:[%s6 + $0x3e8] sm:$0xff]
        %v1115 = vld [vmem:[%s6 + $0x3f0] sm:$0xff]
        %v1116 = vld [vmem:[%s6 + $0x3f8] sm:$0xff]
        %v1117 = vpack.c.bf16 %v993, %v989
        %v1118 = vpack.c.bf16 %v994, %v990
        %v1119 = vpack.c.bf16 %v995, %v991
        %v1120 = vpack.c.bf16 %v996, %v992
        %v1121 = vpack.c.bf16 %v1001, %v997
        %v1122 = vpack.c.bf16 %v1002, %v998
        %v1123 = vpack.c.bf16 %v1003, %v999
        %v1124 = vpack.c.bf16 %v1004, %v1000
        %v1125 = vpack.c.bf16 %v1009, %v1005
        %v1126 = vpack.c.bf16 %v1010, %v1006
        %v1127 = vpack.c.bf16 %v1011, %v1007
        %v1128 = vpack.c.bf16 %v1012, %v1008
        %v1129 = vpack.c.bf16 %v1017, %v1013
        %v1130 = vpack.c.bf16 %v1018, %v1014
        %v1131 = vpack.c.bf16 %v1019, %v1015
        %v1132 = vpack.c.bf16 %v1020, %v1016
        %v1133 = vpack.c.bf16 %v1025, %v1021
        %v1134 = vpack.c.bf16 %v1026, %v1022
        %v1135 = vpack.c.bf16 %v1027, %v1023
        %v1136 = vpack.c.bf16 %v1028, %v1024
        %v1137 = vpack.c.bf16 %v1033, %v1029
        %v1138 = vpack.c.bf16 %v1034, %v1030
        %v1139 = vpack.c.bf16 %v1035, %v1031
        %v1140 = vpack.c.bf16 %v1036, %v1032
        %v1141 = vpack.c.bf16 %v1041, %v1037
        %v1142 = vpack.c.bf16 %v1042, %v1038
        %v1143 = vpack.c.bf16 %v1043, %v1039
        %v1144 = vpack.c.bf16 %v1044, %v1040
        %v1145 = vpack.c.bf16 %v1049, %v1045
        %v1146 = vpack.c.bf16 %v1050, %v1046
        %v1147 = vpack.c.bf16 %v1051, %v1047
        %v1148 = vpack.c.bf16 %v1052, %v1048
        %v1149 = vpack.c.bf16 %v1057, %v1053
        %v1150 = vpack.c.bf16 %v1058, %v1054
        %v1151 = vpack.c.bf16 %v1059, %v1055
        %v1152 = vpack.c.bf16 %v1060, %v1056
        %v1153 = vpack.c.bf16 %v1065, %v1061
        %v1154 = vpack.c.bf16 %v1066, %v1062
        %v1155 = vpack.c.bf16 %v1067, %v1063
        %v1156 = vpack.c.bf16 %v1068, %v1064
        %v1157 = vpack.c.bf16 %v1073, %v1069
        %v1158 = vpack.c.bf16 %v1074, %v1070
        %v1159 = vpack.c.bf16 %v1075, %v1071
        %v1160 = vpack.c.bf16 %v1076, %v1072
        %v1161 = vpack.c.bf16 %v1081, %v1077
        %v1162 = vpack.c.bf16 %v1082, %v1078
        %v1163 = vpack.c.bf16 %v1083, %v1079
        %v1164 = vpack.c.bf16 %v1084, %v1080
        %v1165 = vpack.c.bf16 %v1089, %v1085
        %v1166 = vpack.c.bf16 %v1090, %v1086
        %v1167 = vpack.c.bf16 %v1091, %v1087
        %v1168 = vpack.c.bf16 %v1092, %v1088
        %v1169 = vpack.c.bf16 %v1097, %v1093
        %v1170 = vpack.c.bf16 %v1098, %v1094
        %v1171 = vpack.c.bf16 %v1099, %v1095
        %v1172 = vpack.c.bf16 %v1100, %v1096
        %v1173 = vpack.c.bf16 %v1105, %v1101
        %v1174 = vpack.c.bf16 %v1106, %v1102
        %v1175 = vpack.c.bf16 %v1107, %v1103
        %v1176 = vpack.c.bf16 %v1108, %v1104
        %v1177 = vpack.c.bf16 %v1113, %v1109
        %v1178 = vpack.c.bf16 %v1114, %v1110
        %v1179 = vpack.c.bf16 %v1115, %v1111
        %v1180 = vpack.c.bf16 %v1116, %v1112
        %v1181 = vpack.c.bf16 %v972, %v972
        %v1182 = vpack.c.bf16 %v973, %v973
        %v1183 = vld [vmem:[%s7] sm:$0xff]
        %v1184 = vld [vmem:[%s7 + $0x8] sm:$0xff]
        %v1185 = vld [vmem:[%s7 + $0x10] sm:$0xff]
        %v1186 = vld [vmem:[%s7 + $0x18] sm:$0xff]
        %v1187 = vld [vmem:[%s7 + $0x20] sm:$0xff]
        %v1188 = vld [vmem:[%s7 + $0x28] sm:$0xff]
        %v1189 = vld [vmem:[%s7 + $0x30] sm:$0xff]
        %v1190 = vld [vmem:[%s7 + $0x38] sm:$0xff]
        %v1191 = vld [vmem:[%s7 + $0x40] sm:$0xff]
        %v1192 = vld [vmem:[%s7 + $0x48] sm:$0xff]
        %v1193 = vld [vmem:[%s7 + $0x50] sm:$0xff]
        %v1194 = vld [vmem:[%s7 + $0x58] sm:$0xff]
        %v1195 = vld [vmem:[%s7 + $0x60] sm:$0xff]
        %v1196 = vld [vmem:[%s7 + $0x68] sm:$0xff]
        %v1197 = vld [vmem:[%s7 + $0x70] sm:$0xff]
        %v1198 = vld [vmem:[%s7 + $0x78] sm:$0xff]
        %v1199 = vld [vmem:[%s7 + $0x80] sm:$0xff]
        %v1200 = vld [vmem:[%s7 + $0x88] sm:$0xff]
        %v1201 = vld [vmem:[%s7 + $0x90] sm:$0xff]
        %v1202 = vld [vmem:[%s7 + $0x98] sm:$0xff]
        %v1203 = vld [vmem:[%s7 + $0xa0] sm:$0xff]
        %v1204 = vld [vmem:[%s7 + $0xa8] sm:$0xff]
        %v1205 = vld [vmem:[%s7 + $0xb0] sm:$0xff]
        %v1206 = vld [vmem:[%s7 + $0xb8] sm:$0xff]
        %v1207 = vld [vmem:[%s7 + $0xc0] sm:$0xff]
        %v1208 = vld [vmem:[%s7 + $0xc8] sm:$0xff]
        %v1209 = vld [vmem:[%s7 + $0xd0] sm:$0xff]
        %v1210 = vld [vmem:[%s7 + $0xd8] sm:$0xff]
        %v1211 = vld [vmem:[%s7 + $0xe0] sm:$0xff]
        %v1212 = vld [vmem:[%s7 + $0xe8] sm:$0xff]
        %v1213 = vld [vmem:[%s7 + $0xf0] sm:$0xff]
        %v1214 = vld [vmem:[%s7 + $0xf8] sm:$0xff]
        %v1215 = vld [vmem:[%s7 + $0x100] sm:$0xff]
        %v1216 = vld [vmem:[%s7 + $0x108] sm:$0xff]
        %v1217 = vld [vmem:[%s7 + $0x110] sm:$0xff]
        %v1218 = vld [vmem:[%s7 + $0x118] sm:$0xff]
        %v1219 = vld [vmem:[%s7 + $0x120] sm:$0xff]
        %v1220 = vld [vmem:[%s7 + $0x128] sm:$0xff]
        %v1221 = vld [vmem:[%s7 + $0x130] sm:$0xff]
        %v1222 = vld [vmem:[%s7 + $0x138] sm:$0xff]
        %v1223 = vld [vmem:[%s7 + $0x140] sm:$0xff]
        %v1224 = vld [vmem:[%s7 + $0x148] sm:$0xff]
        %v1225 = vld [vmem:[%s7 + $0x150] sm:$0xff]
        %v1226 = vld [vmem:[%s7 + $0x158] sm:$0xff]
        %v1227 = vld [vmem:[%s7 + $0x160] sm:$0xff]
        %v1228 = vld [vmem:[%s7 + $0x168] sm:$0xff]
        %v1229 = vld [vmem:[%s7 + $0x170] sm:$0xff]
        %v1230 = vld [vmem:[%s7 + $0x178] sm:$0xff]
        %v1231 = vld [vmem:[%s7 + $0x180] sm:$0xff]
        %v1232 = vld [vmem:[%s7 + $0x188] sm:$0xff]
        %v1233 = vld [vmem:[%s7 + $0x190] sm:$0xff]
        %v1234 = vld [vmem:[%s7 + $0x198] sm:$0xff]
        %v1235 = vld [vmem:[%s7 + $0x1a0] sm:$0xff]
        %v1236 = vld [vmem:[%s7 + $0x1a8] sm:$0xff]
        %v1237 = vld [vmem:[%s7 + $0x1b0] sm:$0xff]
        %v1238 = vld [vmem:[%s7 + $0x1b8] sm:$0xff]
        %v1239 = vld [vmem:[%s7 + $0x1c0] sm:$0xff]
        %v1240 = vld [vmem:[%s7 + $0x1c8] sm:$0xff]
        %v1241 = vld [vmem:[%s7 + $0x1d0] sm:$0xff]
        %v1242 = vld [vmem:[%s7 + $0x1d8] sm:$0xff]
        %v1243 = vld [vmem:[%s7 + $0x1e0] sm:$0xff]
        %v1244 = vld [vmem:[%s7 + $0x1e8] sm:$0xff]
        %v1245 = vld [vmem:[%s7 + $0x1f0] sm:$0xff]
        %v1246 = vld [vmem:[%s7 + $0x1f8] sm:$0xff]
        %v1247 = vld [vmem:[%s7 + $0x200] sm:$0xff]
        %v1248 = vld [vmem:[%s7 + $0x208] sm:$0xff]
        %v1249 = vld [vmem:[%s7 + $0x210] sm:$0xff]
        %v1250 = vld [vmem:[%s7 + $0x218] sm:$0xff]
        %v1251 = vld [vmem:[%s7 + $0x220] sm:$0xff]
        %v1252 = vld [vmem:[%s7 + $0x228] sm:$0xff]
        %v1253 = vld [vmem:[%s7 + $0x230] sm:$0xff]
        %v1254 = vld [vmem:[%s7 + $0x238] sm:$0xff]
        %v1255 = vld [vmem:[%s7 + $0x240] sm:$0xff]
        %v1256 = vld [vmem:[%s7 + $0x248] sm:$0xff]
        %v1257 = vld [vmem:[%s7 + $0x250] sm:$0xff]
        %v1258 = vld [vmem:[%s7 + $0x258] sm:$0xff]
        %v1259 = vld [vmem:[%s7 + $0x260] sm:$0xff]
        %v1260 = vld [vmem:[%s7 + $0x268] sm:$0xff]
        %v1261 = vld [vmem:[%s7 + $0x270] sm:$0xff]
        %v1262 = vld [vmem:[%s7 + $0x278] sm:$0xff]
        %v1263 = vld [vmem:[%s7 + $0x280] sm:$0xff]
        %v1264 = vld [vmem:[%s7 + $0x288] sm:$0xff]
        %v1265 = vld [vmem:[%s7 + $0x290] sm:$0xff]
        %v1266 = vld [vmem:[%s7 + $0x298] sm:$0xff]
        %v1267 = vld [vmem:[%s7 + $0x2a0] sm:$0xff]
        %v1268 = vld [vmem:[%s7 + $0x2a8] sm:$0xff]
        %v1269 = vld [vmem:[%s7 + $0x2b0] sm:$0xff]
        %v1270 = vld [vmem:[%s7 + $0x2b8] sm:$0xff]
        %v1271 = vld [vmem:[%s7 + $0x2c0] sm:$0xff]
        %v1272 = vld [vmem:[%s7 + $0x2c8] sm:$0xff]
        %v1273 = vld [vmem:[%s7 + $0x2d0] sm:$0xff]
        %v1274 = vld [vmem:[%s7 + $0x2d8] sm:$0xff]
        %v1275 = vld [vmem:[%s7 + $0x2e0] sm:$0xff]
        %v1276 = vld [vmem:[%s7 + $0x2e8] sm:$0xff]
        %v1277 = vld [vmem:[%s7 + $0x2f0] sm:$0xff]
        %v1278 = vld [vmem:[%s7 + $0x2f8] sm:$0xff]
        %v1279 = vld [vmem:[%s7 + $0x300] sm:$0xff]
        %v1280 = vld [vmem:[%s7 + $0x308] sm:$0xff]
        %v1281 = vld [vmem:[%s7 + $0x310] sm:$0xff]
        %v1282 = vld [vmem:[%s7 + $0x318] sm:$0xff]
        %v1283 = vld [vmem:[%s7 + $0x320] sm:$0xff]
        %v1284 = vld [vmem:[%s7 + $0x328] sm:$0xff]
        %v1285 = vld [vmem:[%s7 + $0x330] sm:$0xff]
        %v1286 = vld [vmem:[%s7 + $0x338] sm:$0xff]
        %v1287 = vld [vmem:[%s7 + $0x340] sm:$0xff]
        %v1288 = vld [vmem:[%s7 + $0x348] sm:$0xff]
        %v1289 = vld [vmem:[%s7 + $0x350] sm:$0xff]
        %v1290 = vld [vmem:[%s7 + $0x358] sm:$0xff]
        %v1291 = vld [vmem:[%s7 + $0x360] sm:$0xff]
        %v1292 = vld [vmem:[%s7 + $0x368] sm:$0xff]
        %v1293 = vld [vmem:[%s7 + $0x370] sm:$0xff]
        %v1294 = vld [vmem:[%s7 + $0x378] sm:$0xff]
        %v1295 = vld [vmem:[%s7 + $0x380] sm:$0xff]
        %v1296 = vld [vmem:[%s7 + $0x388] sm:$0xff]
        %v1297 = vld [vmem:[%s7 + $0x390] sm:$0xff]
        %v1298 = vld [vmem:[%s7 + $0x398] sm:$0xff]
        %v1299 = vld [vmem:[%s7 + $0x3a0] sm:$0xff]
        %v1300 = vld [vmem:[%s7 + $0x3a8] sm:$0xff]
        %v1301 = vld [vmem:[%s7 + $0x3b0] sm:$0xff]
        %v1302 = vld [vmem:[%s7 + $0x3b8] sm:$0xff]
        %v1303 = vld [vmem:[%s7 + $0x3c0] sm:$0xff]
        %v1304 = vld [vmem:[%s7 + $0x3c8] sm:$0xff]
        %v1305 = vld [vmem:[%s7 + $0x3d0] sm:$0xff]
        %v1306 = vld [vmem:[%s7 + $0x3d8] sm:$0xff]
        %v1307 = vld [vmem:[%s7 + $0x3e0] sm:$0xff]
        %v1308 = vld [vmem:[%s7 + $0x3e8] sm:$0xff]
        %v1309 = vld [vmem:[%s7 + $0x3f0] sm:$0xff]
        %v1310 = vld [vmem:[%s7 + $0x3f8] sm:$0xff]
        %v1311 = vpack.c.bf16 %v1187, %v1183
        %v1312 = vpack.c.bf16 %v1188, %v1184
        %v1313 = vpack.c.bf16 %v1189, %v1185
        %v1314 = vpack.c.bf16 %v1190, %v1186
        %v1315 = vpack.c.bf16 %v1195, %v1191
        %v1316 = vpack.c.bf16 %v1196, %v1192
        %v1317 = vpack.c.bf16 %v1197, %v1193
        %v1318 = vpack.c.bf16 %v1198, %v1194
        %v1319 = vpack.c.bf16 %v1203, %v1199
        %v1320 = vpack.c.bf16 %v1204, %v1200
        %v1321 = vpack.c.bf16 %v1205, %v1201
        %v1322 = vpack.c.bf16 %v1206, %v1202
        %v1323 = vpack.c.bf16 %v1211, %v1207
        %v1324 = vpack.c.bf16 %v1212, %v1208
        %v1325 = vpack.c.bf16 %v1213, %v1209
        %v1326 = vpack.c.bf16 %v1214, %v1210
        %v1327 = vpack.c.bf16 %v1219, %v1215
        %v1328 = vpack.c.bf16 %v1220, %v1216
        %v1329 = vpack.c.bf16 %v1221, %v1217
        %v1330 = vpack.c.bf16 %v1222, %v1218
        %v1331 = vpack.c.bf16 %v1227, %v1223
        %v1332 = vpack.c.bf16 %v1228, %v1224
        %v1333 = vpack.c.bf16 %v1229, %v1225
        %v1334 = vpack.c.bf16 %v1230, %v1226
        %v1335 = vpack.c.bf16 %v1235, %v1231
        %v1336 = vpack.c.bf16 %v1236, %v1232
        %v1337 = vpack.c.bf16 %v1237, %v1233
        %v1338 = vpack.c.bf16 %v1238, %v1234
        %v1339 = vpack.c.bf16 %v1243, %v1239
        %v1340 = vpack.c.bf16 %v1244, %v1240
        %v1341 = vpack.c.bf16 %v1245, %v1241
        %v1342 = vpack.c.bf16 %v1246, %v1242
        %v1343 = vpack.c.bf16 %v1251, %v1247
        %v1344 = vpack.c.bf16 %v1252, %v1248
        %v1345 = vpack.c.bf16 %v1253, %v1249
        %v1346 = vpack.c.bf16 %v1254, %v1250
        %v1347 = vpack.c.bf16 %v1259, %v1255
        %v1348 = vpack.c.bf16 %v1260, %v1256
        %v1349 = vpack.c.bf16 %v1261, %v1257
        %v1350 = vpack.c.bf16 %v1262, %v1258
        %v1351 = vpack.c.bf16 %v1267, %v1263
        %v1352 = vpack.c.bf16 %v1268, %v1264
        %v1353 = vpack.c.bf16 %v1269, %v1265
        %v1354 = vpack.c.bf16 %v1270, %v1266
        %v1355 = vpack.c.bf16 %v1275, %v1271
        %v1356 = vpack.c.bf16 %v1276, %v1272
        %v1357 = vpack.c.bf16 %v1277, %v1273
        %v1358 = vpack.c.bf16 %v1278, %v1274
        %v1359 = vpack.c.bf16 %v1283, %v1279
        %v1360 = vpack.c.bf16 %v1284, %v1280
        %v1361 = vpack.c.bf16 %v1285, %v1281
        %v1362 = vpack.c.bf16 %v1286, %v1282
        %v1363 = vpack.c.bf16 %v1291, %v1287
        %v1364 = vpack.c.bf16 %v1292, %v1288
        %v1365 = vpack.c.bf16 %v1293, %v1289
        %v1366 = vpack.c.bf16 %v1294, %v1290
        %v1367 = vpack.c.bf16 %v1299, %v1295
        %v1368 = vpack.c.bf16 %v1300, %v1296
        %v1369 = vpack.c.bf16 %v1301, %v1297
        %v1370 = vpack.c.bf16 %v1302, %v1298
        %v1371 = vpack.c.bf16 %v1307, %v1303
        %v1372 = vpack.c.bf16 %v1308, %v1304
        %v1373 = vpack.c.bf16 %v1309, %v1305
        %v1374 = vpack.c.bf16 %v1310, %v1306
        %1375 = vmatpush.bf16.msra.mxu0 %v1339
        %1376 = vmatpush.bf16.msra.mxu0 %v1335
        %1377 = vmatpush.bf16.msra.mxu0 %v1331
        %1378 = vmatpush.bf16.msra.mxu0 %v1327
        %1379 = vmatpush.bf16.msra.mxu0 %v1323
        %1380 = vmatpush.bf16.msra.mxu0 %v1319
        %1381 = vmatpush.bf16.msra.mxu0 %v1315
        %1382 = vmatpush.bf16.msra.mxu0 %v1311
        %1383 = vmatmul.bf16.gmra.mxu0 %v1181
        %v1384 = vpop.f32.mrf.mxu0
        %v1385 = vadd.f32 0.0, %v1384
        %v1386 = vpop.f32.mrf.mxu0
        %1387 = vdwg.mxu0
        %1388 = vmatpush.bf16.msra.mxu0 %v1371
        %1389 = vmatpush.bf16.msra.mxu0 %v1367
        %1390 = vmatpush.bf16.msra.mxu0 %v1363
        %1391 = vmatpush.bf16.msra.mxu0 %v1359
        %1392 = vmatpush.bf16.msra.mxu0 %v1355
        %1393 = vmatpush.bf16.msra.mxu0 %v1351
        %1394 = vmatpush.bf16.msra.mxu0 %v1347
        %1395 = vmatpush.bf16.msra.mxu0 %v1343
        %1396 = vmatmul.bf16.gmra.mxu0 %v1182
        %v1397 = vpop.f32.mrf.mxu0
        %v1398 = vadd.f32 %v1385, %v1397
        %v1399 = vpop.f32.mrf.mxu0
        %1400 = vdwg.mxu0
        %1401 = vmatpush.bf16.msra.mxu0 %v1340
        %1402 = vmatpush.bf16.msra.mxu0 %v1336
        %1403 = vmatpush.bf16.msra.mxu0 %v1332
        %1404 = vmatpush.bf16.msra.mxu0 %v1328
        %1405 = vmatpush.bf16.msra.mxu0 %v1324
        %1406 = vmatpush.bf16.msra.mxu0 %v1320
        %1407 = vmatpush.bf16.msra.mxu0 %v1316
        %1408 = vmatpush.bf16.msra.mxu0 %v1312
        %1409 = vmatmul.bf16.gmra.mxu0 %v1181
        %v1410 = vpop.f32.mrf.mxu0
        %v1411 = vadd.f32 0.0, %v1410
        %v1412 = vpop.f32.mrf.mxu0
        %1413 = vdwg.mxu0
        %1414 = vmatpush.bf16.msra.mxu0 %v1372
        %1415 = vmatpush.bf16.msra.mxu0 %v1368
        %1416 = vmatpush.bf16.msra.mxu0 %v1364
        %1417 = vmatpush.bf16.msra.mxu0 %v1360
        %1418 = vmatpush.bf16.msra.mxu0 %v1356
        %1419 = vmatpush.bf16.msra.mxu0 %v1352
        %1420 = vmatpush.bf16.msra.mxu0 %v1348
        %1421 = vmatpush.bf16.msra.mxu0 %v1344
        %1422 = vmatmul.bf16.gmra.mxu0 %v1182
        %v1423 = vpop.f32.mrf.mxu0
        %v1424 = vadd.f32 %v1411, %v1423
        %v1425 = vpop.f32.mrf.mxu0
        %1426 = vdwg.mxu0
        %1427 = vmatpush.bf16.msra.mxu0 %v1341
        %1428 = vmatpush.bf16.msra.mxu0 %v1337
        %1429 = vmatpush.bf16.msra.mxu0 %v1333
        %1430 = vmatpush.bf16.msra.mxu0 %v1329
        %1431 = vmatpush.bf16.msra.mxu0 %v1325
        %1432 = vmatpush.bf16.msra.mxu0 %v1321
        %1433 = vmatpush.bf16.msra.mxu0 %v1317
        %1434 = vmatpush.bf16.msra.mxu0 %v1313
        %1435 = vmatmul.bf16.gmra.mxu0 %v1181
        %v1436 = vpop.f32.mrf.mxu0
        %v1437 = vadd.f32 0.0, %v1436
        %v1438 = vpop.f32.mrf.mxu0
        %1439 = vdwg.mxu0
        %1440 = vmatpush.bf16.msra.mxu0 %v1373
        %1441 = vmatpush.bf16.msra.mxu0 %v1369
        %1442 = vmatpush.bf16.msra.mxu0 %v1365
        %1443 = vmatpush.bf16.msra.mxu0 %v1361
        %1444 = vmatpush.bf16.msra.mxu0 %v1357
        %1445 = vmatpush.bf16.msra.mxu0 %v1353
        %1446 = vmatpush.bf16.msra.mxu0 %v1349
        %1447 = vmatpush.bf16.msra.mxu0 %v1345
        %1448 = vmatmul.bf16.gmra.mxu0 %v1182
        %v1449 = vpop.f32.mrf.mxu0
        %v1450 = vadd.f32 %v1437, %v1449
        %v1451 = vpop.f32.mrf.mxu0
        %1452 = vdwg.mxu0
        %1453 = vmatpush.bf16.msra.mxu0 %v1342
        %1454 = vmatpush.bf16.msra.mxu0 %v1338
        %1455 = vmatpush.bf16.msra.mxu0 %v1334
        %1456 = vmatpush.bf16.msra.mxu0 %v1330
        %1457 = vmatpush.bf16.msra.mxu0 %v1326
        %1458 = vmatpush.bf16.msra.mxu0 %v1322
        %1459 = vmatpush.bf16.msra.mxu0 %v1318
        %1460 = vmatpush.bf16.msra.mxu0 %v1314
        %1461 = vmatmul.bf16.gmra.mxu0 %v1181
        %v1462 = vpop.f32.mrf.mxu0
        %v1463 = vadd.f32 0.0, %v1462
        %v1464 = vpop.f32.mrf.mxu0
        %1465 = vdwg.mxu0
        %1466 = vmatpush.bf16.msra.mxu0 %v1374
        %1467 = vmatpush.bf16.msra.mxu0 %v1370
        %1468 = vmatpush.bf16.msra.mxu0 %v1366
        %1469 = vmatpush.bf16.msra.mxu0 %v1362
        %1470 = vmatpush.bf16.msra.mxu0 %v1358
        %1471 = vmatpush.bf16.msra.mxu0 %v1354
        %1472 = vmatpush.bf16.msra.mxu0 %v1350
        %1473 = vmatpush.bf16.msra.mxu0 %v1346
        %1474 = vmatmul.bf16.gmra.mxu0 %v1182
        %v1475 = vpop.f32.mrf.mxu0
        %v1476 = vadd.f32 %v1463, %v1475
        %v1477 = vpop.f32.mrf.mxu0
        %1478 = vdwg.mxu0
        %1479 = vmatpush.bf16.msra.mxu0 %v1145
        %1480 = vmatpush.bf16.msra.mxu0 %v1141
        %1481 = vmatpush.bf16.msra.mxu0 %v1137
        %1482 = vmatpush.bf16.msra.mxu0 %v1133
        %1483 = vmatpush.bf16.msra.mxu0 %v1129
        %1484 = vmatpush.bf16.msra.mxu0 %v1125
        %1485 = vmatpush.bf16.msra.mxu0 %v1121
        %1486 = vmatpush.bf16.msra.mxu0 %v1117
        %1487 = vmatmul.bf16.gmra.mxu0 %v987
        %v1488 = vpop.f32.mrf.mxu0
        %v1489 = vadd.f32 %v1398, %v1488
        %v1490 = vpop.f32.mrf.mxu0
        %1491 = vdwg.mxu0
        %1492 = vmatpush.bf16.msra.mxu0 %v1177
        %1493 = vmatpush.bf16.msra.mxu0 %v1173
        %1494 = vmatpush.bf16.msra.mxu0 %v1169
        %1495 = vmatpush.bf16.msra.mxu0 %v1165
        %1496 = vmatpush.bf16.msra.mxu0 %v1161
        %1497 = vmatpush.bf16.msra.mxu0 %v1157
        %1498 = vmatpush.bf16.msra.mxu0 %v1153
        %1499 = vmatpush.bf16.msra.mxu0 %v1149
        %1500 = vmatmul.bf16.gmra.mxu0 %v988
        %v1501 = vpop.f32.mrf.mxu0
        %v1502 = vadd.f32 %v1489, %v1501
        %v1503 = vpop.f32.mrf.mxu0
        %1504 = vdwg.mxu0
        %1505 = vmatpush.bf16.msra.mxu0 %v1146
        %1506 = vmatpush.bf16.msra.mxu0 %v1142
        %1507 = vmatpush.bf16.msra.mxu0 %v1138
        %1508 = vmatpush.bf16.msra.mxu0 %v1134
        %1509 = vmatpush.bf16.msra.mxu0 %v1130
        %1510 = vmatpush.bf16.msra.mxu0 %v1126
        %1511 = vmatpush.bf16.msra.mxu0 %v1122
        %1512 = vmatpush.bf16.msra.mxu0 %v1118
        %1513 = vmatmul.bf16.gmra.mxu0 %v987
        %v1514 = vpop.f32.mrf.mxu0
        %v1515 = vadd.f32 %v1424, %v1514
        %v1516 = vpop.f32.mrf.mxu0
        %1517 = vdwg.mxu0
        %1518 = vmatpush.bf16.msra.mxu0 %v1178
        %1519 = vmatpush.bf16.msra.mxu0 %v1174
        %1520 = vmatpush.bf16.msra.mxu0 %v1170
        %1521 = vmatpush.bf16.msra.mxu0 %v1166
        %1522 = vmatpush.bf16.msra.mxu0 %v1162
        %1523 = vmatpush.bf16.msra.mxu0 %v1158
        %1524 = vmatpush.bf16.msra.mxu0 %v1154
        %1525 = vmatpush.bf16.msra.mxu0 %v1150
        %1526 = vmatmul.bf16.gmra.mxu0 %v988
        %v1527 = vpop.f32.mrf.mxu0
        %v1528 = vadd.f32 %v1515, %v1527
        %v1529 = vpop.f32.mrf.mxu0
        %1530 = vdwg.mxu0
        %1531 = vmatpush.bf16.msra.mxu0 %v1147
        %1532 = vmatpush.bf16.msra.mxu0 %v1143
        %1533 = vmatpush.bf16.msra.mxu0 %v1139
        %1534 = vmatpush.bf16.msra.mxu0 %v1135
        %1535 = vmatpush.bf16.msra.mxu0 %v1131
        %1536 = vmatpush.bf16.msra.mxu0 %v1127
        %1537 = vmatpush.bf16.msra.mxu0 %v1123
        %1538 = vmatpush.bf16.msra.mxu0 %v1119
        %1539 = vmatmul.bf16.gmra.mxu0 %v987
        %v1540 = vpop.f32.mrf.mxu0
        %v1541 = vadd.f32 %v1450, %v1540
        %v1542 = vpop.f32.mrf.mxu0
        %1543 = vdwg.mxu0
        %1544 = vmatpush.bf16.msra.mxu0 %v1179
        %1545 = vmatpush.bf16.msra.mxu0 %v1175
        %1546 = vmatpush.bf16.msra.mxu0 %v1171
        %1547 = vmatpush.bf16.msra.mxu0 %v1167
        %1548 = vmatpush.bf16.msra.mxu0 %v1163
        %1549 = vmatpush.bf16.msra.mxu0 %v1159
        %1550 = vmatpush.bf16.msra.mxu0 %v1155
        %1551 = vmatpush.bf16.msra.mxu0 %v1151
        %1552 = vmatmul.bf16.gmra.mxu0 %v988
        %v1553 = vpop.f32.mrf.mxu0
        %v1554 = vadd.f32 %v1541, %v1553
        %v1555 = vpop.f32.mrf.mxu0
        %1556 = vdwg.mxu0
        %1557 = vmatpush.bf16.msra.mxu0 %v1148
        %1558 = vmatpush.bf16.msra.mxu0 %v1144
        %1559 = vmatpush.bf16.msra.mxu0 %v1140
        %1560 = vmatpush.bf16.msra.mxu0 %v1136
        %1561 = vmatpush.bf16.msra.mxu0 %v1132
        %1562 = vmatpush.bf16.msra.mxu0 %v1128
        %1563 = vmatpush.bf16.msra.mxu0 %v1124
        %1564 = vmatpush.bf16.msra.mxu0 %v1120
        %1565 = vmatmul.bf16.gmra.mxu0 %v987
        %v1566 = vpop.f32.mrf.mxu0
        %v1567 = vadd.f32 %v1476, %v1566
        %v1568 = vpop.f32.mrf.mxu0
        %1569 = vdwg.mxu0
        %1570 = vmatpush.bf16.msra.mxu0 %v1180
        %1571 = vmatpush.bf16.msra.mxu0 %v1176
        %1572 = vmatpush.bf16.msra.mxu0 %v1172
        %1573 = vmatpush.bf16.msra.mxu0 %v1168
        %1574 = vmatpush.bf16.msra.mxu0 %v1164
        %1575 = vmatpush.bf16.msra.mxu0 %v1160
        %1576 = vmatpush.bf16.msra.mxu0 %v1156
        %1577 = vmatpush.bf16.msra.mxu0 %v1152
        %1578 = vmatmul.bf16.gmra.mxu0 %v988
        %v1579 = vpop.f32.mrf.mxu0
        %v1580 = vadd.f32 %v1567, %v1579
        %v1581 = vpop.f32.mrf.mxu0
        %1582 = vdwg.mxu0
        %v1583 = vld [vmem:[%s8] sm:$0xf]
        %v1585 = vperm.slane %v1583, 0
        %v1586 = vperm.slane %v1583, 1
        %v1587 = vperm.slane %v1583, 2
        %v1588 = vperm.slane %v1583, 3
        %v1593 = vmul.f32 %v1502, %v1585
        %v1594 = vmul.f32 %v1528, %v1586
        %v1595 = vmul.f32 %v1554, %v1587
        %v1596 = vmul.f32 %v1580, %v1588
        %v1597 = vld [vmem:[%s9] sm:$0xf]
        %v1599 = vperm.slane %v1597, 0
        %v1600 = vperm.slane %v1597, 1
        %v1601 = vperm.slane %v1597, 2
        %v1602 = vperm.slane %v1597, 3
        %v1607 = vadd.f32 %v1593, %v1599
        %v1608 = vadd.f32 %v1594, %v1600
        %v1609 = vadd.f32 %v1595, %v1601
        %v1610 = vadd.f32 %v1596, %v1602
        %v1611 = vmul.f32 %v1607, 0.5
        %v1612 = vmul.f32 %v1608, 0.5
        %v1613 = vmul.f32 %v1609, 0.5
        %v1614 = vmul.f32 %v1610, 0.5
        %v1615 = vmul.f32 %v1607, 0.044715
        %v1616 = vmul.f32 %v1608, 0.044715
        %v1617 = vmul.f32 %v1609, 0.044715
        %v1618 = vmul.f32 %v1610, 0.044715
        %v1619 = vmul.f32 %v1615, %v1607
        %v1620 = vmul.f32 %v1616, %v1608
        %v1621 = vmul.f32 %v1617, %v1609
        %v1622 = vmul.f32 %v1618, %v1610
        %v1623 = vmul.f32 %v1619, %v1607
        %v1624 = vmul.f32 %v1620, %v1608
        %v1625 = vmul.f32 %v1621, %v1609
        %v1626 = vmul.f32 %v1622, %v1610
        %v1627 = vadd.f32 %v1607, %v1623
        %v1628 = vadd.f32 %v1608, %v1624
        %v1629 = vadd.f32 %v1609, %v1625
        %v1630 = vadd.f32 %v1610, %v1626
        %v1631 = vmul.f32 %v1627, 0.7978846
        %v1632 = vmul.f32 %v1628, 0.7978846
        %v1633 = vmul.f32 %v1629, 0.7978846
        %v1634 = vmul.f32 %v1630, 0.7978846
        %v1635 = vtanh.pop %v1631
        %v1636 = vtanh.pop %v1632
        %v1637 = vtanh.pop %v1633
        %v1638 = vtanh.pop %v1634
        %v1639 = vadd.f32 %v1635, 1.0
        %v1640 = vadd.f32 %v1636, 1.0
        %v1641 = vadd.f32 %v1637, 1.0
        %v1642 = vadd.f32 %v1638, 1.0
        %v1643 = vmul.f32 %v1611, %v1639
        %v1644 = vmul.f32 %v1612, %v1640
        %v1645 = vmul.f32 %v1613, %v1641
        %v1646 = vmul.f32 %v1614, %v1642
        %1647 = vst [vmem:[%s462] sm:$0xff] %v1643
        %1648 = vst [vmem:[%s462 + $0x8] sm:$0xff] %v1644
        %1649 = vst [vmem:[%s462 + $0x10] sm:$0xff] %v1645
        %1650 = vst [vmem:[%s462 + $0x18] sm:$0xff] %v1646
      $region80: #{model_forward.13} parent=59 // pred_fallthru
        _
      %p1651 = scmp.lt.s32.totalorder %s26, 1
      %s1652 = scalar_select %p1651, %s26, 1
      %s1653 = smul.addr %s1652, 4
      %s1654 = smul.addr %s1653, 8
      %s1655 = scalar_lea.vmem %s10, %s1654
      // Predicated region
      $region81: #{model_forward.13} parent=59 // pred_check
        %p1656 = pneg %p292
      $region82: #{model_forward.13} parent=59 // pred_check_branch
        %1658 = sbr.rel (%p1656) target = $region84
      $region83: #{model_forward.13} parent=59 // pred_region
        _
      $region84: #{model_forward.13} parent=59 // pred_fallthru
        _
    $region60: #{model_forward.13} parent=5 // pred_fallthru
      _
    %p1659 = scmp.le.s32.totalorder 2, %s16
    // Predicated region
    $region85: #{model_forward.13} parent=5 // pred_check
      %p1660 = pneg %p1659
    $region86: #{model_forward.13} parent=5 // pred_check_branch
      %1662 = sbr.rel (%p1660) target = $region88
    $region87: #{model_forward.13} parent=5 // pred_region
      %s1663 = ssub.s32 %s16, 2
      // Predicated region
      $region89: #{model_forward.13} parent=87 // pred_check
        %p1664 = pneg %p298
      $region90: #{model_forward.13} parent=87 // pred_check_branch
        %1666 = sbr.rel (%p1664) target = $region92
      $region91: #{model_forward.13} parent=87 // pred_region
        %p1667 = scmp.lt.s32.totalorder %s29, 1
        %s1668 = scalar_select %p1667, %s29, 1
        %s1669 = smul.addr %s1668, 4
        %s1670 = smul.addr %s1669, 8
        %s1671 = scalar_lea.vmem %s10, %s1670
      $region92: #{model_forward.13} parent=87 // pred_fallthru
        _
    $region88: #{model_forward.13} parent=5 // pred_fallthru
      _
  $region6: #{model_forward.13} parent=0 // loop_footer
    %s20 = sadd.s32 1, %s16
  $region7: #{model_forward.13} parent=0 // loop_footer_branch
    %15 = sbr.rel target = $region3
  $region8: #{model_forward.13} parent=0 // loop_exit
    _

</llo_original>
